<compile_context>
chip_gen: v7x
topology: tpu7x:2x2x1
jax: 0.10.0
libtpu: 0.0.40
codegen_flags: <defaults>
</compile_context>

<pallas_src>
import jax
import jax.numpy as jnp
import numpy as np
from jax.experimental import pallas as pl
from jax.experimental.pallas import tpu as pltpu

EPS = 1e-5


def adversary_kernel(mx_ref, av_ref, w1_ref, c1_ref, w2_ref, c2_ref, o_ref):
    # Folded Linear(4096, 512) on concat([max, avg]):
    #   concat([mx, av]) @ w1'  ==  mx @ w1'[:C]  +  av @ w1'[C:]
    C = w1_ref.shape[0] // 2
    acc = jnp.dot(mx_ref[...], w1_ref[pl.ds(0, C), :],
                  preferred_element_type=jnp.float32)            # (N, 512) f32
    acc = acc + jnp.dot(av_ref[...], w1_ref[pl.ds(C, C), :],
                        preferred_element_type=jnp.float32)

    # Folded-BN1 bias + ReLU, then folded-BN2 Linear(512 -> 4) + bias.
    h = jnp.maximum(acc + c1_ref[...], 0.0)                      # (N, 512)
    o = jnp.dot(h, w2_ref[...], preferred_element_type=jnp.float32) + c2_ref[...]
    o_ref[...] = o.astype(o_ref.dtype)


def fold_bn_into_linear(params):
    """Eval-mode BN followed by Linear:  ((x - m) * g * rsqrt(v+eps) + b) @ W + c
       ==  x @ W' + c'  with  s = g*rsqrt(v+eps),  W' = diag(s) @ W,
       c' = c + (b - m*s) @ W."""
    (g1, b1, m1, v1, w1, c1, g2, b2, m2, v2, w2, c2) = params
    s1 = g1 * jax.lax.rsqrt(v1 + EPS)                        # (1, 4096)
    w1f = (w1 * s1.reshape(-1, 1)).astype(jnp.bfloat16)      # (4096, 512) bf16 stream
    c1f = c1 + (b1 - m1 * s1) @ w1                           # (1, 512)    f32
    s2 = g2 * jax.lax.rsqrt(v2 + EPS)                        # (1, 512)
    w2f = w2 * s2.reshape(-1, 1)                             # (512, 4)    f32 (tiny)
    c2f = c2 + (b2 - m2 * s2) @ w2                           # (1, 4)
    return w1f, c1f, w2f, c2f


def adversary_forward(x_nchw, params):
    N, C, H, W = x_nchw.shape
    xf = x_nchw.reshape(N, C, H * W)

    # AdaptiveMaxPool2d(1) / AdaptiveAvgPool2d(1) in the wrapper: XLA fuses the
    # reduction with the producer (no transpose HLO, no feature-map round trip).
    # Mean is computed in f32, then both pooled tensors are cast to bf16 to match
    # the bf16 w1' MXU pass (f32 accumulate in the kernel).
    mx = jnp.max(xf, axis=-1).astype(jnp.bfloat16)           # (N, C) lane-dense
    av = jnp.mean(xf, axis=-1).astype(jnp.bfloat16)          # (N, C) lane-dense

    w1f, c1f, w2f, c2f = fold_bn_into_linear(params)
    F1 = w1f.shape[1]          # 512
    F2 = w2f.shape[1]          # 4

    return pl.pallas_call(
        adversary_kernel,
        out_shape=jax.ShapeDtypeStruct((N, F2), jnp.float32),
        grid_spec=pltpu.PrefetchScalarGridSpec(
            num_scalar_prefetch=0,
            grid=(1,),                                             # single step
            in_specs=[
                pl.BlockSpec((N, C), lambda i: (0, 0)),            # max-pooled (bf16)
                pl.BlockSpec((N, C), lambda i: (0, 0)),            # avg-pooled (bf16)
                pl.BlockSpec((2 * C, F1), lambda i: (0, 0)),       # folded w1' (bf16)
                pl.BlockSpec((1, F1), lambda i: (0, 0)),           # folded bias1
                pl.BlockSpec((F1, F2), lambda i: (0, 0)),          # folded w2'
                pl.BlockSpec((1, F2), lambda i: (0, 0)),           # folded bias2
            ],
            out_specs=pl.BlockSpec((N, F2), lambda i: (0, 0)),
        ),
        compiler_params=pltpu.CompilerParams(
            dimension_semantics=("arbitrary",),
            vmem_limit_bytes=32 * 1024 * 1024,
        ),
    )(mx, av, w1f, c1f, w2f, c2f)


def reference_forward(x_nchw, params):
    # Faithful (unfolded, f32) eval-mode reference of the PyTorch module.
    (g1, b1, m1, v1, w1, c1, g2, b2, m2, v2, w2, c2) = params
    N, C, H, W = x_nchw.shape
    xf = x_nchw.reshape(N, C, H * W)
    f = jnp.concatenate([jnp.max(xf, axis=-1), jnp.mean(xf, axis=-1)], axis=1)
    h = (f - m1) * jax.lax.rsqrt(v1 + EPS) * g1 + b1
    h = jnp.maximum(h @ w1 + c1, 0.0)
    h = (h - m2) * jax.lax.rsqrt(v2 + EPS) * g2 + b2
    return h @ w2 + c2


def init_params(key):
    ks = jax.random.split(key, 8)

    # BatchNorm1d(4096): gamma/beta/running_mean/running_var  (kept 2D: (1, F))
    g1 = jnp.ones((1, 4096), jnp.float32)
    b1 = jnp.zeros((1, 4096), jnp.float32)
    m1 = jax.random.normal(ks[0], (1, 4096), jnp.float32) * 0.1
    v1 = jnp.abs(jax.random.normal(ks[1], (1, 4096), jnp.float32)) * 0.5 + 0.5

    # Linear(4096, 512): torch weight is (out, in); store transposed for x @ W
    bound1 = 1.0 / np.sqrt(4096.0)
    w1 = jax.random.uniform(ks[2], (4096, 512), jnp.float32, -bound1, bound1)
    c1 = jax.random.uniform(ks[3], (1, 512), jnp.float32, -bound1, bound1)

    # BatchNorm1d(512)
    g2 = jnp.ones((1, 512), jnp.float32)
    b2 = jnp.zeros((1, 512), jnp.float32)
    m2 = jax.random.normal(ks[4], (1, 512), jnp.float32) * 0.1
    v2 = jnp.abs(jax.random.normal(ks[5], (1, 512), jnp.float32)) * 0.5 + 0.5

    # Linear(512, 4)
    bound2 = 1.0 / np.sqrt(512.0)
    w2 = jax.random.uniform(ks[6], (512, 4), jnp.float32, -bound2, bound2)
    c2 = jax.random.uniform(ks[7], (1, 4), jnp.float32, -bound2, bound2)

    return (g1, b1, m1, v1, w1, c1, g2, b2, m2, v2, w2, c2)


if __name__ == "__main__":
    key = jax.random.PRNGKey(0)
    k_x, k_p = jax.random.split(key)

    # BatchNorm1d(4096) after AdaptiveConcatPool2d implies 2048 input channels.
    # N can grow to ~128-256 with essentially no added wall clock (weight-bound).
    N, C, H, W = 2, 2048, 4, 4
    x = jax.random.normal(k_x, (N, C, H, W), jnp.float32)
    params = init_params(k_p)

    out = jax.block_until_ready(adversary_forward(x, params))
    ref = jax.block_until_ready(reference_forward(x, params))

    # Tolerance accounts for the bf16 weight/feature stream of the first matmul.
    np.testing.assert_allclose(np.asarray(out), np.asarray(ref), rtol=2e-2, atol=2e-2)

    assert out.shape == (N, 4)
    print("KERNEL_OK")
</pallas_src>

<mosaic_0001>
module attributes {stable_mosaic.version = 11 : i64} {
  func.func @adversary_kernel(%arg0: i32, %arg1: memref<2x2048xbf16, #tpu.memory_space<vmem>>, %arg2: memref<2x2048xbf16, #tpu.memory_space<vmem>>, %arg3: memref<4096x512xbf16, #tpu.memory_space<vmem>>, %arg4: memref<1x512xf32, #tpu.memory_space<vmem>>, %arg5: memref<512x4xf32, #tpu.memory_space<vmem>>, %arg6: memref<1x4xf32, #tpu.memory_space<vmem>>, %arg7: memref<2x4xf32, #tpu.memory_space<vmem>>) attributes {dimension_semantics = [#tpu.dimension_semantics<arbitrary>], iteration_bounds = array<i64: 1>, scalar_prefetch = 0 : i64, scratch_operands = 0 : i64, tpu.core_type = #tpu.core_type<tc>, window_params = [{pipeline_mode = #tpu.pipeline_mode<synchronous>, transform_indices = @transform_0, window_bounds = array<i64: 2, 2048>}, {pipeline_mode = #tpu.pipeline_mode<synchronous>, transform_indices = @transform_1, window_bounds = array<i64: 2, 2048>}, {pipeline_mode = #tpu.pipeline_mode<synchronous>, transform_indices = @transform_2, window_bounds = array<i64: 4096, 512>}, {pipeline_mode = #tpu.pipeline_mode<synchronous>, transform_indices = @transform_3, window_bounds = array<i64: 1, 512>}, {pipeline_mode = #tpu.pipeline_mode<synchronous>, transform_indices = @transform_4, window_bounds = array<i64: 512, 4>}, {pipeline_mode = #tpu.pipeline_mode<synchronous>, transform_indices = @transform_5, window_bounds = array<i64: 1, 4>}, {pipeline_mode = #tpu.pipeline_mode<synchronous>, transform_indices = @transform_6, window_bounds = array<i64: 2, 4>}]} {
    %c0 = arith.constant 0 : index
    %c0_0 = arith.constant 0 : index
    %0 = vector.load %arg1[%c0, %c0_0] : memref<2x2048xbf16, #tpu.memory_space<vmem>>, vector<2x2048xbf16>
    %c0_1 = arith.constant 0 : index
    %c0_2 = arith.constant 0 : index
    %1 = vector.load %arg3[%c0_1, %c0_2] : memref<4096x512xbf16, #tpu.memory_space<vmem>>, vector<2048x512xbf16>
    %cst = arith.constant dense<0.000000e+00> : vector<2x512xf32>
    %2 = tpu.matmul %0, %1, %cst {dimension_numbers = #tpu.dot_dimension_numbers<[1], [0], [0], [1], [0, 0, 1, 1], [], []>} : vector<2x2048xbf16>, vector<2048x512xbf16>, vector<2x512xf32> -> vector<2x512xf32>
    %c0_3 = arith.constant 0 : index
    %c0_4 = arith.constant 0 : index
    %3 = vector.load %arg2[%c0_3, %c0_4] : memref<2x2048xbf16, #tpu.memory_space<vmem>>, vector<2x2048xbf16>
    %c2048 = arith.constant 2048 : index
    %c0_5 = arith.constant 0 : index
    %4 = vector.load %arg3[%c2048, %c0_5] : memref<4096x512xbf16, #tpu.memory_space<vmem>>, vector<2048x512xbf16>
    %cst_6 = arith.constant dense<0.000000e+00> : vector<2x512xf32>
    %5 = tpu.matmul %3, %4, %cst_6 {dimension_numbers = #tpu.dot_dimension_numbers<[1], [0], [0], [1], [0, 0, 1, 1], [], []>} : vector<2x2048xbf16>, vector<2048x512xbf16>, vector<2x512xf32> -> vector<2x512xf32>
    %6 = arith.addf %2, %5 : vector<2x512xf32>
    %c0_7 = arith.constant 0 : index
    %c0_8 = arith.constant 0 : index
    %7 = vector.load %arg4[%c0_7, %c0_8] : memref<1x512xf32, #tpu.memory_space<vmem>>, vector<1x512xf32>
    %8 = vector.broadcast %7 : vector<1x512xf32> to vector<2x512xf32>
    %9 = arith.addf %6, %8 : vector<2x512xf32>
    %cst_9 = arith.constant 0.000000e+00 : f32
    %10 = vector.broadcast %cst_9 : f32 to vector<2x512xf32>
    %11 = arith.maximumf %9, %10 : vector<2x512xf32>
    %c0_10 = arith.constant 0 : index
    %c0_11 = arith.constant 0 : index
    %12 = vector.load %arg5[%c0_10, %c0_11] : memref<512x4xf32, #tpu.memory_space<vmem>>, vector<512x4xf32>
    %cst_12 = arith.constant dense<0.000000e+00> : vector<2x4xf32>
    %13 = tpu.matmul %11, %12, %cst_12 {dimension_numbers = #tpu.dot_dimension_numbers<[1], [0], [0], [1], [0, 0, 1, 1], [], []>} : vector<2x512xf32>, vector<512x4xf32>, vector<2x4xf32> -> vector<2x4xf32>
    %c0_13 = arith.constant 0 : index
    %c0_14 = arith.constant 0 : index
    %14 = vector.load %arg6[%c0_13, %c0_14] : memref<1x4xf32, #tpu.memory_space<vmem>>, vector<1x4xf32>
    %15 = vector.broadcast %14 : vector<1x4xf32> to vector<2x4xf32>
    %16 = arith.addf %13, %15 : vector<2x4xf32>
    %c0_15 = arith.constant 0 : index
    %c0_16 = arith.constant 0 : index
    %17 = vector.load %arg7[%c0_15, %c0_16] : memref<2x4xf32, #tpu.memory_space<vmem>>, vector<2x4xf32>
    tpu.vector_store %arg7[%c0_15, %c0_16], %16 {strides = array<i32>} : memref<2x4xf32, #tpu.memory_space<vmem>>, vector<2x4xf32>,
    return
  }
  func.func @transform_0(%arg0: i32) -> (i32, i32) {
    %c0_i32 = arith.constant 0 : i32
    %c0_i32_0 = arith.constant 0 : i32
    %c0_i32_1 = arith.constant 0 : i32
    return %c0_i32, %c0_i32_0 : i32, i32
  }
  func.func @transform_1(%arg0: i32) -> (i32, i32) {
    %c0_i32 = arith.constant 0 : i32
    %c0_i32_0 = arith.constant 0 : i32
    %c0_i32_1 = arith.constant 0 : i32
    return %c0_i32, %c0_i32_0 : i32, i32
  }
  func.func @transform_2(%arg0: i32) -> (i32, i32) {
    %c0_i32 = arith.constant 0 : i32
    %c0_i32_0 = arith.constant 0 : i32
    %c0_i32_1 = arith.constant 0 : i32
    return %c0_i32, %c0_i32_0 : i32, i32
  }
  func.func @transform_3(%arg0: i32) -> (i32, i32) {
    %c0_i32 = arith.constant 0 : i32
    %c0_i32_0 = arith.constant 0 : i32
    %c0_i32_1 = arith.constant 0 : i32
    return %c0_i32, %c0_i32_0 : i32, i32
  }
  func.func @transform_4(%arg0: i32) -> (i32, i32) {
    %c0_i32 = arith.constant 0 : i32
    %c0_i32_0 = arith.constant 0 : i32
    %c0_i32_1 = arith.constant 0 : i32
    return %c0_i32, %c0_i32_0 : i32, i32
  }
  func.func @transform_5(%arg0: i32) -> (i32, i32) {
    %c0_i32 = arith.constant 0 : i32
    %c0_i32_0 = arith.constant 0 : i32
    %c0_i32_1 = arith.constant 0 : i32
    return %c0_i32, %c0_i32_0 : i32, i32
  }
  func.func @transform_6(%arg0: i32) -> (i32, i32) {
    %c0_i32 = arith.constant 0 : i32
    %c0_i32_0 = arith.constant 0 : i32
    %c0_i32_1 = arith.constant 0 : i32
    return %c0_i32, %c0_i32_0 : i32, i32
  }
}

</mosaic_0001>

<llo_original>
// kernel: tpu_custom_call.1
$region0: #{tpu_custom_call.1}
  #allocation0 [shape = 'u32[]', space=smem, size = 0x4, offset = 0x4, fixed_abs, tag = 'smem constant byte address 0x4 - core index']
  #allocation1 [shape = 'u32[144,128]{1,0:T(1,128)}', space=vmem, size = 0x12000, scoped, tag = 'internal scratch']
  %s0 = inlined_call_operand.hbm [shape: bf16[2,2048], index: 0, kind: input, shape index: {}]
  %s1 = inlined_call_operand.hbm [shape: bf16[2,2048], index: 1, kind: input, shape index: {}]
  %s2 = inlined_call_operand.hbm [shape: bf16[4096,512], index: 2, kind: input, shape index: {}]
  %s3 = inlined_call_operand.hbm [shape: f32[1,512], index: 3, kind: input, shape index: {}]
  %s4 = inlined_call_operand.vmem [shape: f32[512,4], index: 4, kind: input, shape index: {}]
  %s5 = inlined_call_operand.hbm [shape: f32[1,4], index: 5, kind: input, shape index: {}]
  %s6 = inlined_call_operand.hbm [shape: f32[2,4], index: 6, kind: output, shape index: {}]
  %s7 = sld [smem:[#allocation0]]
  $region54: #{tpu_custom_call.1} parent=0
    _
  %s9 = ssub.s32 1, %s7
  %s10 = scalar_select 0, %s9, %s7
  $region1: #{tpu_custom_call.1} parent=0
    #allocation2 [shape = 'u8[8192]{0}', space=vmem, size = 0x2000, scoped, tag = 'input window, operand 0, single buffered']
    #allocation3 [shape = 's32[1]{0}', space=sflag, size = 0x4, scoped, tag = 'scoped memory for tpu_custom_call.1']
    #allocation4 [shape = 's32[1]{0}', space=sflag, size = 0x4, scoped, tag = 'scoped memory for tpu_custom_call.1']
    #allocation5 [shape = 'u8[8192]{0}', space=vmem, size = 0x2000, scoped, tag = 'input window, operand 1, single buffered']
    #allocation6 [shape = 's32[1]{0}', space=sflag, size = 0x4, scoped, tag = 'scoped memory for tpu_custom_call.1']
    #allocation7 [shape = 'u8[4194304]{0}', space=vmem, size = 0x400000, scoped, tag = 'input window, operand 2, single buffered']
    #allocation8 [shape = 'u8[2048]{0}', space=vmem, size = 0x800, scoped, tag = 'input window, operand 3, single buffered']
    #allocation9 [shape = 's32[1]{0}', space=sflag, size = 0x4, scoped, tag = 'scoped memory for tpu_custom_call.1']
    #allocation10 [shape = 'u8[512]{0}', space=vmem, size = 0x400, scoped, tag = 'input window, operand 5, single buffered']
    #allocation11 [shape = 'u8[1024]{0}', space=vmem, size = 0x400, scoped, tag = 'output window, operand 0, single buffered']
    %11 = vsyncpa [#allocation3], 0
    %12 = vsyncpa [#allocation6], 0
    %13 = vsyncpa [#allocation9], 0
    %14 = vsyncpa [#allocation4], 0
    // Predicated region
    $region2: #{tpu_custom_call.1} parent=1 // pred_check
      _
    $region3: #{tpu_custom_call.1} parent=1 // pred_check_branch
      %16 = sbr.rel (0) target = $region5
    $region4: #{tpu_custom_call.1} parent=1 // pred_region
      %s18 = ssub.s32 256, 256
      %19 = vsyncadd [#allocation3], %s18
      %s21 = sshll.u32 [#allocation2], 4
      %s22 = int_to_ptr.vmem [resolvable:$true] %s21
      %24 = dma.hbm_to_vmem [thread:$0]  %s0, 256, %s22, [#allocation3]
    $region5: #{tpu_custom_call.1} parent=1 // pred_fallthru
      _
    // Predicated region
    $region6: #{tpu_custom_call.1} parent=1 // pred_check
      _
    $region7: #{tpu_custom_call.1} parent=1 // pred_check_branch
      %26 = sbr.rel (0) target = $region9
    $region8: #{tpu_custom_call.1} parent=1 // pred_region
      %s28 = ssub.s32 256, 256
      %29 = vsyncadd [#allocation6], %s28
      %s31 = sshll.u32 [#allocation5], 4
      %s32 = int_to_ptr.vmem [resolvable:$true] %s31
      %34 = dma.hbm_to_vmem [thread:$0]  %s1, 256, %s32, [#allocation6]
    $region9: #{tpu_custom_call.1} parent=1 // pred_fallthru
      _
    // Predicated region
    $region10: #{tpu_custom_call.1} parent=1 // pred_check
      _
    $region11: #{tpu_custom_call.1} parent=1 // pred_check_branch
      %36 = sbr.rel (0) target = $region13
    $region12: #{tpu_custom_call.1} parent=1 // pred_region
      %s38 = ssub.s32 131072, 131072
      %39 = vsyncadd [#allocation6], %s38
      %s40 = sshll.u32 [#allocation7], 4
      %s41 = int_to_ptr.vmem [resolvable:$true] %s40
      %46 = dma.hbm_to_vmem [thread:$0]  %s2, 131072, %s41, [#allocation6], 256, 256, 16
    $region13: #{tpu_custom_call.1} parent=1 // pred_fallthru
      _
    // Predicated region
    $region14: #{tpu_custom_call.1} parent=1 // pred_check
      _
    $region15: #{tpu_custom_call.1} parent=1 // pred_check_branch
      %48 = sbr.rel (0) target = $region17
    $region16: #{tpu_custom_call.1} parent=1 // pred_region
      %s50 = ssub.s32 64, 64
      %51 = vsyncadd [#allocation9], %s50
      %s53 = sshll.u32 [#allocation8], 4
      %s54 = int_to_ptr.vmem [resolvable:$true] %s53
      %56 = dma.hbm_to_vmem [thread:$0]  %s3, 64, %s54, [#allocation9]
    $region17: #{tpu_custom_call.1} parent=1 // pred_fallthru
      _
    // Predicated region
    $region18: #{tpu_custom_call.1} parent=1 // pred_check
      _
    $region19: #{tpu_custom_call.1} parent=1 // pred_check_branch
      %58 = sbr.rel (0) target = $region21
    $region20: #{tpu_custom_call.1} parent=1 // pred_region
      _
    $region21: #{tpu_custom_call.1} parent=1 // pred_fallthru
      _
    // Predicated region
    $region22: #{tpu_custom_call.1} parent=1 // pred_check
      _
    $region23: #{tpu_custom_call.1} parent=1 // pred_check_branch
      %60 = sbr.rel (0) target = $region25
    $region24: #{tpu_custom_call.1} parent=1 // pred_region
      %s62 = ssub.s32 16, 16
      %63 = vsyncadd [#allocation9], %s62
      %s65 = sshll.u32 [#allocation10], 4
      %s66 = int_to_ptr.vmem [resolvable:$true] %s65
      %68 = dma.hbm_to_vmem [thread:$0]  %s5, 16, %s66, [#allocation9]
    $region25: #{tpu_custom_call.1} parent=1 // pred_fallthru
      _
    // Predicated region
    $region26: #{tpu_custom_call.1} parent=1 // pred_check
      _
    $region27: #{tpu_custom_call.1} parent=1 // pred_check_branch
      %70 = sbr.rel (0) target = $region29
    $region28: #{tpu_custom_call.1} parent=1 // pred_region
      %71 = dma.done [#allocation3], 256
    $region29: #{tpu_custom_call.1} parent=1 // pred_fallthru
      _
    // Predicated region
    $region30: #{tpu_custom_call.1} parent=1 // pred_check
      _
    $region31: #{tpu_custom_call.1} parent=1 // pred_check_branch
      %73 = sbr.rel (0) target = $region33
    $region32: #{tpu_custom_call.1} parent=1 // pred_region
      %74 = dma.done [#allocation6], 256
    $region33: #{tpu_custom_call.1} parent=1 // pred_fallthru
      _
    // Predicated region
    $region34: #{tpu_custom_call.1} parent=1 // pred_check
      _
    $region35: #{tpu_custom_call.1} parent=1 // pred_check_branch
      %76 = sbr.rel (0) target = $region37
    $region36: #{tpu_custom_call.1} parent=1 // pred_region
      %77 = dma.done [#allocation6], 131072
    $region37: #{tpu_custom_call.1} parent=1 // pred_fallthru
      _
    // Predicated region
    $region38: #{tpu_custom_call.1} parent=1 // pred_check
      _
    $region39: #{tpu_custom_call.1} parent=1 // pred_check_branch
      %79 = sbr.rel (0) target = $region41
    $region40: #{tpu_custom_call.1} parent=1 // pred_region
      %80 = dma.done [#allocation9], 64
    $region41: #{tpu_custom_call.1} parent=1 // pred_fallthru
      _
    // Predicated region
    $region42: #{tpu_custom_call.1} parent=1 // pred_check
      _
    $region43: #{tpu_custom_call.1} parent=1 // pred_check_branch
      %82 = sbr.rel (0) target = $region45
    $region44: #{tpu_custom_call.1} parent=1 // pred_region
      %83 = dma.done [#allocation9], 16
    $region45: #{tpu_custom_call.1} parent=1 // pred_fallthru
      _
    %v84 = vld [vmem:[#allocation2] sm:$0xff]
    %v85 = vld [vmem:[#allocation2 + $0x8] sm:$0xff]
    %v86 = vld [vmem:[#allocation7] sm:$0xff]
    %v87 = vld [vmem:[#allocation7 + $0x8] sm:$0xff]
    %v88 = vld [vmem:[#allocation7 + $0x10] sm:$0xff]
    %v89 = vld [vmem:[#allocation7 + $0x18] sm:$0xff]
    %v90 = vld [vmem:[#allocation7 + $0x20] sm:$0xff]
    %v91 = vld [vmem:[#allocation7 + $0x28] sm:$0xff]
    %v92 = vld [vmem:[#allocation7 + $0x30] sm:$0xff]
    %v93 = vld [vmem:[#allocation7 + $0x38] sm:$0xff]
    %v94 = vld [vmem:[#allocation7 + $0x40] sm:$0xff]
    %v95 = vld [vmem:[#allocation7 + $0x48] sm:$0xff]
    %v96 = vld [vmem:[#allocation7 + $0x50] sm:$0xff]
    %v97 = vld [vmem:[#allocation7 + $0x58] sm:$0xff]
    %v98 = vld [vmem:[#allocation7 + $0x60] sm:$0xff]
    %v99 = vld [vmem:[#allocation7 + $0x68] sm:$0xff]
    %v100 = vld [vmem:[#allocation7 + $0x70] sm:$0xff]
    %v101 = vld [vmem:[#allocation7 + $0x78] sm:$0xff]
    %v102 = vld [vmem:[#allocation7 + $0x80] sm:$0xff]
    %v103 = vld [vmem:[#allocation7 + $0x88] sm:$0xff]
    %v104 = vld [vmem:[#allocation7 + $0x90] sm:$0xff]
    %v105 = vld [vmem:[#allocation7 + $0x98] sm:$0xff]
    %v106 = vld [vmem:[#allocation7 + $0xa0] sm:$0xff]
    %v107 = vld [vmem:[#allocation7 + $0xa8] sm:$0xff]
    %v108 = vld [vmem:[#allocation7 + $0xb0] sm:$0xff]
    %v109 = vld [vmem:[#allocation7 + $0xb8] sm:$0xff]
    %v110 = vld [vmem:[#allocation7 + $0xc0] sm:$0xff]
    %v111 = vld [vmem:[#allocation7 + $0xc8] sm:$0xff]
    %v112 = vld [vmem:[#allocation7 + $0xd0] sm:$0xff]
    %v113 = vld [vmem:[#allocation7 + $0xd8] sm:$0xff]
    %v114 = vld [vmem:[#allocation7 + $0xe0] sm:$0xff]
    %v115 = vld [vmem:[#allocation7 + $0xe8] sm:$0xff]
    %v116 = vld [vmem:[#allocation7 + $0xf0] sm:$0xff]
    %v117 = vld [vmem:[#allocation7 + $0xf8] sm:$0xff]
    %v118 = vld [vmem:[#allocation7 + $0x100] sm:$0xff]
    %v119 = vld [vmem:[#allocation7 + $0x108] sm:$0xff]
    %v120 = vld [vmem:[#allocation7 + $0x110] sm:$0xff]
    %v121 = vld [vmem:[#allocation7 + $0x118] sm:$0xff]
    %v122 = vld [vmem:[#allocation7 + $0x120] sm:$0xff]
    %v123 = vld [vmem:[#allocation7 + $0x128] sm:$0xff]
    %v124 = vld [vmem:[#allocation7 + $0x130] sm:$0xff]
    %v125 = vld [vmem:[#allocation7 + $0x138] sm:$0xff]
    %v126 = vld [vmem:[#allocation7 + $0x140] sm:$0xff]
    %v127 = vld [vmem:[#allocation7 + $0x148] sm:$0xff]
    %v128 = vld [vmem:[#allocation7 + $0x150] sm:$0xff]
    %v129 = vld [vmem:[#allocation7 + $0x158] sm:$0xff]
    %v130 = vld [vmem:[#allocation7 + $0x160] sm:$0xff]
    %v131 = vld [vmem:[#allocation7 + $0x168] sm:$0xff]
    %v132 = vld [vmem:[#allocation7 + $0x170] sm:$0xff]
    %v133 = vld [vmem:[#allocation7 + $0x178] sm:$0xff]
    %v134 = vld [vmem:[#allocation7 + $0x180] sm:$0xff]
    %v135 = vld [vmem:[#allocation7 + $0x188] sm:$0xff]
    %v136 = vld [vmem:[#allocation7 + $0x190] sm:$0xff]
    %v137 = vld [vmem:[#allocation7 + $0x198] sm:$0xff]
    %v138 = vld [vmem:[#allocation7 + $0x1a0] sm:$0xff]
    %v139 = vld [vmem:[#allocation7 + $0x1a8] sm:$0xff]
    %v140 = vld [vmem:[#allocation7 + $0x1b0] sm:$0xff]
    %v141 = vld [vmem:[#allocation7 + $0x1b8] sm:$0xff]
    %v142 = vld [vmem:[#allocation7 + $0x1c0] sm:$0xff]
    %v143 = vld [vmem:[#allocation7 + $0x1c8] sm:$0xff]
    %v144 = vld [vmem:[#allocation7 + $0x1d0] sm:$0xff]
    %v145 = vld [vmem:[#allocation7 + $0x1d8] sm:$0xff]
    %v146 = vld [vmem:[#allocation7 + $0x1e0] sm:$0xff]
    %v147 = vld [vmem:[#allocation7 + $0x1e8] sm:$0xff]
    %v148 = vld [vmem:[#allocation7 + $0x1f0] sm:$0xff]
    %v149 = vld [vmem:[#allocation7 + $0x1f8] sm:$0xff]
    %v150 = vld [vmem:[#allocation7 + $0x200] sm:$0xff]
    %v151 = vld [vmem:[#allocation7 + $0x208] sm:$0xff]
    %v152 = vld [vmem:[#allocation7 + $0x210] sm:$0xff]
    %v153 = vld [vmem:[#allocation7 + $0x218] sm:$0xff]
    %v154 = vld [vmem:[#allocation7 + $0x220] sm:$0xff]
    %v155 = vld [vmem:[#allocation7 + $0x228] sm:$0xff]
    %v156 = vld [vmem:[#allocation7 + $0x230] sm:$0xff]
    %v157 = vld [vmem:[#allocation7 + $0x238] sm:$0xff]
    %v158 = vld [vmem:[#allocation7 + $0x240] sm:$0xff]
    %v159 = vld [vmem:[#allocation7 + $0x248] sm:$0xff]
    %v160 = vld [vmem:[#allocation7 + $0x250] sm:$0xff]
    %v161 = vld [vmem:[#allocation7 + $0x258] sm:$0xff]
    %v162 = vld [vmem:[#allocation7 + $0x260] sm:$0xff]
    %v163 = vld [vmem:[#allocation7 + $0x268] sm:$0xff]
    %v164 = vld [vmem:[#allocation7 + $0x270] sm:$0xff]
    %v165 = vld [vmem:[#allocation7 + $0x278] sm:$0xff]
    %v166 = vld [vmem:[#allocation7 + $0x280] sm:$0xff]
    %v167 = vld [vmem:[#allocation7 + $0x288] sm:$0xff]
    %v168 = vld [vmem:[#allocation7 + $0x290] sm:$0xff]
    %v169 = vld [vmem:[#allocation7 + $0x298] sm:$0xff]
    %v170 = vld [vmem:[#allocation7 + $0x2a0] sm:$0xff]
    %v171 = vld [vmem:[#allocation7 + $0x2a8] sm:$0xff]
    %v172 = vld [vmem:[#allocation7 + $0x2b0] sm:$0xff]
    %v173 = vld [vmem:[#allocation7 + $0x2b8] sm:$0xff]
    %v174 = vld [vmem:[#allocation7 + $0x2c0] sm:$0xff]
    %v175 = vld [vmem:[#allocation7 + $0x2c8] sm:$0xff]
    %v176 = vld [vmem:[#allocation7 + $0x2d0] sm:$0xff]
    %v177 = vld [vmem:[#allocation7 + $0x2d8] sm:$0xff]
    %v178 = vld [vmem:[#allocation7 + $0x2e0] sm:$0xff]
    %v179 = vld [vmem:[#allocation7 + $0x2e8] sm:$0xff]
    %v180 = vld [vmem:[#allocation7 + $0x2f0] sm:$0xff]
    %v181 = vld [vmem:[#allocation7 + $0x2f8] sm:$0xff]
    %v182 = vld [vmem:[#allocation7 + $0x300] sm:$0xff]
    %v183 = vld [vmem:[#allocation7 + $0x308] sm:$0xff]
    %v184 = vld [vmem:[#allocation7 + $0x310] sm:$0xff]
    %v185 = vld [vmem:[#allocation7 + $0x318] sm:$0xff]
    %v186 = vld [vmem:[#allocation7 + $0x320] sm:$0xff]
    %v187 = vld [vmem:[#allocation7 + $0x328] sm:$0xff]
    %v188 = vld [vmem:[#allocation7 + $0x330] sm:$0xff]
    %v189 = vld [vmem:[#allocation7 + $0x338] sm:$0xff]
    %v190 = vld [vmem:[#allocation7 + $0x340] sm:$0xff]
    %v191 = vld [vmem:[#allocation7 + $0x348] sm:$0xff]
    %v192 = vld [vmem:[#allocation7 + $0x350] sm:$0xff]
    %v193 = vld [vmem:[#allocation7 + $0x358] sm:$0xff]
    %v194 = vld [vmem:[#allocation7 + $0x360] sm:$0xff]
    %v195 = vld [vmem:[#allocation7 + $0x368] sm:$0xff]
    %v196 = vld [vmem:[#allocation7 + $0x370] sm:$0xff]
    %v197 = vld [vmem:[#allocation7 + $0x378] sm:$0xff]
    %v198 = vld [vmem:[#allocation7 + $0x380] sm:$0xff]
    %v199 = vld [vmem:[#allocation7 + $0x388] sm:$0xff]
    %v200 = vld [vmem:[#allocation7 + $0x390] sm:$0xff]
    %v201 = vld [vmem:[#allocation7 + $0x398] sm:$0xff]
    %v202 = vld [vmem:[#allocation7 + $0x3a0] sm:$0xff]
    %v203 = vld [vmem:[#allocation7 + $0x3a8] sm:$0xff]
    %v204 = vld [vmem:[#allocation7 + $0x3b0] sm:$0xff]
    %v205 = vld [vmem:[#allocation7 + $0x3b8] sm:$0xff]
    %v206 = vld [vmem:[#allocation7 + $0x3c0] sm:$0xff]
    %v207 = vld [vmem:[#allocation7 + $0x3c8] sm:$0xff]
    %v208 = vld [vmem:[#allocation7 + $0x3d0] sm:$0xff]
    %v209 = vld [vmem:[#allocation7 + $0x3d8] sm:$0xff]
    %v210 = vld [vmem:[#allocation7 + $0x3e0] sm:$0xff]
    %v211 = vld [vmem:[#allocation7 + $0x3e8] sm:$0xff]
    %v212 = vld [vmem:[#allocation7 + $0x3f0] sm:$0xff]
    %v213 = vld [vmem:[#allocation7 + $0x3f8] sm:$0xff]
    %v214 = vld [vmem:[#allocation7 + $0x400] sm:$0xff]
    %v215 = vld [vmem:[#allocation7 + $0x408] sm:$0xff]
    %v216 = vld [vmem:[#allocation7 + $0x410] sm:$0xff]
    %v217 = vld [vmem:[#allocation7 + $0x418] sm:$0xff]
    %v218 = vld [vmem:[#allocation7 + $0x420] sm:$0xff]
    %v219 = vld [vmem:[#allocation7 + $0x428] sm:$0xff]
    %v220 = vld [vmem:[#allocation7 + $0x430] sm:$0xff]
    %v221 = vld [vmem:[#allocation7 + $0x438] sm:$0xff]
    %v222 = vld [vmem:[#allocation7 + $0x440] sm:$0xff]
    %v223 = vld [vmem:[#allocation7 + $0x448] sm:$0xff]
    %v224 = vld [vmem:[#allocation7 + $0x450] sm:$0xff]
    %v225 = vld [vmem:[#allocation7 + $0x458] sm:$0xff]
    %v226 = vld [vmem:[#allocation7 + $0x460] sm:$0xff]
    %v227 = vld [vmem:[#allocation7 + $0x468] sm:$0xff]
    %v228 = vld [vmem:[#allocation7 + $0x470] sm:$0xff]
    %v229 = vld [vmem:[#allocation7 + $0x478] sm:$0xff]
    %v230 = vld [vmem:[#allocation7 + $0x480] sm:$0xff]
    %v231 = vld [vmem:[#allocation7 + $0x488] sm:$0xff]
    %v232 = vld [vmem:[#allocation7 + $0x490] sm:$0xff]
    %v233 = vld [vmem:[#allocation7 + $0x498] sm:$0xff]
    %v234 = vld [vmem:[#allocation7 + $0x4a0] sm:$0xff]
    %v235 = vld [vmem:[#allocation7 + $0x4a8] sm:$0xff]
    %v236 = vld [vmem:[#allocation7 + $0x4b0] sm:$0xff]
    %v237 = vld [vmem:[#allocation7 + $0x4b8] sm:$0xff]
    %v238 = vld [vmem:[#allocation7 + $0x4c0] sm:$0xff]
    %v239 = vld [vmem:[#allocation7 + $0x4c8] sm:$0xff]
    %v240 = vld [vmem:[#allocation7 + $0x4d0] sm:$0xff]
    %v241 = vld [vmem:[#allocation7 + $0x4d8] sm:$0xff]
    %v242 = vld [vmem:[#allocation7 + $0x4e0] sm:$0xff]
    %v243 = vld [vmem:[#allocation7 + $0x4e8] sm:$0xff]
    %v244 = vld [vmem:[#allocation7 + $0x4f0] sm:$0xff]
    %v245 = vld [vmem:[#allocation7 + $0x4f8] sm:$0xff]
    %v246 = vld [vmem:[#allocation7 + $0x500] sm:$0xff]
    %v247 = vld [vmem:[#allocation7 + $0x508] sm:$0xff]
    %v248 = vld [vmem:[#allocation7 + $0x510] sm:$0xff]
    %v249 = vld [vmem:[#allocation7 + $0x518] sm:$0xff]
    %v250 = vld [vmem:[#allocation7 + $0x520] sm:$0xff]
    %v251 = vld [vmem:[#allocation7 + $0x528] sm:$0xff]
    %v252 = vld [vmem:[#allocation7 + $0x530] sm:$0xff]
    %v253 = vld [vmem:[#allocation7 + $0x538] sm:$0xff]
    %v254 = vld [vmem:[#allocation7 + $0x540] sm:$0xff]
    %v255 = vld [vmem:[#allocation7 + $0x548] sm:$0xff]
    %v256 = vld [vmem:[#allocation7 + $0x550] sm:$0xff]
    %v257 = vld [vmem:[#allocation7 + $0x558] sm:$0xff]
    %v258 = vld [vmem:[#allocation7 + $0x560] sm:$0xff]
    %v259 = vld [vmem:[#allocation7 + $0x568] sm:$0xff]
    %v260 = vld [vmem:[#allocation7 + $0x570] sm:$0xff]
    %v261 = vld [vmem:[#allocation7 + $0x578] sm:$0xff]
    %v262 = vld [vmem:[#allocation7 + $0x580] sm:$0xff]
    %v263 = vld [vmem:[#allocation7 + $0x588] sm:$0xff]
    %v264 = vld [vmem:[#allocation7 + $0x590] sm:$0xff]
    %v265 = vld [vmem:[#allocation7 + $0x598] sm:$0xff]
    %v266 = vld [vmem:[#allocation7 + $0x5a0] sm:$0xff]
    %v267 = vld [vmem:[#allocation7 + $0x5a8] sm:$0xff]
    %v268 = vld [vmem:[#allocation7 + $0x5b0] sm:$0xff]
    %v269 = vld [vmem:[#allocation7 + $0x5b8] sm:$0xff]
    %v270 = vld [vmem:[#allocation7 + $0x5c0] sm:$0xff]
    %v271 = vld [vmem:[#allocation7 + $0x5c8] sm:$0xff]
    %v272 = vld [vmem:[#allocation7 + $0x5d0] sm:$0xff]
    %v273 = vld [vmem:[#allocation7 + $0x5d8] sm:$0xff]
    %v274 = vld [vmem:[#allocation7 + $0x5e0] sm:$0xff]
    %v275 = vld [vmem:[#allocation7 + $0x5e8] sm:$0xff]
    %v276 = vld [vmem:[#allocation7 + $0x5f0] sm:$0xff]
    %v277 = vld [vmem:[#allocation7 + $0x5f8] sm:$0xff]
    %v278 = vld [vmem:[#allocation7 + $0x600] sm:$0xff]
    %v279 = vld [vmem:[#allocation7 + $0x608] sm:$0xff]
    %v280 = vld [vmem:[#allocation7 + $0x610] sm:$0xff]
    %v281 = vld [vmem:[#allocation7 + $0x618] sm:$0xff]
    %v282 = vld [vmem:[#allocation7 + $0x620] sm:$0xff]
    %v283 = vld [vmem:[#allocation7 + $0x628] sm:$0xff]
    %v284 = vld [vmem:[#allocation7 + $0x630] sm:$0xff]
    %v285 = vld [vmem:[#allocation7 + $0x638] sm:$0xff]
    %v286 = vld [vmem:[#allocation7 + $0x640] sm:$0xff]
    %v287 = vld [vmem:[#allocation7 + $0x648] sm:$0xff]
    %v288 = vld [vmem:[#allocation7 + $0x650] sm:$0xff]
    %v289 = vld [vmem:[#allocation7 + $0x658] sm:$0xff]
    %v290 = vld [vmem:[#allocation7 + $0x660] sm:$0xff]
    %v291 = vld [vmem:[#allocation7 + $0x668] sm:$0xff]
    %v292 = vld [vmem:[#allocation7 + $0x670] sm:$0xff]
    %v293 = vld [vmem:[#allocation7 + $0x678] sm:$0xff]
    %v294 = vld [vmem:[#allocation7 + $0x680] sm:$0xff]
    %v295 = vld [vmem:[#allocation7 + $0x688] sm:$0xff]
    %v296 = vld [vmem:[#allocation7 + $0x690] sm:$0xff]
    %v297 = vld [vmem:[#allocation7 + $0x698] sm:$0xff]
    %v298 = vld [vmem:[#allocation7 + $0x6a0] sm:$0xff]
    %v299 = vld [vmem:[#allocation7 + $0x6a8] sm:$0xff]
    %v300 = vld [vmem:[#allocation7 + $0x6b0] sm:$0xff]
    %v301 = vld [vmem:[#allocation7 + $0x6b8] sm:$0xff]
    %v302 = vld [vmem:[#allocation7 + $0x6c0] sm:$0xff]
    %v303 = vld [vmem:[#allocation7 + $0x6c8] sm:$0xff]
    %v304 = vld [vmem:[#allocation7 + $0x6d0] sm:$0xff]
    %v305 = vld [vmem:[#allocation7 + $0x6d8] sm:$0xff]
    %v306 = vld [vmem:[#allocation7 + $0x6e0] sm:$0xff]
    %v307 = vld [vmem:[#allocation7 + $0x6e8] sm:$0xff]
    %v308 = vld [vmem:[#allocation7 + $0x6f0] sm:$0xff]
    %v309 = vld [vmem:[#allocation7 + $0x6f8] sm:$0xff]
    %v310 = vld [vmem:[#allocation7 + $0x700] sm:$0xff]
    %v311 = vld [vmem:[#allocation7 + $0x708] sm:$0xff]
    %v312 = vld [vmem:[#allocation7 + $0x710] sm:$0xff]
    %v313 = vld [vmem:[#allocation7 + $0x718] sm:$0xff]
    %v314 = vld [vmem:[#allocation7 + $0x720] sm:$0xff]
    %v315 = vld [vmem:[#allocation7 + $0x728] sm:$0xff]
    %v316 = vld [vmem:[#allocation7 + $0x730] sm:$0xff]
    %v317 = vld [vmem:[#allocation7 + $0x738] sm:$0xff]
    %v318 = vld [vmem:[#allocation7 + $0x740] sm:$0xff]
    %v319 = vld [vmem:[#allocation7 + $0x748] sm:$0xff]
    %v320 = vld [vmem:[#allocation7 + $0x750] sm:$0xff]
    %v321 = vld [vmem:[#allocation7 + $0x758] sm:$0xff]
    %v322 = vld [vmem:[#allocation7 + $0x760] sm:$0xff]
    %v323 = vld [vmem:[#allocation7 + $0x768] sm:$0xff]
    %v324 = vld [vmem:[#allocation7 + $0x770] sm:$0xff]
    %v325 = vld [vmem:[#allocation7 + $0x778] sm:$0xff]
    %v326 = vld [vmem:[#allocation7 + $0x780] sm:$0xff]
    %v327 = vld [vmem:[#allocation7 + $0x788] sm:$0xff]
    %v328 = vld [vmem:[#allocation7 + $0x790] sm:$0xff]
    %v329 = vld [vmem:[#allocation7 + $0x798] sm:$0xff]
    %v330 = vld [vmem:[#allocation7 + $0x7a0] sm:$0xff]
    %v331 = vld [vmem:[#allocation7 + $0x7a8] sm:$0xff]
    %v332 = vld [vmem:[#allocation7 + $0x7b0] sm:$0xff]
    %v333 = vld [vmem:[#allocation7 + $0x7b8] sm:$0xff]
    %v334 = vld [vmem:[#allocation7 + $0x7c0] sm:$0xff]
    %v335 = vld [vmem:[#allocation7 + $0x7c8] sm:$0xff]
    %v336 = vld [vmem:[#allocation7 + $0x7d0] sm:$0xff]
    %v337 = vld [vmem:[#allocation7 + $0x7d8] sm:$0xff]
    %v338 = vld [vmem:[#allocation7 + $0x7e0] sm:$0xff]
    %v339 = vld [vmem:[#allocation7 + $0x7e8] sm:$0xff]
    %v340 = vld [vmem:[#allocation7 + $0x7f0] sm:$0xff]
    %v341 = vld [vmem:[#allocation7 + $0x7f8] sm:$0xff]
    %v342 = vld [vmem:[#allocation7 + $0x800] sm:$0xff]
    %v343 = vld [vmem:[#allocation7 + $0x808] sm:$0xff]
    %v344 = vld [vmem:[#allocation7 + $0x810] sm:$0xff]
    %v345 = vld [vmem:[#allocation7 + $0x818] sm:$0xff]
    %v346 = vld [vmem:[#allocation7 + $0x820] sm:$0xff]
    %v347 = vld [vmem:[#allocation7 + $0x828] sm:$0xff]
    %v348 = vld [vmem:[#allocation7 + $0x830] sm:$0xff]
    %v349 = vld [vmem:[#allocation7 + $0x838] sm:$0xff]
    %v350 = vld [vmem:[#allocation7 + $0x840] sm:$0xff]
    %v351 = vld [vmem:[#allocation7 + $0x848] sm:$0xff]
    %v352 = vld [vmem:[#allocation7 + $0x850] sm:$0xff]
    %v353 = vld [vmem:[#allocation7 + $0x858] sm:$0xff]
    %v354 = vld [vmem:[#allocation7 + $0x860] sm:$0xff]
    %v355 = vld [vmem:[#allocation7 + $0x868] sm:$0xff]
    %v356 = vld [vmem:[#allocation7 + $0x870] sm:$0xff]
    %v357 = vld [vmem:[#allocation7 + $0x878] sm:$0xff]
    %v358 = vld [vmem:[#allocation7 + $0x880] sm:$0xff]
    %v359 = vld [vmem:[#allocation7 + $0x888] sm:$0xff]
    %v360 = vld [vmem:[#allocation7 + $0x890] sm:$0xff]
    %v361 = vld [vmem:[#allocation7 + $0x898] sm:$0xff]
    %v362 = vld [vmem:[#allocation7 + $0x8a0] sm:$0xff]
    %v363 = vld [vmem:[#allocation7 + $0x8a8] sm:$0xff]
    %v364 = vld [vmem:[#allocation7 + $0x8b0] sm:$0xff]
    %v365 = vld [vmem:[#allocation7 + $0x8b8] sm:$0xff]
    %v366 = vld [vmem:[#allocation7 + $0x8c0] sm:$0xff]
    %v367 = vld [vmem:[#allocation7 + $0x8c8] sm:$0xff]
    %v368 = vld [vmem:[#allocation7 + $0x8d0] sm:$0xff]
    %v369 = vld [vmem:[#allocation7 + $0x8d8] sm:$0xff]
    %v370 = vld [vmem:[#allocation7 + $0x8e0] sm:$0xff]
    %v371 = vld [vmem:[#allocation7 + $0x8e8] sm:$0xff]
    %v372 = vld [vmem:[#allocation7 + $0x8f0] sm:$0xff]
    %v373 = vld [vmem:[#allocation7 + $0x8f8] sm:$0xff]
    %v374 = vld [vmem:[#allocation7 + $0x900] sm:$0xff]
    %v375 = vld [vmem:[#allocation7 + $0x908] sm:$0xff]
    %v376 = vld [vmem:[#allocation7 + $0x910] sm:$0xff]
    %v377 = vld [vmem:[#allocation7 + $0x918] sm:$0xff]
    %v378 = vld [vmem:[#allocation7 + $0x920] sm:$0xff]
    %v379 = vld [vmem:[#allocation7 + $0x928] sm:$0xff]
    %v380 = vld [vmem:[#allocation7 + $0x930] sm:$0xff]
    %v381 = vld [vmem:[#allocation7 + $0x938] sm:$0xff]
    %v382 = vld [vmem:[#allocation7 + $0x940] sm:$0xff]
    %v383 = vld [vmem:[#allocation7 + $0x948] sm:$0xff]
    %v384 = vld [vmem:[#allocation7 + $0x950] sm:$0xff]
    %v385 = vld [vmem:[#allocation7 + $0x958] sm:$0xff]
    %v386 = vld [vmem:[#allocation7 + $0x960] sm:$0xff]
    %v387 = vld [vmem:[#allocation7 + $0x968] sm:$0xff]
    %v388 = vld [vmem:[#allocation7 + $0x970] sm:$0xff]
    %v389 = vld [vmem:[#allocation7 + $0x978] sm:$0xff]
    %v390 = vld [vmem:[#allocation7 + $0x980] sm:$0xff]
    %v391 = vld [vmem:[#allocation7 + $0x988] sm:$0xff]
    %v392 = vld [vmem:[#allocation7 + $0x990] sm:$0xff]
    %v393 = vld [vmem:[#allocation7 + $0x998] sm:$0xff]
    %v394 = vld [vmem:[#allocation7 + $0x9a0] sm:$0xff]
    %v395 = vld [vmem:[#allocation7 + $0x9a8] sm:$0xff]
    %v396 = vld [vmem:[#allocation7 + $0x9b0] sm:$0xff]
    %v397 = vld [vmem:[#allocation7 + $0x9b8] sm:$0xff]
    %v398 = vld [vmem:[#allocation7 + $0x9c0] sm:$0xff]
    %v399 = vld [vmem:[#allocation7 + $0x9c8] sm:$0xff]
    %v400 = vld [vmem:[#allocation7 + $0x9d0] sm:$0xff]
    %v401 = vld [vmem:[#allocation7 + $0x9d8] sm:$0xff]
    %v402 = vld [vmem:[#allocation7 + $0x9e0] sm:$0xff]
    %v403 = vld [vmem:[#allocation7 + $0x9e8] sm:$0xff]
    %v404 = vld [vmem:[#allocation7 + $0x9f0] sm:$0xff]
    %v405 = vld [vmem:[#allocation7 + $0x9f8] sm:$0xff]
    %v406 = vld [vmem:[#allocation7 + $0xa00] sm:$0xff]
    %v407 = vld [vmem:[#allocation7 + $0xa08] sm:$0xff]
    %v408 = vld [vmem:[#allocation7 + $0xa10] sm:$0xff]
    %v409 = vld [vmem:[#allocation7 + $0xa18] sm:$0xff]
    %v410 = vld [vmem:[#allocation7 + $0xa20] sm:$0xff]
    %v411 = vld [vmem:[#allocation7 + $0xa28] sm:$0xff]
    %v412 = vld [vmem:[#allocation7 + $0xa30] sm:$0xff]
    %v413 = vld [vmem:[#allocation7 + $0xa38] sm:$0xff]
    %v414 = vld [vmem:[#allocation7 + $0xa40] sm:$0xff]
    %v415 = vld [vmem:[#allocation7 + $0xa48] sm:$0xff]
    %v416 = vld [vmem:[#allocation7 + $0xa50] sm:$0xff]
    %v417 = vld [vmem:[#allocation7 + $0xa58] sm:$0xff]
    %v418 = vld [vmem:[#allocation7 + $0xa60] sm:$0xff]
    %v419 = vld [vmem:[#allocation7 + $0xa68] sm:$0xff]
    %v420 = vld [vmem:[#allocation7 + $0xa70] sm:$0xff]
    %v421 = vld [vmem:[#allocation7 + $0xa78] sm:$0xff]
    %v422 = vld [vmem:[#allocation7 + $0xa80] sm:$0xff]
    %v423 = vld [vmem:[#allocation7 + $0xa88] sm:$0xff]
    %v424 = vld [vmem:[#allocation7 + $0xa90] sm:$0xff]
    %v425 = vld [vmem:[#allocation7 + $0xa98] sm:$0xff]
    %v426 = vld [vmem:[#allocation7 + $0xaa0] sm:$0xff]
    %v427 = vld [vmem:[#allocation7 + $0xaa8] sm:$0xff]
    %v428 = vld [vmem:[#allocation7 + $0xab0] sm:$0xff]
    %v429 = vld [vmem:[#allocation7 + $0xab8] sm:$0xff]
    %v430 = vld [vmem:[#allocation7 + $0xac0] sm:$0xff]
    %v431 = vld [vmem:[#allocation7 + $0xac8] sm:$0xff]
    %v432 = vld [vmem:[#allocation7 + $0xad0] sm:$0xff]
    %v433 = vld [vmem:[#allocation7 + $0xad8] sm:$0xff]
    %v434 = vld [vmem:[#allocation7 + $0xae0] sm:$0xff]
    %v435 = vld [vmem:[#allocation7 + $0xae8] sm:$0xff]
    %v436 = vld [vmem:[#allocation7 + $0xaf0] sm:$0xff]
    %v437 = vld [vmem:[#allocation7 + $0xaf8] sm:$0xff]
    %v438 = vld [vmem:[#allocation7 + $0xb00] sm:$0xff]
    %v439 = vld [vmem:[#allocation7 + $0xb08] sm:$0xff]
    %v440 = vld [vmem:[#allocation7 + $0xb10] sm:$0xff]
    %v441 = vld [vmem:[#allocation7 + $0xb18] sm:$0xff]
    %v442 = vld [vmem:[#allocation7 + $0xb20] sm:$0xff]
    %v443 = vld [vmem:[#allocation7 + $0xb28] sm:$0xff]
    %v444 = vld [vmem:[#allocation7 + $0xb30] sm:$0xff]
    %v445 = vld [vmem:[#allocation7 + $0xb38] sm:$0xff]
    %v446 = vld [vmem:[#allocation7 + $0xb40] sm:$0xff]
    %v447 = vld [vmem:[#allocation7 + $0xb48] sm:$0xff]
    %v448 = vld [vmem:[#allocation7 + $0xb50] sm:$0xff]
    %v449 = vld [vmem:[#allocation7 + $0xb58] sm:$0xff]
    %v450 = vld [vmem:[#allocation7 + $0xb60] sm:$0xff]
    %v451 = vld [vmem:[#allocation7 + $0xb68] sm:$0xff]
    %v452 = vld [vmem:[#allocation7 + $0xb70] sm:$0xff]
    %v453 = vld [vmem:[#allocation7 + $0xb78] sm:$0xff]
    %v454 = vld [vmem:[#allocation7 + $0xb80] sm:$0xff]
    %v455 = vld [vmem:[#allocation7 + $0xb88] sm:$0xff]
    %v456 = vld [vmem:[#allocation7 + $0xb90] sm:$0xff]
    %v457 = vld [vmem:[#allocation7 + $0xb98] sm:$0xff]
    %v458 = vld [vmem:[#allocation7 + $0xba0] sm:$0xff]
    %v459 = vld [vmem:[#allocation7 + $0xba8] sm:$0xff]
    %v460 = vld [vmem:[#allocation7 + $0xbb0] sm:$0xff]
    %v461 = vld [vmem:[#allocation7 + $0xbb8] sm:$0xff]
    %v462 = vld [vmem:[#allocation7 + $0xbc0] sm:$0xff]
    %v463 = vld [vmem:[#allocation7 + $0xbc8] sm:$0xff]
    %v464 = vld [vmem:[#allocation7 + $0xbd0] sm:$0xff]
    %v465 = vld [vmem:[#allocation7 + $0xbd8] sm:$0xff]
    %v466 = vld [vmem:[#allocation7 + $0xbe0] sm:$0xff]
    %v467 = vld [vmem:[#allocation7 + $0xbe8] sm:$0xff]
    %v468 = vld [vmem:[#allocation7 + $0xbf0] sm:$0xff]
    %v469 = vld [vmem:[#allocation7 + $0xbf8] sm:$0xff]
    %v470 = vld [vmem:[#allocation7 + $0xc00] sm:$0xff]
    %v471 = vld [vmem:[#allocation7 + $0xc08] sm:$0xff]
    %v472 = vld [vmem:[#allocation7 + $0xc10] sm:$0xff]
    %v473 = vld [vmem:[#allocation7 + $0xc18] sm:$0xff]
    %v474 = vld [vmem:[#allocation7 + $0xc20] sm:$0xff]
    %v475 = vld [vmem:[#allocation7 + $0xc28] sm:$0xff]
    %v476 = vld [vmem:[#allocation7 + $0xc30] sm:$0xff]
    %v477 = vld [vmem:[#allocation7 + $0xc38] sm:$0xff]
    %v478 = vld [vmem:[#allocation7 + $0xc40] sm:$0xff]
    %v479 = vld [vmem:[#allocation7 + $0xc48] sm:$0xff]
    %v480 = vld [vmem:[#allocation7 + $0xc50] sm:$0xff]
    %v481 = vld [vmem:[#allocation7 + $0xc58] sm:$0xff]
    %v482 = vld [vmem:[#allocation7 + $0xc60] sm:$0xff]
    %v483 = vld [vmem:[#allocation7 + $0xc68] sm:$0xff]
    %v484 = vld [vmem:[#allocation7 + $0xc70] sm:$0xff]
    %v485 = vld [vmem:[#allocation7 + $0xc78] sm:$0xff]
    %v486 = vld [vmem:[#allocation7 + $0xc80] sm:$0xff]
    %v487 = vld [vmem:[#allocation7 + $0xc88] sm:$0xff]
    %v488 = vld [vmem:[#allocation7 + $0xc90] sm:$0xff]
    %v489 = vld [vmem:[#allocation7 + $0xc98] sm:$0xff]
    %v490 = vld [vmem:[#allocation7 + $0xca0] sm:$0xff]
    %v491 = vld [vmem:[#allocation7 + $0xca8] sm:$0xff]
    %v492 = vld [vmem:[#allocation7 + $0xcb0] sm:$0xff]
    %v493 = vld [vmem:[#allocation7 + $0xcb8] sm:$0xff]
    %v494 = vld [vmem:[#allocation7 + $0xcc0] sm:$0xff]
    %v495 = vld [vmem:[#allocation7 + $0xcc8] sm:$0xff]
    %v496 = vld [vmem:[#allocation7 + $0xcd0] sm:$0xff]
    %v497 = vld [vmem:[#allocation7 + $0xcd8] sm:$0xff]
    %v498 = vld [vmem:[#allocation7 + $0xce0] sm:$0xff]
    %v499 = vld [vmem:[#allocation7 + $0xce8] sm:$0xff]
    %v500 = vld [vmem:[#allocation7 + $0xcf0] sm:$0xff]
    %v501 = vld [vmem:[#allocation7 + $0xcf8] sm:$0xff]
    %v502 = vld [vmem:[#allocation7 + $0xd00] sm:$0xff]
    %v503 = vld [vmem:[#allocation7 + $0xd08] sm:$0xff]
    %v504 = vld [vmem:[#allocation7 + $0xd10] sm:$0xff]
    %v505 = vld [vmem:[#allocation7 + $0xd18] sm:$0xff]
    %v506 = vld [vmem:[#allocation7 + $0xd20] sm:$0xff]
    %v507 = vld [vmem:[#allocation7 + $0xd28] sm:$0xff]
    %v508 = vld [vmem:[#allocation7 + $0xd30] sm:$0xff]
    %v509 = vld [vmem:[#allocation7 + $0xd38] sm:$0xff]
    %v510 = vld [vmem:[#allocation7 + $0xd40] sm:$0xff]
    %v511 = vld [vmem:[#allocation7 + $0xd48] sm:$0xff]
    %v512 = vld [vmem:[#allocation7 + $0xd50] sm:$0xff]
    %v513 = vld [vmem:[#allocation7 + $0xd58] sm:$0xff]
    %v514 = vld [vmem:[#allocation7 + $0xd60] sm:$0xff]
    %v515 = vld [vmem:[#allocation7 + $0xd68] sm:$0xff]
    %v516 = vld [vmem:[#allocation7 + $0xd70] sm:$0xff]
    %v517 = vld [vmem:[#allocation7 + $0xd78] sm:$0xff]
    %v518 = vld [vmem:[#allocation7 + $0xd80] sm:$0xff]
    %v519 = vld [vmem:[#allocation7 + $0xd88] sm:$0xff]
    %v520 = vld [vmem:[#allocation7 + $0xd90] sm:$0xff]
    %v521 = vld [vmem:[#allocation7 + $0xd98] sm:$0xff]
    %v522 = vld [vmem:[#allocation7 + $0xda0] sm:$0xff]
    %v523 = vld [vmem:[#allocation7 + $0xda8] sm:$0xff]
    %v524 = vld [vmem:[#allocation7 + $0xdb0] sm:$0xff]
    %v525 = vld [vmem:[#allocation7 + $0xdb8] sm:$0xff]
    %v526 = vld [vmem:[#allocation7 + $0xdc0] sm:$0xff]
    %v527 = vld [vmem:[#allocation7 + $0xdc8] sm:$0xff]
    %v528 = vld [vmem:[#allocation7 + $0xdd0] sm:$0xff]
    %v529 = vld [vmem:[#allocation7 + $0xdd8] sm:$0xff]
    %v530 = vld [vmem:[#allocation7 + $0xde0] sm:$0xff]
    %v531 = vld [vmem:[#allocation7 + $0xde8] sm:$0xff]
    %v532 = vld [vmem:[#allocation7 + $0xdf0] sm:$0xff]
    %v533 = vld [vmem:[#allocation7 + $0xdf8] sm:$0xff]
    %v534 = vld [vmem:[#allocation7 + $0xe00] sm:$0xff]
    %v535 = vld [vmem:[#allocation7 + $0xe08] sm:$0xff]
    %v536 = vld [vmem:[#allocation7 + $0xe10] sm:$0xff]
    %v537 = vld [vmem:[#allocation7 + $0xe18] sm:$0xff]
    %v538 = vld [vmem:[#allocation7 + $0xe20] sm:$0xff]
    %v539 = vld [vmem:[#allocation7 + $0xe28] sm:$0xff]
    %v540 = vld [vmem:[#allocation7 + $0xe30] sm:$0xff]
    %v541 = vld [vmem:[#allocation7 + $0xe38] sm:$0xff]
    %v542 = vld [vmem:[#allocation7 + $0xe40] sm:$0xff]
    %v543 = vld [vmem:[#allocation7 + $0xe48] sm:$0xff]
    %v544 = vld [vmem:[#allocation7 + $0xe50] sm:$0xff]
    %v545 = vld [vmem:[#allocation7 + $0xe58] sm:$0xff]
    %v546 = vld [vmem:[#allocation7 + $0xe60] sm:$0xff]
    %v547 = vld [vmem:[#allocation7 + $0xe68] sm:$0xff]
    %v548 = vld [vmem:[#allocation7 + $0xe70] sm:$0xff]
    %v549 = vld [vmem:[#allocation7 + $0xe78] sm:$0xff]
    %v550 = vld [vmem:[#allocation7 + $0xe80] sm:$0xff]
    %v551 = vld [vmem:[#allocation7 + $0xe88] sm:$0xff]
    %v552 = vld [vmem:[#allocation7 + $0xe90] sm:$0xff]
    %v553 = vld [vmem:[#allocation7 + $0xe98] sm:$0xff]
    %v554 = vld [vmem:[#allocation7 + $0xea0] sm:$0xff]
    %v555 = vld [vmem:[#allocation7 + $0xea8] sm:$0xff]
    %v556 = vld [vmem:[#allocation7 + $0xeb0] sm:$0xff]
    %v557 = vld [vmem:[#allocation7 + $0xeb8] sm:$0xff]
    %v558 = vld [vmem:[#allocation7 + $0xec0] sm:$0xff]
    %v559 = vld [vmem:[#allocation7 + $0xec8] sm:$0xff]
    %v560 = vld [vmem:[#allocation7 + $0xed0] sm:$0xff]
    %v561 = vld [vmem:[#allocation7 + $0xed8] sm:$0xff]
    %v562 = vld [vmem:[#allocation7 + $0xee0] sm:$0xff]
    %v563 = vld [vmem:[#allocation7 + $0xee8] sm:$0xff]
    %v564 = vld [vmem:[#allocation7 + $0xef0] sm:$0xff]
    %v565 = vld [vmem:[#allocation7 + $0xef8] sm:$0xff]
    %v566 = vld [vmem:[#allocation7 + $0xf00] sm:$0xff]
    %v567 = vld [vmem:[#allocation7 + $0xf08] sm:$0xff]
    %v568 = vld [vmem:[#allocation7 + $0xf10] sm:$0xff]
    %v569 = vld [vmem:[#allocation7 + $0xf18] sm:$0xff]
    %v570 = vld [vmem:[#allocation7 + $0xf20] sm:$0xff]
    %v571 = vld [vmem:[#allocation7 + $0xf28] sm:$0xff]
    %v572 = vld [vmem:[#allocation7 + $0xf30] sm:$0xff]
    %v573 = vld [vmem:[#allocation7 + $0xf38] sm:$0xff]
    %v574 = vld [vmem:[#allocation7 + $0xf40] sm:$0xff]
    %v575 = vld [vmem:[#allocation7 + $0xf48] sm:$0xff]
    %v576 = vld [vmem:[#allocation7 + $0xf50] sm:$0xff]
    %v577 = vld [vmem:[#allocation7 + $0xf58] sm:$0xff]
    %v578 = vld [vmem:[#allocation7 + $0xf60] sm:$0xff]
    %v579 = vld [vmem:[#allocation7 + $0xf68] sm:$0xff]
    %v580 = vld [vmem:[#allocation7 + $0xf70] sm:$0xff]
    %v581 = vld [vmem:[#allocation7 + $0xf78] sm:$0xff]
    %v582 = vld [vmem:[#allocation7 + $0xf80] sm:$0xff]
    %v583 = vld [vmem:[#allocation7 + $0xf88] sm:$0xff]
    %v584 = vld [vmem:[#allocation7 + $0xf90] sm:$0xff]
    %v585 = vld [vmem:[#allocation7 + $0xf98] sm:$0xff]
    %v586 = vld [vmem:[#allocation7 + $0xfa0] sm:$0xff]
    %v587 = vld [vmem:[#allocation7 + $0xfa8] sm:$0xff]
    %v588 = vld [vmem:[#allocation7 + $0xfb0] sm:$0xff]
    %v589 = vld [vmem:[#allocation7 + $0xfb8] sm:$0xff]
    %v590 = vld [vmem:[#allocation7 + $0xfc0] sm:$0xff]
    %v591 = vld [vmem:[#allocation7 + $0xfc8] sm:$0xff]
    %v592 = vld [vmem:[#allocation7 + $0xfd0] sm:$0xff]
    %v593 = vld [vmem:[#allocation7 + $0xfd8] sm:$0xff]
    %v594 = vld [vmem:[#allocation7 + $0xfe0] sm:$0xff]
    %v595 = vld [vmem:[#allocation7 + $0xfe8] sm:$0xff]
    %v596 = vld [vmem:[#allocation7 + $0xff0] sm:$0xff]
    %v597 = vld [vmem:[#allocation7 + $0xff8] sm:$0xff]
    %v598 = vld [vmem:[#allocation5] sm:$0xff]
    %v599 = vld [vmem:[#allocation5 + $0x8] sm:$0xff]
    %v600 = vld [vmem:[#allocation7 + $0x1000] sm:$0xff]
    %v601 = vld [vmem:[#allocation7 + $0x1008] sm:$0xff]
    %v602 = vld [vmem:[#allocation7 + $0x1010] sm:$0xff]
    %v603 = vld [vmem:[#allocation7 + $0x1018] sm:$0xff]
    %v604 = vld [vmem:[#allocation7 + $0x1020] sm:$0xff]
    %v605 = vld [vmem:[#allocation7 + $0x1028] sm:$0xff]
    %v606 = vld [vmem:[#allocation7 + $0x1030] sm:$0xff]
    %v607 = vld [vmem:[#allocation7 + $0x1038] sm:$0xff]
    %v608 = vld [vmem:[#allocation7 + $0x1040] sm:$0xff]
    %v609 = vld [vmem:[#allocation7 + $0x1048] sm:$0xff]
    %v610 = vld [vmem:[#allocation7 + $0x1050] sm:$0xff]
    %v611 = vld [vmem:[#allocation7 + $0x1058] sm:$0xff]
    %v612 = vld [vmem:[#allocation7 + $0x1060] sm:$0xff]
    %v613 = vld [vmem:[#allocation7 + $0x1068] sm:$0xff]
    %v614 = vld [vmem:[#allocation7 + $0x1070] sm:$0xff]
    %v615 = vld [vmem:[#allocation7 + $0x1078] sm:$0xff]
    %v616 = vld [vmem:[#allocation7 + $0x1080] sm:$0xff]
    %v617 = vld [vmem:[#allocation7 + $0x1088] sm:$0xff]
    %v618 = vld [vmem:[#allocation7 + $0x1090] sm:$0xff]
    %v619 = vld [vmem:[#allocation7 + $0x1098] sm:$0xff]
    %v620 = vld [vmem:[#allocation7 + $0x10a0] sm:$0xff]
    %v621 = vld [vmem:[#allocation7 + $0x10a8] sm:$0xff]
    %v622 = vld [vmem:[#allocation7 + $0x10b0] sm:$0xff]
    %v623 = vld [vmem:[#allocation7 + $0x10b8] sm:$0xff]
    %v624 = vld [vmem:[#allocation7 + $0x10c0] sm:$0xff]
    %v625 = vld [vmem:[#allocation7 + $0x10c8] sm:$0xff]
    %v626 = vld [vmem:[#allocation7 + $0x10d0] sm:$0xff]
    %v627 = vld [vmem:[#allocation7 + $0x10d8] sm:$0xff]
    %v628 = vld [vmem:[#allocation7 + $0x10e0] sm:$0xff]
    %v629 = vld [vmem:[#allocation7 + $0x10e8] sm:$0xff]
    %v630 = vld [vmem:[#allocation7 + $0x10f0] sm:$0xff]
    %v631 = vld [vmem:[#allocation7 + $0x10f8] sm:$0xff]
    %v632 = vld [vmem:[#allocation7 + $0x1100] sm:$0xff]
    %v633 = vld [vmem:[#allocation7 + $0x1108] sm:$0xff]
    %v634 = vld [vmem:[#allocation7 + $0x1110] sm:$0xff]
    %v635 = vld [vmem:[#allocation7 + $0x1118] sm:$0xff]
    %v636 = vld [vmem:[#allocation7 + $0x1120] sm:$0xff]
    %v637 = vld [vmem:[#allocation7 + $0x1128] sm:$0xff]
    %v638 = vld [vmem:[#allocation7 + $0x1130] sm:$0xff]
    %v639 = vld [vmem:[#allocation7 + $0x1138] sm:$0xff]
    %v640 = vld [vmem:[#allocation7 + $0x1140] sm:$0xff]
    %v641 = vld [vmem:[#allocation7 + $0x1148] sm:$0xff]
    %v642 = vld [vmem:[#allocation7 + $0x1150] sm:$0xff]
    %v643 = vld [vmem:[#allocation7 + $0x1158] sm:$0xff]
    %v644 = vld [vmem:[#allocation7 + $0x1160] sm:$0xff]
    %v645 = vld [vmem:[#allocation7 + $0x1168] sm:$0xff]
    %v646 = vld [vmem:[#allocation7 + $0x1170] sm:$0xff]
    %v647 = vld [vmem:[#allocation7 + $0x1178] sm:$0xff]
    %v648 = vld [vmem:[#allocation7 + $0x1180] sm:$0xff]
    %v649 = vld [vmem:[#allocation7 + $0x1188] sm:$0xff]
    %v650 = vld [vmem:[#allocation7 + $0x1190] sm:$0xff]
    %v651 = vld [vmem:[#allocation7 + $0x1198] sm:$0xff]
    %v652 = vld [vmem:[#allocation7 + $0x11a0] sm:$0xff]
    %v653 = vld [vmem:[#allocation7 + $0x11a8] sm:$0xff]
    %v654 = vld [vmem:[#allocation7 + $0x11b0] sm:$0xff]
    %v655 = vld [vmem:[#allocation7 + $0x11b8] sm:$0xff]
    %v656 = vld [vmem:[#allocation7 + $0x11c0] sm:$0xff]
    %v657 = vld [vmem:[#allocation7 + $0x11c8] sm:$0xff]
    %v658 = vld [vmem:[#allocation7 + $0x11d0] sm:$0xff]
    %v659 = vld [vmem:[#allocation7 + $0x11d8] sm:$0xff]
    %v660 = vld [vmem:[#allocation7 + $0x11e0] sm:$0xff]
    %v661 = vld [vmem:[#allocation7 + $0x11e8] sm:$0xff]
    %v662 = vld [vmem:[#allocation7 + $0x11f0] sm:$0xff]
    %v663 = vld [vmem:[#allocation7 + $0x11f8] sm:$0xff]
    %v664 = vld [vmem:[#allocation7 + $0x1200] sm:$0xff]
    %v665 = vld [vmem:[#allocation7 + $0x1208] sm:$0xff]
    %v666 = vld [vmem:[#allocation7 + $0x1210] sm:$0xff]
    %v667 = vld [vmem:[#allocation7 + $0x1218] sm:$0xff]
    %v668 = vld [vmem:[#allocation7 + $0x1220] sm:$0xff]
    %v669 = vld [vmem:[#allocation7 + $0x1228] sm:$0xff]
    %v670 = vld [vmem:[#allocation7 + $0x1230] sm:$0xff]
    %v671 = vld [vmem:[#allocation7 + $0x1238] sm:$0xff]
    %v672 = vld [vmem:[#allocation7 + $0x1240] sm:$0xff]
    %v673 = vld [vmem:[#allocation7 + $0x1248] sm:$0xff]
    %v674 = vld [vmem:[#allocation7 + $0x1250] sm:$0xff]
    %v675 = vld [vmem:[#allocation7 + $0x1258] sm:$0xff]
    %v676 = vld [vmem:[#allocation7 + $0x1260] sm:$0xff]
    %v677 = vld [vmem:[#allocation7 + $0x1268] sm:$0xff]
    %v678 = vld [vmem:[#allocation7 + $0x1270] sm:$0xff]
    %v679 = vld [vmem:[#allocation7 + $0x1278] sm:$0xff]
    %v680 = vld [vmem:[#allocation7 + $0x1280] sm:$0xff]
    %v681 = vld [vmem:[#allocation7 + $0x1288] sm:$0xff]
    %v682 = vld [vmem:[#allocation7 + $0x1290] sm:$0xff]
    %v683 = vld [vmem:[#allocation7 + $0x1298] sm:$0xff]
    %v684 = vld [vmem:[#allocation7 + $0x12a0] sm:$0xff]
    %v685 = vld [vmem:[#allocation7 + $0x12a8] sm:$0xff]
    %v686 = vld [vmem:[#allocation7 + $0x12b0] sm:$0xff]
    %v687 = vld [vmem:[#allocation7 + $0x12b8] sm:$0xff]
    %v688 = vld [vmem:[#allocation7 + $0x12c0] sm:$0xff]
    %v689 = vld [vmem:[#allocation7 + $0x12c8] sm:$0xff]
    %v690 = vld [vmem:[#allocation7 + $0x12d0] sm:$0xff]
    %v691 = vld [vmem:[#allocation7 + $0x12d8] sm:$0xff]
    %v692 = vld [vmem:[#allocation7 + $0x12e0] sm:$0xff]
    %v693 = vld [vmem:[#allocation7 + $0x12e8] sm:$0xff]
    %v694 = vld [vmem:[#allocation7 + $0x12f0] sm:$0xff]
    %v695 = vld [vmem:[#allocation7 + $0x12f8] sm:$0xff]
    %v696 = vld [vmem:[#allocation7 + $0x1300] sm:$0xff]
    %v697 = vld [vmem:[#allocation7 + $0x1308] sm:$0xff]
    %v698 = vld [vmem:[#allocation7 + $0x1310] sm:$0xff]
    %v699 = vld [vmem:[#allocation7 + $0x1318] sm:$0xff]
    %v700 = vld [vmem:[#allocation7 + $0x1320] sm:$0xff]
    %v701 = vld [vmem:[#allocation7 + $0x1328] sm:$0xff]
    %v702 = vld [vmem:[#allocation7 + $0x1330] sm:$0xff]
    %v703 = vld [vmem:[#allocation7 + $0x1338] sm:$0xff]
    %v704 = vld [vmem:[#allocation7 + $0x1340] sm:$0xff]
    %v705 = vld [vmem:[#allocation7 + $0x1348] sm:$0xff]
    %v706 = vld [vmem:[#allocation7 + $0x1350] sm:$0xff]
    %v707 = vld [vmem:[#allocation7 + $0x1358] sm:$0xff]
    %v708 = vld [vmem:[#allocation7 + $0x1360] sm:$0xff]
    %v709 = vld [vmem:[#allocation7 + $0x1368] sm:$0xff]
    %v710 = vld [vmem:[#allocation7 + $0x1370] sm:$0xff]
    %v711 = vld [vmem:[#allocation7 + $0x1378] sm:$0xff]
    %v712 = vld [vmem:[#allocation7 + $0x1380] sm:$0xff]
    %v713 = vld [vmem:[#allocation7 + $0x1388] sm:$0xff]
    %v714 = vld [vmem:[#allocation7 + $0x1390] sm:$0xff]
    %v715 = vld [vmem:[#allocation7 + $0x1398] sm:$0xff]
    %v716 = vld [vmem:[#allocation7 + $0x13a0] sm:$0xff]
    %v717 = vld [vmem:[#allocation7 + $0x13a8] sm:$0xff]
    %v718 = vld [vmem:[#allocation7 + $0x13b0] sm:$0xff]
    %v719 = vld [vmem:[#allocation7 + $0x13b8] sm:$0xff]
    %v720 = vld [vmem:[#allocation7 + $0x13c0] sm:$0xff]
    %v721 = vld [vmem:[#allocation7 + $0x13c8] sm:$0xff]
    %v722 = vld [vmem:[#allocation7 + $0x13d0] sm:$0xff]
    %v723 = vld [vmem:[#allocation7 + $0x13d8] sm:$0xff]
    %v724 = vld [vmem:[#allocation7 + $0x13e0] sm:$0xff]
    %v725 = vld [vmem:[#allocation7 + $0x13e8] sm:$0xff]
    %v726 = vld [vmem:[#allocation7 + $0x13f0] sm:$0xff]
    %v727 = vld [vmem:[#allocation7 + $0x13f8] sm:$0xff]
    %v728 = vld [vmem:[#allocation7 + $0x1400] sm:$0xff]
    %v729 = vld [vmem:[#allocation7 + $0x1408] sm:$0xff]
    %v730 = vld [vmem:[#allocation7 + $0x1410] sm:$0xff]
    %v731 = vld [vmem:[#allocation7 + $0x1418] sm:$0xff]
    %v732 = vld [vmem:[#allocation7 + $0x1420] sm:$0xff]
    %v733 = vld [vmem:[#allocation7 + $0x1428] sm:$0xff]
    %v734 = vld [vmem:[#allocation7 + $0x1430] sm:$0xff]
    %v735 = vld [vmem:[#allocation7 + $0x1438] sm:$0xff]
    %v736 = vld [vmem:[#allocation7 + $0x1440] sm:$0xff]
    %v737 = vld [vmem:[#allocation7 + $0x1448] sm:$0xff]
    %v738 = vld [vmem:[#allocation7 + $0x1450] sm:$0xff]
    %v739 = vld [vmem:[#allocation7 + $0x1458] sm:$0xff]
    %v740 = vld [vmem:[#allocation7 + $0x1460] sm:$0xff]
    %v741 = vld [vmem:[#allocation7 + $0x1468] sm:$0xff]
    %v742 = vld [vmem:[#allocation7 + $0x1470] sm:$0xff]
    %v743 = vld [vmem:[#allocation7 + $0x1478] sm:$0xff]
    %v744 = vld [vmem:[#allocation7 + $0x1480] sm:$0xff]
    %v745 = vld [vmem:[#allocation7 + $0x1488] sm:$0xff]
    %v746 = vld [vmem:[#allocation7 + $0x1490] sm:$0xff]
    %v747 = vld [vmem:[#allocation7 + $0x1498] sm:$0xff]
    %v748 = vld [vmem:[#allocation7 + $0x14a0] sm:$0xff]
    %v749 = vld [vmem:[#allocation7 + $0x14a8] sm:$0xff]
    %v750 = vld [vmem:[#allocation7 + $0x14b0] sm:$0xff]
    %v751 = vld [vmem:[#allocation7 + $0x14b8] sm:$0xff]
    %v752 = vld [vmem:[#allocation7 + $0x14c0] sm:$0xff]
    %v753 = vld [vmem:[#allocation7 + $0x14c8] sm:$0xff]
    %v754 = vld [vmem:[#allocation7 + $0x14d0] sm:$0xff]
    %v755 = vld [vmem:[#allocation7 + $0x14d8] sm:$0xff]
    %v756 = vld [vmem:[#allocation7 + $0x14e0] sm:$0xff]
    %v757 = vld [vmem:[#allocation7 + $0x14e8] sm:$0xff]
    %v758 = vld [vmem:[#allocation7 + $0x14f0] sm:$0xff]
    %v759 = vld [vmem:[#allocation7 + $0x14f8] sm:$0xff]
    %v760 = vld [vmem:[#allocation7 + $0x1500] sm:$0xff]
    %v761 = vld [vmem:[#allocation7 + $0x1508] sm:$0xff]
    %v762 = vld [vmem:[#allocation7 + $0x1510] sm:$0xff]
    %v763 = vld [vmem:[#allocation7 + $0x1518] sm:$0xff]
    %v764 = vld [vmem:[#allocation7 + $0x1520] sm:$0xff]
    %v765 = vld [vmem:[#allocation7 + $0x1528] sm:$0xff]
    %v766 = vld [vmem:[#allocation7 + $0x1530] sm:$0xff]
    %v767 = vld [vmem:[#allocation7 + $0x1538] sm:$0xff]
    %v768 = vld [vmem:[#allocation7 + $0x1540] sm:$0xff]
    %v769 = vld [vmem:[#allocation7 + $0x1548] sm:$0xff]
    %v770 = vld [vmem:[#allocation7 + $0x1550] sm:$0xff]
    %v771 = vld [vmem:[#allocation7 + $0x1558] sm:$0xff]
    %v772 = vld [vmem:[#allocation7 + $0x1560] sm:$0xff]
    %v773 = vld [vmem:[#allocation7 + $0x1568] sm:$0xff]
    %v774 = vld [vmem:[#allocation7 + $0x1570] sm:$0xff]
    %v775 = vld [vmem:[#allocation7 + $0x1578] sm:$0xff]
    %v776 = vld [vmem:[#allocation7 + $0x1580] sm:$0xff]
    %v777 = vld [vmem:[#allocation7 + $0x1588] sm:$0xff]
    %v778 = vld [vmem:[#allocation7 + $0x1590] sm:$0xff]
    %v779 = vld [vmem:[#allocation7 + $0x1598] sm:$0xff]
    %v780 = vld [vmem:[#allocation7 + $0x15a0] sm:$0xff]
    %v781 = vld [vmem:[#allocation7 + $0x15a8] sm:$0xff]
    %v782 = vld [vmem:[#allocation7 + $0x15b0] sm:$0xff]
    %v783 = vld [vmem:[#allocation7 + $0x15b8] sm:$0xff]
    %v784 = vld [vmem:[#allocation7 + $0x15c0] sm:$0xff]
    %v785 = vld [vmem:[#allocation7 + $0x15c8] sm:$0xff]
    %v786 = vld [vmem:[#allocation7 + $0x15d0] sm:$0xff]
    %v787 = vld [vmem:[#allocation7 + $0x15d8] sm:$0xff]
    %v788 = vld [vmem:[#allocation7 + $0x15e0] sm:$0xff]
    %v789 = vld [vmem:[#allocation7 + $0x15e8] sm:$0xff]
    %v790 = vld [vmem:[#allocation7 + $0x15f0] sm:$0xff]
    %v791 = vld [vmem:[#allocation7 + $0x15f8] sm:$0xff]
    %v792 = vld [vmem:[#allocation7 + $0x1600] sm:$0xff]
    %v793 = vld [vmem:[#allocation7 + $0x1608] sm:$0xff]
    %v794 = vld [vmem:[#allocation7 + $0x1610] sm:$0xff]
    %v795 = vld [vmem:[#allocation7 + $0x1618] sm:$0xff]
    %v796 = vld [vmem:[#allocation7 + $0x1620] sm:$0xff]
    %v797 = vld [vmem:[#allocation7 + $0x1628] sm:$0xff]
    %v798 = vld [vmem:[#allocation7 + $0x1630] sm:$0xff]
    %v799 = vld [vmem:[#allocation7 + $0x1638] sm:$0xff]
    %v800 = vld [vmem:[#allocation7 + $0x1640] sm:$0xff]
    %v801 = vld [vmem:[#allocation7 + $0x1648] sm:$0xff]
    %v802 = vld [vmem:[#allocation7 + $0x1650] sm:$0xff]
    %v803 = vld [vmem:[#allocation7 + $0x1658] sm:$0xff]
    %v804 = vld [vmem:[#allocation7 + $0x1660] sm:$0xff]
    %v805 = vld [vmem:[#allocation7 + $0x1668] sm:$0xff]
    %v806 = vld [vmem:[#allocation7 + $0x1670] sm:$0xff]
    %v807 = vld [vmem:[#allocation7 + $0x1678] sm:$0xff]
    %v808 = vld [vmem:[#allocation7 + $0x1680] sm:$0xff]
    %v809 = vld [vmem:[#allocation7 + $0x1688] sm:$0xff]
    %v810 = vld [vmem:[#allocation7 + $0x1690] sm:$0xff]
    %v811 = vld [vmem:[#allocation7 + $0x1698] sm:$0xff]
    %v812 = vld [vmem:[#allocation7 + $0x16a0] sm:$0xff]
    %v813 = vld [vmem:[#allocation7 + $0x16a8] sm:$0xff]
    %v814 = vld [vmem:[#allocation7 + $0x16b0] sm:$0xff]
    %v815 = vld [vmem:[#allocation7 + $0x16b8] sm:$0xff]
    %v816 = vld [vmem:[#allocation7 + $0x16c0] sm:$0xff]
    %v817 = vld [vmem:[#allocation7 + $0x16c8] sm:$0xff]
    %v818 = vld [vmem:[#allocation7 + $0x16d0] sm:$0xff]
    %v819 = vld [vmem:[#allocation7 + $0x16d8] sm:$0xff]
    %v820 = vld [vmem:[#allocation7 + $0x16e0] sm:$0xff]
    %v821 = vld [vmem:[#allocation7 + $0x16e8] sm:$0xff]
    %v822 = vld [vmem:[#allocation7 + $0x16f0] sm:$0xff]
    %v823 = vld [vmem:[#allocation7 + $0x16f8] sm:$0xff]
    %v824 = vld [vmem:[#allocation7 + $0x1700] sm:$0xff]
    %v825 = vld [vmem:[#allocation7 + $0x1708] sm:$0xff]
    %v826 = vld [vmem:[#allocation7 + $0x1710] sm:$0xff]
    %v827 = vld [vmem:[#allocation7 + $0x1718] sm:$0xff]
    %v828 = vld [vmem:[#allocation7 + $0x1720] sm:$0xff]
    %v829 = vld [vmem:[#allocation7 + $0x1728] sm:$0xff]
    %v830 = vld [vmem:[#allocation7 + $0x1730] sm:$0xff]
    %v831 = vld [vmem:[#allocation7 + $0x1738] sm:$0xff]
    %v832 = vld [vmem:[#allocation7 + $0x1740] sm:$0xff]
    %v833 = vld [vmem:[#allocation7 + $0x1748] sm:$0xff]
    %v834 = vld [vmem:[#allocation7 + $0x1750] sm:$0xff]
    %v835 = vld [vmem:[#allocation7 + $0x1758] sm:$0xff]
    %v836 = vld [vmem:[#allocation7 + $0x1760] sm:$0xff]
    %v837 = vld [vmem:[#allocation7 + $0x1768] sm:$0xff]
    %v838 = vld [vmem:[#allocation7 + $0x1770] sm:$0xff]
    %v839 = vld [vmem:[#allocation7 + $0x1778] sm:$0xff]
    %v840 = vld [vmem:[#allocation7 + $0x1780] sm:$0xff]
    %v841 = vld [vmem:[#allocation7 + $0x1788] sm:$0xff]
    %v842 = vld [vmem:[#allocation7 + $0x1790] sm:$0xff]
    %v843 = vld [vmem:[#allocation7 + $0x1798] sm:$0xff]
    %v844 = vld [vmem:[#allocation7 + $0x17a0] sm:$0xff]
    %v845 = vld [vmem:[#allocation7 + $0x17a8] sm:$0xff]
    %v846 = vld [vmem:[#allocation7 + $0x17b0] sm:$0xff]
    %v847 = vld [vmem:[#allocation7 + $0x17b8] sm:$0xff]
    %v848 = vld [vmem:[#allocation7 + $0x17c0] sm:$0xff]
    %v849 = vld [vmem:[#allocation7 + $0x17c8] sm:$0xff]
    %v850 = vld [vmem:[#allocation7 + $0x17d0] sm:$0xff]
    %v851 = vld [vmem:[#allocation7 + $0x17d8] sm:$0xff]
    %v852 = vld [vmem:[#allocation7 + $0x17e0] sm:$0xff]
    %v853 = vld [vmem:[#allocation7 + $0x17e8] sm:$0xff]
    %v854 = vld [vmem:[#allocation7 + $0x17f0] sm:$0xff]
    %v855 = vld [vmem:[#allocation7 + $0x17f8] sm:$0xff]
    %v856 = vld [vmem:[#allocation7 + $0x1800] sm:$0xff]
    %v857 = vld [vmem:[#allocation7 + $0x1808] sm:$0xff]
    %v858 = vld [vmem:[#allocation7 + $0x1810] sm:$0xff]
    %v859 = vld [vmem:[#allocation7 + $0x1818] sm:$0xff]
    %v860 = vld [vmem:[#allocation7 + $0x1820] sm:$0xff]
    %v861 = vld [vmem:[#allocation7 + $0x1828] sm:$0xff]
    %v862 = vld [vmem:[#allocation7 + $0x1830] sm:$0xff]
    %v863 = vld [vmem:[#allocation7 + $0x1838] sm:$0xff]
    %v864 = vld [vmem:[#allocation7 + $0x1840] sm:$0xff]
    %v865 = vld [vmem:[#allocation7 + $0x1848] sm:$0xff]
    %v866 = vld [vmem:[#allocation7 + $0x1850] sm:$0xff]
    %v867 = vld [vmem:[#allocation7 + $0x1858] sm:$0xff]
    %v868 = vld [vmem:[#allocation7 + $0x1860] sm:$0xff]
    %v869 = vld [vmem:[#allocation7 + $0x1868] sm:$0xff]
    %v870 = vld [vmem:[#allocation7 + $0x1870] sm:$0xff]
    %v871 = vld [vmem:[#allocation7 + $0x1878] sm:$0xff]
    %v872 = vld [vmem:[#allocation7 + $0x1880] sm:$0xff]
    %v873 = vld [vmem:[#allocation7 + $0x1888] sm:$0xff]
    %v874 = vld [vmem:[#allocation7 + $0x1890] sm:$0xff]
    %v875 = vld [vmem:[#allocation7 + $0x1898] sm:$0xff]
    %v876 = vld [vmem:[#allocation7 + $0x18a0] sm:$0xff]
    %v877 = vld [vmem:[#allocation7 + $0x18a8] sm:$0xff]
    %v878 = vld [vmem:[#allocation7 + $0x18b0] sm:$0xff]
    %v879 = vld [vmem:[#allocation7 + $0x18b8] sm:$0xff]
    %v880 = vld [vmem:[#allocation7 + $0x18c0] sm:$0xff]
    %v881 = vld [vmem:[#allocation7 + $0x18c8] sm:$0xff]
    %v882 = vld [vmem:[#allocation7 + $0x18d0] sm:$0xff]
    %v883 = vld [vmem:[#allocation7 + $0x18d8] sm:$0xff]
    %v884 = vld [vmem:[#allocation7 + $0x18e0] sm:$0xff]
    %v885 = vld [vmem:[#allocation7 + $0x18e8] sm:$0xff]
    %v886 = vld [vmem:[#allocation7 + $0x18f0] sm:$0xff]
    %v887 = vld [vmem:[#allocation7 + $0x18f8] sm:$0xff]
    %v888 = vld [vmem:[#allocation7 + $0x1900] sm:$0xff]
    %v889 = vld [vmem:[#allocation7 + $0x1908] sm:$0xff]
    %v890 = vld [vmem:[#allocation7 + $0x1910] sm:$0xff]
    %v891 = vld [vmem:[#allocation7 + $0x1918] sm:$0xff]
    %v892 = vld [vmem:[#allocation7 + $0x1920] sm:$0xff]
    %v893 = vld [vmem:[#allocation7 + $0x1928] sm:$0xff]
    %v894 = vld [vmem:[#allocation7 + $0x1930] sm:$0xff]
    %v895 = vld [vmem:[#allocation7 + $0x1938] sm:$0xff]
    %v896 = vld [vmem:[#allocation7 + $0x1940] sm:$0xff]
    %v897 = vld [vmem:[#allocation7 + $0x1948] sm:$0xff]
    %v898 = vld [vmem:[#allocation7 + $0x1950] sm:$0xff]
    %v899 = vld [vmem:[#allocation7 + $0x1958] sm:$0xff]
    %v900 = vld [vmem:[#allocation7 + $0x1960] sm:$0xff]
    %v901 = vld [vmem:[#allocation7 + $0x1968] sm:$0xff]
    %v902 = vld [vmem:[#allocation7 + $0x1970] sm:$0xff]
    %v903 = vld [vmem:[#allocation7 + $0x1978] sm:$0xff]
    %v904 = vld [vmem:[#allocation7 + $0x1980] sm:$0xff]
    %v905 = vld [vmem:[#allocation7 + $0x1988] sm:$0xff]
    %v906 = vld [vmem:[#allocation7 + $0x1990] sm:$0xff]
    %v907 = vld [vmem:[#allocation7 + $0x1998] sm:$0xff]
    %v908 = vld [vmem:[#allocation7 + $0x19a0] sm:$0xff]
    %v909 = vld [vmem:[#allocation7 + $0x19a8] sm:$0xff]
    %v910 = vld [vmem:[#allocation7 + $0x19b0] sm:$0xff]
    %v911 = vld [vmem:[#allocation7 + $0x19b8] sm:$0xff]
    %v912 = vld [vmem:[#allocation7 + $0x19c0] sm:$0xff]
    %v913 = vld [vmem:[#allocation7 + $0x19c8] sm:$0xff]
    %v914 = vld [vmem:[#allocation7 + $0x19d0] sm:$0xff]
    %v915 = vld [vmem:[#allocation7 + $0x19d8] sm:$0xff]
    %v916 = vld [vmem:[#allocation7 + $0x19e0] sm:$0xff]
    %v917 = vld [vmem:[#allocation7 + $0x19e8] sm:$0xff]
    %v918 = vld [vmem:[#allocation7 + $0x19f0] sm:$0xff]
    %v919 = vld [vmem:[#allocation7 + $0x19f8] sm:$0xff]
    %v920 = vld [vmem:[#allocation7 + $0x1a00] sm:$0xff]
    %v921 = vld [vmem:[#allocation7 + $0x1a08] sm:$0xff]
    %v922 = vld [vmem:[#allocation7 + $0x1a10] sm:$0xff]
    %v923 = vld [vmem:[#allocation7 + $0x1a18] sm:$0xff]
    %v924 = vld [vmem:[#allocation7 + $0x1a20] sm:$0xff]
    %v925 = vld [vmem:[#allocation7 + $0x1a28] sm:$0xff]
    %v926 = vld [vmem:[#allocation7 + $0x1a30] sm:$0xff]
    %v927 = vld [vmem:[#allocation7 + $0x1a38] sm:$0xff]
    %v928 = vld [vmem:[#allocation7 + $0x1a40] sm:$0xff]
    %v929 = vld [vmem:[#allocation7 + $0x1a48] sm:$0xff]
    %v930 = vld [vmem:[#allocation7 + $0x1a50] sm:$0xff]
    %v931 = vld [vmem:[#allocation7 + $0x1a58] sm:$0xff]
    %v932 = vld [vmem:[#allocation7 + $0x1a60] sm:$0xff]
    %v933 = vld [vmem:[#allocation7 + $0x1a68] sm:$0xff]
    %v934 = vld [vmem:[#allocation7 + $0x1a70] sm:$0xff]
    %v935 = vld [vmem:[#allocation7 + $0x1a78] sm:$0xff]
    %v936 = vld [vmem:[#allocation7 + $0x1a80] sm:$0xff]
    %v937 = vld [vmem:[#allocation7 + $0x1a88] sm:$0xff]
    %v938 = vld [vmem:[#allocation7 + $0x1a90] sm:$0xff]
    %v939 = vld [vmem:[#allocation7 + $0x1a98] sm:$0xff]
    %v940 = vld [vmem:[#allocation7 + $0x1aa0] sm:$0xff]
    %v941 = vld [vmem:[#allocation7 + $0x1aa8] sm:$0xff]
    %v942 = vld [vmem:[#allocation7 + $0x1ab0] sm:$0xff]
    %v943 = vld [vmem:[#allocation7 + $0x1ab8] sm:$0xff]
    %v944 = vld [vmem:[#allocation7 + $0x1ac0] sm:$0xff]
    %v945 = vld [vmem:[#allocation7 + $0x1ac8] sm:$0xff]
    %v946 = vld [vmem:[#allocation7 + $0x1ad0] sm:$0xff]
    %v947 = vld [vmem:[#allocation7 + $0x1ad8] sm:$0xff]
    %v948 = vld [vmem:[#allocation7 + $0x1ae0] sm:$0xff]
    %v949 = vld [vmem:[#allocation7 + $0x1ae8] sm:$0xff]
    %v950 = vld [vmem:[#allocation7 + $0x1af0] sm:$0xff]
    %v951 = vld [vmem:[#allocation7 + $0x1af8] sm:$0xff]
    %v952 = vld [vmem:[#allocation7 + $0x1b00] sm:$0xff]
    %v953 = vld [vmem:[#allocation7 + $0x1b08] sm:$0xff]
    %v954 = vld [vmem:[#allocation7 + $0x1b10] sm:$0xff]
    %v955 = vld [vmem:[#allocation7 + $0x1b18] sm:$0xff]
    %v956 = vld [vmem:[#allocation7 + $0x1b20] sm:$0xff]
    %v957 = vld [vmem:[#allocation7 + $0x1b28] sm:$0xff]
    %v958 = vld [vmem:[#allocation7 + $0x1b30] sm:$0xff]
    %v959 = vld [vmem:[#allocation7 + $0x1b38] sm:$0xff]
    %v960 = vld [vmem:[#allocation7 + $0x1b40] sm:$0xff]
    %v961 = vld [vmem:[#allocation7 + $0x1b48] sm:$0xff]
    %v962 = vld [vmem:[#allocation7 + $0x1b50] sm:$0xff]
    %v963 = vld [vmem:[#allocation7 + $0x1b58] sm:$0xff]
    %v964 = vld [vmem:[#allocation7 + $0x1b60] sm:$0xff]
    %v965 = vld [vmem:[#allocation7 + $0x1b68] sm:$0xff]
    %v966 = vld [vmem:[#allocation7 + $0x1b70] sm:$0xff]
    %v967 = vld [vmem:[#allocation7 + $0x1b78] sm:$0xff]
    %v968 = vld [vmem:[#allocation7 + $0x1b80] sm:$0xff]
    %v969 = vld [vmem:[#allocation7 + $0x1b88] sm:$0xff]
    %v970 = vld [vmem:[#allocation7 + $0x1b90] sm:$0xff]
    %v971 = vld [vmem:[#allocation7 + $0x1b98] sm:$0xff]
    %v972 = vld [vmem:[#allocation7 + $0x1ba0] sm:$0xff]
    %v973 = vld [vmem:[#allocation7 + $0x1ba8] sm:$0xff]
    %v974 = vld [vmem:[#allocation7 + $0x1bb0] sm:$0xff]
    %v975 = vld [vmem:[#allocation7 + $0x1bb8] sm:$0xff]
    %v976 = vld [vmem:[#allocation7 + $0x1bc0] sm:$0xff]
    %v977 = vld [vmem:[#allocation7 + $0x1bc8] sm:$0xff]
    %v978 = vld [vmem:[#allocation7 + $0x1bd0] sm:$0xff]
    %v979 = vld [vmem:[#allocation7 + $0x1bd8] sm:$0xff]
    %v980 = vld [vmem:[#allocation7 + $0x1be0] sm:$0xff]
    %v981 = vld [vmem:[#allocation7 + $0x1be8] sm:$0xff]
    %v982 = vld [vmem:[#allocation7 + $0x1bf0] sm:$0xff]
    %v983 = vld [vmem:[#allocation7 + $0x1bf8] sm:$0xff]
    %v984 = vld [vmem:[#allocation7 + $0x1c00] sm:$0xff]
    %v985 = vld [vmem:[#allocation7 + $0x1c08] sm:$0xff]
    %v986 = vld [vmem:[#allocation7 + $0x1c10] sm:$0xff]
    %v987 = vld [vmem:[#allocation7 + $0x1c18] sm:$0xff]
    %v988 = vld [vmem:[#allocation7 + $0x1c20] sm:$0xff]
    %v989 = vld [vmem:[#allocation7 + $0x1c28] sm:$0xff]
    %v990 = vld [vmem:[#allocation7 + $0x1c30] sm:$0xff]
    %v991 = vld [vmem:[#allocation7 + $0x1c38] sm:$0xff]
    %v992 = vld [vmem:[#allocation7 + $0x1c40] sm:$0xff]
    %v993 = vld [vmem:[#allocation7 + $0x1c48] sm:$0xff]
    %v994 = vld [vmem:[#allocation7 + $0x1c50] sm:$0xff]
    %v995 = vld [vmem:[#allocation7 + $0x1c58] sm:$0xff]
    %v996 = vld [vmem:[#allocation7 + $0x1c60] sm:$0xff]
    %v997 = vld [vmem:[#allocation7 + $0x1c68] sm:$0xff]
    %v998 = vld [vmem:[#allocation7 + $0x1c70] sm:$0xff]
    %v999 = vld [vmem:[#allocation7 + $0x1c78] sm:$0xff]
    %v1000 = vld [vmem:[#allocation7 + $0x1c80] sm:$0xff]
    %v1001 = vld [vmem:[#allocation7 + $0x1c88] sm:$0xff]
    %v1002 = vld [vmem:[#allocation7 + $0x1c90] sm:$0xff]
    %v1003 = vld [vmem:[#allocation7 + $0x1c98] sm:$0xff]
    %v1004 = vld [vmem:[#allocation7 + $0x1ca0] sm:$0xff]
    %v1005 = vld [vmem:[#allocation7 + $0x1ca8] sm:$0xff]
    %v1006 = vld [vmem:[#allocation7 + $0x1cb0] sm:$0xff]
    %v1007 = vld [vmem:[#allocation7 + $0x1cb8] sm:$0xff]
    %v1008 = vld [vmem:[#allocation7 + $0x1cc0] sm:$0xff]
    %v1009 = vld [vmem:[#allocation7 + $0x1cc8] sm:$0xff]
    %v1010 = vld [vmem:[#allocation7 + $0x1cd0] sm:$0xff]
    %v1011 = vld [vmem:[#allocation7 + $0x1cd8] sm:$0xff]
    %v1012 = vld [vmem:[#allocation7 + $0x1ce0] sm:$0xff]
    %v1013 = vld [vmem:[#allocation7 + $0x1ce8] sm:$0xff]
    %v1014 = vld [vmem:[#allocation7 + $0x1cf0] sm:$0xff]
    %v1015 = vld [vmem:[#allocation7 + $0x1cf8] sm:$0xff]
    %v1016 = vld [vmem:[#allocation7 + $0x1d00] sm:$0xff]
    %v1017 = vld [vmem:[#allocation7 + $0x1d08] sm:$0xff]
    %v1018 = vld [vmem:[#allocation7 + $0x1d10] sm:$0xff]
    %v1019 = vld [vmem:[#allocation7 + $0x1d18] sm:$0xff]
    %v1020 = vld [vmem:[#allocation7 + $0x1d20] sm:$0xff]
    %v1021 = vld [vmem:[#allocation7 + $0x1d28] sm:$0xff]
    %v1022 = vld [vmem:[#allocation7 + $0x1d30] sm:$0xff]
    %v1023 = vld [vmem:[#allocation7 + $0x1d38] sm:$0xff]
    %v1024 = vld [vmem:[#allocation7 + $0x1d40] sm:$0xff]
    %v1025 = vld [vmem:[#allocation7 + $0x1d48] sm:$0xff]
    %v1026 = vld [vmem:[#allocation7 + $0x1d50] sm:$0xff]
    %v1027 = vld [vmem:[#allocation7 + $0x1d58] sm:$0xff]
    %v1028 = vld [vmem:[#allocation7 + $0x1d60] sm:$0xff]
    %v1029 = vld [vmem:[#allocation7 + $0x1d68] sm:$0xff]
    %v1030 = vld [vmem:[#allocation7 + $0x1d70] sm:$0xff]
    %v1031 = vld [vmem:[#allocation7 + $0x1d78] sm:$0xff]
    %v1032 = vld [vmem:[#allocation7 + $0x1d80] sm:$0xff]
    %v1033 = vld [vmem:[#allocation7 + $0x1d88] sm:$0xff]
    %v1034 = vld [vmem:[#allocation7 + $0x1d90] sm:$0xff]
    %v1035 = vld [vmem:[#allocation7 + $0x1d98] sm:$0xff]
    %v1036 = vld [vmem:[#allocation7 + $0x1da0] sm:$0xff]
    %v1037 = vld [vmem:[#allocation7 + $0x1da8] sm:$0xff]
    %v1038 = vld [vmem:[#allocation7 + $0x1db0] sm:$0xff]
    %v1039 = vld [vmem:[#allocation7 + $0x1db8] sm:$0xff]
    %v1040 = vld [vmem:[#allocation7 + $0x1dc0] sm:$0xff]
    %v1041 = vld [vmem:[#allocation7 + $0x1dc8] sm:$0xff]
    %v1042 = vld [vmem:[#allocation7 + $0x1dd0] sm:$0xff]
    %v1043 = vld [vmem:[#allocation7 + $0x1dd8] sm:$0xff]
    %v1044 = vld [vmem:[#allocation7 + $0x1de0] sm:$0xff]
    %v1045 = vld [vmem:[#allocation7 + $0x1de8] sm:$0xff]
    %v1046 = vld [vmem:[#allocation7 + $0x1df0] sm:$0xff]
    %v1047 = vld [vmem:[#allocation7 + $0x1df8] sm:$0xff]
    %v1048 = vld [vmem:[#allocation7 + $0x1e00] sm:$0xff]
    %v1049 = vld [vmem:[#allocation7 + $0x1e08] sm:$0xff]
    %v1050 = vld [vmem:[#allocation7 + $0x1e10] sm:$0xff]
    %v1051 = vld [vmem:[#allocation7 + $0x1e18] sm:$0xff]
    %v1052 = vld [vmem:[#allocation7 + $0x1e20] sm:$0xff]
    %v1053 = vld [vmem:[#allocation7 + $0x1e28] sm:$0xff]
    %v1054 = vld [vmem:[#allocation7 + $0x1e30] sm:$0xff]
    %v1055 = vld [vmem:[#allocation7 + $0x1e38] sm:$0xff]
    %v1056 = vld [vmem:[#allocation7 + $0x1e40] sm:$0xff]
    %v1057 = vld [vmem:[#allocation7 + $0x1e48] sm:$0xff]
    %v1058 = vld [vmem:[#allocation7 + $0x1e50] sm:$0xff]
    %v1059 = vld [vmem:[#allocation7 + $0x1e58] sm:$0xff]
    %v1060 = vld [vmem:[#allocation7 + $0x1e60] sm:$0xff]
    %v1061 = vld [vmem:[#allocation7 + $0x1e68] sm:$0xff]
    %v1062 = vld [vmem:[#allocation7 + $0x1e70] sm:$0xff]
    %v1063 = vld [vmem:[#allocation7 + $0x1e78] sm:$0xff]
    %v1064 = vld [vmem:[#allocation7 + $0x1e80] sm:$0xff]
    %v1065 = vld [vmem:[#allocation7 + $0x1e88] sm:$0xff]
    %v1066 = vld [vmem:[#allocation7 + $0x1e90] sm:$0xff]
    %v1067 = vld [vmem:[#allocation7 + $0x1e98] sm:$0xff]
    %v1068 = vld [vmem:[#allocation7 + $0x1ea0] sm:$0xff]
    %v1069 = vld [vmem:[#allocation7 + $0x1ea8] sm:$0xff]
    %v1070 = vld [vmem:[#allocation7 + $0x1eb0] sm:$0xff]
    %v1071 = vld [vmem:[#allocation7 + $0x1eb8] sm:$0xff]
    %v1072 = vld [vmem:[#allocation7 + $0x1ec0] sm:$0xff]
    %v1073 = vld [vmem:[#allocation7 + $0x1ec8] sm:$0xff]
    %v1074 = vld [vmem:[#allocation7 + $0x1ed0] sm:$0xff]
    %v1075 = vld [vmem:[#allocation7 + $0x1ed8] sm:$0xff]
    %v1076 = vld [vmem:[#allocation7 + $0x1ee0] sm:$0xff]
    %v1077 = vld [vmem:[#allocation7 + $0x1ee8] sm:$0xff]
    %v1078 = vld [vmem:[#allocation7 + $0x1ef0] sm:$0xff]
    %v1079 = vld [vmem:[#allocation7 + $0x1ef8] sm:$0xff]
    %v1080 = vld [vmem:[#allocation7 + $0x1f00] sm:$0xff]
    %v1081 = vld [vmem:[#allocation7 + $0x1f08] sm:$0xff]
    %v1082 = vld [vmem:[#allocation7 + $0x1f10] sm:$0xff]
    %v1083 = vld [vmem:[#allocation7 + $0x1f18] sm:$0xff]
    %v1084 = vld [vmem:[#allocation7 + $0x1f20] sm:$0xff]
    %v1085 = vld [vmem:[#allocation7 + $0x1f28] sm:$0xff]
    %v1086 = vld [vmem:[#allocation7 + $0x1f30] sm:$0xff]
    %v1087 = vld [vmem:[#allocation7 + $0x1f38] sm:$0xff]
    %v1088 = vld [vmem:[#allocation7 + $0x1f40] sm:$0xff]
    %v1089 = vld [vmem:[#allocation7 + $0x1f48] sm:$0xff]
    %v1090 = vld [vmem:[#allocation7 + $0x1f50] sm:$0xff]
    %v1091 = vld [vmem:[#allocation7 + $0x1f58] sm:$0xff]
    %v1092 = vld [vmem:[#allocation7 + $0x1f60] sm:$0xff]
    %v1093 = vld [vmem:[#allocation7 + $0x1f68] sm:$0xff]
    %v1094 = vld [vmem:[#allocation7 + $0x1f70] sm:$0xff]
    %v1095 = vld [vmem:[#allocation7 + $0x1f78] sm:$0xff]
    %v1096 = vld [vmem:[#allocation7 + $0x1f80] sm:$0xff]
    %v1097 = vld [vmem:[#allocation7 + $0x1f88] sm:$0xff]
    %v1098 = vld [vmem:[#allocation7 + $0x1f90] sm:$0xff]
    %v1099 = vld [vmem:[#allocation7 + $0x1f98] sm:$0xff]
    %v1100 = vld [vmem:[#allocation7 + $0x1fa0] sm:$0xff]
    %v1101 = vld [vmem:[#allocation7 + $0x1fa8] sm:$0xff]
    %v1102 = vld [vmem:[#allocation7 + $0x1fb0] sm:$0xff]
    %v1103 = vld [vmem:[#allocation7 + $0x1fb8] sm:$0xff]
    %v1104 = vld [vmem:[#allocation7 + $0x1fc0] sm:$0xff]
    %v1105 = vld [vmem:[#allocation7 + $0x1fc8] sm:$0xff]
    %v1106 = vld [vmem:[#allocation7 + $0x1fd0] sm:$0xff]
    %v1107 = vld [vmem:[#allocation7 + $0x1fd8] sm:$0xff]
    %v1108 = vld [vmem:[#allocation7 + $0x1fe0] sm:$0xff]
    %v1109 = vld [vmem:[#allocation7 + $0x1fe8] sm:$0xff]
    %v1110 = vld [vmem:[#allocation7 + $0x1ff0] sm:$0xff]
    %v1111 = vld [vmem:[#allocation7 + $0x1ff8] sm:$0xff]
    %v1114 = vcombine.high %v598, %v598
    %v1116 = vunpack.c.l.s4 1966171168
    %v1117 = vunpack.c.0.s8 %v1116
    %v1118 = vlaneseq
    %v1119 = vshrl.u32 %v1118, 7
    %v1120 = vsub.s32 %v1117, %v1119
    %v1121 = vrot.slane %v598, %v1120
    %v1123 = vunpack.c.l.s4 1966171168
    %v1124 = vunpack.c.0.s8 %v1123
    %v1125 = vlaneseq
    %v1126 = vshrl.u32 %v1125, 7
    %v1127 = vsub.s32 %v1124, %v1126
    %v1128 = vrot.slane %v1114, %v1127
    %v1129 = vcombine.high %v1121, %v1121
    %v1130 = vcombine.high %v1128, %v1128
    %v1132 = vunpack.c.l.s4 1966171168
    %v1133 = vunpack.c.0.s8 %v1132
    %v1134 = vlaneseq
    %v1135 = vshrl.u32 %v1134, 7
    %v1136 = vsub.s32 %v1133, %v1135
    %v1137 = vrot.slane %v1121, %v1136
    %v1139 = vunpack.c.l.s4 1966171168
    %v1140 = vunpack.c.0.s8 %v1139
    %v1141 = vlaneseq
    %v1142 = vshrl.u32 %v1141, 7
    %v1143 = vsub.s32 %v1140, %v1142
    %v1144 = vrot.slane %v1128, %v1143
    %v1146 = vunpack.c.l.s4 1966171168
    %v1147 = vunpack.c.0.s8 %v1146
    %v1148 = vlaneseq
    %v1149 = vshrl.u32 %v1148, 7
    %v1150 = vsub.s32 %v1147, %v1149
    %v1151 = vrot.slane %v1129, %v1150
    %v1153 = vunpack.c.l.s4 1966171168
    %v1154 = vunpack.c.0.s8 %v1153
    %v1155 = vlaneseq
    %v1156 = vshrl.u32 %v1155, 7
    %v1157 = vsub.s32 %v1154, %v1156
    %v1158 = vrot.slane %v1130, %v1157
    %v1159 = vcombine.high %v1137, %v1137
    %v1160 = vcombine.high %v1144, %v1144
    %v1161 = vcombine.high %v1151, %v1151
    %v1162 = vcombine.high %v1158, %v1158
    %v1163 = vcombine.high %v599, %v599
    %v1165 = vunpack.c.l.s4 1966171168
    %v1166 = vunpack.c.0.s8 %v1165
    %v1167 = vlaneseq
    %v1168 = vshrl.u32 %v1167, 7
    %v1169 = vsub.s32 %v1166, %v1168
    %v1170 = vrot.slane %v599, %v1169
    %v1172 = vunpack.c.l.s4 1966171168
    %v1173 = vunpack.c.0.s8 %v1172
    %v1174 = vlaneseq
    %v1175 = vshrl.u32 %v1174, 7
    %v1176 = vsub.s32 %v1173, %v1175
    %v1177 = vrot.slane %v1163, %v1176
    %v1178 = vcombine.high %v1170, %v1170
    %v1179 = vcombine.high %v1177, %v1177
    %v1181 = vunpack.c.l.s4 1966171168
    %v1182 = vunpack.c.0.s8 %v1181
    %v1183 = vlaneseq
    %v1184 = vshrl.u32 %v1183, 7
    %v1185 = vsub.s32 %v1182, %v1184
    %v1186 = vrot.slane %v1170, %v1185
    %v1188 = vunpack.c.l.s4 1966171168
    %v1189 = vunpack.c.0.s8 %v1188
    %v1190 = vlaneseq
    %v1191 = vshrl.u32 %v1190, 7
    %v1192 = vsub.s32 %v1189, %v1191
    %v1193 = vrot.slane %v1177, %v1192
    %v1195 = vunpack.c.l.s4 1966171168
    %v1196 = vunpack.c.0.s8 %v1195
    %v1197 = vlaneseq
    %v1198 = vshrl.u32 %v1197, 7
    %v1199 = vsub.s32 %v1196, %v1198
    %v1200 = vrot.slane %v1178, %v1199
    %v1202 = vunpack.c.l.s4 1966171168
    %v1203 = vunpack.c.0.s8 %v1202
    %v1204 = vlaneseq
    %v1205 = vshrl.u32 %v1204, 7
    %v1206 = vsub.s32 %v1203, %v1205
    %v1207 = vrot.slane %v1179, %v1206
    %v1208 = vcombine.high %v1186, %v1186
    %v1209 = vcombine.high %v1193, %v1193
    %v1210 = vcombine.high %v1200, %v1200
    %v1211 = vcombine.high %v1207, %v1207
    %v1740 = vunpack.c.l.b16 %v600
    %v1741 = vunpack.c.h.b16 %v600
    %v1742 = vunpack.c.l.b16 %v601
    %v1743 = vunpack.c.h.b16 %v601
    %v1744 = vunpack.c.l.b16 %v602
    %v1745 = vunpack.c.h.b16 %v602
    %v1746 = vunpack.c.l.b16 %v603
    %v1747 = vunpack.c.h.b16 %v603
    %v1748 = vunpack.c.l.b16 %v604
    %v1749 = vunpack.c.h.b16 %v604
    %v1750 = vunpack.c.l.b16 %v605
    %v1751 = vunpack.c.h.b16 %v605
    %v1752 = vunpack.c.l.b16 %v606
    %v1753 = vunpack.c.h.b16 %v606
    %v1754 = vunpack.c.l.b16 %v607
    %v1755 = vunpack.c.h.b16 %v607
    %v1756 = vunpack.c.l.b16 %v608
    %v1757 = vunpack.c.h.b16 %v608
    %v1758 = vunpack.c.l.b16 %v609
    %v1759 = vunpack.c.h.b16 %v609
    %v1760 = vunpack.c.l.b16 %v610
    %v1761 = vunpack.c.h.b16 %v610
    %v1762 = vunpack.c.l.b16 %v611
    %v1763 = vunpack.c.h.b16 %v611
    %v1764 = vunpack.c.l.b16 %v612
    %v1765 = vunpack.c.h.b16 %v612
    %v1766 = vunpack.c.l.b16 %v613
    %v1767 = vunpack.c.h.b16 %v613
    %v1768 = vunpack.c.l.b16 %v614
    %v1769 = vunpack.c.h.b16 %v614
    %v1770 = vunpack.c.l.b16 %v615
    %v1771 = vunpack.c.h.b16 %v615
    %v1772 = vunpack.c.l.b16 %v616
    %v1773 = vunpack.c.h.b16 %v616
    %v1774 = vunpack.c.l.b16 %v617
    %v1775 = vunpack.c.h.b16 %v617
    %v1776 = vunpack.c.l.b16 %v618
    %v1777 = vunpack.c.h.b16 %v618
    %v1778 = vunpack.c.l.b16 %v619
    %v1779 = vunpack.c.h.b16 %v619
    %v1780 = vunpack.c.l.b16 %v620
    %v1781 = vunpack.c.h.b16 %v620
    %v1782 = vunpack.c.l.b16 %v621
    %v1783 = vunpack.c.h.b16 %v621
    %v1784 = vunpack.c.l.b16 %v622
    %v1785 = vunpack.c.h.b16 %v622
    %v1786 = vunpack.c.l.b16 %v623
    %v1787 = vunpack.c.h.b16 %v623
    %v1788 = vunpack.c.l.b16 %v624
    %v1789 = vunpack.c.h.b16 %v624
    %v1790 = vunpack.c.l.b16 %v625
    %v1791 = vunpack.c.h.b16 %v625
    %v1792 = vunpack.c.l.b16 %v626
    %v1793 = vunpack.c.h.b16 %v626
    %v1794 = vunpack.c.l.b16 %v627
    %v1795 = vunpack.c.h.b16 %v627
    %v1796 = vunpack.c.l.b16 %v628
    %v1797 = vunpack.c.h.b16 %v628
    %v1798 = vunpack.c.l.b16 %v629
    %v1799 = vunpack.c.h.b16 %v629
    %v1800 = vunpack.c.l.b16 %v630
    %v1801 = vunpack.c.h.b16 %v630
    %v1802 = vunpack.c.l.b16 %v631
    %v1803 = vunpack.c.h.b16 %v631
    %v1804 = vunpack.c.l.b16 %v632
    %v1805 = vunpack.c.h.b16 %v632
    %v1806 = vunpack.c.l.b16 %v633
    %v1807 = vunpack.c.h.b16 %v633
    %v1808 = vunpack.c.l.b16 %v634
    %v1809 = vunpack.c.h.b16 %v634
    %v1810 = vunpack.c.l.b16 %v635
    %v1811 = vunpack.c.h.b16 %v635
    %v1812 = vunpack.c.l.b16 %v636
    %v1813 = vunpack.c.h.b16 %v636
    %v1814 = vunpack.c.l.b16 %v637
    %v1815 = vunpack.c.h.b16 %v637
    %v1816 = vunpack.c.l.b16 %v638
    %v1817 = vunpack.c.h.b16 %v638
    %v1818 = vunpack.c.l.b16 %v639
    %v1819 = vunpack.c.h.b16 %v639
    %v1820 = vunpack.c.l.b16 %v640
    %v1821 = vunpack.c.h.b16 %v640
    %v1822 = vunpack.c.l.b16 %v641
    %v1823 = vunpack.c.h.b16 %v641
    %v1824 = vunpack.c.l.b16 %v642
    %v1825 = vunpack.c.h.b16 %v642
    %v1826 = vunpack.c.l.b16 %v643
    %v1827 = vunpack.c.h.b16 %v643
    %v1828 = vunpack.c.l.b16 %v644
    %v1829 = vunpack.c.h.b16 %v644
    %v1830 = vunpack.c.l.b16 %v645
    %v1831 = vunpack.c.h.b16 %v645
    %v1832 = vunpack.c.l.b16 %v646
    %v1833 = vunpack.c.h.b16 %v646
    %v1834 = vunpack.c.l.b16 %v647
    %v1835 = vunpack.c.h.b16 %v647
    %v1836 = vunpack.c.l.b16 %v648
    %v1837 = vunpack.c.h.b16 %v648
    %v1838 = vunpack.c.l.b16 %v649
    %v1839 = vunpack.c.h.b16 %v649
    %v1840 = vunpack.c.l.b16 %v650
    %v1841 = vunpack.c.h.b16 %v650
    %v1842 = vunpack.c.l.b16 %v651
    %v1843 = vunpack.c.h.b16 %v651
    %v1844 = vunpack.c.l.b16 %v652
    %v1845 = vunpack.c.h.b16 %v652
    %v1846 = vunpack.c.l.b16 %v653
    %v1847 = vunpack.c.h.b16 %v653
    %v1848 = vunpack.c.l.b16 %v654
    %v1849 = vunpack.c.h.b16 %v654
    %v1850 = vunpack.c.l.b16 %v655
    %v1851 = vunpack.c.h.b16 %v655
    %v1852 = vunpack.c.l.b16 %v656
    %v1853 = vunpack.c.h.b16 %v656
    %v1854 = vunpack.c.l.b16 %v657
    %v1855 = vunpack.c.h.b16 %v657
    %v1856 = vunpack.c.l.b16 %v658
    %v1857 = vunpack.c.h.b16 %v658
    %v1858 = vunpack.c.l.b16 %v659
    %v1859 = vunpack.c.h.b16 %v659
    %v1860 = vunpack.c.l.b16 %v660
    %v1861 = vunpack.c.h.b16 %v660
    %v1862 = vunpack.c.l.b16 %v661
    %v1863 = vunpack.c.h.b16 %v661
    %v1864 = vunpack.c.l.b16 %v662
    %v1865 = vunpack.c.h.b16 %v662
    %v1866 = vunpack.c.l.b16 %v663
    %v1867 = vunpack.c.h.b16 %v663
    %v1868 = vunpack.c.l.b16 %v664
    %v1869 = vunpack.c.h.b16 %v664
    %v1870 = vunpack.c.l.b16 %v665
    %v1871 = vunpack.c.h.b16 %v665
    %v1872 = vunpack.c.l.b16 %v666
    %v1873 = vunpack.c.h.b16 %v666
    %v1874 = vunpack.c.l.b16 %v667
    %v1875 = vunpack.c.h.b16 %v667
    %v1876 = vunpack.c.l.b16 %v668
    %v1877 = vunpack.c.h.b16 %v668
    %v1878 = vunpack.c.l.b16 %v669
    %v1879 = vunpack.c.h.b16 %v669
    %v1880 = vunpack.c.l.b16 %v670
    %v1881 = vunpack.c.h.b16 %v670
    %v1882 = vunpack.c.l.b16 %v671
    %v1883 = vunpack.c.h.b16 %v671
    %v1884 = vunpack.c.l.b16 %v672
    %v1885 = vunpack.c.h.b16 %v672
    %v1886 = vunpack.c.l.b16 %v673
    %v1887 = vunpack.c.h.b16 %v673
    %v1888 = vunpack.c.l.b16 %v674
    %v1889 = vunpack.c.h.b16 %v674
    %v1890 = vunpack.c.l.b16 %v675
    %v1891 = vunpack.c.h.b16 %v675
    %v1892 = vunpack.c.l.b16 %v676
    %v1893 = vunpack.c.h.b16 %v676
    %v1894 = vunpack.c.l.b16 %v677
    %v1895 = vunpack.c.h.b16 %v677
    %v1896 = vunpack.c.l.b16 %v678
    %v1897 = vunpack.c.h.b16 %v678
    %v1898 = vunpack.c.l.b16 %v679
    %v1899 = vunpack.c.h.b16 %v679
    %v1900 = vunpack.c.l.b16 %v680
    %v1901 = vunpack.c.h.b16 %v680
    %v1902 = vunpack.c.l.b16 %v681
    %v1903 = vunpack.c.h.b16 %v681
    %v1904 = vunpack.c.l.b16 %v682
    %v1905 = vunpack.c.h.b16 %v682
    %v1906 = vunpack.c.l.b16 %v683
    %v1907 = vunpack.c.h.b16 %v683
    %v1908 = vunpack.c.l.b16 %v684
    %v1909 = vunpack.c.h.b16 %v684
    %v1910 = vunpack.c.l.b16 %v685
    %v1911 = vunpack.c.h.b16 %v685
    %v1912 = vunpack.c.l.b16 %v686
    %v1913 = vunpack.c.h.b16 %v686
    %v1914 = vunpack.c.l.b16 %v687
    %v1915 = vunpack.c.h.b16 %v687
    %v1916 = vunpack.c.l.b16 %v688
    %v1917 = vunpack.c.h.b16 %v688
    %v1918 = vunpack.c.l.b16 %v689
    %v1919 = vunpack.c.h.b16 %v689
    %v1920 = vunpack.c.l.b16 %v690
    %v1921 = vunpack.c.h.b16 %v690
    %v1922 = vunpack.c.l.b16 %v691
    %v1923 = vunpack.c.h.b16 %v691
    %v1924 = vunpack.c.l.b16 %v692
    %v1925 = vunpack.c.h.b16 %v692
    %v1926 = vunpack.c.l.b16 %v693
    %v1927 = vunpack.c.h.b16 %v693
    %v1928 = vunpack.c.l.b16 %v694
    %v1929 = vunpack.c.h.b16 %v694
    %v1930 = vunpack.c.l.b16 %v695
    %v1931 = vunpack.c.h.b16 %v695
    %v1932 = vunpack.c.l.b16 %v696
    %v1933 = vunpack.c.h.b16 %v696
    %v1934 = vunpack.c.l.b16 %v697
    %v1935 = vunpack.c.h.b16 %v697
    %v1936 = vunpack.c.l.b16 %v698
    %v1937 = vunpack.c.h.b16 %v698
    %v1938 = vunpack.c.l.b16 %v699
    %v1939 = vunpack.c.h.b16 %v699
    %v1940 = vunpack.c.l.b16 %v700
    %v1941 = vunpack.c.h.b16 %v700
    %v1942 = vunpack.c.l.b16 %v701
    %v1943 = vunpack.c.h.b16 %v701
    %v1944 = vunpack.c.l.b16 %v702
    %v1945 = vunpack.c.h.b16 %v702
    %v1946 = vunpack.c.l.b16 %v703
    %v1947 = vunpack.c.h.b16 %v703
    %v1948 = vunpack.c.l.b16 %v704
    %v1949 = vunpack.c.h.b16 %v704
    %v1950 = vunpack.c.l.b16 %v705
    %v1951 = vunpack.c.h.b16 %v705
    %v1952 = vunpack.c.l.b16 %v706
    %v1953 = vunpack.c.h.b16 %v706
    %v1954 = vunpack.c.l.b16 %v707
    %v1955 = vunpack.c.h.b16 %v707
    %v1956 = vunpack.c.l.b16 %v708
    %v1957 = vunpack.c.h.b16 %v708
    %v1958 = vunpack.c.l.b16 %v709
    %v1959 = vunpack.c.h.b16 %v709
    %v1960 = vunpack.c.l.b16 %v710
    %v1961 = vunpack.c.h.b16 %v710
    %v1962 = vunpack.c.l.b16 %v711
    %v1963 = vunpack.c.h.b16 %v711
    %v1964 = vunpack.c.l.b16 %v712
    %v1965 = vunpack.c.h.b16 %v712
    %v1966 = vunpack.c.l.b16 %v713
    %v1967 = vunpack.c.h.b16 %v713
    %v1968 = vunpack.c.l.b16 %v714
    %v1969 = vunpack.c.h.b16 %v714
    %v1970 = vunpack.c.l.b16 %v715
    %v1971 = vunpack.c.h.b16 %v715
    %v1972 = vunpack.c.l.b16 %v716
    %v1973 = vunpack.c.h.b16 %v716
    %v1974 = vunpack.c.l.b16 %v717
    %v1975 = vunpack.c.h.b16 %v717
    %v1976 = vunpack.c.l.b16 %v718
    %v1977 = vunpack.c.h.b16 %v718
    %v1978 = vunpack.c.l.b16 %v719
    %v1979 = vunpack.c.h.b16 %v719
    %v1980 = vunpack.c.l.b16 %v720
    %v1981 = vunpack.c.h.b16 %v720
    %v1982 = vunpack.c.l.b16 %v721
    %v1983 = vunpack.c.h.b16 %v721
    %v1984 = vunpack.c.l.b16 %v722
    %v1985 = vunpack.c.h.b16 %v722
    %v1986 = vunpack.c.l.b16 %v723
    %v1987 = vunpack.c.h.b16 %v723
    %v1988 = vunpack.c.l.b16 %v724
    %v1989 = vunpack.c.h.b16 %v724
    %v1990 = vunpack.c.l.b16 %v725
    %v1991 = vunpack.c.h.b16 %v725
    %v1992 = vunpack.c.l.b16 %v726
    %v1993 = vunpack.c.h.b16 %v726
    %v1994 = vunpack.c.l.b16 %v727
    %v1995 = vunpack.c.h.b16 %v727
    %v1996 = vunpack.c.l.b16 %v728
    %v1997 = vunpack.c.h.b16 %v728
    %v1998 = vunpack.c.l.b16 %v729
    %v1999 = vunpack.c.h.b16 %v729
    %v2000 = vunpack.c.l.b16 %v730
    %v2001 = vunpack.c.h.b16 %v730
    %v2002 = vunpack.c.l.b16 %v731
    %v2003 = vunpack.c.h.b16 %v731
    %v2004 = vunpack.c.l.b16 %v732
    %v2005 = vunpack.c.h.b16 %v732
    %v2006 = vunpack.c.l.b16 %v733
    %v2007 = vunpack.c.h.b16 %v733
    %v2008 = vunpack.c.l.b16 %v734
    %v2009 = vunpack.c.h.b16 %v734
    %v2010 = vunpack.c.l.b16 %v735
    %v2011 = vunpack.c.h.b16 %v735
    %v2012 = vunpack.c.l.b16 %v736
    %v2013 = vunpack.c.h.b16 %v736
    %v2014 = vunpack.c.l.b16 %v737
    %v2015 = vunpack.c.h.b16 %v737
    %v2016 = vunpack.c.l.b16 %v738
    %v2017 = vunpack.c.h.b16 %v738
    %v2018 = vunpack.c.l.b16 %v739
    %v2019 = vunpack.c.h.b16 %v739
    %v2020 = vunpack.c.l.b16 %v740
    %v2021 = vunpack.c.h.b16 %v740
    %v2022 = vunpack.c.l.b16 %v741
    %v2023 = vunpack.c.h.b16 %v741
    %v2024 = vunpack.c.l.b16 %v742
    %v2025 = vunpack.c.h.b16 %v742
    %v2026 = vunpack.c.l.b16 %v743
    %v2027 = vunpack.c.h.b16 %v743
    %v2028 = vunpack.c.l.b16 %v744
    %v2029 = vunpack.c.h.b16 %v744
    %v2030 = vunpack.c.l.b16 %v745
    %v2031 = vunpack.c.h.b16 %v745
    %v2032 = vunpack.c.l.b16 %v746
    %v2033 = vunpack.c.h.b16 %v746
    %v2034 = vunpack.c.l.b16 %v747
    %v2035 = vunpack.c.h.b16 %v747
    %v2036 = vunpack.c.l.b16 %v748
    %v2037 = vunpack.c.h.b16 %v748
    %v2038 = vunpack.c.l.b16 %v749
    %v2039 = vunpack.c.h.b16 %v749
    %v2040 = vunpack.c.l.b16 %v750
    %v2041 = vunpack.c.h.b16 %v750
    %v2042 = vunpack.c.l.b16 %v751
    %v2043 = vunpack.c.h.b16 %v751
    %v2044 = vunpack.c.l.b16 %v752
    %v2045 = vunpack.c.h.b16 %v752
    %v2046 = vunpack.c.l.b16 %v753
    %v2047 = vunpack.c.h.b16 %v753
    %v2048 = vunpack.c.l.b16 %v754
    %v2049 = vunpack.c.h.b16 %v754
    %v2050 = vunpack.c.l.b16 %v755
    %v2051 = vunpack.c.h.b16 %v755
    %v2052 = vunpack.c.l.b16 %v756
    %v2053 = vunpack.c.h.b16 %v756
    %v2054 = vunpack.c.l.b16 %v757
    %v2055 = vunpack.c.h.b16 %v757
    %v2056 = vunpack.c.l.b16 %v758
    %v2057 = vunpack.c.h.b16 %v758
    %v2058 = vunpack.c.l.b16 %v759
    %v2059 = vunpack.c.h.b16 %v759
    %v2060 = vunpack.c.l.b16 %v760
    %v2061 = vunpack.c.h.b16 %v760
    %v2062 = vunpack.c.l.b16 %v761
    %v2063 = vunpack.c.h.b16 %v761
    %v2064 = vunpack.c.l.b16 %v762
    %v2065 = vunpack.c.h.b16 %v762
    %v2066 = vunpack.c.l.b16 %v763
    %v2067 = vunpack.c.h.b16 %v763
    %v2068 = vunpack.c.l.b16 %v764
    %v2069 = vunpack.c.h.b16 %v764
    %v2070 = vunpack.c.l.b16 %v765
    %v2071 = vunpack.c.h.b16 %v765
    %v2072 = vunpack.c.l.b16 %v766
    %v2073 = vunpack.c.h.b16 %v766
    %v2074 = vunpack.c.l.b16 %v767
    %v2075 = vunpack.c.h.b16 %v767
    %v2076 = vunpack.c.l.b16 %v768
    %v2077 = vunpack.c.h.b16 %v768
    %v2078 = vunpack.c.l.b16 %v769
    %v2079 = vunpack.c.h.b16 %v769
    %v2080 = vunpack.c.l.b16 %v770
    %v2081 = vunpack.c.h.b16 %v770
    %v2082 = vunpack.c.l.b16 %v771
    %v2083 = vunpack.c.h.b16 %v771
    %v2084 = vunpack.c.l.b16 %v772
    %v2085 = vunpack.c.h.b16 %v772
    %v2086 = vunpack.c.l.b16 %v773
    %v2087 = vunpack.c.h.b16 %v773
    %v2088 = vunpack.c.l.b16 %v774
    %v2089 = vunpack.c.h.b16 %v774
    %v2090 = vunpack.c.l.b16 %v775
    %v2091 = vunpack.c.h.b16 %v775
    %v2092 = vunpack.c.l.b16 %v776
    %v2093 = vunpack.c.h.b16 %v776
    %v2094 = vunpack.c.l.b16 %v777
    %v2095 = vunpack.c.h.b16 %v777
    %v2096 = vunpack.c.l.b16 %v778
    %v2097 = vunpack.c.h.b16 %v778
    %v2098 = vunpack.c.l.b16 %v779
    %v2099 = vunpack.c.h.b16 %v779
    %v2100 = vunpack.c.l.b16 %v780
    %v2101 = vunpack.c.h.b16 %v780
    %v2102 = vunpack.c.l.b16 %v781
    %v2103 = vunpack.c.h.b16 %v781
    %v2104 = vunpack.c.l.b16 %v782
    %v2105 = vunpack.c.h.b16 %v782
    %v2106 = vunpack.c.l.b16 %v783
    %v2107 = vunpack.c.h.b16 %v783
    %v2108 = vunpack.c.l.b16 %v784
    %v2109 = vunpack.c.h.b16 %v784
    %v2110 = vunpack.c.l.b16 %v785
    %v2111 = vunpack.c.h.b16 %v785
    %v2112 = vunpack.c.l.b16 %v786
    %v2113 = vunpack.c.h.b16 %v786
    %v2114 = vunpack.c.l.b16 %v787
    %v2115 = vunpack.c.h.b16 %v787
    %v2116 = vunpack.c.l.b16 %v788
    %v2117 = vunpack.c.h.b16 %v788
    %v2118 = vunpack.c.l.b16 %v789
    %v2119 = vunpack.c.h.b16 %v789
    %v2120 = vunpack.c.l.b16 %v790
    %v2121 = vunpack.c.h.b16 %v790
    %v2122 = vunpack.c.l.b16 %v791
    %v2123 = vunpack.c.h.b16 %v791
    %v2124 = vunpack.c.l.b16 %v792
    %v2125 = vunpack.c.h.b16 %v792
    %v2126 = vunpack.c.l.b16 %v793
    %v2127 = vunpack.c.h.b16 %v793
    %v2128 = vunpack.c.l.b16 %v794
    %v2129 = vunpack.c.h.b16 %v794
    %v2130 = vunpack.c.l.b16 %v795
    %v2131 = vunpack.c.h.b16 %v795
    %v2132 = vunpack.c.l.b16 %v796
    %v2133 = vunpack.c.h.b16 %v796
    %v2134 = vunpack.c.l.b16 %v797
    %v2135 = vunpack.c.h.b16 %v797
    %v2136 = vunpack.c.l.b16 %v798
    %v2137 = vunpack.c.h.b16 %v798
    %v2138 = vunpack.c.l.b16 %v799
    %v2139 = vunpack.c.h.b16 %v799
    %v2140 = vunpack.c.l.b16 %v800
    %v2141 = vunpack.c.h.b16 %v800
    %v2142 = vunpack.c.l.b16 %v801
    %v2143 = vunpack.c.h.b16 %v801
    %v2144 = vunpack.c.l.b16 %v802
    %v2145 = vunpack.c.h.b16 %v802
    %v2146 = vunpack.c.l.b16 %v803
    %v2147 = vunpack.c.h.b16 %v803
    %v2148 = vunpack.c.l.b16 %v804
    %v2149 = vunpack.c.h.b16 %v804
    %v2150 = vunpack.c.l.b16 %v805
    %v2151 = vunpack.c.h.b16 %v805
    %v2152 = vunpack.c.l.b16 %v806
    %v2153 = vunpack.c.h.b16 %v806
    %v2154 = vunpack.c.l.b16 %v807
    %v2155 = vunpack.c.h.b16 %v807
    %v2156 = vunpack.c.l.b16 %v808
    %v2157 = vunpack.c.h.b16 %v808
    %v2158 = vunpack.c.l.b16 %v809
    %v2159 = vunpack.c.h.b16 %v809
    %v2160 = vunpack.c.l.b16 %v810
    %v2161 = vunpack.c.h.b16 %v810
    %v2162 = vunpack.c.l.b16 %v811
    %v2163 = vunpack.c.h.b16 %v811
    %v2164 = vunpack.c.l.b16 %v812
    %v2165 = vunpack.c.h.b16 %v812
    %v2166 = vunpack.c.l.b16 %v813
    %v2167 = vunpack.c.h.b16 %v813
    %v2168 = vunpack.c.l.b16 %v814
    %v2169 = vunpack.c.h.b16 %v814
    %v2170 = vunpack.c.l.b16 %v815
    %v2171 = vunpack.c.h.b16 %v815
    %v2172 = vunpack.c.l.b16 %v816
    %v2173 = vunpack.c.h.b16 %v816
    %v2174 = vunpack.c.l.b16 %v817
    %v2175 = vunpack.c.h.b16 %v817
    %v2176 = vunpack.c.l.b16 %v818
    %v2177 = vunpack.c.h.b16 %v818
    %v2178 = vunpack.c.l.b16 %v819
    %v2179 = vunpack.c.h.b16 %v819
    %v2180 = vunpack.c.l.b16 %v820
    %v2181 = vunpack.c.h.b16 %v820
    %v2182 = vunpack.c.l.b16 %v821
    %v2183 = vunpack.c.h.b16 %v821
    %v2184 = vunpack.c.l.b16 %v822
    %v2185 = vunpack.c.h.b16 %v822
    %v2186 = vunpack.c.l.b16 %v823
    %v2187 = vunpack.c.h.b16 %v823
    %v2188 = vunpack.c.l.b16 %v824
    %v2189 = vunpack.c.h.b16 %v824
    %v2190 = vunpack.c.l.b16 %v825
    %v2191 = vunpack.c.h.b16 %v825
    %v2192 = vunpack.c.l.b16 %v826
    %v2193 = vunpack.c.h.b16 %v826
    %v2194 = vunpack.c.l.b16 %v827
    %v2195 = vunpack.c.h.b16 %v827
    %v2196 = vunpack.c.l.b16 %v828
    %v2197 = vunpack.c.h.b16 %v828
    %v2198 = vunpack.c.l.b16 %v829
    %v2199 = vunpack.c.h.b16 %v829
    %v2200 = vunpack.c.l.b16 %v830
    %v2201 = vunpack.c.h.b16 %v830
    %v2202 = vunpack.c.l.b16 %v831
    %v2203 = vunpack.c.h.b16 %v831
    %v2204 = vunpack.c.l.b16 %v832
    %v2205 = vunpack.c.h.b16 %v832
    %v2206 = vunpack.c.l.b16 %v833
    %v2207 = vunpack.c.h.b16 %v833
    %v2208 = vunpack.c.l.b16 %v834
    %v2209 = vunpack.c.h.b16 %v834
    %v2210 = vunpack.c.l.b16 %v835
    %v2211 = vunpack.c.h.b16 %v835
    %v2212 = vunpack.c.l.b16 %v836
    %v2213 = vunpack.c.h.b16 %v836
    %v2214 = vunpack.c.l.b16 %v837
    %v2215 = vunpack.c.h.b16 %v837
    %v2216 = vunpack.c.l.b16 %v838
    %v2217 = vunpack.c.h.b16 %v838
    %v2218 = vunpack.c.l.b16 %v839
    %v2219 = vunpack.c.h.b16 %v839
    %v2220 = vunpack.c.l.b16 %v840
    %v2221 = vunpack.c.h.b16 %v840
    %v2222 = vunpack.c.l.b16 %v841
    %v2223 = vunpack.c.h.b16 %v841
    %v2224 = vunpack.c.l.b16 %v842
    %v2225 = vunpack.c.h.b16 %v842
    %v2226 = vunpack.c.l.b16 %v843
    %v2227 = vunpack.c.h.b16 %v843
    %v2228 = vunpack.c.l.b16 %v844
    %v2229 = vunpack.c.h.b16 %v844
    %v2230 = vunpack.c.l.b16 %v845
    %v2231 = vunpack.c.h.b16 %v845
    %v2232 = vunpack.c.l.b16 %v846
    %v2233 = vunpack.c.h.b16 %v846
    %v2234 = vunpack.c.l.b16 %v847
    %v2235 = vunpack.c.h.b16 %v847
    %v2236 = vunpack.c.l.b16 %v848
    %v2237 = vunpack.c.h.b16 %v848
    %v2238 = vunpack.c.l.b16 %v849
    %v2239 = vunpack.c.h.b16 %v849
    %v2240 = vunpack.c.l.b16 %v850
    %v2241 = vunpack.c.h.b16 %v850
    %v2242 = vunpack.c.l.b16 %v851
    %v2243 = vunpack.c.h.b16 %v851
    %v2244 = vunpack.c.l.b16 %v852
    %v2245 = vunpack.c.h.b16 %v852
    %v2246 = vunpack.c.l.b16 %v853
    %v2247 = vunpack.c.h.b16 %v853
    %v2248 = vunpack.c.l.b16 %v854
    %v2249 = vunpack.c.h.b16 %v854
    %v2250 = vunpack.c.l.b16 %v855
    %v2251 = vunpack.c.h.b16 %v855
    %v2252 = vunpack.c.l.b16 %v856
    %v2253 = vunpack.c.h.b16 %v856
    %v2254 = vunpack.c.l.b16 %v857
    %v2255 = vunpack.c.h.b16 %v857
    %v2256 = vunpack.c.l.b16 %v858
    %v2257 = vunpack.c.h.b16 %v858
    %v2258 = vunpack.c.l.b16 %v859
    %v2259 = vunpack.c.h.b16 %v859
    %v2260 = vunpack.c.l.b16 %v860
    %v2261 = vunpack.c.h.b16 %v860
    %v2262 = vunpack.c.l.b16 %v861
    %v2263 = vunpack.c.h.b16 %v861
    %v2264 = vunpack.c.l.b16 %v862
    %v2265 = vunpack.c.h.b16 %v862
    %v2266 = vunpack.c.l.b16 %v863
    %v2267 = vunpack.c.h.b16 %v863
    %v2268 = vunpack.c.l.b16 %v864
    %v2269 = vunpack.c.h.b16 %v864
    %v2270 = vunpack.c.l.b16 %v865
    %v2271 = vunpack.c.h.b16 %v865
    %v2272 = vunpack.c.l.b16 %v866
    %v2273 = vunpack.c.h.b16 %v866
    %v2274 = vunpack.c.l.b16 %v867
    %v2275 = vunpack.c.h.b16 %v867
    %v2276 = vunpack.c.l.b16 %v868
    %v2277 = vunpack.c.h.b16 %v868
    %v2278 = vunpack.c.l.b16 %v869
    %v2279 = vunpack.c.h.b16 %v869
    %v2280 = vunpack.c.l.b16 %v870
    %v2281 = vunpack.c.h.b16 %v870
    %v2282 = vunpack.c.l.b16 %v871
    %v2283 = vunpack.c.h.b16 %v871
    %v2284 = vunpack.c.l.b16 %v872
    %v2285 = vunpack.c.h.b16 %v872
    %v2286 = vunpack.c.l.b16 %v873
    %v2287 = vunpack.c.h.b16 %v873
    %v2288 = vunpack.c.l.b16 %v874
    %v2289 = vunpack.c.h.b16 %v874
    %v2290 = vunpack.c.l.b16 %v875
    %v2291 = vunpack.c.h.b16 %v875
    %v2292 = vunpack.c.l.b16 %v876
    %v2293 = vunpack.c.h.b16 %v876
    %v2294 = vunpack.c.l.b16 %v877
    %v2295 = vunpack.c.h.b16 %v877
    %v2296 = vunpack.c.l.b16 %v878
    %v2297 = vunpack.c.h.b16 %v878
    %v2298 = vunpack.c.l.b16 %v879
    %v2299 = vunpack.c.h.b16 %v879
    %v2300 = vunpack.c.l.b16 %v880
    %v2301 = vunpack.c.h.b16 %v880
    %v2302 = vunpack.c.l.b16 %v881
    %v2303 = vunpack.c.h.b16 %v881
    %v2304 = vunpack.c.l.b16 %v882
    %v2305 = vunpack.c.h.b16 %v882
    %v2306 = vunpack.c.l.b16 %v883
    %v2307 = vunpack.c.h.b16 %v883
    %v2308 = vunpack.c.l.b16 %v884
    %v2309 = vunpack.c.h.b16 %v884
    %v2310 = vunpack.c.l.b16 %v885
    %v2311 = vunpack.c.h.b16 %v885
    %v2312 = vunpack.c.l.b16 %v886
    %v2313 = vunpack.c.h.b16 %v886
    %v2314 = vunpack.c.l.b16 %v887
    %v2315 = vunpack.c.h.b16 %v887
    %v2316 = vunpack.c.l.b16 %v888
    %v2317 = vunpack.c.h.b16 %v888
    %v2318 = vunpack.c.l.b16 %v889
    %v2319 = vunpack.c.h.b16 %v889
    %v2320 = vunpack.c.l.b16 %v890
    %v2321 = vunpack.c.h.b16 %v890
    %v2322 = vunpack.c.l.b16 %v891
    %v2323 = vunpack.c.h.b16 %v891
    %v2324 = vunpack.c.l.b16 %v892
    %v2325 = vunpack.c.h.b16 %v892
    %v2326 = vunpack.c.l.b16 %v893
    %v2327 = vunpack.c.h.b16 %v893
    %v2328 = vunpack.c.l.b16 %v894
    %v2329 = vunpack.c.h.b16 %v894
    %v2330 = vunpack.c.l.b16 %v895
    %v2331 = vunpack.c.h.b16 %v895
    %v2332 = vunpack.c.l.b16 %v896
    %v2333 = vunpack.c.h.b16 %v896
    %v2334 = vunpack.c.l.b16 %v897
    %v2335 = vunpack.c.h.b16 %v897
    %v2336 = vunpack.c.l.b16 %v898
    %v2337 = vunpack.c.h.b16 %v898
    %v2338 = vunpack.c.l.b16 %v899
    %v2339 = vunpack.c.h.b16 %v899
    %v2340 = vunpack.c.l.b16 %v900
    %v2341 = vunpack.c.h.b16 %v900
    %v2342 = vunpack.c.l.b16 %v901
    %v2343 = vunpack.c.h.b16 %v901
    %v2344 = vunpack.c.l.b16 %v902
    %v2345 = vunpack.c.h.b16 %v902
    %v2346 = vunpack.c.l.b16 %v903
    %v2347 = vunpack.c.h.b16 %v903
    %v2348 = vunpack.c.l.b16 %v904
    %v2349 = vunpack.c.h.b16 %v904
    %v2350 = vunpack.c.l.b16 %v905
    %v2351 = vunpack.c.h.b16 %v905
    %v2352 = vunpack.c.l.b16 %v906
    %v2353 = vunpack.c.h.b16 %v906
    %v2354 = vunpack.c.l.b16 %v907
    %v2355 = vunpack.c.h.b16 %v907
    %v2356 = vunpack.c.l.b16 %v908
    %v2357 = vunpack.c.h.b16 %v908
    %v2358 = vunpack.c.l.b16 %v909
    %v2359 = vunpack.c.h.b16 %v909
    %v2360 = vunpack.c.l.b16 %v910
    %v2361 = vunpack.c.h.b16 %v910
    %v2362 = vunpack.c.l.b16 %v911
    %v2363 = vunpack.c.h.b16 %v911
    %v2364 = vunpack.c.l.b16 %v912
    %v2365 = vunpack.c.h.b16 %v912
    %v2366 = vunpack.c.l.b16 %v913
    %v2367 = vunpack.c.h.b16 %v913
    %v2368 = vunpack.c.l.b16 %v914
    %v2369 = vunpack.c.h.b16 %v914
    %v2370 = vunpack.c.l.b16 %v915
    %v2371 = vunpack.c.h.b16 %v915
    %v2372 = vunpack.c.l.b16 %v916
    %v2373 = vunpack.c.h.b16 %v916
    %v2374 = vunpack.c.l.b16 %v917
    %v2375 = vunpack.c.h.b16 %v917
    %v2376 = vunpack.c.l.b16 %v918
    %v2377 = vunpack.c.h.b16 %v918
    %v2378 = vunpack.c.l.b16 %v919
    %v2379 = vunpack.c.h.b16 %v919
    %v2380 = vunpack.c.l.b16 %v920
    %v2381 = vunpack.c.h.b16 %v920
    %v2382 = vunpack.c.l.b16 %v921
    %v2383 = vunpack.c.h.b16 %v921
    %v2384 = vunpack.c.l.b16 %v922
    %v2385 = vunpack.c.h.b16 %v922
    %v2386 = vunpack.c.l.b16 %v923
    %v2387 = vunpack.c.h.b16 %v923
    %v2388 = vunpack.c.l.b16 %v924
    %v2389 = vunpack.c.h.b16 %v924
    %v2390 = vunpack.c.l.b16 %v925
    %v2391 = vunpack.c.h.b16 %v925
    %v2392 = vunpack.c.l.b16 %v926
    %v2393 = vunpack.c.h.b16 %v926
    %v2394 = vunpack.c.l.b16 %v927
    %v2395 = vunpack.c.h.b16 %v927
    %v2396 = vunpack.c.l.b16 %v928
    %v2397 = vunpack.c.h.b16 %v928
    %v2398 = vunpack.c.l.b16 %v929
    %v2399 = vunpack.c.h.b16 %v929
    %v2400 = vunpack.c.l.b16 %v930
    %v2401 = vunpack.c.h.b16 %v930
    %v2402 = vunpack.c.l.b16 %v931
    %v2403 = vunpack.c.h.b16 %v931
    %v2404 = vunpack.c.l.b16 %v932
    %v2405 = vunpack.c.h.b16 %v932
    %v2406 = vunpack.c.l.b16 %v933
    %v2407 = vunpack.c.h.b16 %v933
    %v2408 = vunpack.c.l.b16 %v934
    %v2409 = vunpack.c.h.b16 %v934
    %v2410 = vunpack.c.l.b16 %v935
    %v2411 = vunpack.c.h.b16 %v935
    %v2412 = vunpack.c.l.b16 %v936
    %v2413 = vunpack.c.h.b16 %v936
    %v2414 = vunpack.c.l.b16 %v937
    %v2415 = vunpack.c.h.b16 %v937
    %v2416 = vunpack.c.l.b16 %v938
    %v2417 = vunpack.c.h.b16 %v938
    %v2418 = vunpack.c.l.b16 %v939
    %v2419 = vunpack.c.h.b16 %v939
    %v2420 = vunpack.c.l.b16 %v940
    %v2421 = vunpack.c.h.b16 %v940
    %v2422 = vunpack.c.l.b16 %v941
    %v2423 = vunpack.c.h.b16 %v941
    %v2424 = vunpack.c.l.b16 %v942
    %v2425 = vunpack.c.h.b16 %v942
    %v2426 = vunpack.c.l.b16 %v943
    %v2427 = vunpack.c.h.b16 %v943
    %v2428 = vunpack.c.l.b16 %v944
    %v2429 = vunpack.c.h.b16 %v944
    %v2430 = vunpack.c.l.b16 %v945
    %v2431 = vunpack.c.h.b16 %v945
    %v2432 = vunpack.c.l.b16 %v946
    %v2433 = vunpack.c.h.b16 %v946
    %v2434 = vunpack.c.l.b16 %v947
    %v2435 = vunpack.c.h.b16 %v947
    %v2436 = vunpack.c.l.b16 %v948
    %v2437 = vunpack.c.h.b16 %v948
    %v2438 = vunpack.c.l.b16 %v949
    %v2439 = vunpack.c.h.b16 %v949
    %v2440 = vunpack.c.l.b16 %v950
    %v2441 = vunpack.c.h.b16 %v950
    %v2442 = vunpack.c.l.b16 %v951
    %v2443 = vunpack.c.h.b16 %v951
    %v2444 = vunpack.c.l.b16 %v952
    %v2445 = vunpack.c.h.b16 %v952
    %v2446 = vunpack.c.l.b16 %v953
    %v2447 = vunpack.c.h.b16 %v953
    %v2448 = vunpack.c.l.b16 %v954
    %v2449 = vunpack.c.h.b16 %v954
    %v2450 = vunpack.c.l.b16 %v955
    %v2451 = vunpack.c.h.b16 %v955
    %v2452 = vunpack.c.l.b16 %v956
    %v2453 = vunpack.c.h.b16 %v956
    %v2454 = vunpack.c.l.b16 %v957
    %v2455 = vunpack.c.h.b16 %v957
    %v2456 = vunpack.c.l.b16 %v958
    %v2457 = vunpack.c.h.b16 %v958
    %v2458 = vunpack.c.l.b16 %v959
    %v2459 = vunpack.c.h.b16 %v959
    %v2460 = vunpack.c.l.b16 %v960
    %v2461 = vunpack.c.h.b16 %v960
    %v2462 = vunpack.c.l.b16 %v961
    %v2463 = vunpack.c.h.b16 %v961
    %v2464 = vunpack.c.l.b16 %v962
    %v2465 = vunpack.c.h.b16 %v962
    %v2466 = vunpack.c.l.b16 %v963
    %v2467 = vunpack.c.h.b16 %v963
    %v2468 = vunpack.c.l.b16 %v964
    %v2469 = vunpack.c.h.b16 %v964
    %v2470 = vunpack.c.l.b16 %v965
    %v2471 = vunpack.c.h.b16 %v965
    %v2472 = vunpack.c.l.b16 %v966
    %v2473 = vunpack.c.h.b16 %v966
    %v2474 = vunpack.c.l.b16 %v967
    %v2475 = vunpack.c.h.b16 %v967
    %v2476 = vunpack.c.l.b16 %v968
    %v2477 = vunpack.c.h.b16 %v968
    %v2478 = vunpack.c.l.b16 %v969
    %v2479 = vunpack.c.h.b16 %v969
    %v2480 = vunpack.c.l.b16 %v970
    %v2481 = vunpack.c.h.b16 %v970
    %v2482 = vunpack.c.l.b16 %v971
    %v2483 = vunpack.c.h.b16 %v971
    %v2484 = vunpack.c.l.b16 %v972
    %v2485 = vunpack.c.h.b16 %v972
    %v2486 = vunpack.c.l.b16 %v973
    %v2487 = vunpack.c.h.b16 %v973
    %v2488 = vunpack.c.l.b16 %v974
    %v2489 = vunpack.c.h.b16 %v974
    %v2490 = vunpack.c.l.b16 %v975
    %v2491 = vunpack.c.h.b16 %v975
    %v2492 = vunpack.c.l.b16 %v976
    %v2493 = vunpack.c.h.b16 %v976
    %v2494 = vunpack.c.l.b16 %v977
    %v2495 = vunpack.c.h.b16 %v977
    %v2496 = vunpack.c.l.b16 %v978
    %v2497 = vunpack.c.h.b16 %v978
    %v2498 = vunpack.c.l.b16 %v979
    %v2499 = vunpack.c.h.b16 %v979
    %v2500 = vunpack.c.l.b16 %v980
    %v2501 = vunpack.c.h.b16 %v980
    %v2502 = vunpack.c.l.b16 %v981
    %v2503 = vunpack.c.h.b16 %v981
    %v2504 = vunpack.c.l.b16 %v982
    %v2505 = vunpack.c.h.b16 %v982
    %v2506 = vunpack.c.l.b16 %v983
    %v2507 = vunpack.c.h.b16 %v983
    %v2508 = vunpack.c.l.b16 %v984
    %v2509 = vunpack.c.h.b16 %v984
    %v2510 = vunpack.c.l.b16 %v985
    %v2511 = vunpack.c.h.b16 %v985
    %v2512 = vunpack.c.l.b16 %v986
    %v2513 = vunpack.c.h.b16 %v986
    %v2514 = vunpack.c.l.b16 %v987
    %v2515 = vunpack.c.h.b16 %v987
    %v2516 = vunpack.c.l.b16 %v988
    %v2517 = vunpack.c.h.b16 %v988
    %v2518 = vunpack.c.l.b16 %v989
    %v2519 = vunpack.c.h.b16 %v989
    %v2520 = vunpack.c.l.b16 %v990
    %v2521 = vunpack.c.h.b16 %v990
    %v2522 = vunpack.c.l.b16 %v991
    %v2523 = vunpack.c.h.b16 %v991
    %v2524 = vunpack.c.l.b16 %v992
    %v2525 = vunpack.c.h.b16 %v992
    %v2526 = vunpack.c.l.b16 %v993
    %v2527 = vunpack.c.h.b16 %v993
    %v2528 = vunpack.c.l.b16 %v994
    %v2529 = vunpack.c.h.b16 %v994
    %v2530 = vunpack.c.l.b16 %v995
    %v2531 = vunpack.c.h.b16 %v995
    %v2532 = vunpack.c.l.b16 %v996
    %v2533 = vunpack.c.h.b16 %v996
    %v2534 = vunpack.c.l.b16 %v997
    %v2535 = vunpack.c.h.b16 %v997
    %v2536 = vunpack.c.l.b16 %v998
    %v2537 = vunpack.c.h.b16 %v998
    %v2538 = vunpack.c.l.b16 %v999
    %v2539 = vunpack.c.h.b16 %v999
    %v2540 = vunpack.c.l.b16 %v1000
    %v2541 = vunpack.c.h.b16 %v1000
    %v2542 = vunpack.c.l.b16 %v1001
    %v2543 = vunpack.c.h.b16 %v1001
    %v2544 = vunpack.c.l.b16 %v1002
    %v2545 = vunpack.c.h.b16 %v1002
    %v2546 = vunpack.c.l.b16 %v1003
    %v2547 = vunpack.c.h.b16 %v1003
    %v2548 = vunpack.c.l.b16 %v1004
    %v2549 = vunpack.c.h.b16 %v1004
    %v2550 = vunpack.c.l.b16 %v1005
    %v2551 = vunpack.c.h.b16 %v1005
    %v2552 = vunpack.c.l.b16 %v1006
    %v2553 = vunpack.c.h.b16 %v1006
    %v2554 = vunpack.c.l.b16 %v1007
    %v2555 = vunpack.c.h.b16 %v1007
    %v2556 = vunpack.c.l.b16 %v1008
    %v2557 = vunpack.c.h.b16 %v1008
    %v2558 = vunpack.c.l.b16 %v1009
    %v2559 = vunpack.c.h.b16 %v1009
    %v2560 = vunpack.c.l.b16 %v1010
    %v2561 = vunpack.c.h.b16 %v1010
    %v2562 = vunpack.c.l.b16 %v1011
    %v2563 = vunpack.c.h.b16 %v1011
    %v2564 = vunpack.c.l.b16 %v1012
    %v2565 = vunpack.c.h.b16 %v1012
    %v2566 = vunpack.c.l.b16 %v1013
    %v2567 = vunpack.c.h.b16 %v1013
    %v2568 = vunpack.c.l.b16 %v1014
    %v2569 = vunpack.c.h.b16 %v1014
    %v2570 = vunpack.c.l.b16 %v1015
    %v2571 = vunpack.c.h.b16 %v1015
    %v2572 = vunpack.c.l.b16 %v1016
    %v2573 = vunpack.c.h.b16 %v1016
    %v2574 = vunpack.c.l.b16 %v1017
    %v2575 = vunpack.c.h.b16 %v1017
    %v2576 = vunpack.c.l.b16 %v1018
    %v2577 = vunpack.c.h.b16 %v1018
    %v2578 = vunpack.c.l.b16 %v1019
    %v2579 = vunpack.c.h.b16 %v1019
    %v2580 = vunpack.c.l.b16 %v1020
    %v2581 = vunpack.c.h.b16 %v1020
    %v2582 = vunpack.c.l.b16 %v1021
    %v2583 = vunpack.c.h.b16 %v1021
    %v2584 = vunpack.c.l.b16 %v1022
    %v2585 = vunpack.c.h.b16 %v1022
    %v2586 = vunpack.c.l.b16 %v1023
    %v2587 = vunpack.c.h.b16 %v1023
    %v2588 = vunpack.c.l.b16 %v1024
    %v2589 = vunpack.c.h.b16 %v1024
    %v2590 = vunpack.c.l.b16 %v1025
    %v2591 = vunpack.c.h.b16 %v1025
    %v2592 = vunpack.c.l.b16 %v1026
    %v2593 = vunpack.c.h.b16 %v1026
    %v2594 = vunpack.c.l.b16 %v1027
    %v2595 = vunpack.c.h.b16 %v1027
    %v2596 = vunpack.c.l.b16 %v1028
    %v2597 = vunpack.c.h.b16 %v1028
    %v2598 = vunpack.c.l.b16 %v1029
    %v2599 = vunpack.c.h.b16 %v1029
    %v2600 = vunpack.c.l.b16 %v1030
    %v2601 = vunpack.c.h.b16 %v1030
    %v2602 = vunpack.c.l.b16 %v1031
    %v2603 = vunpack.c.h.b16 %v1031
    %v2604 = vunpack.c.l.b16 %v1032
    %v2605 = vunpack.c.h.b16 %v1032
    %v2606 = vunpack.c.l.b16 %v1033
    %v2607 = vunpack.c.h.b16 %v1033
    %v2608 = vunpack.c.l.b16 %v1034
    %v2609 = vunpack.c.h.b16 %v1034
    %v2610 = vunpack.c.l.b16 %v1035
    %v2611 = vunpack.c.h.b16 %v1035
    %v2612 = vunpack.c.l.b16 %v1036
    %v2613 = vunpack.c.h.b16 %v1036
    %v2614 = vunpack.c.l.b16 %v1037
    %v2615 = vunpack.c.h.b16 %v1037
    %v2616 = vunpack.c.l.b16 %v1038
    %v2617 = vunpack.c.h.b16 %v1038
    %v2618 = vunpack.c.l.b16 %v1039
    %v2619 = vunpack.c.h.b16 %v1039
    %v2620 = vunpack.c.l.b16 %v1040
    %v2621 = vunpack.c.h.b16 %v1040
    %v2622 = vunpack.c.l.b16 %v1041
    %v2623 = vunpack.c.h.b16 %v1041
    %v2624 = vunpack.c.l.b16 %v1042
    %v2625 = vunpack.c.h.b16 %v1042
    %v2626 = vunpack.c.l.b16 %v1043
    %v2627 = vunpack.c.h.b16 %v1043
    %v2628 = vunpack.c.l.b16 %v1044
    %v2629 = vunpack.c.h.b16 %v1044
    %v2630 = vunpack.c.l.b16 %v1045
    %v2631 = vunpack.c.h.b16 %v1045
    %v2632 = vunpack.c.l.b16 %v1046
    %v2633 = vunpack.c.h.b16 %v1046
    %v2634 = vunpack.c.l.b16 %v1047
    %v2635 = vunpack.c.h.b16 %v1047
    %v2636 = vunpack.c.l.b16 %v1048
    %v2637 = vunpack.c.h.b16 %v1048
    %v2638 = vunpack.c.l.b16 %v1049
    %v2639 = vunpack.c.h.b16 %v1049
    %v2640 = vunpack.c.l.b16 %v1050
    %v2641 = vunpack.c.h.b16 %v1050
    %v2642 = vunpack.c.l.b16 %v1051
    %v2643 = vunpack.c.h.b16 %v1051
    %v2644 = vunpack.c.l.b16 %v1052
    %v2645 = vunpack.c.h.b16 %v1052
    %v2646 = vunpack.c.l.b16 %v1053
    %v2647 = vunpack.c.h.b16 %v1053
    %v2648 = vunpack.c.l.b16 %v1054
    %v2649 = vunpack.c.h.b16 %v1054
    %v2650 = vunpack.c.l.b16 %v1055
    %v2651 = vunpack.c.h.b16 %v1055
    %v2652 = vunpack.c.l.b16 %v1056
    %v2653 = vunpack.c.h.b16 %v1056
    %v2654 = vunpack.c.l.b16 %v1057
    %v2655 = vunpack.c.h.b16 %v1057
    %v2656 = vunpack.c.l.b16 %v1058
    %v2657 = vunpack.c.h.b16 %v1058
    %v2658 = vunpack.c.l.b16 %v1059
    %v2659 = vunpack.c.h.b16 %v1059
    %v2660 = vunpack.c.l.b16 %v1060
    %v2661 = vunpack.c.h.b16 %v1060
    %v2662 = vunpack.c.l.b16 %v1061
    %v2663 = vunpack.c.h.b16 %v1061
    %v2664 = vunpack.c.l.b16 %v1062
    %v2665 = vunpack.c.h.b16 %v1062
    %v2666 = vunpack.c.l.b16 %v1063
    %v2667 = vunpack.c.h.b16 %v1063
    %v2668 = vunpack.c.l.b16 %v1064
    %v2669 = vunpack.c.h.b16 %v1064
    %v2670 = vunpack.c.l.b16 %v1065
    %v2671 = vunpack.c.h.b16 %v1065
    %v2672 = vunpack.c.l.b16 %v1066
    %v2673 = vunpack.c.h.b16 %v1066
    %v2674 = vunpack.c.l.b16 %v1067
    %v2675 = vunpack.c.h.b16 %v1067
    %v2676 = vunpack.c.l.b16 %v1068
    %v2677 = vunpack.c.h.b16 %v1068
    %v2678 = vunpack.c.l.b16 %v1069
    %v2679 = vunpack.c.h.b16 %v1069
    %v2680 = vunpack.c.l.b16 %v1070
    %v2681 = vunpack.c.h.b16 %v1070
    %v2682 = vunpack.c.l.b16 %v1071
    %v2683 = vunpack.c.h.b16 %v1071
    %v2684 = vunpack.c.l.b16 %v1072
    %v2685 = vunpack.c.h.b16 %v1072
    %v2686 = vunpack.c.l.b16 %v1073
    %v2687 = vunpack.c.h.b16 %v1073
    %v2688 = vunpack.c.l.b16 %v1074
    %v2689 = vunpack.c.h.b16 %v1074
    %v2690 = vunpack.c.l.b16 %v1075
    %v2691 = vunpack.c.h.b16 %v1075
    %v2692 = vunpack.c.l.b16 %v1076
    %v2693 = vunpack.c.h.b16 %v1076
    %v2694 = vunpack.c.l.b16 %v1077
    %v2695 = vunpack.c.h.b16 %v1077
    %v2696 = vunpack.c.l.b16 %v1078
    %v2697 = vunpack.c.h.b16 %v1078
    %v2698 = vunpack.c.l.b16 %v1079
    %v2699 = vunpack.c.h.b16 %v1079
    %v2700 = vunpack.c.l.b16 %v1080
    %v2701 = vunpack.c.h.b16 %v1080
    %v2702 = vunpack.c.l.b16 %v1081
    %v2703 = vunpack.c.h.b16 %v1081
    %v2704 = vunpack.c.l.b16 %v1082
    %v2705 = vunpack.c.h.b16 %v1082
    %v2706 = vunpack.c.l.b16 %v1083
    %v2707 = vunpack.c.h.b16 %v1083
    %v2708 = vunpack.c.l.b16 %v1084
    %v2709 = vunpack.c.h.b16 %v1084
    %v2710 = vunpack.c.l.b16 %v1085
    %v2711 = vunpack.c.h.b16 %v1085
    %v2712 = vunpack.c.l.b16 %v1086
    %v2713 = vunpack.c.h.b16 %v1086
    %v2714 = vunpack.c.l.b16 %v1087
    %v2715 = vunpack.c.h.b16 %v1087
    %v2716 = vunpack.c.l.b16 %v1088
    %v2717 = vunpack.c.h.b16 %v1088
    %v2718 = vunpack.c.l.b16 %v1089
    %v2719 = vunpack.c.h.b16 %v1089
    %v2720 = vunpack.c.l.b16 %v1090
    %v2721 = vunpack.c.h.b16 %v1090
    %v2722 = vunpack.c.l.b16 %v1091
    %v2723 = vunpack.c.h.b16 %v1091
    %v2724 = vunpack.c.l.b16 %v1092
    %v2725 = vunpack.c.h.b16 %v1092
    %v2726 = vunpack.c.l.b16 %v1093
    %v2727 = vunpack.c.h.b16 %v1093
    %v2728 = vunpack.c.l.b16 %v1094
    %v2729 = vunpack.c.h.b16 %v1094
    %v2730 = vunpack.c.l.b16 %v1095
    %v2731 = vunpack.c.h.b16 %v1095
    %v2732 = vunpack.c.l.b16 %v1096
    %v2733 = vunpack.c.h.b16 %v1096
    %v2734 = vunpack.c.l.b16 %v1097
    %v2735 = vunpack.c.h.b16 %v1097
    %v2736 = vunpack.c.l.b16 %v1098
    %v2737 = vunpack.c.h.b16 %v1098
    %v2738 = vunpack.c.l.b16 %v1099
    %v2739 = vunpack.c.h.b16 %v1099
    %v2740 = vunpack.c.l.b16 %v1100
    %v2741 = vunpack.c.h.b16 %v1100
    %v2742 = vunpack.c.l.b16 %v1101
    %v2743 = vunpack.c.h.b16 %v1101
    %v2744 = vunpack.c.l.b16 %v1102
    %v2745 = vunpack.c.h.b16 %v1102
    %v2746 = vunpack.c.l.b16 %v1103
    %v2747 = vunpack.c.h.b16 %v1103
    %v2748 = vunpack.c.l.b16 %v1104
    %v2749 = vunpack.c.h.b16 %v1104
    %v2750 = vunpack.c.l.b16 %v1105
    %v2751 = vunpack.c.h.b16 %v1105
    %v2752 = vunpack.c.l.b16 %v1106
    %v2753 = vunpack.c.h.b16 %v1106
    %v2754 = vunpack.c.l.b16 %v1107
    %v2755 = vunpack.c.h.b16 %v1107
    %v2756 = vunpack.c.l.b16 %v1108
    %v2757 = vunpack.c.h.b16 %v1108
    %v2758 = vunpack.c.l.b16 %v1109
    %v2759 = vunpack.c.h.b16 %v1109
    %v2760 = vunpack.c.l.b16 %v1110
    %v2761 = vunpack.c.h.b16 %v1110
    %v2762 = vunpack.c.l.b16 %v1111
    %v2763 = vunpack.c.h.b16 %v1111
    %v2764 = vpack.c.b16 %v1744, %v1740
    %v2765 = vpack.c.b16 %v1745, %v1741
    %v2766 = vpack.c.b16 %v1746, %v1742
    %v2767 = vpack.c.b16 %v1747, %v1743
    %v2768 = vpack.c.b16 %v1752, %v1748
    %v2769 = vpack.c.b16 %v1753, %v1749
    %v2770 = vpack.c.b16 %v1754, %v1750
    %v2771 = vpack.c.b16 %v1755, %v1751
    %v2772 = vpack.c.b16 %v1760, %v1756
    %v2773 = vpack.c.b16 %v1761, %v1757
    %v2774 = vpack.c.b16 %v1762, %v1758
    %v2775 = vpack.c.b16 %v1763, %v1759
    %v2776 = vpack.c.b16 %v1768, %v1764
    %v2777 = vpack.c.b16 %v1769, %v1765
    %v2778 = vpack.c.b16 %v1770, %v1766
    %v2779 = vpack.c.b16 %v1771, %v1767
    %v2780 = vpack.c.b16 %v1776, %v1772
    %v2781 = vpack.c.b16 %v1777, %v1773
    %v2782 = vpack.c.b16 %v1778, %v1774
    %v2783 = vpack.c.b16 %v1779, %v1775
    %v2784 = vpack.c.b16 %v1784, %v1780
    %v2785 = vpack.c.b16 %v1785, %v1781
    %v2786 = vpack.c.b16 %v1786, %v1782
    %v2787 = vpack.c.b16 %v1787, %v1783
    %v2788 = vpack.c.b16 %v1792, %v1788
    %v2789 = vpack.c.b16 %v1793, %v1789
    %v2790 = vpack.c.b16 %v1794, %v1790
    %v2791 = vpack.c.b16 %v1795, %v1791
    %v2792 = vpack.c.b16 %v1800, %v1796
    %v2793 = vpack.c.b16 %v1801, %v1797
    %v2794 = vpack.c.b16 %v1802, %v1798
    %v2795 = vpack.c.b16 %v1803, %v1799
    %v2796 = vpack.c.b16 %v1808, %v1804
    %v2797 = vpack.c.b16 %v1809, %v1805
    %v2798 = vpack.c.b16 %v1810, %v1806
    %v2799 = vpack.c.b16 %v1811, %v1807
    %v2800 = vpack.c.b16 %v1816, %v1812
    %v2801 = vpack.c.b16 %v1817, %v1813
    %v2802 = vpack.c.b16 %v1818, %v1814
    %v2803 = vpack.c.b16 %v1819, %v1815
    %v2804 = vpack.c.b16 %v1824, %v1820
    %v2805 = vpack.c.b16 %v1825, %v1821
    %v2806 = vpack.c.b16 %v1826, %v1822
    %v2807 = vpack.c.b16 %v1827, %v1823
    %v2808 = vpack.c.b16 %v1832, %v1828
    %v2809 = vpack.c.b16 %v1833, %v1829
    %v2810 = vpack.c.b16 %v1834, %v1830
    %v2811 = vpack.c.b16 %v1835, %v1831
    %v2812 = vpack.c.b16 %v1840, %v1836
    %v2813 = vpack.c.b16 %v1841, %v1837
    %v2814 = vpack.c.b16 %v1842, %v1838
    %v2815 = vpack.c.b16 %v1843, %v1839
    %v2816 = vpack.c.b16 %v1848, %v1844
    %v2817 = vpack.c.b16 %v1849, %v1845
    %v2818 = vpack.c.b16 %v1850, %v1846
    %v2819 = vpack.c.b16 %v1851, %v1847
    %v2820 = vpack.c.b16 %v1856, %v1852
    %v2821 = vpack.c.b16 %v1857, %v1853
    %v2822 = vpack.c.b16 %v1858, %v1854
    %v2823 = vpack.c.b16 %v1859, %v1855
    %v2824 = vpack.c.b16 %v1864, %v1860
    %v2825 = vpack.c.b16 %v1865, %v1861
    %v2826 = vpack.c.b16 %v1866, %v1862
    %v2827 = vpack.c.b16 %v1867, %v1863
    %v2828 = vpack.c.b16 %v1872, %v1868
    %v2829 = vpack.c.b16 %v1873, %v1869
    %v2830 = vpack.c.b16 %v1874, %v1870
    %v2831 = vpack.c.b16 %v1875, %v1871
    %v2832 = vpack.c.b16 %v1880, %v1876
    %v2833 = vpack.c.b16 %v1881, %v1877
    %v2834 = vpack.c.b16 %v1882, %v1878
    %v2835 = vpack.c.b16 %v1883, %v1879
    %v2836 = vpack.c.b16 %v1888, %v1884
    %v2837 = vpack.c.b16 %v1889, %v1885
    %v2838 = vpack.c.b16 %v1890, %v1886
    %v2839 = vpack.c.b16 %v1891, %v1887
    %v2840 = vpack.c.b16 %v1896, %v1892
    %v2841 = vpack.c.b16 %v1897, %v1893
    %v2842 = vpack.c.b16 %v1898, %v1894
    %v2843 = vpack.c.b16 %v1899, %v1895
    %v2844 = vpack.c.b16 %v1904, %v1900
    %v2845 = vpack.c.b16 %v1905, %v1901
    %v2846 = vpack.c.b16 %v1906, %v1902
    %v2847 = vpack.c.b16 %v1907, %v1903
    %v2848 = vpack.c.b16 %v1912, %v1908
    %v2849 = vpack.c.b16 %v1913, %v1909
    %v2850 = vpack.c.b16 %v1914, %v1910
    %v2851 = vpack.c.b16 %v1915, %v1911
    %v2852 = vpack.c.b16 %v1920, %v1916
    %v2853 = vpack.c.b16 %v1921, %v1917
    %v2854 = vpack.c.b16 %v1922, %v1918
    %v2855 = vpack.c.b16 %v1923, %v1919
    %v2856 = vpack.c.b16 %v1928, %v1924
    %v2857 = vpack.c.b16 %v1929, %v1925
    %v2858 = vpack.c.b16 %v1930, %v1926
    %v2859 = vpack.c.b16 %v1931, %v1927
    %v2860 = vpack.c.b16 %v1936, %v1932
    %v2861 = vpack.c.b16 %v1937, %v1933
    %v2862 = vpack.c.b16 %v1938, %v1934
    %v2863 = vpack.c.b16 %v1939, %v1935
    %v2864 = vpack.c.b16 %v1944, %v1940
    %v2865 = vpack.c.b16 %v1945, %v1941
    %v2866 = vpack.c.b16 %v1946, %v1942
    %v2867 = vpack.c.b16 %v1947, %v1943
    %v2868 = vpack.c.b16 %v1952, %v1948
    %v2869 = vpack.c.b16 %v1953, %v1949
    %v2870 = vpack.c.b16 %v1954, %v1950
    %v2871 = vpack.c.b16 %v1955, %v1951
    %v2872 = vpack.c.b16 %v1960, %v1956
    %v2873 = vpack.c.b16 %v1961, %v1957
    %v2874 = vpack.c.b16 %v1962, %v1958
    %v2875 = vpack.c.b16 %v1963, %v1959
    %v2876 = vpack.c.b16 %v1968, %v1964
    %v2877 = vpack.c.b16 %v1969, %v1965
    %v2878 = vpack.c.b16 %v1970, %v1966
    %v2879 = vpack.c.b16 %v1971, %v1967
    %v2880 = vpack.c.b16 %v1976, %v1972
    %v2881 = vpack.c.b16 %v1977, %v1973
    %v2882 = vpack.c.b16 %v1978, %v1974
    %v2883 = vpack.c.b16 %v1979, %v1975
    %v2884 = vpack.c.b16 %v1984, %v1980
    %v2885 = vpack.c.b16 %v1985, %v1981
    %v2886 = vpack.c.b16 %v1986, %v1982
    %v2887 = vpack.c.b16 %v1987, %v1983
    %v2888 = vpack.c.b16 %v1992, %v1988
    %v2889 = vpack.c.b16 %v1993, %v1989
    %v2890 = vpack.c.b16 %v1994, %v1990
    %v2891 = vpack.c.b16 %v1995, %v1991
    %v2892 = vpack.c.b16 %v2000, %v1996
    %v2893 = vpack.c.b16 %v2001, %v1997
    %v2894 = vpack.c.b16 %v2002, %v1998
    %v2895 = vpack.c.b16 %v2003, %v1999
    %v2896 = vpack.c.b16 %v2008, %v2004
    %v2897 = vpack.c.b16 %v2009, %v2005
    %v2898 = vpack.c.b16 %v2010, %v2006
    %v2899 = vpack.c.b16 %v2011, %v2007
    %v2900 = vpack.c.b16 %v2016, %v2012
    %v2901 = vpack.c.b16 %v2017, %v2013
    %v2902 = vpack.c.b16 %v2018, %v2014
    %v2903 = vpack.c.b16 %v2019, %v2015
    %v2904 = vpack.c.b16 %v2024, %v2020
    %v2905 = vpack.c.b16 %v2025, %v2021
    %v2906 = vpack.c.b16 %v2026, %v2022
    %v2907 = vpack.c.b16 %v2027, %v2023
    %v2908 = vpack.c.b16 %v2032, %v2028
    %v2909 = vpack.c.b16 %v2033, %v2029
    %v2910 = vpack.c.b16 %v2034, %v2030
    %v2911 = vpack.c.b16 %v2035, %v2031
    %v2912 = vpack.c.b16 %v2040, %v2036
    %v2913 = vpack.c.b16 %v2041, %v2037
    %v2914 = vpack.c.b16 %v2042, %v2038
    %v2915 = vpack.c.b16 %v2043, %v2039
    %v2916 = vpack.c.b16 %v2048, %v2044
    %v2917 = vpack.c.b16 %v2049, %v2045
    %v2918 = vpack.c.b16 %v2050, %v2046
    %v2919 = vpack.c.b16 %v2051, %v2047
    %v2920 = vpack.c.b16 %v2056, %v2052
    %v2921 = vpack.c.b16 %v2057, %v2053
    %v2922 = vpack.c.b16 %v2058, %v2054
    %v2923 = vpack.c.b16 %v2059, %v2055
    %v2924 = vpack.c.b16 %v2064, %v2060
    %v2925 = vpack.c.b16 %v2065, %v2061
    %v2926 = vpack.c.b16 %v2066, %v2062
    %v2927 = vpack.c.b16 %v2067, %v2063
    %v2928 = vpack.c.b16 %v2072, %v2068
    %v2929 = vpack.c.b16 %v2073, %v2069
    %v2930 = vpack.c.b16 %v2074, %v2070
    %v2931 = vpack.c.b16 %v2075, %v2071
    %v2932 = vpack.c.b16 %v2080, %v2076
    %v2933 = vpack.c.b16 %v2081, %v2077
    %v2934 = vpack.c.b16 %v2082, %v2078
    %v2935 = vpack.c.b16 %v2083, %v2079
    %v2936 = vpack.c.b16 %v2088, %v2084
    %v2937 = vpack.c.b16 %v2089, %v2085
    %v2938 = vpack.c.b16 %v2090, %v2086
    %v2939 = vpack.c.b16 %v2091, %v2087
    %v2940 = vpack.c.b16 %v2096, %v2092
    %v2941 = vpack.c.b16 %v2097, %v2093
    %v2942 = vpack.c.b16 %v2098, %v2094
    %v2943 = vpack.c.b16 %v2099, %v2095
    %v2944 = vpack.c.b16 %v2104, %v2100
    %v2945 = vpack.c.b16 %v2105, %v2101
    %v2946 = vpack.c.b16 %v2106, %v2102
    %v2947 = vpack.c.b16 %v2107, %v2103
    %v2948 = vpack.c.b16 %v2112, %v2108
    %v2949 = vpack.c.b16 %v2113, %v2109
    %v2950 = vpack.c.b16 %v2114, %v2110
    %v2951 = vpack.c.b16 %v2115, %v2111
    %v2952 = vpack.c.b16 %v2120, %v2116
    %v2953 = vpack.c.b16 %v2121, %v2117
    %v2954 = vpack.c.b16 %v2122, %v2118
    %v2955 = vpack.c.b16 %v2123, %v2119
    %v2956 = vpack.c.b16 %v2128, %v2124
    %v2957 = vpack.c.b16 %v2129, %v2125
    %v2958 = vpack.c.b16 %v2130, %v2126
    %v2959 = vpack.c.b16 %v2131, %v2127
    %v2960 = vpack.c.b16 %v2136, %v2132
    %v2961 = vpack.c.b16 %v2137, %v2133
    %v2962 = vpack.c.b16 %v2138, %v2134
    %v2963 = vpack.c.b16 %v2139, %v2135
    %v2964 = vpack.c.b16 %v2144, %v2140
    %v2965 = vpack.c.b16 %v2145, %v2141
    %v2966 = vpack.c.b16 %v2146, %v2142
    %v2967 = vpack.c.b16 %v2147, %v2143
    %v2968 = vpack.c.b16 %v2152, %v2148
    %v2969 = vpack.c.b16 %v2153, %v2149
    %v2970 = vpack.c.b16 %v2154, %v2150
    %v2971 = vpack.c.b16 %v2155, %v2151
    %v2972 = vpack.c.b16 %v2160, %v2156
    %v2973 = vpack.c.b16 %v2161, %v2157
    %v2974 = vpack.c.b16 %v2162, %v2158
    %v2975 = vpack.c.b16 %v2163, %v2159
    %v2976 = vpack.c.b16 %v2168, %v2164
    %v2977 = vpack.c.b16 %v2169, %v2165
    %v2978 = vpack.c.b16 %v2170, %v2166
    %v2979 = vpack.c.b16 %v2171, %v2167
    %v2980 = vpack.c.b16 %v2176, %v2172
    %v2981 = vpack.c.b16 %v2177, %v2173
    %v2982 = vpack.c.b16 %v2178, %v2174
    %v2983 = vpack.c.b16 %v2179, %v2175
    %v2984 = vpack.c.b16 %v2184, %v2180
    %v2985 = vpack.c.b16 %v2185, %v2181
    %v2986 = vpack.c.b16 %v2186, %v2182
    %v2987 = vpack.c.b16 %v2187, %v2183
    %v2988 = vpack.c.b16 %v2192, %v2188
    %v2989 = vpack.c.b16 %v2193, %v2189
    %v2990 = vpack.c.b16 %v2194, %v2190
    %v2991 = vpack.c.b16 %v2195, %v2191
    %v2992 = vpack.c.b16 %v2200, %v2196
    %v2993 = vpack.c.b16 %v2201, %v2197
    %v2994 = vpack.c.b16 %v2202, %v2198
    %v2995 = vpack.c.b16 %v2203, %v2199
    %v2996 = vpack.c.b16 %v2208, %v2204
    %v2997 = vpack.c.b16 %v2209, %v2205
    %v2998 = vpack.c.b16 %v2210, %v2206
    %v2999 = vpack.c.b16 %v2211, %v2207
    %v3000 = vpack.c.b16 %v2216, %v2212
    %v3001 = vpack.c.b16 %v2217, %v2213
    %v3002 = vpack.c.b16 %v2218, %v2214
    %v3003 = vpack.c.b16 %v2219, %v2215
    %v3004 = vpack.c.b16 %v2224, %v2220
    %v3005 = vpack.c.b16 %v2225, %v2221
    %v3006 = vpack.c.b16 %v2226, %v2222
    %v3007 = vpack.c.b16 %v2227, %v2223
    %v3008 = vpack.c.b16 %v2232, %v2228
    %v3009 = vpack.c.b16 %v2233, %v2229
    %v3010 = vpack.c.b16 %v2234, %v2230
    %v3011 = vpack.c.b16 %v2235, %v2231
    %v3012 = vpack.c.b16 %v2240, %v2236
    %v3013 = vpack.c.b16 %v2241, %v2237
    %v3014 = vpack.c.b16 %v2242, %v2238
    %v3015 = vpack.c.b16 %v2243, %v2239
    %v3016 = vpack.c.b16 %v2248, %v2244
    %v3017 = vpack.c.b16 %v2249, %v2245
    %v3018 = vpack.c.b16 %v2250, %v2246
    %v3019 = vpack.c.b16 %v2251, %v2247
    %v3020 = vpack.c.b16 %v2256, %v2252
    %v3021 = vpack.c.b16 %v2257, %v2253
    %v3022 = vpack.c.b16 %v2258, %v2254
    %v3023 = vpack.c.b16 %v2259, %v2255
    %v3024 = vpack.c.b16 %v2264, %v2260
    %v3025 = vpack.c.b16 %v2265, %v2261
    %v3026 = vpack.c.b16 %v2266, %v2262
    %v3027 = vpack.c.b16 %v2267, %v2263
    %v3028 = vpack.c.b16 %v2272, %v2268
    %v3029 = vpack.c.b16 %v2273, %v2269
    %v3030 = vpack.c.b16 %v2274, %v2270
    %v3031 = vpack.c.b16 %v2275, %v2271
    %v3032 = vpack.c.b16 %v2280, %v2276
    %v3033 = vpack.c.b16 %v2281, %v2277
    %v3034 = vpack.c.b16 %v2282, %v2278
    %v3035 = vpack.c.b16 %v2283, %v2279
    %v3036 = vpack.c.b16 %v2288, %v2284
    %v3037 = vpack.c.b16 %v2289, %v2285
    %v3038 = vpack.c.b16 %v2290, %v2286
    %v3039 = vpack.c.b16 %v2291, %v2287
    %v3040 = vpack.c.b16 %v2296, %v2292
    %v3041 = vpack.c.b16 %v2297, %v2293
    %v3042 = vpack.c.b16 %v2298, %v2294
    %v3043 = vpack.c.b16 %v2299, %v2295
    %v3044 = vpack.c.b16 %v2304, %v2300
    %v3045 = vpack.c.b16 %v2305, %v2301
    %v3046 = vpack.c.b16 %v2306, %v2302
    %v3047 = vpack.c.b16 %v2307, %v2303
    %v3048 = vpack.c.b16 %v2312, %v2308
    %v3049 = vpack.c.b16 %v2313, %v2309
    %v3050 = vpack.c.b16 %v2314, %v2310
    %v3051 = vpack.c.b16 %v2315, %v2311
    %v3052 = vpack.c.b16 %v2320, %v2316
    %v3053 = vpack.c.b16 %v2321, %v2317
    %v3054 = vpack.c.b16 %v2322, %v2318
    %v3055 = vpack.c.b16 %v2323, %v2319
    %v3056 = vpack.c.b16 %v2328, %v2324
    %v3057 = vpack.c.b16 %v2329, %v2325
    %v3058 = vpack.c.b16 %v2330, %v2326
    %v3059 = vpack.c.b16 %v2331, %v2327
    %v3060 = vpack.c.b16 %v2336, %v2332
    %v3061 = vpack.c.b16 %v2337, %v2333
    %v3062 = vpack.c.b16 %v2338, %v2334
    %v3063 = vpack.c.b16 %v2339, %v2335
    %v3064 = vpack.c.b16 %v2344, %v2340
    %v3065 = vpack.c.b16 %v2345, %v2341
    %v3066 = vpack.c.b16 %v2346, %v2342
    %v3067 = vpack.c.b16 %v2347, %v2343
    %v3068 = vpack.c.b16 %v2352, %v2348
    %v3069 = vpack.c.b16 %v2353, %v2349
    %v3070 = vpack.c.b16 %v2354, %v2350
    %v3071 = vpack.c.b16 %v2355, %v2351
    %v3072 = vpack.c.b16 %v2360, %v2356
    %v3073 = vpack.c.b16 %v2361, %v2357
    %v3074 = vpack.c.b16 %v2362, %v2358
    %v3075 = vpack.c.b16 %v2363, %v2359
    %v3076 = vpack.c.b16 %v2368, %v2364
    %v3077 = vpack.c.b16 %v2369, %v2365
    %v3078 = vpack.c.b16 %v2370, %v2366
    %v3079 = vpack.c.b16 %v2371, %v2367
    %v3080 = vpack.c.b16 %v2376, %v2372
    %v3081 = vpack.c.b16 %v2377, %v2373
    %v3082 = vpack.c.b16 %v2378, %v2374
    %v3083 = vpack.c.b16 %v2379, %v2375
    %v3084 = vpack.c.b16 %v2384, %v2380
    %v3085 = vpack.c.b16 %v2385, %v2381
    %v3086 = vpack.c.b16 %v2386, %v2382
    %v3087 = vpack.c.b16 %v2387, %v2383
    %v3088 = vpack.c.b16 %v2392, %v2388
    %v3089 = vpack.c.b16 %v2393, %v2389
    %v3090 = vpack.c.b16 %v2394, %v2390
    %v3091 = vpack.c.b16 %v2395, %v2391
    %v3092 = vpack.c.b16 %v2400, %v2396
    %v3093 = vpack.c.b16 %v2401, %v2397
    %v3094 = vpack.c.b16 %v2402, %v2398
    %v3095 = vpack.c.b16 %v2403, %v2399
    %v3096 = vpack.c.b16 %v2408, %v2404
    %v3097 = vpack.c.b16 %v2409, %v2405
    %v3098 = vpack.c.b16 %v2410, %v2406
    %v3099 = vpack.c.b16 %v2411, %v2407
    %v3100 = vpack.c.b16 %v2416, %v2412
    %v3101 = vpack.c.b16 %v2417, %v2413
    %v3102 = vpack.c.b16 %v2418, %v2414
    %v3103 = vpack.c.b16 %v2419, %v2415
    %v3104 = vpack.c.b16 %v2424, %v2420
    %v3105 = vpack.c.b16 %v2425, %v2421
    %v3106 = vpack.c.b16 %v2426, %v2422
    %v3107 = vpack.c.b16 %v2427, %v2423
    %v3108 = vpack.c.b16 %v2432, %v2428
    %v3109 = vpack.c.b16 %v2433, %v2429
    %v3110 = vpack.c.b16 %v2434, %v2430
    %v3111 = vpack.c.b16 %v2435, %v2431
    %v3112 = vpack.c.b16 %v2440, %v2436
    %v3113 = vpack.c.b16 %v2441, %v2437
    %v3114 = vpack.c.b16 %v2442, %v2438
    %v3115 = vpack.c.b16 %v2443, %v2439
    %v3116 = vpack.c.b16 %v2448, %v2444
    %v3117 = vpack.c.b16 %v2449, %v2445
    %v3118 = vpack.c.b16 %v2450, %v2446
    %v3119 = vpack.c.b16 %v2451, %v2447
    %v3120 = vpack.c.b16 %v2456, %v2452
    %v3121 = vpack.c.b16 %v2457, %v2453
    %v3122 = vpack.c.b16 %v2458, %v2454
    %v3123 = vpack.c.b16 %v2459, %v2455
    %v3124 = vpack.c.b16 %v2464, %v2460
    %v3125 = vpack.c.b16 %v2465, %v2461
    %v3126 = vpack.c.b16 %v2466, %v2462
    %v3127 = vpack.c.b16 %v2467, %v2463
    %v3128 = vpack.c.b16 %v2472, %v2468
    %v3129 = vpack.c.b16 %v2473, %v2469
    %v3130 = vpack.c.b16 %v2474, %v2470
    %v3131 = vpack.c.b16 %v2475, %v2471
    %v3132 = vpack.c.b16 %v2480, %v2476
    %v3133 = vpack.c.b16 %v2481, %v2477
    %v3134 = vpack.c.b16 %v2482, %v2478
    %v3135 = vpack.c.b16 %v2483, %v2479
    %v3136 = vpack.c.b16 %v2488, %v2484
    %v3137 = vpack.c.b16 %v2489, %v2485
    %v3138 = vpack.c.b16 %v2490, %v2486
    %v3139 = vpack.c.b16 %v2491, %v2487
    %v3140 = vpack.c.b16 %v2496, %v2492
    %v3141 = vpack.c.b16 %v2497, %v2493
    %v3142 = vpack.c.b16 %v2498, %v2494
    %v3143 = vpack.c.b16 %v2499, %v2495
    %v3144 = vpack.c.b16 %v2504, %v2500
    %v3145 = vpack.c.b16 %v2505, %v2501
    %v3146 = vpack.c.b16 %v2506, %v2502
    %v3147 = vpack.c.b16 %v2507, %v2503
    %v3148 = vpack.c.b16 %v2512, %v2508
    %v3149 = vpack.c.b16 %v2513, %v2509
    %v3150 = vpack.c.b16 %v2514, %v2510
    %v3151 = vpack.c.b16 %v2515, %v2511
    %v3152 = vpack.c.b16 %v2520, %v2516
    %v3153 = vpack.c.b16 %v2521, %v2517
    %v3154 = vpack.c.b16 %v2522, %v2518
    %v3155 = vpack.c.b16 %v2523, %v2519
    %v3156 = vpack.c.b16 %v2528, %v2524
    %v3157 = vpack.c.b16 %v2529, %v2525
    %v3158 = vpack.c.b16 %v2530, %v2526
    %v3159 = vpack.c.b16 %v2531, %v2527
    %v3160 = vpack.c.b16 %v2536, %v2532
    %v3161 = vpack.c.b16 %v2537, %v2533
    %v3162 = vpack.c.b16 %v2538, %v2534
    %v3163 = vpack.c.b16 %v2539, %v2535
    %v3164 = vpack.c.b16 %v2544, %v2540
    %v3165 = vpack.c.b16 %v2545, %v2541
    %v3166 = vpack.c.b16 %v2546, %v2542
    %v3167 = vpack.c.b16 %v2547, %v2543
    %v3168 = vpack.c.b16 %v2552, %v2548
    %v3169 = vpack.c.b16 %v2553, %v2549
    %v3170 = vpack.c.b16 %v2554, %v2550
    %v3171 = vpack.c.b16 %v2555, %v2551
    %v3172 = vpack.c.b16 %v2560, %v2556
    %v3173 = vpack.c.b16 %v2561, %v2557
    %v3174 = vpack.c.b16 %v2562, %v2558
    %v3175 = vpack.c.b16 %v2563, %v2559
    %v3176 = vpack.c.b16 %v2568, %v2564
    %v3177 = vpack.c.b16 %v2569, %v2565
    %v3178 = vpack.c.b16 %v2570, %v2566
    %v3179 = vpack.c.b16 %v2571, %v2567
    %v3180 = vpack.c.b16 %v2576, %v2572
    %v3181 = vpack.c.b16 %v2577, %v2573
    %v3182 = vpack.c.b16 %v2578, %v2574
    %v3183 = vpack.c.b16 %v2579, %v2575
    %v3184 = vpack.c.b16 %v2584, %v2580
    %v3185 = vpack.c.b16 %v2585, %v2581
    %v3186 = vpack.c.b16 %v2586, %v2582
    %v3187 = vpack.c.b16 %v2587, %v2583
    %v3188 = vpack.c.b16 %v2592, %v2588
    %v3189 = vpack.c.b16 %v2593, %v2589
    %v3190 = vpack.c.b16 %v2594, %v2590
    %v3191 = vpack.c.b16 %v2595, %v2591
    %v3192 = vpack.c.b16 %v2600, %v2596
    %v3193 = vpack.c.b16 %v2601, %v2597
    %v3194 = vpack.c.b16 %v2602, %v2598
    %v3195 = vpack.c.b16 %v2603, %v2599
    %v3196 = vpack.c.b16 %v2608, %v2604
    %v3197 = vpack.c.b16 %v2609, %v2605
    %v3198 = vpack.c.b16 %v2610, %v2606
    %v3199 = vpack.c.b16 %v2611, %v2607
    %v3200 = vpack.c.b16 %v2616, %v2612
    %v3201 = vpack.c.b16 %v2617, %v2613
    %v3202 = vpack.c.b16 %v2618, %v2614
    %v3203 = vpack.c.b16 %v2619, %v2615
    %v3204 = vpack.c.b16 %v2624, %v2620
    %v3205 = vpack.c.b16 %v2625, %v2621
    %v3206 = vpack.c.b16 %v2626, %v2622
    %v3207 = vpack.c.b16 %v2627, %v2623
    %v3208 = vpack.c.b16 %v2632, %v2628
    %v3209 = vpack.c.b16 %v2633, %v2629
    %v3210 = vpack.c.b16 %v2634, %v2630
    %v3211 = vpack.c.b16 %v2635, %v2631
    %v3212 = vpack.c.b16 %v2640, %v2636
    %v3213 = vpack.c.b16 %v2641, %v2637
    %v3214 = vpack.c.b16 %v2642, %v2638
    %v3215 = vpack.c.b16 %v2643, %v2639
    %v3216 = vpack.c.b16 %v2648, %v2644
    %v3217 = vpack.c.b16 %v2649, %v2645
    %v3218 = vpack.c.b16 %v2650, %v2646
    %v3219 = vpack.c.b16 %v2651, %v2647
    %v3220 = vpack.c.b16 %v2656, %v2652
    %v3221 = vpack.c.b16 %v2657, %v2653
    %v3222 = vpack.c.b16 %v2658, %v2654
    %v3223 = vpack.c.b16 %v2659, %v2655
    %v3224 = vpack.c.b16 %v2664, %v2660
    %v3225 = vpack.c.b16 %v2665, %v2661
    %v3226 = vpack.c.b16 %v2666, %v2662
    %v3227 = vpack.c.b16 %v2667, %v2663
    %v3228 = vpack.c.b16 %v2672, %v2668
    %v3229 = vpack.c.b16 %v2673, %v2669
    %v3230 = vpack.c.b16 %v2674, %v2670
    %v3231 = vpack.c.b16 %v2675, %v2671
    %v3232 = vpack.c.b16 %v2680, %v2676
    %v3233 = vpack.c.b16 %v2681, %v2677
    %v3234 = vpack.c.b16 %v2682, %v2678
    %v3235 = vpack.c.b16 %v2683, %v2679
    %v3236 = vpack.c.b16 %v2688, %v2684
    %v3237 = vpack.c.b16 %v2689, %v2685
    %v3238 = vpack.c.b16 %v2690, %v2686
    %v3239 = vpack.c.b16 %v2691, %v2687
    %v3240 = vpack.c.b16 %v2696, %v2692
    %v3241 = vpack.c.b16 %v2697, %v2693
    %v3242 = vpack.c.b16 %v2698, %v2694
    %v3243 = vpack.c.b16 %v2699, %v2695
    %v3244 = vpack.c.b16 %v2704, %v2700
    %v3245 = vpack.c.b16 %v2705, %v2701
    %v3246 = vpack.c.b16 %v2706, %v2702
    %v3247 = vpack.c.b16 %v2707, %v2703
    %v3248 = vpack.c.b16 %v2712, %v2708
    %v3249 = vpack.c.b16 %v2713, %v2709
    %v3250 = vpack.c.b16 %v2714, %v2710
    %v3251 = vpack.c.b16 %v2715, %v2711
    %v3252 = vpack.c.b16 %v2720, %v2716
    %v3253 = vpack.c.b16 %v2721, %v2717
    %v3254 = vpack.c.b16 %v2722, %v2718
    %v3255 = vpack.c.b16 %v2723, %v2719
    %v3256 = vpack.c.b16 %v2728, %v2724
    %v3257 = vpack.c.b16 %v2729, %v2725
    %v3258 = vpack.c.b16 %v2730, %v2726
    %v3259 = vpack.c.b16 %v2731, %v2727
    %v3260 = vpack.c.b16 %v2736, %v2732
    %v3261 = vpack.c.b16 %v2737, %v2733
    %v3262 = vpack.c.b16 %v2738, %v2734
    %v3263 = vpack.c.b16 %v2739, %v2735
    %v3264 = vpack.c.b16 %v2744, %v2740
    %v3265 = vpack.c.b16 %v2745, %v2741
    %v3266 = vpack.c.b16 %v2746, %v2742
    %v3267 = vpack.c.b16 %v2747, %v2743
    %v3268 = vpack.c.b16 %v2752, %v2748
    %v3269 = vpack.c.b16 %v2753, %v2749
    %v3270 = vpack.c.b16 %v2754, %v2750
    %v3271 = vpack.c.b16 %v2755, %v2751
    %v3272 = vpack.c.b16 %v2760, %v2756
    %v3273 = vpack.c.b16 %v2761, %v2757
    %v3274 = vpack.c.b16 %v2762, %v2758
    %v3275 = vpack.c.b16 %v2763, %v2759
    %3788 = vmatprep.subr.bf16.mxu0 %v2765
    %3789 = vmatpush1.bf16.msra.mxu0 %v2764
    %3790 = vmatprep.subr.bf16.mxu0 %v2769
    %3791 = vmatpush1.bf16.msra.mxu0 %v2768
    %3792 = vmatprep.subr.bf16.mxu0 %v2773
    %3793 = vmatpush1.bf16.msra.mxu0 %v2772
    %3794 = vmatprep.subr.bf16.mxu0 %v2777
    %3795 = vmatpush1.bf16.msra.mxu0 %v2776
    %3796 = vmatprep.subr.bf16.mxu0 %v2781
    %3797 = vmatpush1.bf16.msra.mxu0 %v2780
    %3798 = vmatprep.subr.bf16.mxu0 %v2785
    %3799 = vmatpush1.bf16.msra.mxu0 %v2784
    %3800 = vmatprep.subr.bf16.mxu0 %v2789
    %3801 = vmatpush1.bf16.msra.mxu0 %v2788
    %3802 = vmatprep.subr.bf16.mxu0 %v2793
    %3803 = vmatpush1.bf16.msra.mxu0 %v2792
    %3804 = vmatprep.subr.bf16.mxu0 %v2797
    %3805 = vmatpush1.bf16.msra.mxu0 %v2796
    %3806 = vmatprep.subr.bf16.mxu0 %v2801
    %3807 = vmatpush1.bf16.msra.mxu0 %v2800
    %3808 = vmatprep.subr.bf16.mxu0 %v2805
    %3809 = vmatpush1.bf16.msra.mxu0 %v2804
    %3810 = vmatprep.subr.bf16.mxu0 %v2809
    %3811 = vmatpush1.bf16.msra.mxu0 %v2808
    %3812 = vmatprep.subr.bf16.mxu0 %v2813
    %3813 = vmatpush1.bf16.msra.mxu0 %v2812
    %3814 = vmatprep.subr.bf16.mxu0 %v2817
    %3815 = vmatpush1.bf16.msra.mxu0 %v2816
    %3816 = vmatprep.subr.bf16.mxu0 %v2821
    %3817 = vmatpush1.bf16.msra.mxu0 %v2820
    %3818 = vmatprep.subr.bf16.mxu0 %v2825
    %3819 = vmatpush1.bf16.msra.mxu0 %v2824
    %3820 = vmatprep.mubr.bf16.mxu0 %v1151
    %3821 = vmatmul.mubr.bf16.gmra.mrb[0].mxu0 %v1137
    %v3822 = vpop.f32.mrb[0].mxu0
    %v3823 = vadd.f32 0.0, %v3822
    %v3824 = vpop.f32.mrb[0].mxu0
    %v3825 = vadd.f32 0.0, %v3824
    %v3826 = vpop.f32.mrb[0].mxu0
    %v3827 = vpop.f32.mrb[0].mxu0
    %3828 = vdwg.mxu0
    %3829 = vmatprep.subr.bf16.mxu0 %v2829
    %3830 = vmatpush1.bf16.msra.mxu0 %v2828
    %3831 = vmatprep.subr.bf16.mxu0 %v2833
    %3832 = vmatpush1.bf16.msra.mxu0 %v2832
    %3833 = vmatprep.subr.bf16.mxu0 %v2837
    %3834 = vmatpush1.bf16.msra.mxu0 %v2836
    %3835 = vmatprep.subr.bf16.mxu0 %v2841
    %3836 = vmatpush1.bf16.msra.mxu0 %v2840
    %3837 = vmatprep.subr.bf16.mxu0 %v2845
    %3838 = vmatpush1.bf16.msra.mxu0 %v2844
    %3839 = vmatprep.subr.bf16.mxu0 %v2849
    %3840 = vmatpush1.bf16.msra.mxu0 %v2848
    %3841 = vmatprep.subr.bf16.mxu0 %v2853
    %3842 = vmatpush1.bf16.msra.mxu0 %v2852
    %3843 = vmatprep.subr.bf16.mxu0 %v2857
    %3844 = vmatpush1.bf16.msra.mxu0 %v2856
    %3845 = vmatprep.subr.bf16.mxu0 %v2861
    %3846 = vmatpush1.bf16.msra.mxu0 %v2860
    %3847 = vmatprep.subr.bf16.mxu0 %v2865
    %3848 = vmatpush1.bf16.msra.mxu0 %v2864
    %3849 = vmatprep.subr.bf16.mxu0 %v2869
    %3850 = vmatpush1.bf16.msra.mxu0 %v2868
    %3851 = vmatprep.subr.bf16.mxu0 %v2873
    %3852 = vmatpush1.bf16.msra.mxu0 %v2872
    %3853 = vmatprep.subr.bf16.mxu0 %v2877
    %3854 = vmatpush1.bf16.msra.mxu0 %v2876
    %3855 = vmatprep.subr.bf16.mxu0 %v2881
    %3856 = vmatpush1.bf16.msra.mxu0 %v2880
    %3857 = vmatprep.subr.bf16.mxu0 %v2885
    %3858 = vmatpush1.bf16.msra.mxu0 %v2884
    %3859 = vmatprep.subr.bf16.mxu0 %v2889
    %3860 = vmatpush1.bf16.msra.mxu0 %v2888
    %3861 = vmatprep.mubr.bf16.mxu0 %v1161
    %3862 = vmatmul.mubr.bf16.gmra.mrb[0].mxu0 %v1159
    %v3863 = vpop.f32.mrb[0].mxu0
    %v3864 = vadd.f32 %v3823, %v3863
    %v3865 = vpop.f32.mrb[0].mxu0
    %v3866 = vadd.f32 %v3825, %v3865
    %v3867 = vpop.f32.mrb[0].mxu0
    %v3868 = vpop.f32.mrb[0].mxu0
    %3869 = vdwg.mxu0
    %3870 = vmatprep.subr.bf16.mxu0 %v2893
    %3871 = vmatpush1.bf16.msra.mxu0 %v2892
    %3872 = vmatprep.subr.bf16.mxu0 %v2897
    %3873 = vmatpush1.bf16.msra.mxu0 %v2896
    %3874 = vmatprep.subr.bf16.mxu0 %v2901
    %3875 = vmatpush1.bf16.msra.mxu0 %v2900
    %3876 = vmatprep.subr.bf16.mxu0 %v2905
    %3877 = vmatpush1.bf16.msra.mxu0 %v2904
    %3878 = vmatprep.subr.bf16.mxu0 %v2909
    %3879 = vmatpush1.bf16.msra.mxu0 %v2908
    %3880 = vmatprep.subr.bf16.mxu0 %v2913
    %3881 = vmatpush1.bf16.msra.mxu0 %v2912
    %3882 = vmatprep.subr.bf16.mxu0 %v2917
    %3883 = vmatpush1.bf16.msra.mxu0 %v2916
    %3884 = vmatprep.subr.bf16.mxu0 %v2921
    %3885 = vmatpush1.bf16.msra.mxu0 %v2920
    %3886 = vmatprep.subr.bf16.mxu0 %v2925
    %3887 = vmatpush1.bf16.msra.mxu0 %v2924
    %3888 = vmatprep.subr.bf16.mxu0 %v2929
    %3889 = vmatpush1.bf16.msra.mxu0 %v2928
    %3890 = vmatprep.subr.bf16.mxu0 %v2933
    %3891 = vmatpush1.bf16.msra.mxu0 %v2932
    %3892 = vmatprep.subr.bf16.mxu0 %v2937
    %3893 = vmatpush1.bf16.msra.mxu0 %v2936
    %3894 = vmatprep.subr.bf16.mxu0 %v2941
    %3895 = vmatpush1.bf16.msra.mxu0 %v2940
    %3896 = vmatprep.subr.bf16.mxu0 %v2945
    %3897 = vmatpush1.bf16.msra.mxu0 %v2944
    %3898 = vmatprep.subr.bf16.mxu0 %v2949
    %3899 = vmatpush1.bf16.msra.mxu0 %v2948
    %3900 = vmatprep.subr.bf16.mxu0 %v2953
    %3901 = vmatpush1.bf16.msra.mxu0 %v2952
    %3902 = vmatprep.mubr.bf16.mxu0 %v1158
    %3903 = vmatmul.mubr.bf16.gmra.mrb[0].mxu0 %v1144
    %v3904 = vpop.f32.mrb[0].mxu0
    %v3905 = vadd.f32 %v3864, %v3904
    %v3906 = vpop.f32.mrb[0].mxu0
    %v3907 = vadd.f32 %v3866, %v3906
    %v3908 = vpop.f32.mrb[0].mxu0
    %v3909 = vpop.f32.mrb[0].mxu0
    %3910 = vdwg.mxu0
    %3911 = vmatprep.subr.bf16.mxu0 %v2957
    %3912 = vmatpush1.bf16.msra.mxu0 %v2956
    %3913 = vmatprep.subr.bf16.mxu0 %v2961
    %3914 = vmatpush1.bf16.msra.mxu0 %v2960
    %3915 = vmatprep.subr.bf16.mxu0 %v2965
    %3916 = vmatpush1.bf16.msra.mxu0 %v2964
    %3917 = vmatprep.subr.bf16.mxu0 %v2969
    %3918 = vmatpush1.bf16.msra.mxu0 %v2968
    %3919 = vmatprep.subr.bf16.mxu0 %v2973
    %3920 = vmatpush1.bf16.msra.mxu0 %v2972
    %3921 = vmatprep.subr.bf16.mxu0 %v2977
    %3922 = vmatpush1.bf16.msra.mxu0 %v2976
    %3923 = vmatprep.subr.bf16.mxu0 %v2981
    %3924 = vmatpush1.bf16.msra.mxu0 %v2980
    %3925 = vmatprep.subr.bf16.mxu0 %v2985
    %3926 = vmatpush1.bf16.msra.mxu0 %v2984
    %3927 = vmatprep.subr.bf16.mxu0 %v2989
    %3928 = vmatpush1.bf16.msra.mxu0 %v2988
    %3929 = vmatprep.subr.bf16.mxu0 %v2993
    %3930 = vmatpush1.bf16.msra.mxu0 %v2992
    %3931 = vmatprep.subr.bf16.mxu0 %v2997
    %3932 = vmatpush1.bf16.msra.mxu0 %v2996
    %3933 = vmatprep.subr.bf16.mxu0 %v3001
    %3934 = vmatpush1.bf16.msra.mxu0 %v3000
    %3935 = vmatprep.subr.bf16.mxu0 %v3005
    %3936 = vmatpush1.bf16.msra.mxu0 %v3004
    %3937 = vmatprep.subr.bf16.mxu0 %v3009
    %3938 = vmatpush1.bf16.msra.mxu0 %v3008
    %3939 = vmatprep.subr.bf16.mxu0 %v3013
    %3940 = vmatpush1.bf16.msra.mxu0 %v3012
    %3941 = vmatprep.subr.bf16.mxu0 %v3017
    %3942 = vmatpush1.bf16.msra.mxu0 %v3016
    %3943 = vmatprep.mubr.bf16.mxu0 %v1162
    %3944 = vmatmul.mubr.bf16.gmra.mrb[0].mxu0 %v1160
    %v3945 = vpop.f32.mrb[0].mxu0
    %v3946 = vadd.f32 %v3905, %v3945
    %v3947 = vpop.f32.mrb[0].mxu0
    %v3948 = vadd.f32 %v3907, %v3947
    %v3949 = vpop.f32.mrb[0].mxu0
    %v3950 = vpop.f32.mrb[0].mxu0
    %3951 = vdwg.mxu0
    %3952 = vmatprep.subr.bf16.mxu0 %v3021
    %3953 = vmatpush1.bf16.msra.mxu0 %v3020
    %3954 = vmatprep.subr.bf16.mxu0 %v3025
    %3955 = vmatpush1.bf16.msra.mxu0 %v3024
    %3956 = vmatprep.subr.bf16.mxu0 %v3029
    %3957 = vmatpush1.bf16.msra.mxu0 %v3028
    %3958 = vmatprep.subr.bf16.mxu0 %v3033
    %3959 = vmatpush1.bf16.msra.mxu0 %v3032
    %3960 = vmatprep.subr.bf16.mxu0 %v3037
    %3961 = vmatpush1.bf16.msra.mxu0 %v3036
    %3962 = vmatprep.subr.bf16.mxu0 %v3041
    %3963 = vmatpush1.bf16.msra.mxu0 %v3040
    %3964 = vmatprep.subr.bf16.mxu0 %v3045
    %3965 = vmatpush1.bf16.msra.mxu0 %v3044
    %3966 = vmatprep.subr.bf16.mxu0 %v3049
    %3967 = vmatpush1.bf16.msra.mxu0 %v3048
    %3968 = vmatprep.subr.bf16.mxu0 %v3053
    %3969 = vmatpush1.bf16.msra.mxu0 %v3052
    %3970 = vmatprep.subr.bf16.mxu0 %v3057
    %3971 = vmatpush1.bf16.msra.mxu0 %v3056
    %3972 = vmatprep.subr.bf16.mxu0 %v3061
    %3973 = vmatpush1.bf16.msra.mxu0 %v3060
    %3974 = vmatprep.subr.bf16.mxu0 %v3065
    %3975 = vmatpush1.bf16.msra.mxu0 %v3064
    %3976 = vmatprep.subr.bf16.mxu0 %v3069
    %3977 = vmatpush1.bf16.msra.mxu0 %v3068
    %3978 = vmatprep.subr.bf16.mxu0 %v3073
    %3979 = vmatpush1.bf16.msra.mxu0 %v3072
    %3980 = vmatprep.subr.bf16.mxu0 %v3077
    %3981 = vmatpush1.bf16.msra.mxu0 %v3076
    %3982 = vmatprep.subr.bf16.mxu0 %v3081
    %3983 = vmatpush1.bf16.msra.mxu0 %v3080
    %3984 = vmatprep.mubr.bf16.mxu0 %v1200
    %3985 = vmatmul.mubr.bf16.gmra.mrb[0].mxu0 %v1186
    %v3986 = vpop.f32.mrb[0].mxu0
    %v3987 = vadd.f32 %v3946, %v3986
    %v3988 = vpop.f32.mrb[0].mxu0
    %v3989 = vadd.f32 %v3948, %v3988
    %v3990 = vpop.f32.mrb[0].mxu0
    %v3991 = vpop.f32.mrb[0].mxu0
    %3992 = vdwg.mxu0
    %3993 = vmatprep.subr.bf16.mxu0 %v3085
    %3994 = vmatpush1.bf16.msra.mxu0 %v3084
    %3995 = vmatprep.subr.bf16.mxu0 %v3089
    %3996 = vmatpush1.bf16.msra.mxu0 %v3088
    %3997 = vmatprep.subr.bf16.mxu0 %v3093
    %3998 = vmatpush1.bf16.msra.mxu0 %v3092
    %3999 = vmatprep.subr.bf16.mxu0 %v3097
    %4000 = vmatpush1.bf16.msra.mxu0 %v3096
    %4001 = vmatprep.subr.bf16.mxu0 %v3101
    %4002 = vmatpush1.bf16.msra.mxu0 %v3100
    %4003 = vmatprep.subr.bf16.mxu0 %v3105
    %4004 = vmatpush1.bf16.msra.mxu0 %v3104
    %4005 = vmatprep.subr.bf16.mxu0 %v3109
    %4006 = vmatpush1.bf16.msra.mxu0 %v3108
    %4007 = vmatprep.subr.bf16.mxu0 %v3113
    %4008 = vmatpush1.bf16.msra.mxu0 %v3112
    %4009 = vmatprep.subr.bf16.mxu0 %v3117
    %4010 = vmatpush1.bf16.msra.mxu0 %v3116
    %4011 = vmatprep.subr.bf16.mxu0 %v3121
    %4012 = vmatpush1.bf16.msra.mxu0 %v3120
    %4013 = vmatprep.subr.bf16.mxu0 %v3125
    %4014 = vmatpush1.bf16.msra.mxu0 %v3124
    %4015 = vmatprep.subr.bf16.mxu0 %v3129
    %4016 = vmatpush1.bf16.msra.mxu0 %v3128
    %4017 = vmatprep.subr.bf16.mxu0 %v3133
    %4018 = vmatpush1.bf16.msra.mxu0 %v3132
    %4019 = vmatprep.subr.bf16.mxu0 %v3137
    %4020 = vmatpush1.bf16.msra.mxu0 %v3136
    %4021 = vmatprep.subr.bf16.mxu0 %v3141
    %4022 = vmatpush1.bf16.msra.mxu0 %v3140
    %4023 = vmatprep.subr.bf16.mxu0 %v3145
    %4024 = vmatpush1.bf16.msra.mxu0 %v3144
    %4025 = vmatprep.mubr.bf16.mxu0 %v1210
    %4026 = vmatmul.mubr.bf16.gmra.mrb[0].mxu0 %v1208
    %v4027 = vpop.f32.mrb[0].mxu0
    %v4028 = vadd.f32 %v3987, %v4027
    %v4029 = vpop.f32.mrb[0].mxu0
    %v4030 = vadd.f32 %v3989, %v4029
    %v4031 = vpop.f32.mrb[0].mxu0
    %v4032 = vpop.f32.mrb[0].mxu0
    %4033 = vdwg.mxu0
    %4034 = vmatprep.subr.bf16.mxu0 %v3149
    %4035 = vmatpush1.bf16.msra.mxu0 %v3148
    %4036 = vmatprep.subr.bf16.mxu0 %v3153
    %4037 = vmatpush1.bf16.msra.mxu0 %v3152
    %4038 = vmatprep.subr.bf16.mxu0 %v3157
    %4039 = vmatpush1.bf16.msra.mxu0 %v3156
    %4040 = vmatprep.subr.bf16.mxu0 %v3161
    %4041 = vmatpush1.bf16.msra.mxu0 %v3160
    %4042 = vmatprep.subr.bf16.mxu0 %v3165
    %4043 = vmatpush1.bf16.msra.mxu0 %v3164
    %4044 = vmatprep.subr.bf16.mxu0 %v3169
    %4045 = vmatpush1.bf16.msra.mxu0 %v3168
    %4046 = vmatprep.subr.bf16.mxu0 %v3173
    %4047 = vmatpush1.bf16.msra.mxu0 %v3172
    %4048 = vmatprep.subr.bf16.mxu0 %v3177
    %4049 = vmatpush1.bf16.msra.mxu0 %v3176
    %4050 = vmatprep.subr.bf16.mxu0 %v3181
    %4051 = vmatpush1.bf16.msra.mxu0 %v3180
    %4052 = vmatprep.subr.bf16.mxu0 %v3185
    %4053 = vmatpush1.bf16.msra.mxu0 %v3184
    %4054 = vmatprep.subr.bf16.mxu0 %v3189
    %4055 = vmatpush1.bf16.msra.mxu0 %v3188
    %4056 = vmatprep.subr.bf16.mxu0 %v3193
    %4057 = vmatpush1.bf16.msra.mxu0 %v3192
    %4058 = vmatprep.subr.bf16.mxu0 %v3197
    %4059 = vmatpush1.bf16.msra.mxu0 %v3196
    %4060 = vmatprep.subr.bf16.mxu0 %v3201
    %4061 = vmatpush1.bf16.msra.mxu0 %v3200
    %4062 = vmatprep.subr.bf16.mxu0 %v3205
    %4063 = vmatpush1.bf16.msra.mxu0 %v3204
    %4064 = vmatprep.subr.bf16.mxu0 %v3209
    %4065 = vmatpush1.bf16.msra.mxu0 %v3208
    %4066 = vmatprep.mubr.bf16.mxu0 %v1207
    %4067 = vmatmul.mubr.bf16.gmra.mrb[0].mxu0 %v1193
    %v4068 = vpop.f32.mrb[0].mxu0
    %v4069 = vadd.f32 %v4028, %v4068
    %v4070 = vpop.f32.mrb[0].mxu0
    %v4071 = vadd.f32 %v4030, %v4070
    %v4072 = vpop.f32.mrb[0].mxu0
    %v4073 = vpop.f32.mrb[0].mxu0
    %4074 = vdwg.mxu0
    %4075 = vmatprep.subr.bf16.mxu0 %v3213
    %4076 = vmatpush1.bf16.msra.mxu0 %v3212
    %4077 = vmatprep.subr.bf16.mxu0 %v3217
    %4078 = vmatpush1.bf16.msra.mxu0 %v3216
    %4079 = vmatprep.subr.bf16.mxu0 %v3221
    %4080 = vmatpush1.bf16.msra.mxu0 %v3220
    %4081 = vmatprep.subr.bf16.mxu0 %v3225
    %4082 = vmatpush1.bf16.msra.mxu0 %v3224
    %4083 = vmatprep.subr.bf16.mxu0 %v3229
    %4084 = vmatpush1.bf16.msra.mxu0 %v3228
    %4085 = vmatprep.subr.bf16.mxu0 %v3233
    %4086 = vmatpush1.bf16.msra.mxu0 %v3232
    %4087 = vmatprep.subr.bf16.mxu0 %v3237
    %4088 = vmatpush1.bf16.msra.mxu0 %v3236
    %4089 = vmatprep.subr.bf16.mxu0 %v3241
    %4090 = vmatpush1.bf16.msra.mxu0 %v3240
    %4091 = vmatprep.subr.bf16.mxu0 %v3245
    %4092 = vmatpush1.bf16.msra.mxu0 %v3244
    %4093 = vmatprep.subr.bf16.mxu0 %v3249
    %4094 = vmatpush1.bf16.msra.mxu0 %v3248
    %4095 = vmatprep.subr.bf16.mxu0 %v3253
    %4096 = vmatpush1.bf16.msra.mxu0 %v3252
    %4097 = vmatprep.subr.bf16.mxu0 %v3257
    %4098 = vmatpush1.bf16.msra.mxu0 %v3256
    %4099 = vmatprep.subr.bf16.mxu0 %v3261
    %4100 = vmatpush1.bf16.msra.mxu0 %v3260
    %4101 = vmatprep.subr.bf16.mxu0 %v3265
    %4102 = vmatpush1.bf16.msra.mxu0 %v3264
    %4103 = vmatprep.subr.bf16.mxu0 %v3269
    %4104 = vmatpush1.bf16.msra.mxu0 %v3268
    %4105 = vmatprep.subr.bf16.mxu0 %v3273
    %4106 = vmatpush1.bf16.msra.mxu0 %v3272
    %4107 = vmatprep.mubr.bf16.mxu0 %v1211
    %4108 = vmatmul.mubr.bf16.gmra.mrb[0].mxu0 %v1209
    %v4109 = vpop.f32.mrb[0].mxu0
    %v4110 = vadd.f32 %v4069, %v4109
    %v4111 = vpop.f32.mrb[0].mxu0
    %v4112 = vadd.f32 %v4071, %v4111
    %v4113 = vpop.f32.mrb[0].mxu0
    %v4114 = vpop.f32.mrb[0].mxu0
    %4115 = vdwg.mxu0
    %4116 = vmatprep.subr.bf16.mxu0 %v2767
    %4117 = vmatpush1.bf16.msra.mxu0 %v2766
    %4118 = vmatprep.subr.bf16.mxu0 %v2771
    %4119 = vmatpush1.bf16.msra.mxu0 %v2770
    %4120 = vmatprep.subr.bf16.mxu0 %v2775
    %4121 = vmatpush1.bf16.msra.mxu0 %v2774
    %4122 = vmatprep.subr.bf16.mxu0 %v2779
    %4123 = vmatpush1.bf16.msra.mxu0 %v2778
    %4124 = vmatprep.subr.bf16.mxu0 %v2783
    %4125 = vmatpush1.bf16.msra.mxu0 %v2782
    %4126 = vmatprep.subr.bf16.mxu0 %v2787
    %4127 = vmatpush1.bf16.msra.mxu0 %v2786
    %4128 = vmatprep.subr.bf16.mxu0 %v2791
    %4129 = vmatpush1.bf16.msra.mxu0 %v2790
    %4130 = vmatprep.subr.bf16.mxu0 %v2795
    %4131 = vmatpush1.bf16.msra.mxu0 %v2794
    %4132 = vmatprep.subr.bf16.mxu0 %v2799
    %4133 = vmatpush1.bf16.msra.mxu0 %v2798
    %4134 = vmatprep.subr.bf16.mxu0 %v2803
    %4135 = vmatpush1.bf16.msra.mxu0 %v2802
    %4136 = vmatprep.subr.bf16.mxu0 %v2807
    %4137 = vmatpush1.bf16.msra.mxu0 %v2806
    %4138 = vmatprep.subr.bf16.mxu0 %v2811
    %4139 = vmatpush1.bf16.msra.mxu0 %v2810
    %4140 = vmatprep.subr.bf16.mxu0 %v2815
    %4141 = vmatpush1.bf16.msra.mxu0 %v2814
    %4142 = vmatprep.subr.bf16.mxu0 %v2819
    %4143 = vmatpush1.bf16.msra.mxu0 %v2818
    %4144 = vmatprep.subr.bf16.mxu0 %v2823
    %4145 = vmatpush1.bf16.msra.mxu0 %v2822
    %4146 = vmatprep.subr.bf16.mxu0 %v2827
    %4147 = vmatpush1.bf16.msra.mxu0 %v2826
    %4148 = vmatprep.mubr.bf16.mxu0 %v1151
    %4149 = vmatmul.mubr.bf16.gmra.mrb[0].mxu0 %v1137
    %v4150 = vpop.f32.mrb[0].mxu0
    %v4151 = vadd.f32 0.0, %v4150
    %v4152 = vpop.f32.mrb[0].mxu0
    %v4153 = vadd.f32 0.0, %v4152
    %v4154 = vpop.f32.mrb[0].mxu0
    %v4155 = vpop.f32.mrb[0].mxu0
    %4156 = vdwg.mxu0
    %4157 = vmatprep.subr.bf16.mxu0 %v2831
    %4158 = vmatpush1.bf16.msra.mxu0 %v2830
    %4159 = vmatprep.subr.bf16.mxu0 %v2835
    %4160 = vmatpush1.bf16.msra.mxu0 %v2834
    %4161 = vmatprep.subr.bf16.mxu0 %v2839
    %4162 = vmatpush1.bf16.msra.mxu0 %v2838
    %4163 = vmatprep.subr.bf16.mxu0 %v2843
    %4164 = vmatpush1.bf16.msra.mxu0 %v2842
    %4165 = vmatprep.subr.bf16.mxu0 %v2847
    %4166 = vmatpush1.bf16.msra.mxu0 %v2846
    %4167 = vmatprep.subr.bf16.mxu0 %v2851
    %4168 = vmatpush1.bf16.msra.mxu0 %v2850
    %4169 = vmatprep.subr.bf16.mxu0 %v2855
    %4170 = vmatpush1.bf16.msra.mxu0 %v2854
    %4171 = vmatprep.subr.bf16.mxu0 %v2859
    %4172 = vmatpush1.bf16.msra.mxu0 %v2858
    %4173 = vmatprep.subr.bf16.mxu0 %v2863
    %4174 = vmatpush1.bf16.msra.mxu0 %v2862
    %4175 = vmatprep.subr.bf16.mxu0 %v2867
    %4176 = vmatpush1.bf16.msra.mxu0 %v2866
    %4177 = vmatprep.subr.bf16.mxu0 %v2871
    %4178 = vmatpush1.bf16.msra.mxu0 %v2870
    %4179 = vmatprep.subr.bf16.mxu0 %v2875
    %4180 = vmatpush1.bf16.msra.mxu0 %v2874
    %4181 = vmatprep.subr.bf16.mxu0 %v2879
    %4182 = vmatpush1.bf16.msra.mxu0 %v2878
    %4183 = vmatprep.subr.bf16.mxu0 %v2883
    %4184 = vmatpush1.bf16.msra.mxu0 %v2882
    %4185 = vmatprep.subr.bf16.mxu0 %v2887
    %4186 = vmatpush1.bf16.msra.mxu0 %v2886
    %4187 = vmatprep.subr.bf16.mxu0 %v2891
    %4188 = vmatpush1.bf16.msra.mxu0 %v2890
    %4189 = vmatprep.mubr.bf16.mxu0 %v1161
    %4190 = vmatmul.mubr.bf16.gmra.mrb[0].mxu0 %v1159
    %v4191 = vpop.f32.mrb[0].mxu0
    %v4192 = vadd.f32 %v4151, %v4191
    %v4193 = vpop.f32.mrb[0].mxu0
    %v4194 = vadd.f32 %v4153, %v4193
    %v4195 = vpop.f32.mrb[0].mxu0
    %v4196 = vpop.f32.mrb[0].mxu0
    %4197 = vdwg.mxu0
    %4198 = vmatprep.subr.bf16.mxu0 %v2895
    %4199 = vmatpush1.bf16.msra.mxu0 %v2894
    %4200 = vmatprep.subr.bf16.mxu0 %v2899
    %4201 = vmatpush1.bf16.msra.mxu0 %v2898
    %4202 = vmatprep.subr.bf16.mxu0 %v2903
    %4203 = vmatpush1.bf16.msra.mxu0 %v2902
    %4204 = vmatprep.subr.bf16.mxu0 %v2907
    %4205 = vmatpush1.bf16.msra.mxu0 %v2906
    %4206 = vmatprep.subr.bf16.mxu0 %v2911
    %4207 = vmatpush1.bf16.msra.mxu0 %v2910
    %4208 = vmatprep.subr.bf16.mxu0 %v2915
    %4209 = vmatpush1.bf16.msra.mxu0 %v2914
    %4210 = vmatprep.subr.bf16.mxu0 %v2919
    %4211 = vmatpush1.bf16.msra.mxu0 %v2918
    %4212 = vmatprep.subr.bf16.mxu0 %v2923
    %4213 = vmatpush1.bf16.msra.mxu0 %v2922
    %4214 = vmatprep.subr.bf16.mxu0 %v2927
    %4215 = vmatpush1.bf16.msra.mxu0 %v2926
    %4216 = vmatprep.subr.bf16.mxu0 %v2931
    %4217 = vmatpush1.bf16.msra.mxu0 %v2930
    %4218 = vmatprep.subr.bf16.mxu0 %v2935
    %4219 = vmatpush1.bf16.msra.mxu0 %v2934
    %4220 = vmatprep.subr.bf16.mxu0 %v2939
    %4221 = vmatpush1.bf16.msra.mxu0 %v2938
    %4222 = vmatprep.subr.bf16.mxu0 %v2943
    %4223 = vmatpush1.bf16.msra.mxu0 %v2942
    %4224 = vmatprep.subr.bf16.mxu0 %v2947
    %4225 = vmatpush1.bf16.msra.mxu0 %v2946
    %4226 = vmatprep.subr.bf16.mxu0 %v2951
    %4227 = vmatpush1.bf16.msra.mxu0 %v2950
    %4228 = vmatprep.subr.bf16.mxu0 %v2955
    %4229 = vmatpush1.bf16.msra.mxu0 %v2954
    %4230 = vmatprep.mubr.bf16.mxu0 %v1158
    %4231 = vmatmul.mubr.bf16.gmra.mrb[0].mxu0 %v1144
    %v4232 = vpop.f32.mrb[0].mxu0
    %v4233 = vadd.f32 %v4192, %v4232
    %v4234 = vpop.f32.mrb[0].mxu0
    %v4235 = vadd.f32 %v4194, %v4234
    %v4236 = vpop.f32.mrb[0].mxu0
    %v4237 = vpop.f32.mrb[0].mxu0
    %4238 = vdwg.mxu0
    %4239 = vmatprep.subr.bf16.mxu0 %v2959
    %4240 = vmatpush1.bf16.msra.mxu0 %v2958
    %4241 = vmatprep.subr.bf16.mxu0 %v2963
    %4242 = vmatpush1.bf16.msra.mxu0 %v2962
    %4243 = vmatprep.subr.bf16.mxu0 %v2967
    %4244 = vmatpush1.bf16.msra.mxu0 %v2966
    %4245 = vmatprep.subr.bf16.mxu0 %v2971
    %4246 = vmatpush1.bf16.msra.mxu0 %v2970
    %4247 = vmatprep.subr.bf16.mxu0 %v2975
    %4248 = vmatpush1.bf16.msra.mxu0 %v2974
    %4249 = vmatprep.subr.bf16.mxu0 %v2979
    %4250 = vmatpush1.bf16.msra.mxu0 %v2978
    %4251 = vmatprep.subr.bf16.mxu0 %v2983
    %4252 = vmatpush1.bf16.msra.mxu0 %v2982
    %4253 = vmatprep.subr.bf16.mxu0 %v2987
    %4254 = vmatpush1.bf16.msra.mxu0 %v2986
    %4255 = vmatprep.subr.bf16.mxu0 %v2991
    %4256 = vmatpush1.bf16.msra.mxu0 %v2990
    %4257 = vmatprep.subr.bf16.mxu0 %v2995
    %4258 = vmatpush1.bf16.msra.mxu0 %v2994
    %4259 = vmatprep.subr.bf16.mxu0 %v2999
    %4260 = vmatpush1.bf16.msra.mxu0 %v2998
    %4261 = vmatprep.subr.bf16.mxu0 %v3003
    %4262 = vmatpush1.bf16.msra.mxu0 %v3002
    %4263 = vmatprep.subr.bf16.mxu0 %v3007
    %4264 = vmatpush1.bf16.msra.mxu0 %v3006
    %4265 = vmatprep.subr.bf16.mxu0 %v3011
    %4266 = vmatpush1.bf16.msra.mxu0 %v3010
    %4267 = vmatprep.subr.bf16.mxu0 %v3015
    %4268 = vmatpush1.bf16.msra.mxu0 %v3014
    %4269 = vmatprep.subr.bf16.mxu0 %v3019
    %4270 = vmatpush1.bf16.msra.mxu0 %v3018
    %4271 = vmatprep.mubr.bf16.mxu0 %v1162
    %4272 = vmatmul.mubr.bf16.gmra.mrb[0].mxu0 %v1160
    %v4273 = vpop.f32.mrb[0].mxu0
    %v4274 = vadd.f32 %v4233, %v4273
    %v4275 = vpop.f32.mrb[0].mxu0
    %v4276 = vadd.f32 %v4235, %v4275
    %v4277 = vpop.f32.mrb[0].mxu0
    %v4278 = vpop.f32.mrb[0].mxu0
    %4279 = vdwg.mxu0
    %4280 = vmatprep.subr.bf16.mxu0 %v3023
    %4281 = vmatpush1.bf16.msra.mxu0 %v3022
    %4282 = vmatprep.subr.bf16.mxu0 %v3027
    %4283 = vmatpush1.bf16.msra.mxu0 %v3026
    %4284 = vmatprep.subr.bf16.mxu0 %v3031
    %4285 = vmatpush1.bf16.msra.mxu0 %v3030
    %4286 = vmatprep.subr.bf16.mxu0 %v3035
    %4287 = vmatpush1.bf16.msra.mxu0 %v3034
    %4288 = vmatprep.subr.bf16.mxu0 %v3039
    %4289 = vmatpush1.bf16.msra.mxu0 %v3038
    %4290 = vmatprep.subr.bf16.mxu0 %v3043
    %4291 = vmatpush1.bf16.msra.mxu0 %v3042
    %4292 = vmatprep.subr.bf16.mxu0 %v3047
    %4293 = vmatpush1.bf16.msra.mxu0 %v3046
    %4294 = vmatprep.subr.bf16.mxu0 %v3051
    %4295 = vmatpush1.bf16.msra.mxu0 %v3050
    %4296 = vmatprep.subr.bf16.mxu0 %v3055
    %4297 = vmatpush1.bf16.msra.mxu0 %v3054
    %4298 = vmatprep.subr.bf16.mxu0 %v3059
    %4299 = vmatpush1.bf16.msra.mxu0 %v3058
    %4300 = vmatprep.subr.bf16.mxu0 %v3063
    %4301 = vmatpush1.bf16.msra.mxu0 %v3062
    %4302 = vmatprep.subr.bf16.mxu0 %v3067
    %4303 = vmatpush1.bf16.msra.mxu0 %v3066
    %4304 = vmatprep.subr.bf16.mxu0 %v3071
    %4305 = vmatpush1.bf16.msra.mxu0 %v3070
    %4306 = vmatprep.subr.bf16.mxu0 %v3075
    %4307 = vmatpush1.bf16.msra.mxu0 %v3074
    %4308 = vmatprep.subr.bf16.mxu0 %v3079
    %4309 = vmatpush1.bf16.msra.mxu0 %v3078
    %4310 = vmatprep.subr.bf16.mxu0 %v3083
    %4311 = vmatpush1.bf16.msra.mxu0 %v3082
    %4312 = vmatprep.mubr.bf16.mxu0 %v1200
    %4313 = vmatmul.mubr.bf16.gmra.mrb[0].mxu0 %v1186
    %v4314 = vpop.f32.mrb[0].mxu0
    %v4315 = vadd.f32 %v4274, %v4314
    %v4316 = vpop.f32.mrb[0].mxu0
    %v4317 = vadd.f32 %v4276, %v4316
    %v4318 = vpop.f32.mrb[0].mxu0
    %v4319 = vpop.f32.mrb[0].mxu0
    %4320 = vdwg.mxu0
    %4321 = vmatprep.subr.bf16.mxu0 %v3087
    %4322 = vmatpush1.bf16.msra.mxu0 %v3086
    %4323 = vmatprep.subr.bf16.mxu0 %v3091
    %4324 = vmatpush1.bf16.msra.mxu0 %v3090
    %4325 = vmatprep.subr.bf16.mxu0 %v3095
    %4326 = vmatpush1.bf16.msra.mxu0 %v3094
    %4327 = vmatprep.subr.bf16.mxu0 %v3099
    %4328 = vmatpush1.bf16.msra.mxu0 %v3098
    %4329 = vmatprep.subr.bf16.mxu0 %v3103
    %4330 = vmatpush1.bf16.msra.mxu0 %v3102
    %4331 = vmatprep.subr.bf16.mxu0 %v3107
    %4332 = vmatpush1.bf16.msra.mxu0 %v3106
    %4333 = vmatprep.subr.bf16.mxu0 %v3111
    %4334 = vmatpush1.bf16.msra.mxu0 %v3110
    %4335 = vmatprep.subr.bf16.mxu0 %v3115
    %4336 = vmatpush1.bf16.msra.mxu0 %v3114
    %4337 = vmatprep.subr.bf16.mxu0 %v3119
    %4338 = vmatpush1.bf16.msra.mxu0 %v3118
    %4339 = vmatprep.subr.bf16.mxu0 %v3123
    %4340 = vmatpush1.bf16.msra.mxu0 %v3122
    %4341 = vmatprep.subr.bf16.mxu0 %v3127
    %4342 = vmatpush1.bf16.msra.mxu0 %v3126
    %4343 = vmatprep.subr.bf16.mxu0 %v3131
    %4344 = vmatpush1.bf16.msra.mxu0 %v3130
    %4345 = vmatprep.subr.bf16.mxu0 %v3135
    %4346 = vmatpush1.bf16.msra.mxu0 %v3134
    %4347 = vmatprep.subr.bf16.mxu0 %v3139
    %4348 = vmatpush1.bf16.msra.mxu0 %v3138
    %4349 = vmatprep.subr.bf16.mxu0 %v3143
    %4350 = vmatpush1.bf16.msra.mxu0 %v3142
    %4351 = vmatprep.subr.bf16.mxu0 %v3147
    %4352 = vmatpush1.bf16.msra.mxu0 %v3146
    %4353 = vmatprep.mubr.bf16.mxu0 %v1210
    %4354 = vmatmul.mubr.bf16.gmra.mrb[0].mxu0 %v1208
    %v4355 = vpop.f32.mrb[0].mxu0
    %v4356 = vadd.f32 %v4315, %v4355
    %v4357 = vpop.f32.mrb[0].mxu0
    %v4358 = vadd.f32 %v4317, %v4357
    %v4359 = vpop.f32.mrb[0].mxu0
    %v4360 = vpop.f32.mrb[0].mxu0
    %4361 = vdwg.mxu0
    %4362 = vmatprep.subr.bf16.mxu0 %v3151
    %4363 = vmatpush1.bf16.msra.mxu0 %v3150
    %4364 = vmatprep.subr.bf16.mxu0 %v3155
    %4365 = vmatpush1.bf16.msra.mxu0 %v3154
    %4366 = vmatprep.subr.bf16.mxu0 %v3159
    %4367 = vmatpush1.bf16.msra.mxu0 %v3158
    %4368 = vmatprep.subr.bf16.mxu0 %v3163
    %4369 = vmatpush1.bf16.msra.mxu0 %v3162
    %4370 = vmatprep.subr.bf16.mxu0 %v3167
    %4371 = vmatpush1.bf16.msra.mxu0 %v3166
    %4372 = vmatprep.subr.bf16.mxu0 %v3171
    %4373 = vmatpush1.bf16.msra.mxu0 %v3170
    %4374 = vmatprep.subr.bf16.mxu0 %v3175
    %4375 = vmatpush1.bf16.msra.mxu0 %v3174
    %4376 = vmatprep.subr.bf16.mxu0 %v3179
    %4377 = vmatpush1.bf16.msra.mxu0 %v3178
    %4378 = vmatprep.subr.bf16.mxu0 %v3183
    %4379 = vmatpush1.bf16.msra.mxu0 %v3182
    %4380 = vmatprep.subr.bf16.mxu0 %v3187
    %4381 = vmatpush1.bf16.msra.mxu0 %v3186
    %4382 = vmatprep.subr.bf16.mxu0 %v3191
    %4383 = vmatpush1.bf16.msra.mxu0 %v3190
    %4384 = vmatprep.subr.bf16.mxu0 %v3195
    %4385 = vmatpush1.bf16.msra.mxu0 %v3194
    %4386 = vmatprep.subr.bf16.mxu0 %v3199
    %4387 = vmatpush1.bf16.msra.mxu0 %v3198
    %4388 = vmatprep.subr.bf16.mxu0 %v3203
    %4389 = vmatpush1.bf16.msra.mxu0 %v3202
    %4390 = vmatprep.subr.bf16.mxu0 %v3207
    %4391 = vmatpush1.bf16.msra.mxu0 %v3206
    %4392 = vmatprep.subr.bf16.mxu0 %v3211
    %4393 = vmatpush1.bf16.msra.mxu0 %v3210
    %4394 = vmatprep.mubr.bf16.mxu0 %v1207
    %4395 = vmatmul.mubr.bf16.gmra.mrb[0].mxu0 %v1193
    %v4396 = vpop.f32.mrb[0].mxu0
    %v4397 = vadd.f32 %v4356, %v4396
    %v4398 = vpop.f32.mrb[0].mxu0
    %v4399 = vadd.f32 %v4358, %v4398
    %v4400 = vpop.f32.mrb[0].mxu0
    %v4401 = vpop.f32.mrb[0].mxu0
    %4402 = vdwg.mxu0
    %4403 = vmatprep.subr.bf16.mxu0 %v3215
    %4404 = vmatpush1.bf16.msra.mxu0 %v3214
    %4405 = vmatprep.subr.bf16.mxu0 %v3219
    %4406 = vmatpush1.bf16.msra.mxu0 %v3218
    %4407 = vmatprep.subr.bf16.mxu0 %v3223
    %4408 = vmatpush1.bf16.msra.mxu0 %v3222
    %4409 = vmatprep.subr.bf16.mxu0 %v3227
    %4410 = vmatpush1.bf16.msra.mxu0 %v3226
    %4411 = vmatprep.subr.bf16.mxu0 %v3231
    %4412 = vmatpush1.bf16.msra.mxu0 %v3230
    %4413 = vmatprep.subr.bf16.mxu0 %v3235
    %4414 = vmatpush1.bf16.msra.mxu0 %v3234
    %4415 = vmatprep.subr.bf16.mxu0 %v3239
    %4416 = vmatpush1.bf16.msra.mxu0 %v3238
    %4417 = vmatprep.subr.bf16.mxu0 %v3243
    %4418 = vmatpush1.bf16.msra.mxu0 %v3242
    %4419 = vmatprep.subr.bf16.mxu0 %v3247
    %4420 = vmatpush1.bf16.msra.mxu0 %v3246
    %4421 = vmatprep.subr.bf16.mxu0 %v3251
    %4422 = vmatpush1.bf16.msra.mxu0 %v3250
    %4423 = vmatprep.subr.bf16.mxu0 %v3255
    %4424 = vmatpush1.bf16.msra.mxu0 %v3254
    %4425 = vmatprep.subr.bf16.mxu0 %v3259
    %4426 = vmatpush1.bf16.msra.mxu0 %v3258
    %4427 = vmatprep.subr.bf16.mxu0 %v3263
    %4428 = vmatpush1.bf16.msra.mxu0 %v3262
    %4429 = vmatprep.subr.bf16.mxu0 %v3267
    %4430 = vmatpush1.bf16.msra.mxu0 %v3266
    %4431 = vmatprep.subr.bf16.mxu0 %v3271
    %4432 = vmatpush1.bf16.msra.mxu0 %v3270
    %4433 = vmatprep.subr.bf16.mxu0 %v3275
    %4434 = vmatpush1.bf16.msra.mxu0 %v3274
    %4435 = vmatprep.mubr.bf16.mxu0 %v1211
    %4436 = vmatmul.mubr.bf16.gmra.mrb[0].mxu0 %v1209
    %v4437 = vpop.f32.mrb[0].mxu0
    %v4438 = vadd.f32 %v4397, %v4437
    %v4439 = vpop.f32.mrb[0].mxu0
    %v4440 = vadd.f32 %v4399, %v4439
    %v4441 = vpop.f32.mrb[0].mxu0
    %v4442 = vpop.f32.mrb[0].mxu0
    %4443 = vdwg.mxu0
    %v4446 = vcombine.high %v84, %v84
    %v4448 = vunpack.c.l.s4 1966171168
    %v4449 = vunpack.c.0.s8 %v4448
    %v4450 = vlaneseq
    %v4451 = vshrl.u32 %v4450, 7
    %v4452 = vsub.s32 %v4449, %v4451
    %v4453 = vrot.slane %v84, %v4452
    %v4455 = vunpack.c.l.s4 1966171168
    %v4456 = vunpack.c.0.s8 %v4455
    %v4457 = vlaneseq
    %v4458 = vshrl.u32 %v4457, 7
    %v4459 = vsub.s32 %v4456, %v4458
    %v4460 = vrot.slane %v4446, %v4459
    %v4461 = vcombine.high %v4453, %v4453
    %v4462 = vcombine.high %v4460, %v4460
    %v4464 = vunpack.c.l.s4 1966171168
    %v4465 = vunpack.c.0.s8 %v4464
    %v4466 = vlaneseq
    %v4467 = vshrl.u32 %v4466, 7
    %v4468 = vsub.s32 %v4465, %v4467
    %v4469 = vrot.slane %v4453, %v4468
    %v4471 = vunpack.c.l.s4 1966171168
    %v4472 = vunpack.c.0.s8 %v4471
    %v4473 = vlaneseq
    %v4474 = vshrl.u32 %v4473, 7
    %v4475 = vsub.s32 %v4472, %v4474
    %v4476 = vrot.slane %v4460, %v4475
    %v4478 = vunpack.c.l.s4 1966171168
    %v4479 = vunpack.c.0.s8 %v4478
    %v4480 = vlaneseq
    %v4481 = vshrl.u32 %v4480, 7
    %v4482 = vsub.s32 %v4479, %v4481
    %v4483 = vrot.slane %v4461, %v4482
    %v4485 = vunpack.c.l.s4 1966171168
    %v4486 = vunpack.c.0.s8 %v4485
    %v4487 = vlaneseq
    %v4488 = vshrl.u32 %v4487, 7
    %v4489 = vsub.s32 %v4486, %v4488
    %v4490 = vrot.slane %v4462, %v4489
    %v4491 = vcombine.high %v4469, %v4469
    %v4492 = vcombine.high %v4476, %v4476
    %v4493 = vcombine.high %v4483, %v4483
    %v4494 = vcombine.high %v4490, %v4490
    %v4495 = vcombine.high %v85, %v85
    %v4497 = vunpack.c.l.s4 1966171168
    %v4498 = vunpack.c.0.s8 %v4497
    %v4499 = vlaneseq
    %v4500 = vshrl.u32 %v4499, 7
    %v4501 = vsub.s32 %v4498, %v4500
    %v4502 = vrot.slane %v85, %v4501
    %v4504 = vunpack.c.l.s4 1966171168
    %v4505 = vunpack.c.0.s8 %v4504
    %v4506 = vlaneseq
    %v4507 = vshrl.u32 %v4506, 7
    %v4508 = vsub.s32 %v4505, %v4507
    %v4509 = vrot.slane %v4495, %v4508
    %v4510 = vcombine.high %v4502, %v4502
    %v4511 = vcombine.high %v4509, %v4509
    %v4513 = vunpack.c.l.s4 1966171168
    %v4514 = vunpack.c.0.s8 %v4513
    %v4515 = vlaneseq
    %v4516 = vshrl.u32 %v4515, 7
    %v4517 = vsub.s32 %v4514, %v4516
    %v4518 = vrot.slane %v4502, %v4517
    %v4520 = vunpack.c.l.s4 1966171168
    %v4521 = vunpack.c.0.s8 %v4520
    %v4522 = vlaneseq
    %v4523 = vshrl.u32 %v4522, 7
    %v4524 = vsub.s32 %v4521, %v4523
    %v4525 = vrot.slane %v4509, %v4524
    %v4527 = vunpack.c.l.s4 1966171168
    %v4528 = vunpack.c.0.s8 %v4527
    %v4529 = vlaneseq
    %v4530 = vshrl.u32 %v4529, 7
    %v4531 = vsub.s32 %v4528, %v4530
    %v4532 = vrot.slane %v4510, %v4531
    %v4534 = vunpack.c.l.s4 1966171168
    %v4535 = vunpack.c.0.s8 %v4534
    %v4536 = vlaneseq
    %v4537 = vshrl.u32 %v4536, 7
    %v4538 = vsub.s32 %v4535, %v4537
    %v4539 = vrot.slane %v4511, %v4538
    %v4540 = vcombine.high %v4518, %v4518
    %v4541 = vcombine.high %v4525, %v4525
    %v4542 = vcombine.high %v4532, %v4532
    %v4543 = vcombine.high %v4539, %v4539
    %v5072 = vunpack.c.l.b16 %v86
    %v5073 = vunpack.c.h.b16 %v86
    %v5074 = vunpack.c.l.b16 %v87
    %v5075 = vunpack.c.h.b16 %v87
    %v5076 = vunpack.c.l.b16 %v88
    %v5077 = vunpack.c.h.b16 %v88
    %v5078 = vunpack.c.l.b16 %v89
    %v5079 = vunpack.c.h.b16 %v89
    %v5080 = vunpack.c.l.b16 %v90
    %v5081 = vunpack.c.h.b16 %v90
    %v5082 = vunpack.c.l.b16 %v91
    %v5083 = vunpack.c.h.b16 %v91
    %v5084 = vunpack.c.l.b16 %v92
    %v5085 = vunpack.c.h.b16 %v92
    %v5086 = vunpack.c.l.b16 %v93
    %v5087 = vunpack.c.h.b16 %v93
    %v5088 = vunpack.c.l.b16 %v94
    %v5089 = vunpack.c.h.b16 %v94
    %v5090 = vunpack.c.l.b16 %v95
    %v5091 = vunpack.c.h.b16 %v95
    %v5092 = vunpack.c.l.b16 %v96
    %v5093 = vunpack.c.h.b16 %v96
    %v5094 = vunpack.c.l.b16 %v97
    %v5095 = vunpack.c.h.b16 %v97
    %v5096 = vunpack.c.l.b16 %v98
    %v5097 = vunpack.c.h.b16 %v98
    %v5098 = vunpack.c.l.b16 %v99
    %v5099 = vunpack.c.h.b16 %v99
    %v5100 = vunpack.c.l.b16 %v100
    %v5101 = vunpack.c.h.b16 %v100
    %v5102 = vunpack.c.l.b16 %v101
    %v5103 = vunpack.c.h.b16 %v101
    %v5104 = vunpack.c.l.b16 %v102
    %v5105 = vunpack.c.h.b16 %v102
    %v5106 = vunpack.c.l.b16 %v103
    %v5107 = vunpack.c.h.b16 %v103
    %v5108 = vunpack.c.l.b16 %v104
    %v5109 = vunpack.c.h.b16 %v104
    %v5110 = vunpack.c.l.b16 %v105
    %v5111 = vunpack.c.h.b16 %v105
    %v5112 = vunpack.c.l.b16 %v106
    %v5113 = vunpack.c.h.b16 %v106
    %v5114 = vunpack.c.l.b16 %v107
    %v5115 = vunpack.c.h.b16 %v107
    %v5116 = vunpack.c.l.b16 %v108
    %v5117 = vunpack.c.h.b16 %v108
    %v5118 = vunpack.c.l.b16 %v109
    %v5119 = vunpack.c.h.b16 %v109
    %v5120 = vunpack.c.l.b16 %v110
    %v5121 = vunpack.c.h.b16 %v110
    %v5122 = vunpack.c.l.b16 %v111
    %v5123 = vunpack.c.h.b16 %v111
    %v5124 = vunpack.c.l.b16 %v112
    %v5125 = vunpack.c.h.b16 %v112
    %v5126 = vunpack.c.l.b16 %v113
    %v5127 = vunpack.c.h.b16 %v113
    %v5128 = vunpack.c.l.b16 %v114
    %v5129 = vunpack.c.h.b16 %v114
    %v5130 = vunpack.c.l.b16 %v115
    %v5131 = vunpack.c.h.b16 %v115
    %v5132 = vunpack.c.l.b16 %v116
    %v5133 = vunpack.c.h.b16 %v116
    %v5134 = vunpack.c.l.b16 %v117
    %v5135 = vunpack.c.h.b16 %v117
    %v5136 = vunpack.c.l.b16 %v118
    %v5137 = vunpack.c.h.b16 %v118
    %v5138 = vunpack.c.l.b16 %v119
    %v5139 = vunpack.c.h.b16 %v119
    %v5140 = vunpack.c.l.b16 %v120
    %v5141 = vunpack.c.h.b16 %v120
    %v5142 = vunpack.c.l.b16 %v121
    %v5143 = vunpack.c.h.b16 %v121
    %v5144 = vunpack.c.l.b16 %v122
    %v5145 = vunpack.c.h.b16 %v122
    %v5146 = vunpack.c.l.b16 %v123
    %v5147 = vunpack.c.h.b16 %v123
    %v5148 = vunpack.c.l.b16 %v124
    %v5149 = vunpack.c.h.b16 %v124
    %v5150 = vunpack.c.l.b16 %v125
    %v5151 = vunpack.c.h.b16 %v125
    %v5152 = vunpack.c.l.b16 %v126
    %v5153 = vunpack.c.h.b16 %v126
    %v5154 = vunpack.c.l.b16 %v127
    %v5155 = vunpack.c.h.b16 %v127
    %v5156 = vunpack.c.l.b16 %v128
    %v5157 = vunpack.c.h.b16 %v128
    %v5158 = vunpack.c.l.b16 %v129
    %v5159 = vunpack.c.h.b16 %v129
    %v5160 = vunpack.c.l.b16 %v130
    %v5161 = vunpack.c.h.b16 %v130
    %v5162 = vunpack.c.l.b16 %v131
    %v5163 = vunpack.c.h.b16 %v131
    %v5164 = vunpack.c.l.b16 %v132
    %v5165 = vunpack.c.h.b16 %v132
    %v5166 = vunpack.c.l.b16 %v133
    %v5167 = vunpack.c.h.b16 %v133
    %v5168 = vunpack.c.l.b16 %v134
    %v5169 = vunpack.c.h.b16 %v134
    %v5170 = vunpack.c.l.b16 %v135
    %v5171 = vunpack.c.h.b16 %v135
    %v5172 = vunpack.c.l.b16 %v136
    %v5173 = vunpack.c.h.b16 %v136
    %v5174 = vunpack.c.l.b16 %v137
    %v5175 = vunpack.c.h.b16 %v137
    %v5176 = vunpack.c.l.b16 %v138
    %v5177 = vunpack.c.h.b16 %v138
    %v5178 = vunpack.c.l.b16 %v139
    %v5179 = vunpack.c.h.b16 %v139
    %v5180 = vunpack.c.l.b16 %v140
    %v5181 = vunpack.c.h.b16 %v140
    %v5182 = vunpack.c.l.b16 %v141
    %v5183 = vunpack.c.h.b16 %v141
    %v5184 = vunpack.c.l.b16 %v142
    %v5185 = vunpack.c.h.b16 %v142
    %v5186 = vunpack.c.l.b16 %v143
    %v5187 = vunpack.c.h.b16 %v143
    %v5188 = vunpack.c.l.b16 %v144
    %v5189 = vunpack.c.h.b16 %v144
    %v5190 = vunpack.c.l.b16 %v145
    %v5191 = vunpack.c.h.b16 %v145
    %v5192 = vunpack.c.l.b16 %v146
    %v5193 = vunpack.c.h.b16 %v146
    %v5194 = vunpack.c.l.b16 %v147
    %v5195 = vunpack.c.h.b16 %v147
    %v5196 = vunpack.c.l.b16 %v148
    %v5197 = vunpack.c.h.b16 %v148
    %v5198 = vunpack.c.l.b16 %v149
    %v5199 = vunpack.c.h.b16 %v149
    %v5200 = vunpack.c.l.b16 %v150
    %v5201 = vunpack.c.h.b16 %v150
    %v5202 = vunpack.c.l.b16 %v151
    %v5203 = vunpack.c.h.b16 %v151
    %v5204 = vunpack.c.l.b16 %v152
    %v5205 = vunpack.c.h.b16 %v152
    %v5206 = vunpack.c.l.b16 %v153
    %v5207 = vunpack.c.h.b16 %v153
    %v5208 = vunpack.c.l.b16 %v154
    %v5209 = vunpack.c.h.b16 %v154
    %v5210 = vunpack.c.l.b16 %v155
    %v5211 = vunpack.c.h.b16 %v155
    %v5212 = vunpack.c.l.b16 %v156
    %v5213 = vunpack.c.h.b16 %v156
    %v5214 = vunpack.c.l.b16 %v157
    %v5215 = vunpack.c.h.b16 %v157
    %v5216 = vunpack.c.l.b16 %v158
    %v5217 = vunpack.c.h.b16 %v158
    %v5218 = vunpack.c.l.b16 %v159
    %v5219 = vunpack.c.h.b16 %v159
    %v5220 = vunpack.c.l.b16 %v160
    %v5221 = vunpack.c.h.b16 %v160
    %v5222 = vunpack.c.l.b16 %v161
    %v5223 = vunpack.c.h.b16 %v161
    %v5224 = vunpack.c.l.b16 %v162
    %v5225 = vunpack.c.h.b16 %v162
    %v5226 = vunpack.c.l.b16 %v163
    %v5227 = vunpack.c.h.b16 %v163
    %v5228 = vunpack.c.l.b16 %v164
    %v5229 = vunpack.c.h.b16 %v164
    %v5230 = vunpack.c.l.b16 %v165
    %v5231 = vunpack.c.h.b16 %v165
    %v5232 = vunpack.c.l.b16 %v166
    %v5233 = vunpack.c.h.b16 %v166
    %v5234 = vunpack.c.l.b16 %v167
    %v5235 = vunpack.c.h.b16 %v167
    %v5236 = vunpack.c.l.b16 %v168
    %v5237 = vunpack.c.h.b16 %v168
    %v5238 = vunpack.c.l.b16 %v169
    %v5239 = vunpack.c.h.b16 %v169
    %v5240 = vunpack.c.l.b16 %v170
    %v5241 = vunpack.c.h.b16 %v170
    %v5242 = vunpack.c.l.b16 %v171
    %v5243 = vunpack.c.h.b16 %v171
    %v5244 = vunpack.c.l.b16 %v172
    %v5245 = vunpack.c.h.b16 %v172
    %v5246 = vunpack.c.l.b16 %v173
    %v5247 = vunpack.c.h.b16 %v173
    %v5248 = vunpack.c.l.b16 %v174
    %v5249 = vunpack.c.h.b16 %v174
    %v5250 = vunpack.c.l.b16 %v175
    %v5251 = vunpack.c.h.b16 %v175
    %v5252 = vunpack.c.l.b16 %v176
    %v5253 = vunpack.c.h.b16 %v176
    %v5254 = vunpack.c.l.b16 %v177
    %v5255 = vunpack.c.h.b16 %v177
    %v5256 = vunpack.c.l.b16 %v178
    %v5257 = vunpack.c.h.b16 %v178
    %v5258 = vunpack.c.l.b16 %v179
    %v5259 = vunpack.c.h.b16 %v179
    %v5260 = vunpack.c.l.b16 %v180
    %v5261 = vunpack.c.h.b16 %v180
    %v5262 = vunpack.c.l.b16 %v181
    %v5263 = vunpack.c.h.b16 %v181
    %v5264 = vunpack.c.l.b16 %v182
    %v5265 = vunpack.c.h.b16 %v182
    %v5266 = vunpack.c.l.b16 %v183
    %v5267 = vunpack.c.h.b16 %v183
    %v5268 = vunpack.c.l.b16 %v184
    %v5269 = vunpack.c.h.b16 %v184
    %v5270 = vunpack.c.l.b16 %v185
    %v5271 = vunpack.c.h.b16 %v185
    %v5272 = vunpack.c.l.b16 %v186
    %v5273 = vunpack.c.h.b16 %v186
    %v5274 = vunpack.c.l.b16 %v187
    %v5275 = vunpack.c.h.b16 %v187
    %v5276 = vunpack.c.l.b16 %v188
    %v5277 = vunpack.c.h.b16 %v188
    %v5278 = vunpack.c.l.b16 %v189
    %v5279 = vunpack.c.h.b16 %v189
    %v5280 = vunpack.c.l.b16 %v190
    %v5281 = vunpack.c.h.b16 %v190
    %v5282 = vunpack.c.l.b16 %v191
    %v5283 = vunpack.c.h.b16 %v191
    %v5284 = vunpack.c.l.b16 %v192
    %v5285 = vunpack.c.h.b16 %v192
    %v5286 = vunpack.c.l.b16 %v193
    %v5287 = vunpack.c.h.b16 %v193
    %v5288 = vunpack.c.l.b16 %v194
    %v5289 = vunpack.c.h.b16 %v194
    %v5290 = vunpack.c.l.b16 %v195
    %v5291 = vunpack.c.h.b16 %v195
    %v5292 = vunpack.c.l.b16 %v196
    %v5293 = vunpack.c.h.b16 %v196
    %v5294 = vunpack.c.l.b16 %v197
    %v5295 = vunpack.c.h.b16 %v197
    %v5296 = vunpack.c.l.b16 %v198
    %v5297 = vunpack.c.h.b16 %v198
    %v5298 = vunpack.c.l.b16 %v199
    %v5299 = vunpack.c.h.b16 %v199
    %v5300 = vunpack.c.l.b16 %v200
    %v5301 = vunpack.c.h.b16 %v200
    %v5302 = vunpack.c.l.b16 %v201
    %v5303 = vunpack.c.h.b16 %v201
    %v5304 = vunpack.c.l.b16 %v202
    %v5305 = vunpack.c.h.b16 %v202
    %v5306 = vunpack.c.l.b16 %v203
    %v5307 = vunpack.c.h.b16 %v203
    %v5308 = vunpack.c.l.b16 %v204
    %v5309 = vunpack.c.h.b16 %v204
    %v5310 = vunpack.c.l.b16 %v205
    %v5311 = vunpack.c.h.b16 %v205
    %v5312 = vunpack.c.l.b16 %v206
    %v5313 = vunpack.c.h.b16 %v206
    %v5314 = vunpack.c.l.b16 %v207
    %v5315 = vunpack.c.h.b16 %v207
    %v5316 = vunpack.c.l.b16 %v208
    %v5317 = vunpack.c.h.b16 %v208
    %v5318 = vunpack.c.l.b16 %v209
    %v5319 = vunpack.c.h.b16 %v209
    %v5320 = vunpack.c.l.b16 %v210
    %v5321 = vunpack.c.h.b16 %v210
    %v5322 = vunpack.c.l.b16 %v211
    %v5323 = vunpack.c.h.b16 %v211
    %v5324 = vunpack.c.l.b16 %v212
    %v5325 = vunpack.c.h.b16 %v212
    %v5326 = vunpack.c.l.b16 %v213
    %v5327 = vunpack.c.h.b16 %v213
    %v5328 = vunpack.c.l.b16 %v214
    %v5329 = vunpack.c.h.b16 %v214
    %v5330 = vunpack.c.l.b16 %v215
    %v5331 = vunpack.c.h.b16 %v215
    %v5332 = vunpack.c.l.b16 %v216
    %v5333 = vunpack.c.h.b16 %v216
    %v5334 = vunpack.c.l.b16 %v217
    %v5335 = vunpack.c.h.b16 %v217
    %v5336 = vunpack.c.l.b16 %v218
    %v5337 = vunpack.c.h.b16 %v218
    %v5338 = vunpack.c.l.b16 %v219
    %v5339 = vunpack.c.h.b16 %v219
    %v5340 = vunpack.c.l.b16 %v220
    %v5341 = vunpack.c.h.b16 %v220
    %v5342 = vunpack.c.l.b16 %v221
    %v5343 = vunpack.c.h.b16 %v221
    %v5344 = vunpack.c.l.b16 %v222
    %v5345 = vunpack.c.h.b16 %v222
    %v5346 = vunpack.c.l.b16 %v223
    %v5347 = vunpack.c.h.b16 %v223
    %v5348 = vunpack.c.l.b16 %v224
    %v5349 = vunpack.c.h.b16 %v224
    %v5350 = vunpack.c.l.b16 %v225
    %v5351 = vunpack.c.h.b16 %v225
    %v5352 = vunpack.c.l.b16 %v226
    %v5353 = vunpack.c.h.b16 %v226
    %v5354 = vunpack.c.l.b16 %v227
    %v5355 = vunpack.c.h.b16 %v227
    %v5356 = vunpack.c.l.b16 %v228
    %v5357 = vunpack.c.h.b16 %v228
    %v5358 = vunpack.c.l.b16 %v229
    %v5359 = vunpack.c.h.b16 %v229
    %v5360 = vunpack.c.l.b16 %v230
    %v5361 = vunpack.c.h.b16 %v230
    %v5362 = vunpack.c.l.b16 %v231
    %v5363 = vunpack.c.h.b16 %v231
    %v5364 = vunpack.c.l.b16 %v232
    %v5365 = vunpack.c.h.b16 %v232
    %v5366 = vunpack.c.l.b16 %v233
    %v5367 = vunpack.c.h.b16 %v233
    %v5368 = vunpack.c.l.b16 %v234
    %v5369 = vunpack.c.h.b16 %v234
    %v5370 = vunpack.c.l.b16 %v235
    %v5371 = vunpack.c.h.b16 %v235
    %v5372 = vunpack.c.l.b16 %v236
    %v5373 = vunpack.c.h.b16 %v236
    %v5374 = vunpack.c.l.b16 %v237
    %v5375 = vunpack.c.h.b16 %v237
    %v5376 = vunpack.c.l.b16 %v238
    %v5377 = vunpack.c.h.b16 %v238
    %v5378 = vunpack.c.l.b16 %v239
    %v5379 = vunpack.c.h.b16 %v239
    %v5380 = vunpack.c.l.b16 %v240
    %v5381 = vunpack.c.h.b16 %v240
    %v5382 = vunpack.c.l.b16 %v241
    %v5383 = vunpack.c.h.b16 %v241
    %v5384 = vunpack.c.l.b16 %v242
    %v5385 = vunpack.c.h.b16 %v242
    %v5386 = vunpack.c.l.b16 %v243
    %v5387 = vunpack.c.h.b16 %v243
    %v5388 = vunpack.c.l.b16 %v244
    %v5389 = vunpack.c.h.b16 %v244
    %v5390 = vunpack.c.l.b16 %v245
    %v5391 = vunpack.c.h.b16 %v245
    %v5392 = vunpack.c.l.b16 %v246
    %v5393 = vunpack.c.h.b16 %v246
    %v5394 = vunpack.c.l.b16 %v247
    %v5395 = vunpack.c.h.b16 %v247
    %v5396 = vunpack.c.l.b16 %v248
    %v5397 = vunpack.c.h.b16 %v248
    %v5398 = vunpack.c.l.b16 %v249
    %v5399 = vunpack.c.h.b16 %v249
    %v5400 = vunpack.c.l.b16 %v250
    %v5401 = vunpack.c.h.b16 %v250
    %v5402 = vunpack.c.l.b16 %v251
    %v5403 = vunpack.c.h.b16 %v251
    %v5404 = vunpack.c.l.b16 %v252
    %v5405 = vunpack.c.h.b16 %v252
    %v5406 = vunpack.c.l.b16 %v253
    %v5407 = vunpack.c.h.b16 %v253
    %v5408 = vunpack.c.l.b16 %v254
    %v5409 = vunpack.c.h.b16 %v254
    %v5410 = vunpack.c.l.b16 %v255
    %v5411 = vunpack.c.h.b16 %v255
    %v5412 = vunpack.c.l.b16 %v256
    %v5413 = vunpack.c.h.b16 %v256
    %v5414 = vunpack.c.l.b16 %v257
    %v5415 = vunpack.c.h.b16 %v257
    %v5416 = vunpack.c.l.b16 %v258
    %v5417 = vunpack.c.h.b16 %v258
    %v5418 = vunpack.c.l.b16 %v259
    %v5419 = vunpack.c.h.b16 %v259
    %v5420 = vunpack.c.l.b16 %v260
    %v5421 = vunpack.c.h.b16 %v260
    %v5422 = vunpack.c.l.b16 %v261
    %v5423 = vunpack.c.h.b16 %v261
    %v5424 = vunpack.c.l.b16 %v262
    %v5425 = vunpack.c.h.b16 %v262
    %v5426 = vunpack.c.l.b16 %v263
    %v5427 = vunpack.c.h.b16 %v263
    %v5428 = vunpack.c.l.b16 %v264
    %v5429 = vunpack.c.h.b16 %v264
    %v5430 = vunpack.c.l.b16 %v265
    %v5431 = vunpack.c.h.b16 %v265
    %v5432 = vunpack.c.l.b16 %v266
    %v5433 = vunpack.c.h.b16 %v266
    %v5434 = vunpack.c.l.b16 %v267
    %v5435 = vunpack.c.h.b16 %v267
    %v5436 = vunpack.c.l.b16 %v268
    %v5437 = vunpack.c.h.b16 %v268
    %v5438 = vunpack.c.l.b16 %v269
    %v5439 = vunpack.c.h.b16 %v269
    %v5440 = vunpack.c.l.b16 %v270
    %v5441 = vunpack.c.h.b16 %v270
    %v5442 = vunpack.c.l.b16 %v271
    %v5443 = vunpack.c.h.b16 %v271
    %v5444 = vunpack.c.l.b16 %v272
    %v5445 = vunpack.c.h.b16 %v272
    %v5446 = vunpack.c.l.b16 %v273
    %v5447 = vunpack.c.h.b16 %v273
    %v5448 = vunpack.c.l.b16 %v274
    %v5449 = vunpack.c.h.b16 %v274
    %v5450 = vunpack.c.l.b16 %v275
    %v5451 = vunpack.c.h.b16 %v275
    %v5452 = vunpack.c.l.b16 %v276
    %v5453 = vunpack.c.h.b16 %v276
    %v5454 = vunpack.c.l.b16 %v277
    %v5455 = vunpack.c.h.b16 %v277
    %v5456 = vunpack.c.l.b16 %v278
    %v5457 = vunpack.c.h.b16 %v278
    %v5458 = vunpack.c.l.b16 %v279
    %v5459 = vunpack.c.h.b16 %v279
    %v5460 = vunpack.c.l.b16 %v280
    %v5461 = vunpack.c.h.b16 %v280
    %v5462 = vunpack.c.l.b16 %v281
    %v5463 = vunpack.c.h.b16 %v281
    %v5464 = vunpack.c.l.b16 %v282
    %v5465 = vunpack.c.h.b16 %v282
    %v5466 = vunpack.c.l.b16 %v283
    %v5467 = vunpack.c.h.b16 %v283
    %v5468 = vunpack.c.l.b16 %v284
    %v5469 = vunpack.c.h.b16 %v284
    %v5470 = vunpack.c.l.b16 %v285
    %v5471 = vunpack.c.h.b16 %v285
    %v5472 = vunpack.c.l.b16 %v286
    %v5473 = vunpack.c.h.b16 %v286
    %v5474 = vunpack.c.l.b16 %v287
    %v5475 = vunpack.c.h.b16 %v287
    %v5476 = vunpack.c.l.b16 %v288
    %v5477 = vunpack.c.h.b16 %v288
    %v5478 = vunpack.c.l.b16 %v289
    %v5479 = vunpack.c.h.b16 %v289
    %v5480 = vunpack.c.l.b16 %v290
    %v5481 = vunpack.c.h.b16 %v290
    %v5482 = vunpack.c.l.b16 %v291
    %v5483 = vunpack.c.h.b16 %v291
    %v5484 = vunpack.c.l.b16 %v292
    %v5485 = vunpack.c.h.b16 %v292
    %v5486 = vunpack.c.l.b16 %v293
    %v5487 = vunpack.c.h.b16 %v293
    %v5488 = vunpack.c.l.b16 %v294
    %v5489 = vunpack.c.h.b16 %v294
    %v5490 = vunpack.c.l.b16 %v295
    %v5491 = vunpack.c.h.b16 %v295
    %v5492 = vunpack.c.l.b16 %v296
    %v5493 = vunpack.c.h.b16 %v296
    %v5494 = vunpack.c.l.b16 %v297
    %v5495 = vunpack.c.h.b16 %v297
    %v5496 = vunpack.c.l.b16 %v298
    %v5497 = vunpack.c.h.b16 %v298
    %v5498 = vunpack.c.l.b16 %v299
    %v5499 = vunpack.c.h.b16 %v299
    %v5500 = vunpack.c.l.b16 %v300
    %v5501 = vunpack.c.h.b16 %v300
    %v5502 = vunpack.c.l.b16 %v301
    %v5503 = vunpack.c.h.b16 %v301
    %v5504 = vunpack.c.l.b16 %v302
    %v5505 = vunpack.c.h.b16 %v302
    %v5506 = vunpack.c.l.b16 %v303
    %v5507 = vunpack.c.h.b16 %v303
    %v5508 = vunpack.c.l.b16 %v304
    %v5509 = vunpack.c.h.b16 %v304
    %v5510 = vunpack.c.l.b16 %v305
    %v5511 = vunpack.c.h.b16 %v305
    %v5512 = vunpack.c.l.b16 %v306
    %v5513 = vunpack.c.h.b16 %v306
    %v5514 = vunpack.c.l.b16 %v307
    %v5515 = vunpack.c.h.b16 %v307
    %v5516 = vunpack.c.l.b16 %v308
    %v5517 = vunpack.c.h.b16 %v308
    %v5518 = vunpack.c.l.b16 %v309
    %v5519 = vunpack.c.h.b16 %v309
    %v5520 = vunpack.c.l.b16 %v310
    %v5521 = vunpack.c.h.b16 %v310
    %v5522 = vunpack.c.l.b16 %v311
    %v5523 = vunpack.c.h.b16 %v311
    %v5524 = vunpack.c.l.b16 %v312
    %v5525 = vunpack.c.h.b16 %v312
    %v5526 = vunpack.c.l.b16 %v313
    %v5527 = vunpack.c.h.b16 %v313
    %v5528 = vunpack.c.l.b16 %v314
    %v5529 = vunpack.c.h.b16 %v314
    %v5530 = vunpack.c.l.b16 %v315
    %v5531 = vunpack.c.h.b16 %v315
    %v5532 = vunpack.c.l.b16 %v316
    %v5533 = vunpack.c.h.b16 %v316
    %v5534 = vunpack.c.l.b16 %v317
    %v5535 = vunpack.c.h.b16 %v317
    %v5536 = vunpack.c.l.b16 %v318
    %v5537 = vunpack.c.h.b16 %v318
    %v5538 = vunpack.c.l.b16 %v319
    %v5539 = vunpack.c.h.b16 %v319
    %v5540 = vunpack.c.l.b16 %v320
    %v5541 = vunpack.c.h.b16 %v320
    %v5542 = vunpack.c.l.b16 %v321
    %v5543 = vunpack.c.h.b16 %v321
    %v5544 = vunpack.c.l.b16 %v322
    %v5545 = vunpack.c.h.b16 %v322
    %v5546 = vunpack.c.l.b16 %v323
    %v5547 = vunpack.c.h.b16 %v323
    %v5548 = vunpack.c.l.b16 %v324
    %v5549 = vunpack.c.h.b16 %v324
    %v5550 = vunpack.c.l.b16 %v325
    %v5551 = vunpack.c.h.b16 %v325
    %v5552 = vunpack.c.l.b16 %v326
    %v5553 = vunpack.c.h.b16 %v326
    %v5554 = vunpack.c.l.b16 %v327
    %v5555 = vunpack.c.h.b16 %v327
    %v5556 = vunpack.c.l.b16 %v328
    %v5557 = vunpack.c.h.b16 %v328
    %v5558 = vunpack.c.l.b16 %v329
    %v5559 = vunpack.c.h.b16 %v329
    %v5560 = vunpack.c.l.b16 %v330
    %v5561 = vunpack.c.h.b16 %v330
    %v5562 = vunpack.c.l.b16 %v331
    %v5563 = vunpack.c.h.b16 %v331
    %v5564 = vunpack.c.l.b16 %v332
    %v5565 = vunpack.c.h.b16 %v332
    %v5566 = vunpack.c.l.b16 %v333
    %v5567 = vunpack.c.h.b16 %v333
    %v5568 = vunpack.c.l.b16 %v334
    %v5569 = vunpack.c.h.b16 %v334
    %v5570 = vunpack.c.l.b16 %v335
    %v5571 = vunpack.c.h.b16 %v335
    %v5572 = vunpack.c.l.b16 %v336
    %v5573 = vunpack.c.h.b16 %v336
    %v5574 = vunpack.c.l.b16 %v337
    %v5575 = vunpack.c.h.b16 %v337
    %v5576 = vunpack.c.l.b16 %v338
    %v5577 = vunpack.c.h.b16 %v338
    %v5578 = vunpack.c.l.b16 %v339
    %v5579 = vunpack.c.h.b16 %v339
    %v5580 = vunpack.c.l.b16 %v340
    %v5581 = vunpack.c.h.b16 %v340
    %v5582 = vunpack.c.l.b16 %v341
    %v5583 = vunpack.c.h.b16 %v341
    %v5584 = vunpack.c.l.b16 %v342
    %v5585 = vunpack.c.h.b16 %v342
    %v5586 = vunpack.c.l.b16 %v343
    %v5587 = vunpack.c.h.b16 %v343
    %v5588 = vunpack.c.l.b16 %v344
    %v5589 = vunpack.c.h.b16 %v344
    %v5590 = vunpack.c.l.b16 %v345
    %v5591 = vunpack.c.h.b16 %v345
    %v5592 = vunpack.c.l.b16 %v346
    %v5593 = vunpack.c.h.b16 %v346
    %v5594 = vunpack.c.l.b16 %v347
    %v5595 = vunpack.c.h.b16 %v347
    %v5596 = vunpack.c.l.b16 %v348
    %v5597 = vunpack.c.h.b16 %v348
    %v5598 = vunpack.c.l.b16 %v349
    %v5599 = vunpack.c.h.b16 %v349
    %v5600 = vunpack.c.l.b16 %v350
    %v5601 = vunpack.c.h.b16 %v350
    %v5602 = vunpack.c.l.b16 %v351
    %v5603 = vunpack.c.h.b16 %v351
    %v5604 = vunpack.c.l.b16 %v352
    %v5605 = vunpack.c.h.b16 %v352
    %v5606 = vunpack.c.l.b16 %v353
    %v5607 = vunpack.c.h.b16 %v353
    %v5608 = vunpack.c.l.b16 %v354
    %v5609 = vunpack.c.h.b16 %v354
    %v5610 = vunpack.c.l.b16 %v355
    %v5611 = vunpack.c.h.b16 %v355
    %v5612 = vunpack.c.l.b16 %v356
    %v5613 = vunpack.c.h.b16 %v356
    %v5614 = vunpack.c.l.b16 %v357
    %v5615 = vunpack.c.h.b16 %v357
    %v5616 = vunpack.c.l.b16 %v358
    %v5617 = vunpack.c.h.b16 %v358
    %v5618 = vunpack.c.l.b16 %v359
    %v5619 = vunpack.c.h.b16 %v359
    %v5620 = vunpack.c.l.b16 %v360
    %v5621 = vunpack.c.h.b16 %v360
    %v5622 = vunpack.c.l.b16 %v361
    %v5623 = vunpack.c.h.b16 %v361
    %v5624 = vunpack.c.l.b16 %v362
    %v5625 = vunpack.c.h.b16 %v362
    %v5626 = vunpack.c.l.b16 %v363
    %v5627 = vunpack.c.h.b16 %v363
    %v5628 = vunpack.c.l.b16 %v364
    %v5629 = vunpack.c.h.b16 %v364
    %v5630 = vunpack.c.l.b16 %v365
    %v5631 = vunpack.c.h.b16 %v365
    %v5632 = vunpack.c.l.b16 %v366
    %v5633 = vunpack.c.h.b16 %v366
    %v5634 = vunpack.c.l.b16 %v367
    %v5635 = vunpack.c.h.b16 %v367
    %v5636 = vunpack.c.l.b16 %v368
    %v5637 = vunpack.c.h.b16 %v368
    %v5638 = vunpack.c.l.b16 %v369
    %v5639 = vunpack.c.h.b16 %v369
    %v5640 = vunpack.c.l.b16 %v370
    %v5641 = vunpack.c.h.b16 %v370
    %v5642 = vunpack.c.l.b16 %v371
    %v5643 = vunpack.c.h.b16 %v371
    %v5644 = vunpack.c.l.b16 %v372
    %v5645 = vunpack.c.h.b16 %v372
    %v5646 = vunpack.c.l.b16 %v373
    %v5647 = vunpack.c.h.b16 %v373
    %v5648 = vunpack.c.l.b16 %v374
    %v5649 = vunpack.c.h.b16 %v374
    %v5650 = vunpack.c.l.b16 %v375
    %v5651 = vunpack.c.h.b16 %v375
    %v5652 = vunpack.c.l.b16 %v376
    %v5653 = vunpack.c.h.b16 %v376
    %v5654 = vunpack.c.l.b16 %v377
    %v5655 = vunpack.c.h.b16 %v377
    %v5656 = vunpack.c.l.b16 %v378
    %v5657 = vunpack.c.h.b16 %v378
    %v5658 = vunpack.c.l.b16 %v379
    %v5659 = vunpack.c.h.b16 %v379
    %v5660 = vunpack.c.l.b16 %v380
    %v5661 = vunpack.c.h.b16 %v380
    %v5662 = vunpack.c.l.b16 %v381
    %v5663 = vunpack.c.h.b16 %v381
    %v5664 = vunpack.c.l.b16 %v382
    %v5665 = vunpack.c.h.b16 %v382
    %v5666 = vunpack.c.l.b16 %v383
    %v5667 = vunpack.c.h.b16 %v383
    %v5668 = vunpack.c.l.b16 %v384
    %v5669 = vunpack.c.h.b16 %v384
    %v5670 = vunpack.c.l.b16 %v385
    %v5671 = vunpack.c.h.b16 %v385
    %v5672 = vunpack.c.l.b16 %v386
    %v5673 = vunpack.c.h.b16 %v386
    %v5674 = vunpack.c.l.b16 %v387
    %v5675 = vunpack.c.h.b16 %v387
    %v5676 = vunpack.c.l.b16 %v388
    %v5677 = vunpack.c.h.b16 %v388
    %v5678 = vunpack.c.l.b16 %v389
    %v5679 = vunpack.c.h.b16 %v389
    %v5680 = vunpack.c.l.b16 %v390
    %v5681 = vunpack.c.h.b16 %v390
    %v5682 = vunpack.c.l.b16 %v391
    %v5683 = vunpack.c.h.b16 %v391
    %v5684 = vunpack.c.l.b16 %v392
    %v5685 = vunpack.c.h.b16 %v392
    %v5686 = vunpack.c.l.b16 %v393
    %v5687 = vunpack.c.h.b16 %v393
    %v5688 = vunpack.c.l.b16 %v394
    %v5689 = vunpack.c.h.b16 %v394
    %v5690 = vunpack.c.l.b16 %v395
    %v5691 = vunpack.c.h.b16 %v395
    %v5692 = vunpack.c.l.b16 %v396
    %v5693 = vunpack.c.h.b16 %v396
    %v5694 = vunpack.c.l.b16 %v397
    %v5695 = vunpack.c.h.b16 %v397
    %v5696 = vunpack.c.l.b16 %v398
    %v5697 = vunpack.c.h.b16 %v398
    %v5698 = vunpack.c.l.b16 %v399
    %v5699 = vunpack.c.h.b16 %v399
    %v5700 = vunpack.c.l.b16 %v400
    %v5701 = vunpack.c.h.b16 %v400
    %v5702 = vunpack.c.l.b16 %v401
    %v5703 = vunpack.c.h.b16 %v401
    %v5704 = vunpack.c.l.b16 %v402
    %v5705 = vunpack.c.h.b16 %v402
    %v5706 = vunpack.c.l.b16 %v403
    %v5707 = vunpack.c.h.b16 %v403
    %v5708 = vunpack.c.l.b16 %v404
    %v5709 = vunpack.c.h.b16 %v404
    %v5710 = vunpack.c.l.b16 %v405
    %v5711 = vunpack.c.h.b16 %v405
    %v5712 = vunpack.c.l.b16 %v406
    %v5713 = vunpack.c.h.b16 %v406
    %v5714 = vunpack.c.l.b16 %v407
    %v5715 = vunpack.c.h.b16 %v407
    %v5716 = vunpack.c.l.b16 %v408
    %v5717 = vunpack.c.h.b16 %v408
    %v5718 = vunpack.c.l.b16 %v409
    %v5719 = vunpack.c.h.b16 %v409
    %v5720 = vunpack.c.l.b16 %v410
    %v5721 = vunpack.c.h.b16 %v410
    %v5722 = vunpack.c.l.b16 %v411
    %v5723 = vunpack.c.h.b16 %v411
    %v5724 = vunpack.c.l.b16 %v412
    %v5725 = vunpack.c.h.b16 %v412
    %v5726 = vunpack.c.l.b16 %v413
    %v5727 = vunpack.c.h.b16 %v413
    %v5728 = vunpack.c.l.b16 %v414
    %v5729 = vunpack.c.h.b16 %v414
    %v5730 = vunpack.c.l.b16 %v415
    %v5731 = vunpack.c.h.b16 %v415
    %v5732 = vunpack.c.l.b16 %v416
    %v5733 = vunpack.c.h.b16 %v416
    %v5734 = vunpack.c.l.b16 %v417
    %v5735 = vunpack.c.h.b16 %v417
    %v5736 = vunpack.c.l.b16 %v418
    %v5737 = vunpack.c.h.b16 %v418
    %v5738 = vunpack.c.l.b16 %v419
    %v5739 = vunpack.c.h.b16 %v419
    %v5740 = vunpack.c.l.b16 %v420
    %v5741 = vunpack.c.h.b16 %v420
    %v5742 = vunpack.c.l.b16 %v421
    %v5743 = vunpack.c.h.b16 %v421
    %v5744 = vunpack.c.l.b16 %v422
    %v5745 = vunpack.c.h.b16 %v422
    %v5746 = vunpack.c.l.b16 %v423
    %v5747 = vunpack.c.h.b16 %v423
    %v5748 = vunpack.c.l.b16 %v424
    %v5749 = vunpack.c.h.b16 %v424
    %v5750 = vunpack.c.l.b16 %v425
    %v5751 = vunpack.c.h.b16 %v425
    %v5752 = vunpack.c.l.b16 %v426
    %v5753 = vunpack.c.h.b16 %v426
    %v5754 = vunpack.c.l.b16 %v427
    %v5755 = vunpack.c.h.b16 %v427
    %v5756 = vunpack.c.l.b16 %v428
    %v5757 = vunpack.c.h.b16 %v428
    %v5758 = vunpack.c.l.b16 %v429
    %v5759 = vunpack.c.h.b16 %v429
    %v5760 = vunpack.c.l.b16 %v430
    %v5761 = vunpack.c.h.b16 %v430
    %v5762 = vunpack.c.l.b16 %v431
    %v5763 = vunpack.c.h.b16 %v431
    %v5764 = vunpack.c.l.b16 %v432
    %v5765 = vunpack.c.h.b16 %v432
    %v5766 = vunpack.c.l.b16 %v433
    %v5767 = vunpack.c.h.b16 %v433
    %v5768 = vunpack.c.l.b16 %v434
    %v5769 = vunpack.c.h.b16 %v434
    %v5770 = vunpack.c.l.b16 %v435
    %v5771 = vunpack.c.h.b16 %v435
    %v5772 = vunpack.c.l.b16 %v436
    %v5773 = vunpack.c.h.b16 %v436
    %v5774 = vunpack.c.l.b16 %v437
    %v5775 = vunpack.c.h.b16 %v437
    %v5776 = vunpack.c.l.b16 %v438
    %v5777 = vunpack.c.h.b16 %v438
    %v5778 = vunpack.c.l.b16 %v439
    %v5779 = vunpack.c.h.b16 %v439
    %v5780 = vunpack.c.l.b16 %v440
    %v5781 = vunpack.c.h.b16 %v440
    %v5782 = vunpack.c.l.b16 %v441
    %v5783 = vunpack.c.h.b16 %v441
    %v5784 = vunpack.c.l.b16 %v442
    %v5785 = vunpack.c.h.b16 %v442
    %v5786 = vunpack.c.l.b16 %v443
    %v5787 = vunpack.c.h.b16 %v443
    %v5788 = vunpack.c.l.b16 %v444
    %v5789 = vunpack.c.h.b16 %v444
    %v5790 = vunpack.c.l.b16 %v445
    %v5791 = vunpack.c.h.b16 %v445
    %v5792 = vunpack.c.l.b16 %v446
    %v5793 = vunpack.c.h.b16 %v446
    %v5794 = vunpack.c.l.b16 %v447
    %v5795 = vunpack.c.h.b16 %v447
    %v5796 = vunpack.c.l.b16 %v448
    %v5797 = vunpack.c.h.b16 %v448
    %v5798 = vunpack.c.l.b16 %v449
    %v5799 = vunpack.c.h.b16 %v449
    %v5800 = vunpack.c.l.b16 %v450
    %v5801 = vunpack.c.h.b16 %v450
    %v5802 = vunpack.c.l.b16 %v451
    %v5803 = vunpack.c.h.b16 %v451
    %v5804 = vunpack.c.l.b16 %v452
    %v5805 = vunpack.c.h.b16 %v452
    %v5806 = vunpack.c.l.b16 %v453
    %v5807 = vunpack.c.h.b16 %v453
    %v5808 = vunpack.c.l.b16 %v454
    %v5809 = vunpack.c.h.b16 %v454
    %v5810 = vunpack.c.l.b16 %v455
    %v5811 = vunpack.c.h.b16 %v455
    %v5812 = vunpack.c.l.b16 %v456
    %v5813 = vunpack.c.h.b16 %v456
    %v5814 = vunpack.c.l.b16 %v457
    %v5815 = vunpack.c.h.b16 %v457
    %v5816 = vunpack.c.l.b16 %v458
    %v5817 = vunpack.c.h.b16 %v458
    %v5818 = vunpack.c.l.b16 %v459
    %v5819 = vunpack.c.h.b16 %v459
    %v5820 = vunpack.c.l.b16 %v460
    %v5821 = vunpack.c.h.b16 %v460
    %v5822 = vunpack.c.l.b16 %v461
    %v5823 = vunpack.c.h.b16 %v461
    %v5824 = vunpack.c.l.b16 %v462
    %v5825 = vunpack.c.h.b16 %v462
    %v5826 = vunpack.c.l.b16 %v463
    %v5827 = vunpack.c.h.b16 %v463
    %v5828 = vunpack.c.l.b16 %v464
    %v5829 = vunpack.c.h.b16 %v464
    %v5830 = vunpack.c.l.b16 %v465
    %v5831 = vunpack.c.h.b16 %v465
    %v5832 = vunpack.c.l.b16 %v466
    %v5833 = vunpack.c.h.b16 %v466
    %v5834 = vunpack.c.l.b16 %v467
    %v5835 = vunpack.c.h.b16 %v467
    %v5836 = vunpack.c.l.b16 %v468
    %v5837 = vunpack.c.h.b16 %v468
    %v5838 = vunpack.c.l.b16 %v469
    %v5839 = vunpack.c.h.b16 %v469
    %v5840 = vunpack.c.l.b16 %v470
    %v5841 = vunpack.c.h.b16 %v470
    %v5842 = vunpack.c.l.b16 %v471
    %v5843 = vunpack.c.h.b16 %v471
    %v5844 = vunpack.c.l.b16 %v472
    %v5845 = vunpack.c.h.b16 %v472
    %v5846 = vunpack.c.l.b16 %v473
    %v5847 = vunpack.c.h.b16 %v473
    %v5848 = vunpack.c.l.b16 %v474
    %v5849 = vunpack.c.h.b16 %v474
    %v5850 = vunpack.c.l.b16 %v475
    %v5851 = vunpack.c.h.b16 %v475
    %v5852 = vunpack.c.l.b16 %v476
    %v5853 = vunpack.c.h.b16 %v476
    %v5854 = vunpack.c.l.b16 %v477
    %v5855 = vunpack.c.h.b16 %v477
    %v5856 = vunpack.c.l.b16 %v478
    %v5857 = vunpack.c.h.b16 %v478
    %v5858 = vunpack.c.l.b16 %v479
    %v5859 = vunpack.c.h.b16 %v479
    %v5860 = vunpack.c.l.b16 %v480
    %v5861 = vunpack.c.h.b16 %v480
    %v5862 = vunpack.c.l.b16 %v481
    %v5863 = vunpack.c.h.b16 %v481
    %v5864 = vunpack.c.l.b16 %v482
    %v5865 = vunpack.c.h.b16 %v482
    %v5866 = vunpack.c.l.b16 %v483
    %v5867 = vunpack.c.h.b16 %v483
    %v5868 = vunpack.c.l.b16 %v484
    %v5869 = vunpack.c.h.b16 %v484
    %v5870 = vunpack.c.l.b16 %v485
    %v5871 = vunpack.c.h.b16 %v485
    %v5872 = vunpack.c.l.b16 %v486
    %v5873 = vunpack.c.h.b16 %v486
    %v5874 = vunpack.c.l.b16 %v487
    %v5875 = vunpack.c.h.b16 %v487
    %v5876 = vunpack.c.l.b16 %v488
    %v5877 = vunpack.c.h.b16 %v488
    %v5878 = vunpack.c.l.b16 %v489
    %v5879 = vunpack.c.h.b16 %v489
    %v5880 = vunpack.c.l.b16 %v490
    %v5881 = vunpack.c.h.b16 %v490
    %v5882 = vunpack.c.l.b16 %v491
    %v5883 = vunpack.c.h.b16 %v491
    %v5884 = vunpack.c.l.b16 %v492
    %v5885 = vunpack.c.h.b16 %v492
    %v5886 = vunpack.c.l.b16 %v493
    %v5887 = vunpack.c.h.b16 %v493
    %v5888 = vunpack.c.l.b16 %v494
    %v5889 = vunpack.c.h.b16 %v494
    %v5890 = vunpack.c.l.b16 %v495
    %v5891 = vunpack.c.h.b16 %v495
    %v5892 = vunpack.c.l.b16 %v496
    %v5893 = vunpack.c.h.b16 %v496
    %v5894 = vunpack.c.l.b16 %v497
    %v5895 = vunpack.c.h.b16 %v497
    %v5896 = vunpack.c.l.b16 %v498
    %v5897 = vunpack.c.h.b16 %v498
    %v5898 = vunpack.c.l.b16 %v499
    %v5899 = vunpack.c.h.b16 %v499
    %v5900 = vunpack.c.l.b16 %v500
    %v5901 = vunpack.c.h.b16 %v500
    %v5902 = vunpack.c.l.b16 %v501
    %v5903 = vunpack.c.h.b16 %v501
    %v5904 = vunpack.c.l.b16 %v502
    %v5905 = vunpack.c.h.b16 %v502
    %v5906 = vunpack.c.l.b16 %v503
    %v5907 = vunpack.c.h.b16 %v503
    %v5908 = vunpack.c.l.b16 %v504
    %v5909 = vunpack.c.h.b16 %v504
    %v5910 = vunpack.c.l.b16 %v505
    %v5911 = vunpack.c.h.b16 %v505
    %v5912 = vunpack.c.l.b16 %v506
    %v5913 = vunpack.c.h.b16 %v506
    %v5914 = vunpack.c.l.b16 %v507
    %v5915 = vunpack.c.h.b16 %v507
    %v5916 = vunpack.c.l.b16 %v508
    %v5917 = vunpack.c.h.b16 %v508
    %v5918 = vunpack.c.l.b16 %v509
    %v5919 = vunpack.c.h.b16 %v509
    %v5920 = vunpack.c.l.b16 %v510
    %v5921 = vunpack.c.h.b16 %v510
    %v5922 = vunpack.c.l.b16 %v511
    %v5923 = vunpack.c.h.b16 %v511
    %v5924 = vunpack.c.l.b16 %v512
    %v5925 = vunpack.c.h.b16 %v512
    %v5926 = vunpack.c.l.b16 %v513
    %v5927 = vunpack.c.h.b16 %v513
    %v5928 = vunpack.c.l.b16 %v514
    %v5929 = vunpack.c.h.b16 %v514
    %v5930 = vunpack.c.l.b16 %v515
    %v5931 = vunpack.c.h.b16 %v515
    %v5932 = vunpack.c.l.b16 %v516
    %v5933 = vunpack.c.h.b16 %v516
    %v5934 = vunpack.c.l.b16 %v517
    %v5935 = vunpack.c.h.b16 %v517
    %v5936 = vunpack.c.l.b16 %v518
    %v5937 = vunpack.c.h.b16 %v518
    %v5938 = vunpack.c.l.b16 %v519
    %v5939 = vunpack.c.h.b16 %v519
    %v5940 = vunpack.c.l.b16 %v520
    %v5941 = vunpack.c.h.b16 %v520
    %v5942 = vunpack.c.l.b16 %v521
    %v5943 = vunpack.c.h.b16 %v521
    %v5944 = vunpack.c.l.b16 %v522
    %v5945 = vunpack.c.h.b16 %v522
    %v5946 = vunpack.c.l.b16 %v523
    %v5947 = vunpack.c.h.b16 %v523
    %v5948 = vunpack.c.l.b16 %v524
    %v5949 = vunpack.c.h.b16 %v524
    %v5950 = vunpack.c.l.b16 %v525
    %v5951 = vunpack.c.h.b16 %v525
    %v5952 = vunpack.c.l.b16 %v526
    %v5953 = vunpack.c.h.b16 %v526
    %v5954 = vunpack.c.l.b16 %v527
    %v5955 = vunpack.c.h.b16 %v527
    %v5956 = vunpack.c.l.b16 %v528
    %v5957 = vunpack.c.h.b16 %v528
    %v5958 = vunpack.c.l.b16 %v529
    %v5959 = vunpack.c.h.b16 %v529
    %v5960 = vunpack.c.l.b16 %v530
    %v5961 = vunpack.c.h.b16 %v530
    %v5962 = vunpack.c.l.b16 %v531
    %v5963 = vunpack.c.h.b16 %v531
    %v5964 = vunpack.c.l.b16 %v532
    %v5965 = vunpack.c.h.b16 %v532
    %v5966 = vunpack.c.l.b16 %v533
    %v5967 = vunpack.c.h.b16 %v533
    %v5968 = vunpack.c.l.b16 %v534
    %v5969 = vunpack.c.h.b16 %v534
    %v5970 = vunpack.c.l.b16 %v535
    %v5971 = vunpack.c.h.b16 %v535
    %v5972 = vunpack.c.l.b16 %v536
    %v5973 = vunpack.c.h.b16 %v536
    %v5974 = vunpack.c.l.b16 %v537
    %v5975 = vunpack.c.h.b16 %v537
    %v5976 = vunpack.c.l.b16 %v538
    %v5977 = vunpack.c.h.b16 %v538
    %v5978 = vunpack.c.l.b16 %v539
    %v5979 = vunpack.c.h.b16 %v539
    %v5980 = vunpack.c.l.b16 %v540
    %v5981 = vunpack.c.h.b16 %v540
    %v5982 = vunpack.c.l.b16 %v541
    %v5983 = vunpack.c.h.b16 %v541
    %v5984 = vunpack.c.l.b16 %v542
    %v5985 = vunpack.c.h.b16 %v542
    %v5986 = vunpack.c.l.b16 %v543
    %v5987 = vunpack.c.h.b16 %v543
    %v5988 = vunpack.c.l.b16 %v544
    %v5989 = vunpack.c.h.b16 %v544
    %v5990 = vunpack.c.l.b16 %v545
    %v5991 = vunpack.c.h.b16 %v545
    %v5992 = vunpack.c.l.b16 %v546
    %v5993 = vunpack.c.h.b16 %v546
    %v5994 = vunpack.c.l.b16 %v547
    %v5995 = vunpack.c.h.b16 %v547
    %v5996 = vunpack.c.l.b16 %v548
    %v5997 = vunpack.c.h.b16 %v548
    %v5998 = vunpack.c.l.b16 %v549
    %v5999 = vunpack.c.h.b16 %v549
    %v6000 = vunpack.c.l.b16 %v550
    %v6001 = vunpack.c.h.b16 %v550
    %v6002 = vunpack.c.l.b16 %v551
    %v6003 = vunpack.c.h.b16 %v551
    %v6004 = vunpack.c.l.b16 %v552
    %v6005 = vunpack.c.h.b16 %v552
    %v6006 = vunpack.c.l.b16 %v553
    %v6007 = vunpack.c.h.b16 %v553
    %v6008 = vunpack.c.l.b16 %v554
    %v6009 = vunpack.c.h.b16 %v554
    %v6010 = vunpack.c.l.b16 %v555
    %v6011 = vunpack.c.h.b16 %v555
    %v6012 = vunpack.c.l.b16 %v556
    %v6013 = vunpack.c.h.b16 %v556
    %v6014 = vunpack.c.l.b16 %v557
    %v6015 = vunpack.c.h.b16 %v557
    %v6016 = vunpack.c.l.b16 %v558
    %v6017 = vunpack.c.h.b16 %v558
    %v6018 = vunpack.c.l.b16 %v559
    %v6019 = vunpack.c.h.b16 %v559
    %v6020 = vunpack.c.l.b16 %v560
    %v6021 = vunpack.c.h.b16 %v560
    %v6022 = vunpack.c.l.b16 %v561
    %v6023 = vunpack.c.h.b16 %v561
    %v6024 = vunpack.c.l.b16 %v562
    %v6025 = vunpack.c.h.b16 %v562
    %v6026 = vunpack.c.l.b16 %v563
    %v6027 = vunpack.c.h.b16 %v563
    %v6028 = vunpack.c.l.b16 %v564
    %v6029 = vunpack.c.h.b16 %v564
    %v6030 = vunpack.c.l.b16 %v565
    %v6031 = vunpack.c.h.b16 %v565
    %v6032 = vunpack.c.l.b16 %v566
    %v6033 = vunpack.c.h.b16 %v566
    %v6034 = vunpack.c.l.b16 %v567
    %v6035 = vunpack.c.h.b16 %v567
    %v6036 = vunpack.c.l.b16 %v568
    %v6037 = vunpack.c.h.b16 %v568
    %v6038 = vunpack.c.l.b16 %v569
    %v6039 = vunpack.c.h.b16 %v569
    %v6040 = vunpack.c.l.b16 %v570
    %v6041 = vunpack.c.h.b16 %v570
    %v6042 = vunpack.c.l.b16 %v571
    %v6043 = vunpack.c.h.b16 %v571
    %v6044 = vunpack.c.l.b16 %v572
    %v6045 = vunpack.c.h.b16 %v572
    %v6046 = vunpack.c.l.b16 %v573
    %v6047 = vunpack.c.h.b16 %v573
    %v6048 = vunpack.c.l.b16 %v574
    %v6049 = vunpack.c.h.b16 %v574
    %v6050 = vunpack.c.l.b16 %v575
    %v6051 = vunpack.c.h.b16 %v575
    %v6052 = vunpack.c.l.b16 %v576
    %v6053 = vunpack.c.h.b16 %v576
    %v6054 = vunpack.c.l.b16 %v577
    %v6055 = vunpack.c.h.b16 %v577
    %v6056 = vunpack.c.l.b16 %v578
    %v6057 = vunpack.c.h.b16 %v578
    %v6058 = vunpack.c.l.b16 %v579
    %v6059 = vunpack.c.h.b16 %v579
    %v6060 = vunpack.c.l.b16 %v580
    %v6061 = vunpack.c.h.b16 %v580
    %v6062 = vunpack.c.l.b16 %v581
    %v6063 = vunpack.c.h.b16 %v581
    %v6064 = vunpack.c.l.b16 %v582
    %v6065 = vunpack.c.h.b16 %v582
    %v6066 = vunpack.c.l.b16 %v583
    %v6067 = vunpack.c.h.b16 %v583
    %v6068 = vunpack.c.l.b16 %v584
    %v6069 = vunpack.c.h.b16 %v584
    %v6070 = vunpack.c.l.b16 %v585
    %v6071 = vunpack.c.h.b16 %v585
    %v6072 = vunpack.c.l.b16 %v586
    %v6073 = vunpack.c.h.b16 %v586
    %v6074 = vunpack.c.l.b16 %v587
    %v6075 = vunpack.c.h.b16 %v587
    %v6076 = vunpack.c.l.b16 %v588
    %v6077 = vunpack.c.h.b16 %v588
    %v6078 = vunpack.c.l.b16 %v589
    %v6079 = vunpack.c.h.b16 %v589
    %v6080 = vunpack.c.l.b16 %v590
    %v6081 = vunpack.c.h.b16 %v590
    %v6082 = vunpack.c.l.b16 %v591
    %v6083 = vunpack.c.h.b16 %v591
    %v6084 = vunpack.c.l.b16 %v592
    %v6085 = vunpack.c.h.b16 %v592
    %v6086 = vunpack.c.l.b16 %v593
    %v6087 = vunpack.c.h.b16 %v593
    %v6088 = vunpack.c.l.b16 %v594
    %v6089 = vunpack.c.h.b16 %v594
    %v6090 = vunpack.c.l.b16 %v595
    %v6091 = vunpack.c.h.b16 %v595
    %v6092 = vunpack.c.l.b16 %v596
    %v6093 = vunpack.c.h.b16 %v596
    %v6094 = vunpack.c.l.b16 %v597
    %v6095 = vunpack.c.h.b16 %v597
    %v6096 = vpack.c.b16 %v5076, %v5072
    %v6097 = vpack.c.b16 %v5077, %v5073
    %v6098 = vpack.c.b16 %v5078, %v5074
    %v6099 = vpack.c.b16 %v5079, %v5075
    %v6100 = vpack.c.b16 %v5084, %v5080
    %v6101 = vpack.c.b16 %v5085, %v5081
    %v6102 = vpack.c.b16 %v5086, %v5082
    %v6103 = vpack.c.b16 %v5087, %v5083
    %v6104 = vpack.c.b16 %v5092, %v5088
    %v6105 = vpack.c.b16 %v5093, %v5089
    %v6106 = vpack.c.b16 %v5094, %v5090
    %v6107 = vpack.c.b16 %v5095, %v5091
    %v6108 = vpack.c.b16 %v5100, %v5096
    %v6109 = vpack.c.b16 %v5101, %v5097
    %v6110 = vpack.c.b16 %v5102, %v5098
    %v6111 = vpack.c.b16 %v5103, %v5099
    %v6112 = vpack.c.b16 %v5108, %v5104
    %v6113 = vpack.c.b16 %v5109, %v5105
    %v6114 = vpack.c.b16 %v5110, %v5106
    %v6115 = vpack.c.b16 %v5111, %v5107
    %v6116 = vpack.c.b16 %v5116, %v5112
    %v6117 = vpack.c.b16 %v5117, %v5113
    %v6118 = vpack.c.b16 %v5118, %v5114
    %v6119 = vpack.c.b16 %v5119, %v5115
    %v6120 = vpack.c.b16 %v5124, %v5120
    %v6121 = vpack.c.b16 %v5125, %v5121
    %v6122 = vpack.c.b16 %v5126, %v5122
    %v6123 = vpack.c.b16 %v5127, %v5123
    %v6124 = vpack.c.b16 %v5132, %v5128
    %v6125 = vpack.c.b16 %v5133, %v5129
    %v6126 = vpack.c.b16 %v5134, %v5130
    %v6127 = vpack.c.b16 %v5135, %v5131
    %v6128 = vpack.c.b16 %v5140, %v5136
    %v6129 = vpack.c.b16 %v5141, %v5137
    %v6130 = vpack.c.b16 %v5142, %v5138
    %v6131 = vpack.c.b16 %v5143, %v5139
    %v6132 = vpack.c.b16 %v5148, %v5144
    %v6133 = vpack.c.b16 %v5149, %v5145
    %v6134 = vpack.c.b16 %v5150, %v5146
    %v6135 = vpack.c.b16 %v5151, %v5147
    %v6136 = vpack.c.b16 %v5156, %v5152
    %v6137 = vpack.c.b16 %v5157, %v5153
    %v6138 = vpack.c.b16 %v5158, %v5154
    %v6139 = vpack.c.b16 %v5159, %v5155
    %v6140 = vpack.c.b16 %v5164, %v5160
    %v6141 = vpack.c.b16 %v5165, %v5161
    %v6142 = vpack.c.b16 %v5166, %v5162
    %v6143 = vpack.c.b16 %v5167, %v5163
    %v6144 = vpack.c.b16 %v5172, %v5168
    %v6145 = vpack.c.b16 %v5173, %v5169
    %v6146 = vpack.c.b16 %v5174, %v5170
    %v6147 = vpack.c.b16 %v5175, %v5171
    %v6148 = vpack.c.b16 %v5180, %v5176
    %v6149 = vpack.c.b16 %v5181, %v5177
    %v6150 = vpack.c.b16 %v5182, %v5178
    %v6151 = vpack.c.b16 %v5183, %v5179
    %v6152 = vpack.c.b16 %v5188, %v5184
    %v6153 = vpack.c.b16 %v5189, %v5185
    %v6154 = vpack.c.b16 %v5190, %v5186
    %v6155 = vpack.c.b16 %v5191, %v5187
    %v6156 = vpack.c.b16 %v5196, %v5192
    %v6157 = vpack.c.b16 %v5197, %v5193
    %v6158 = vpack.c.b16 %v5198, %v5194
    %v6159 = vpack.c.b16 %v5199, %v5195
    %v6160 = vpack.c.b16 %v5204, %v5200
    %v6161 = vpack.c.b16 %v5205, %v5201
    %v6162 = vpack.c.b16 %v5206, %v5202
    %v6163 = vpack.c.b16 %v5207, %v5203
    %v6164 = vpack.c.b16 %v5212, %v5208
    %v6165 = vpack.c.b16 %v5213, %v5209
    %v6166 = vpack.c.b16 %v5214, %v5210
    %v6167 = vpack.c.b16 %v5215, %v5211
    %v6168 = vpack.c.b16 %v5220, %v5216
    %v6169 = vpack.c.b16 %v5221, %v5217
    %v6170 = vpack.c.b16 %v5222, %v5218
    %v6171 = vpack.c.b16 %v5223, %v5219
    %v6172 = vpack.c.b16 %v5228, %v5224
    %v6173 = vpack.c.b16 %v5229, %v5225
    %v6174 = vpack.c.b16 %v5230, %v5226
    %v6175 = vpack.c.b16 %v5231, %v5227
    %v6176 = vpack.c.b16 %v5236, %v5232
    %v6177 = vpack.c.b16 %v5237, %v5233
    %v6178 = vpack.c.b16 %v5238, %v5234
    %v6179 = vpack.c.b16 %v5239, %v5235
    %v6180 = vpack.c.b16 %v5244, %v5240
    %v6181 = vpack.c.b16 %v5245, %v5241
    %v6182 = vpack.c.b16 %v5246, %v5242
    %v6183 = vpack.c.b16 %v5247, %v5243
    %v6184 = vpack.c.b16 %v5252, %v5248
    %v6185 = vpack.c.b16 %v5253, %v5249
    %v6186 = vpack.c.b16 %v5254, %v5250
    %v6187 = vpack.c.b16 %v5255, %v5251
    %v6188 = vpack.c.b16 %v5260, %v5256
    %v6189 = vpack.c.b16 %v5261, %v5257
    %v6190 = vpack.c.b16 %v5262, %v5258
    %v6191 = vpack.c.b16 %v5263, %v5259
    %v6192 = vpack.c.b16 %v5268, %v5264
    %v6193 = vpack.c.b16 %v5269, %v5265
    %v6194 = vpack.c.b16 %v5270, %v5266
    %v6195 = vpack.c.b16 %v5271, %v5267
    %v6196 = vpack.c.b16 %v5276, %v5272
    %v6197 = vpack.c.b16 %v5277, %v5273
    %v6198 = vpack.c.b16 %v5278, %v5274
    %v6199 = vpack.c.b16 %v5279, %v5275
    %v6200 = vpack.c.b16 %v5284, %v5280
    %v6201 = vpack.c.b16 %v5285, %v5281
    %v6202 = vpack.c.b16 %v5286, %v5282
    %v6203 = vpack.c.b16 %v5287, %v5283
    %v6204 = vpack.c.b16 %v5292, %v5288
    %v6205 = vpack.c.b16 %v5293, %v5289
    %v6206 = vpack.c.b16 %v5294, %v5290
    %v6207 = vpack.c.b16 %v5295, %v5291
    %v6208 = vpack.c.b16 %v5300, %v5296
    %v6209 = vpack.c.b16 %v5301, %v5297
    %v6210 = vpack.c.b16 %v5302, %v5298
    %v6211 = vpack.c.b16 %v5303, %v5299
    %v6212 = vpack.c.b16 %v5308, %v5304
    %v6213 = vpack.c.b16 %v5309, %v5305
    %v6214 = vpack.c.b16 %v5310, %v5306
    %v6215 = vpack.c.b16 %v5311, %v5307
    %v6216 = vpack.c.b16 %v5316, %v5312
    %v6217 = vpack.c.b16 %v5317, %v5313
    %v6218 = vpack.c.b16 %v5318, %v5314
    %v6219 = vpack.c.b16 %v5319, %v5315
    %v6220 = vpack.c.b16 %v5324, %v5320
    %v6221 = vpack.c.b16 %v5325, %v5321
    %v6222 = vpack.c.b16 %v5326, %v5322
    %v6223 = vpack.c.b16 %v5327, %v5323
    %v6224 = vpack.c.b16 %v5332, %v5328
    %v6225 = vpack.c.b16 %v5333, %v5329
    %v6226 = vpack.c.b16 %v5334, %v5330
    %v6227 = vpack.c.b16 %v5335, %v5331
    %v6228 = vpack.c.b16 %v5340, %v5336
    %v6229 = vpack.c.b16 %v5341, %v5337
    %v6230 = vpack.c.b16 %v5342, %v5338
    %v6231 = vpack.c.b16 %v5343, %v5339
    %v6232 = vpack.c.b16 %v5348, %v5344
    %v6233 = vpack.c.b16 %v5349, %v5345
    %v6234 = vpack.c.b16 %v5350, %v5346
    %v6235 = vpack.c.b16 %v5351, %v5347
    %v6236 = vpack.c.b16 %v5356, %v5352
    %v6237 = vpack.c.b16 %v5357, %v5353
    %v6238 = vpack.c.b16 %v5358, %v5354
    %v6239 = vpack.c.b16 %v5359, %v5355
    %v6240 = vpack.c.b16 %v5364, %v5360
    %v6241 = vpack.c.b16 %v5365, %v5361
    %v6242 = vpack.c.b16 %v5366, %v5362
    %v6243 = vpack.c.b16 %v5367, %v5363
    %v6244 = vpack.c.b16 %v5372, %v5368
    %v6245 = vpack.c.b16 %v5373, %v5369
    %v6246 = vpack.c.b16 %v5374, %v5370
    %v6247 = vpack.c.b16 %v5375, %v5371
    %v6248 = vpack.c.b16 %v5380, %v5376
    %v6249 = vpack.c.b16 %v5381, %v5377
    %v6250 = vpack.c.b16 %v5382, %v5378
    %v6251 = vpack.c.b16 %v5383, %v5379
    %v6252 = vpack.c.b16 %v5388, %v5384
    %v6253 = vpack.c.b16 %v5389, %v5385
    %v6254 = vpack.c.b16 %v5390, %v5386
    %v6255 = vpack.c.b16 %v5391, %v5387
    %v6256 = vpack.c.b16 %v5396, %v5392
    %v6257 = vpack.c.b16 %v5397, %v5393
    %v6258 = vpack.c.b16 %v5398, %v5394
    %v6259 = vpack.c.b16 %v5399, %v5395
    %v6260 = vpack.c.b16 %v5404, %v5400
    %v6261 = vpack.c.b16 %v5405, %v5401
    %v6262 = vpack.c.b16 %v5406, %v5402
    %v6263 = vpack.c.b16 %v5407, %v5403
    %v6264 = vpack.c.b16 %v5412, %v5408
    %v6265 = vpack.c.b16 %v5413, %v5409
    %v6266 = vpack.c.b16 %v5414, %v5410
    %v6267 = vpack.c.b16 %v5415, %v5411
    %v6268 = vpack.c.b16 %v5420, %v5416
    %v6269 = vpack.c.b16 %v5421, %v5417
    %v6270 = vpack.c.b16 %v5422, %v5418
    %v6271 = vpack.c.b16 %v5423, %v5419
    %v6272 = vpack.c.b16 %v5428, %v5424
    %v6273 = vpack.c.b16 %v5429, %v5425
    %v6274 = vpack.c.b16 %v5430, %v5426
    %v6275 = vpack.c.b16 %v5431, %v5427
    %v6276 = vpack.c.b16 %v5436, %v5432
    %v6277 = vpack.c.b16 %v5437, %v5433
    %v6278 = vpack.c.b16 %v5438, %v5434
    %v6279 = vpack.c.b16 %v5439, %v5435
    %v6280 = vpack.c.b16 %v5444, %v5440
    %v6281 = vpack.c.b16 %v5445, %v5441
    %v6282 = vpack.c.b16 %v5446, %v5442
    %v6283 = vpack.c.b16 %v5447, %v5443
    %v6284 = vpack.c.b16 %v5452, %v5448
    %v6285 = vpack.c.b16 %v5453, %v5449
    %v6286 = vpack.c.b16 %v5454, %v5450
    %v6287 = vpack.c.b16 %v5455, %v5451
    %v6288 = vpack.c.b16 %v5460, %v5456
    %v6289 = vpack.c.b16 %v5461, %v5457
    %v6290 = vpack.c.b16 %v5462, %v5458
    %v6291 = vpack.c.b16 %v5463, %v5459
    %v6292 = vpack.c.b16 %v5468, %v5464
    %v6293 = vpack.c.b16 %v5469, %v5465
    %v6294 = vpack.c.b16 %v5470, %v5466
    %v6295 = vpack.c.b16 %v5471, %v5467
    %v6296 = vpack.c.b16 %v5476, %v5472
    %v6297 = vpack.c.b16 %v5477, %v5473
    %v6298 = vpack.c.b16 %v5478, %v5474
    %v6299 = vpack.c.b16 %v5479, %v5475
    %v6300 = vpack.c.b16 %v5484, %v5480
    %v6301 = vpack.c.b16 %v5485, %v5481
    %v6302 = vpack.c.b16 %v5486, %v5482
    %v6303 = vpack.c.b16 %v5487, %v5483
    %v6304 = vpack.c.b16 %v5492, %v5488
    %v6305 = vpack.c.b16 %v5493, %v5489
    %v6306 = vpack.c.b16 %v5494, %v5490
    %v6307 = vpack.c.b16 %v5495, %v5491
    %v6308 = vpack.c.b16 %v5500, %v5496
    %v6309 = vpack.c.b16 %v5501, %v5497
    %v6310 = vpack.c.b16 %v5502, %v5498
    %v6311 = vpack.c.b16 %v5503, %v5499
    %v6312 = vpack.c.b16 %v5508, %v5504
    %v6313 = vpack.c.b16 %v5509, %v5505
    %v6314 = vpack.c.b16 %v5510, %v5506
    %v6315 = vpack.c.b16 %v5511, %v5507
    %v6316 = vpack.c.b16 %v5516, %v5512
    %v6317 = vpack.c.b16 %v5517, %v5513
    %v6318 = vpack.c.b16 %v5518, %v5514
    %v6319 = vpack.c.b16 %v5519, %v5515
    %v6320 = vpack.c.b16 %v5524, %v5520
    %v6321 = vpack.c.b16 %v5525, %v5521
    %v6322 = vpack.c.b16 %v5526, %v5522
    %v6323 = vpack.c.b16 %v5527, %v5523
    %v6324 = vpack.c.b16 %v5532, %v5528
    %v6325 = vpack.c.b16 %v5533, %v5529
    %v6326 = vpack.c.b16 %v5534, %v5530
    %v6327 = vpack.c.b16 %v5535, %v5531
    %v6328 = vpack.c.b16 %v5540, %v5536
    %v6329 = vpack.c.b16 %v5541, %v5537
    %v6330 = vpack.c.b16 %v5542, %v5538
    %v6331 = vpack.c.b16 %v5543, %v5539
    %v6332 = vpack.c.b16 %v5548, %v5544
    %v6333 = vpack.c.b16 %v5549, %v5545
    %v6334 = vpack.c.b16 %v5550, %v5546
    %v6335 = vpack.c.b16 %v5551, %v5547
    %v6336 = vpack.c.b16 %v5556, %v5552
    %v6337 = vpack.c.b16 %v5557, %v5553
    %v6338 = vpack.c.b16 %v5558, %v5554
    %v6339 = vpack.c.b16 %v5559, %v5555
    %v6340 = vpack.c.b16 %v5564, %v5560
    %v6341 = vpack.c.b16 %v5565, %v5561
    %v6342 = vpack.c.b16 %v5566, %v5562
    %v6343 = vpack.c.b16 %v5567, %v5563
    %v6344 = vpack.c.b16 %v5572, %v5568
    %v6345 = vpack.c.b16 %v5573, %v5569
    %v6346 = vpack.c.b16 %v5574, %v5570
    %v6347 = vpack.c.b16 %v5575, %v5571
    %v6348 = vpack.c.b16 %v5580, %v5576
    %v6349 = vpack.c.b16 %v5581, %v5577
    %v6350 = vpack.c.b16 %v5582, %v5578
    %v6351 = vpack.c.b16 %v5583, %v5579
    %v6352 = vpack.c.b16 %v5588, %v5584
    %v6353 = vpack.c.b16 %v5589, %v5585
    %v6354 = vpack.c.b16 %v5590, %v5586
    %v6355 = vpack.c.b16 %v5591, %v5587
    %v6356 = vpack.c.b16 %v5596, %v5592
    %v6357 = vpack.c.b16 %v5597, %v5593
    %v6358 = vpack.c.b16 %v5598, %v5594
    %v6359 = vpack.c.b16 %v5599, %v5595
    %v6360 = vpack.c.b16 %v5604, %v5600
    %v6361 = vpack.c.b16 %v5605, %v5601
    %v6362 = vpack.c.b16 %v5606, %v5602
    %v6363 = vpack.c.b16 %v5607, %v5603
    %v6364 = vpack.c.b16 %v5612, %v5608
    %v6365 = vpack.c.b16 %v5613, %v5609
    %v6366 = vpack.c.b16 %v5614, %v5610
    %v6367 = vpack.c.b16 %v5615, %v5611
    %v6368 = vpack.c.b16 %v5620, %v5616
    %v6369 = vpack.c.b16 %v5621, %v5617
    %v6370 = vpack.c.b16 %v5622, %v5618
    %v6371 = vpack.c.b16 %v5623, %v5619
    %v6372 = vpack.c.b16 %v5628, %v5624
    %v6373 = vpack.c.b16 %v5629, %v5625
    %v6374 = vpack.c.b16 %v5630, %v5626
    %v6375 = vpack.c.b16 %v5631, %v5627
    %v6376 = vpack.c.b16 %v5636, %v5632
    %v6377 = vpack.c.b16 %v5637, %v5633
    %v6378 = vpack.c.b16 %v5638, %v5634
    %v6379 = vpack.c.b16 %v5639, %v5635
    %v6380 = vpack.c.b16 %v5644, %v5640
    %v6381 = vpack.c.b16 %v5645, %v5641
    %v6382 = vpack.c.b16 %v5646, %v5642
    %v6383 = vpack.c.b16 %v5647, %v5643
    %v6384 = vpack.c.b16 %v5652, %v5648
    %v6385 = vpack.c.b16 %v5653, %v5649
    %v6386 = vpack.c.b16 %v5654, %v5650
    %v6387 = vpack.c.b16 %v5655, %v5651
    %v6388 = vpack.c.b16 %v5660, %v5656
    %v6389 = vpack.c.b16 %v5661, %v5657
    %v6390 = vpack.c.b16 %v5662, %v5658
    %v6391 = vpack.c.b16 %v5663, %v5659
    %v6392 = vpack.c.b16 %v5668, %v5664
    %v6393 = vpack.c.b16 %v5669, %v5665
    %v6394 = vpack.c.b16 %v5670, %v5666
    %v6395 = vpack.c.b16 %v5671, %v5667
    %v6396 = vpack.c.b16 %v5676, %v5672
    %v6397 = vpack.c.b16 %v5677, %v5673
    %v6398 = vpack.c.b16 %v5678, %v5674
    %v6399 = vpack.c.b16 %v5679, %v5675
    %v6400 = vpack.c.b16 %v5684, %v5680
    %v6401 = vpack.c.b16 %v5685, %v5681
    %v6402 = vpack.c.b16 %v5686, %v5682
    %v6403 = vpack.c.b16 %v5687, %v5683
    %v6404 = vpack.c.b16 %v5692, %v5688
    %v6405 = vpack.c.b16 %v5693, %v5689
    %v6406 = vpack.c.b16 %v5694, %v5690
    %v6407 = vpack.c.b16 %v5695, %v5691
    %v6408 = vpack.c.b16 %v5700, %v5696
    %v6409 = vpack.c.b16 %v5701, %v5697
    %v6410 = vpack.c.b16 %v5702, %v5698
    %v6411 = vpack.c.b16 %v5703, %v5699
    %v6412 = vpack.c.b16 %v5708, %v5704
    %v6413 = vpack.c.b16 %v5709, %v5705
    %v6414 = vpack.c.b16 %v5710, %v5706
    %v6415 = vpack.c.b16 %v5711, %v5707
    %v6416 = vpack.c.b16 %v5716, %v5712
    %v6417 = vpack.c.b16 %v5717, %v5713
    %v6418 = vpack.c.b16 %v5718, %v5714
    %v6419 = vpack.c.b16 %v5719, %v5715
    %v6420 = vpack.c.b16 %v5724, %v5720
    %v6421 = vpack.c.b16 %v5725, %v5721
    %v6422 = vpack.c.b16 %v5726, %v5722
    %v6423 = vpack.c.b16 %v5727, %v5723
    %v6424 = vpack.c.b16 %v5732, %v5728
    %v6425 = vpack.c.b16 %v5733, %v5729
    %v6426 = vpack.c.b16 %v5734, %v5730
    %v6427 = vpack.c.b16 %v5735, %v5731
    %v6428 = vpack.c.b16 %v5740, %v5736
    %v6429 = vpack.c.b16 %v5741, %v5737
    %v6430 = vpack.c.b16 %v5742, %v5738
    %v6431 = vpack.c.b16 %v5743, %v5739
    %v6432 = vpack.c.b16 %v5748, %v5744
    %v6433 = vpack.c.b16 %v5749, %v5745
    %v6434 = vpack.c.b16 %v5750, %v5746
    %v6435 = vpack.c.b16 %v5751, %v5747
    %v6436 = vpack.c.b16 %v5756, %v5752
    %v6437 = vpack.c.b16 %v5757, %v5753
    %v6438 = vpack.c.b16 %v5758, %v5754
    %v6439 = vpack.c.b16 %v5759, %v5755
    %v6440 = vpack.c.b16 %v5764, %v5760
    %v6441 = vpack.c.b16 %v5765, %v5761
    %v6442 = vpack.c.b16 %v5766, %v5762
    %v6443 = vpack.c.b16 %v5767, %v5763
    %v6444 = vpack.c.b16 %v5772, %v5768
    %v6445 = vpack.c.b16 %v5773, %v5769
    %v6446 = vpack.c.b16 %v5774, %v5770
    %v6447 = vpack.c.b16 %v5775, %v5771
    %v6448 = vpack.c.b16 %v5780, %v5776
    %v6449 = vpack.c.b16 %v5781, %v5777
    %v6450 = vpack.c.b16 %v5782, %v5778
    %v6451 = vpack.c.b16 %v5783, %v5779
    %v6452 = vpack.c.b16 %v5788, %v5784
    %v6453 = vpack.c.b16 %v5789, %v5785
    %v6454 = vpack.c.b16 %v5790, %v5786
    %v6455 = vpack.c.b16 %v5791, %v5787
    %v6456 = vpack.c.b16 %v5796, %v5792
    %v6457 = vpack.c.b16 %v5797, %v5793
    %v6458 = vpack.c.b16 %v5798, %v5794
    %v6459 = vpack.c.b16 %v5799, %v5795
    %v6460 = vpack.c.b16 %v5804, %v5800
    %v6461 = vpack.c.b16 %v5805, %v5801
    %v6462 = vpack.c.b16 %v5806, %v5802
    %v6463 = vpack.c.b16 %v5807, %v5803
    %v6464 = vpack.c.b16 %v5812, %v5808
    %v6465 = vpack.c.b16 %v5813, %v5809
    %v6466 = vpack.c.b16 %v5814, %v5810
    %v6467 = vpack.c.b16 %v5815, %v5811
    %v6468 = vpack.c.b16 %v5820, %v5816
    %v6469 = vpack.c.b16 %v5821, %v5817
    %v6470 = vpack.c.b16 %v5822, %v5818
    %v6471 = vpack.c.b16 %v5823, %v5819
    %v6472 = vpack.c.b16 %v5828, %v5824
    %v6473 = vpack.c.b16 %v5829, %v5825
    %v6474 = vpack.c.b16 %v5830, %v5826
    %v6475 = vpack.c.b16 %v5831, %v5827
    %v6476 = vpack.c.b16 %v5836, %v5832
    %v6477 = vpack.c.b16 %v5837, %v5833
    %v6478 = vpack.c.b16 %v5838, %v5834
    %v6479 = vpack.c.b16 %v5839, %v5835
    %v6480 = vpack.c.b16 %v5844, %v5840
    %v6481 = vpack.c.b16 %v5845, %v5841
    %v6482 = vpack.c.b16 %v5846, %v5842
    %v6483 = vpack.c.b16 %v5847, %v5843
    %v6484 = vpack.c.b16 %v5852, %v5848
    %v6485 = vpack.c.b16 %v5853, %v5849
    %v6486 = vpack.c.b16 %v5854, %v5850
    %v6487 = vpack.c.b16 %v5855, %v5851
    %v6488 = vpack.c.b16 %v5860, %v5856
    %v6489 = vpack.c.b16 %v5861, %v5857
    %v6490 = vpack.c.b16 %v5862, %v5858
    %v6491 = vpack.c.b16 %v5863, %v5859
    %v6492 = vpack.c.b16 %v5868, %v5864
    %v6493 = vpack.c.b16 %v5869, %v5865
    %v6494 = vpack.c.b16 %v5870, %v5866
    %v6495 = vpack.c.b16 %v5871, %v5867
    %v6496 = vpack.c.b16 %v5876, %v5872
    %v6497 = vpack.c.b16 %v5877, %v5873
    %v6498 = vpack.c.b16 %v5878, %v5874
    %v6499 = vpack.c.b16 %v5879, %v5875
    %v6500 = vpack.c.b16 %v5884, %v5880
    %v6501 = vpack.c.b16 %v5885, %v5881
    %v6502 = vpack.c.b16 %v5886, %v5882
    %v6503 = vpack.c.b16 %v5887, %v5883
    %v6504 = vpack.c.b16 %v5892, %v5888
    %v6505 = vpack.c.b16 %v5893, %v5889
    %v6506 = vpack.c.b16 %v5894, %v5890
    %v6507 = vpack.c.b16 %v5895, %v5891
    %v6508 = vpack.c.b16 %v5900, %v5896
    %v6509 = vpack.c.b16 %v5901, %v5897
    %v6510 = vpack.c.b16 %v5902, %v5898
    %v6511 = vpack.c.b16 %v5903, %v5899
    %v6512 = vpack.c.b16 %v5908, %v5904
    %v6513 = vpack.c.b16 %v5909, %v5905
    %v6514 = vpack.c.b16 %v5910, %v5906
    %v6515 = vpack.c.b16 %v5911, %v5907
    %v6516 = vpack.c.b16 %v5916, %v5912
    %v6517 = vpack.c.b16 %v5917, %v5913
    %v6518 = vpack.c.b16 %v5918, %v5914
    %v6519 = vpack.c.b16 %v5919, %v5915
    %v6520 = vpack.c.b16 %v5924, %v5920
    %v6521 = vpack.c.b16 %v5925, %v5921
    %v6522 = vpack.c.b16 %v5926, %v5922
    %v6523 = vpack.c.b16 %v5927, %v5923
    %v6524 = vpack.c.b16 %v5932, %v5928
    %v6525 = vpack.c.b16 %v5933, %v5929
    %v6526 = vpack.c.b16 %v5934, %v5930
    %v6527 = vpack.c.b16 %v5935, %v5931
    %v6528 = vpack.c.b16 %v5940, %v5936
    %v6529 = vpack.c.b16 %v5941, %v5937
    %v6530 = vpack.c.b16 %v5942, %v5938
    %v6531 = vpack.c.b16 %v5943, %v5939
    %v6532 = vpack.c.b16 %v5948, %v5944
    %v6533 = vpack.c.b16 %v5949, %v5945
    %v6534 = vpack.c.b16 %v5950, %v5946
    %v6535 = vpack.c.b16 %v5951, %v5947
    %v6536 = vpack.c.b16 %v5956, %v5952
    %v6537 = vpack.c.b16 %v5957, %v5953
    %v6538 = vpack.c.b16 %v5958, %v5954
    %v6539 = vpack.c.b16 %v5959, %v5955
    %v6540 = vpack.c.b16 %v5964, %v5960
    %v6541 = vpack.c.b16 %v5965, %v5961
    %v6542 = vpack.c.b16 %v5966, %v5962
    %v6543 = vpack.c.b16 %v5967, %v5963
    %v6544 = vpack.c.b16 %v5972, %v5968
    %v6545 = vpack.c.b16 %v5973, %v5969
    %v6546 = vpack.c.b16 %v5974, %v5970
    %v6547 = vpack.c.b16 %v5975, %v5971
    %v6548 = vpack.c.b16 %v5980, %v5976
    %v6549 = vpack.c.b16 %v5981, %v5977
    %v6550 = vpack.c.b16 %v5982, %v5978
    %v6551 = vpack.c.b16 %v5983, %v5979
    %v6552 = vpack.c.b16 %v5988, %v5984
    %v6553 = vpack.c.b16 %v5989, %v5985
    %v6554 = vpack.c.b16 %v5990, %v5986
    %v6555 = vpack.c.b16 %v5991, %v5987
    %v6556 = vpack.c.b16 %v5996, %v5992
    %v6557 = vpack.c.b16 %v5997, %v5993
    %v6558 = vpack.c.b16 %v5998, %v5994
    %v6559 = vpack.c.b16 %v5999, %v5995
    %v6560 = vpack.c.b16 %v6004, %v6000
    %v6561 = vpack.c.b16 %v6005, %v6001
    %v6562 = vpack.c.b16 %v6006, %v6002
    %v6563 = vpack.c.b16 %v6007, %v6003
    %v6564 = vpack.c.b16 %v6012, %v6008
    %v6565 = vpack.c.b16 %v6013, %v6009
    %v6566 = vpack.c.b16 %v6014, %v6010
    %v6567 = vpack.c.b16 %v6015, %v6011
    %v6568 = vpack.c.b16 %v6020, %v6016
    %v6569 = vpack.c.b16 %v6021, %v6017
    %v6570 = vpack.c.b16 %v6022, %v6018
    %v6571 = vpack.c.b16 %v6023, %v6019
    %v6572 = vpack.c.b16 %v6028, %v6024
    %v6573 = vpack.c.b16 %v6029, %v6025
    %v6574 = vpack.c.b16 %v6030, %v6026
    %v6575 = vpack.c.b16 %v6031, %v6027
    %v6576 = vpack.c.b16 %v6036, %v6032
    %v6577 = vpack.c.b16 %v6037, %v6033
    %v6578 = vpack.c.b16 %v6038, %v6034
    %v6579 = vpack.c.b16 %v6039, %v6035
    %v6580 = vpack.c.b16 %v6044, %v6040
    %v6581 = vpack.c.b16 %v6045, %v6041
    %v6582 = vpack.c.b16 %v6046, %v6042
    %v6583 = vpack.c.b16 %v6047, %v6043
    %v6584 = vpack.c.b16 %v6052, %v6048
    %v6585 = vpack.c.b16 %v6053, %v6049
    %v6586 = vpack.c.b16 %v6054, %v6050
    %v6587 = vpack.c.b16 %v6055, %v6051
    %v6588 = vpack.c.b16 %v6060, %v6056
    %v6589 = vpack.c.b16 %v6061, %v6057
    %v6590 = vpack.c.b16 %v6062, %v6058
    %v6591 = vpack.c.b16 %v6063, %v6059
    %v6592 = vpack.c.b16 %v6068, %v6064
    %v6593 = vpack.c.b16 %v6069, %v6065
    %v6594 = vpack.c.b16 %v6070, %v6066
    %v6595 = vpack.c.b16 %v6071, %v6067
    %v6596 = vpack.c.b16 %v6076, %v6072
    %v6597 = vpack.c.b16 %v6077, %v6073
    %v6598 = vpack.c.b16 %v6078, %v6074
    %v6599 = vpack.c.b16 %v6079, %v6075
    %v6600 = vpack.c.b16 %v6084, %v6080
    %v6601 = vpack.c.b16 %v6085, %v6081
    %v6602 = vpack.c.b16 %v6086, %v6082
    %v6603 = vpack.c.b16 %v6087, %v6083
    %v6604 = vpack.c.b16 %v6092, %v6088
    %v6605 = vpack.c.b16 %v6093, %v6089
    %v6606 = vpack.c.b16 %v6094, %v6090
    %v6607 = vpack.c.b16 %v6095, %v6091
    %7120 = vmatprep.subr.bf16.mxu0 %v6097
    %7121 = vmatpush1.bf16.msra.mxu0 %v6096
    %7122 = vmatprep.subr.bf16.mxu0 %v6101
    %7123 = vmatpush1.bf16.msra.mxu0 %v6100
    %7124 = vmatprep.subr.bf16.mxu0 %v6105
    %7125 = vmatpush1.bf16.msra.mxu0 %v6104
    %7126 = vmatprep.subr.bf16.mxu0 %v6109
    %7127 = vmatpush1.bf16.msra.mxu0 %v6108
    %7128 = vmatprep.subr.bf16.mxu0 %v6113
    %7129 = vmatpush1.bf16.msra.mxu0 %v6112
    %7130 = vmatprep.subr.bf16.mxu0 %v6117
    %7131 = vmatpush1.bf16.msra.mxu0 %v6116
    %7132 = vmatprep.subr.bf16.mxu0 %v6121
    %7133 = vmatpush1.bf16.msra.mxu0 %v6120
    %7134 = vmatprep.subr.bf16.mxu0 %v6125
    %7135 = vmatpush1.bf16.msra.mxu0 %v6124
    %7136 = vmatprep.subr.bf16.mxu0 %v6129
    %7137 = vmatpush1.bf16.msra.mxu0 %v6128
    %7138 = vmatprep.subr.bf16.mxu0 %v6133
    %7139 = vmatpush1.bf16.msra.mxu0 %v6132
    %7140 = vmatprep.subr.bf16.mxu0 %v6137
    %7141 = vmatpush1.bf16.msra.mxu0 %v6136
    %7142 = vmatprep.subr.bf16.mxu0 %v6141
    %7143 = vmatpush1.bf16.msra.mxu0 %v6140
    %7144 = vmatprep.subr.bf16.mxu0 %v6145
    %7145 = vmatpush1.bf16.msra.mxu0 %v6144
    %7146 = vmatprep.subr.bf16.mxu0 %v6149
    %7147 = vmatpush1.bf16.msra.mxu0 %v6148
    %7148 = vmatprep.subr.bf16.mxu0 %v6153
    %7149 = vmatpush1.bf16.msra.mxu0 %v6152
    %7150 = vmatprep.subr.bf16.mxu0 %v6157
    %7151 = vmatpush1.bf16.msra.mxu0 %v6156
    %7152 = vmatprep.mubr.bf16.mxu0 %v4483
    %7153 = vmatmul.mubr.bf16.gmra.mrb[0].mxu0 %v4469
    %v7154 = vpop.f32.mrb[0].mxu0
    %v7155 = vadd.f32 %v4110, %v7154
    %v7156 = vpop.f32.mrb[0].mxu0
    %v7157 = vadd.f32 %v4112, %v7156
    %v7158 = vpop.f32.mrb[0].mxu0
    %v7159 = vpop.f32.mrb[0].mxu0
    %7160 = vdwg.mxu0
    %7161 = vmatprep.subr.bf16.mxu0 %v6161
    %7162 = vmatpush1.bf16.msra.mxu0 %v6160
    %7163 = vmatprep.subr.bf16.mxu0 %v6165
    %7164 = vmatpush1.bf16.msra.mxu0 %v6164
    %7165 = vmatprep.subr.bf16.mxu0 %v6169
    %7166 = vmatpush1.bf16.msra.mxu0 %v6168
    %7167 = vmatprep.subr.bf16.mxu0 %v6173
    %7168 = vmatpush1.bf16.msra.mxu0 %v6172
    %7169 = vmatprep.subr.bf16.mxu0 %v6177
    %7170 = vmatpush1.bf16.msra.mxu0 %v6176
    %7171 = vmatprep.subr.bf16.mxu0 %v6181
    %7172 = vmatpush1.bf16.msra.mxu0 %v6180
    %7173 = vmatprep.subr.bf16.mxu0 %v6185
    %7174 = vmatpush1.bf16.msra.mxu0 %v6184
    %7175 = vmatprep.subr.bf16.mxu0 %v6189
    %7176 = vmatpush1.bf16.msra.mxu0 %v6188
    %7177 = vmatprep.subr.bf16.mxu0 %v6193
    %7178 = vmatpush1.bf16.msra.mxu0 %v6192
    %7179 = vmatprep.subr.bf16.mxu0 %v6197
    %7180 = vmatpush1.bf16.msra.mxu0 %v6196
    %7181 = vmatprep.subr.bf16.mxu0 %v6201
    %7182 = vmatpush1.bf16.msra.mxu0 %v6200
    %7183 = vmatprep.subr.bf16.mxu0 %v6205
    %7184 = vmatpush1.bf16.msra.mxu0 %v6204
    %7185 = vmatprep.subr.bf16.mxu0 %v6209
    %7186 = vmatpush1.bf16.msra.mxu0 %v6208
    %7187 = vmatprep.subr.bf16.mxu0 %v6213
    %7188 = vmatpush1.bf16.msra.mxu0 %v6212
    %7189 = vmatprep.subr.bf16.mxu0 %v6217
    %7190 = vmatpush1.bf16.msra.mxu0 %v6216
    %7191 = vmatprep.subr.bf16.mxu0 %v6221
    %7192 = vmatpush1.bf16.msra.mxu0 %v6220
    %7193 = vmatprep.mubr.bf16.mxu0 %v4493
    %7194 = vmatmul.mubr.bf16.gmra.mrb[0].mxu0 %v4491
    %v7195 = vpop.f32.mrb[0].mxu0
    %v7196 = vadd.f32 %v7155, %v7195
    %v7197 = vpop.f32.mrb[0].mxu0
    %v7198 = vadd.f32 %v7157, %v7197
    %v7199 = vpop.f32.mrb[0].mxu0
    %v7200 = vpop.f32.mrb[0].mxu0
    %7201 = vdwg.mxu0
    %7202 = vmatprep.subr.bf16.mxu0 %v6225
    %7203 = vmatpush1.bf16.msra.mxu0 %v6224
    %7204 = vmatprep.subr.bf16.mxu0 %v6229
    %7205 = vmatpush1.bf16.msra.mxu0 %v6228
    %7206 = vmatprep.subr.bf16.mxu0 %v6233
    %7207 = vmatpush1.bf16.msra.mxu0 %v6232
    %7208 = vmatprep.subr.bf16.mxu0 %v6237
    %7209 = vmatpush1.bf16.msra.mxu0 %v6236
    %7210 = vmatprep.subr.bf16.mxu0 %v6241
    %7211 = vmatpush1.bf16.msra.mxu0 %v6240
    %7212 = vmatprep.subr.bf16.mxu0 %v6245
    %7213 = vmatpush1.bf16.msra.mxu0 %v6244
    %7214 = vmatprep.subr.bf16.mxu0 %v6249
    %7215 = vmatpush1.bf16.msra.mxu0 %v6248
    %7216 = vmatprep.subr.bf16.mxu0 %v6253
    %7217 = vmatpush1.bf16.msra.mxu0 %v6252
    %7218 = vmatprep.subr.bf16.mxu0 %v6257
    %7219 = vmatpush1.bf16.msra.mxu0 %v6256
    %7220 = vmatprep.subr.bf16.mxu0 %v6261
    %7221 = vmatpush1.bf16.msra.mxu0 %v6260
    %7222 = vmatprep.subr.bf16.mxu0 %v6265
    %7223 = vmatpush1.bf16.msra.mxu0 %v6264
    %7224 = vmatprep.subr.bf16.mxu0 %v6269
    %7225 = vmatpush1.bf16.msra.mxu0 %v6268
    %7226 = vmatprep.subr.bf16.mxu0 %v6273
    %7227 = vmatpush1.bf16.msra.mxu0 %v6272
    %7228 = vmatprep.subr.bf16.mxu0 %v6277
    %7229 = vmatpush1.bf16.msra.mxu0 %v6276
    %7230 = vmatprep.subr.bf16.mxu0 %v6281
    %7231 = vmatpush1.bf16.msra.mxu0 %v6280
    %7232 = vmatprep.subr.bf16.mxu0 %v6285
    %7233 = vmatpush1.bf16.msra.mxu0 %v6284
    %7234 = vmatprep.mubr.bf16.mxu0 %v4490
    %7235 = vmatmul.mubr.bf16.gmra.mrb[0].mxu0 %v4476
    %v7236 = vpop.f32.mrb[0].mxu0
    %v7237 = vadd.f32 %v7196, %v7236
    %v7238 = vpop.f32.mrb[0].mxu0
    %v7239 = vadd.f32 %v7198, %v7238
    %v7240 = vpop.f32.mrb[0].mxu0
    %v7241 = vpop.f32.mrb[0].mxu0
    %7242 = vdwg.mxu0
    %7243 = vmatprep.subr.bf16.mxu0 %v6289
    %7244 = vmatpush1.bf16.msra.mxu0 %v6288
    %7245 = vmatprep.subr.bf16.mxu0 %v6293
    %7246 = vmatpush1.bf16.msra.mxu0 %v6292
    %7247 = vmatprep.subr.bf16.mxu0 %v6297
    %7248 = vmatpush1.bf16.msra.mxu0 %v6296
    %7249 = vmatprep.subr.bf16.mxu0 %v6301
    %7250 = vmatpush1.bf16.msra.mxu0 %v6300
    %7251 = vmatprep.subr.bf16.mxu0 %v6305
    %7252 = vmatpush1.bf16.msra.mxu0 %v6304
    %7253 = vmatprep.subr.bf16.mxu0 %v6309
    %7254 = vmatpush1.bf16.msra.mxu0 %v6308
    %7255 = vmatprep.subr.bf16.mxu0 %v6313
    %7256 = vmatpush1.bf16.msra.mxu0 %v6312
    %7257 = vmatprep.subr.bf16.mxu0 %v6317
    %7258 = vmatpush1.bf16.msra.mxu0 %v6316
    %7259 = vmatprep.subr.bf16.mxu0 %v6321
    %7260 = vmatpush1.bf16.msra.mxu0 %v6320
    %7261 = vmatprep.subr.bf16.mxu0 %v6325
    %7262 = vmatpush1.bf16.msra.mxu0 %v6324
    %7263 = vmatprep.subr.bf16.mxu0 %v6329
    %7264 = vmatpush1.bf16.msra.mxu0 %v6328
    %7265 = vmatprep.subr.bf16.mxu0 %v6333
    %7266 = vmatpush1.bf16.msra.mxu0 %v6332
    %7267 = vmatprep.subr.bf16.mxu0 %v6337
    %7268 = vmatpush1.bf16.msra.mxu0 %v6336
    %7269 = vmatprep.subr.bf16.mxu0 %v6341
    %7270 = vmatpush1.bf16.msra.mxu0 %v6340
    %7271 = vmatprep.subr.bf16.mxu0 %v6345
    %7272 = vmatpush1.bf16.msra.mxu0 %v6344
    %7273 = vmatprep.subr.bf16.mxu0 %v6349
    %7274 = vmatpush1.bf16.msra.mxu0 %v6348
    %7275 = vmatprep.mubr.bf16.mxu0 %v4494
    %7276 = vmatmul.mubr.bf16.gmra.mrb[0].mxu0 %v4492
    %v7277 = vpop.f32.mrb[0].mxu0
    %v7278 = vadd.f32 %v7237, %v7277
    %v7279 = vpop.f32.mrb[0].mxu0
    %v7280 = vadd.f32 %v7239, %v7279
    %v7281 = vpop.f32.mrb[0].mxu0
    %v7282 = vpop.f32.mrb[0].mxu0
    %7283 = vdwg.mxu0
    %7284 = vmatprep.subr.bf16.mxu0 %v6353
    %7285 = vmatpush1.bf16.msra.mxu0 %v6352
    %7286 = vmatprep.subr.bf16.mxu0 %v6357
    %7287 = vmatpush1.bf16.msra.mxu0 %v6356
    %7288 = vmatprep.subr.bf16.mxu0 %v6361
    %7289 = vmatpush1.bf16.msra.mxu0 %v6360
    %7290 = vmatprep.subr.bf16.mxu0 %v6365
    %7291 = vmatpush1.bf16.msra.mxu0 %v6364
    %7292 = vmatprep.subr.bf16.mxu0 %v6369
    %7293 = vmatpush1.bf16.msra.mxu0 %v6368
    %7294 = vmatprep.subr.bf16.mxu0 %v6373
    %7295 = vmatpush1.bf16.msra.mxu0 %v6372
    %7296 = vmatprep.subr.bf16.mxu0 %v6377
    %7297 = vmatpush1.bf16.msra.mxu0 %v6376
    %7298 = vmatprep.subr.bf16.mxu0 %v6381
    %7299 = vmatpush1.bf16.msra.mxu0 %v6380
    %7300 = vmatprep.subr.bf16.mxu0 %v6385
    %7301 = vmatpush1.bf16.msra.mxu0 %v6384
    %7302 = vmatprep.subr.bf16.mxu0 %v6389
    %7303 = vmatpush1.bf16.msra.mxu0 %v6388
    %7304 = vmatprep.subr.bf16.mxu0 %v6393
    %7305 = vmatpush1.bf16.msra.mxu0 %v6392
    %7306 = vmatprep.subr.bf16.mxu0 %v6397
    %7307 = vmatpush1.bf16.msra.mxu0 %v6396
    %7308 = vmatprep.subr.bf16.mxu0 %v6401
    %7309 = vmatpush1.bf16.msra.mxu0 %v6400
    %7310 = vmatprep.subr.bf16.mxu0 %v6405
    %7311 = vmatpush1.bf16.msra.mxu0 %v6404
    %7312 = vmatprep.subr.bf16.mxu0 %v6409
    %7313 = vmatpush1.bf16.msra.mxu0 %v6408
    %7314 = vmatprep.subr.bf16.mxu0 %v6413
    %7315 = vmatpush1.bf16.msra.mxu0 %v6412
    %7316 = vmatprep.mubr.bf16.mxu0 %v4532
    %7317 = vmatmul.mubr.bf16.gmra.mrb[0].mxu0 %v4518
    %v7318 = vpop.f32.mrb[0].mxu0
    %v7319 = vadd.f32 %v7278, %v7318
    %v7320 = vpop.f32.mrb[0].mxu0
    %v7321 = vadd.f32 %v7280, %v7320
    %v7322 = vpop.f32.mrb[0].mxu0
    %v7323 = vpop.f32.mrb[0].mxu0
    %7324 = vdwg.mxu0
    %7325 = vmatprep.subr.bf16.mxu0 %v6417
    %7326 = vmatpush1.bf16.msra.mxu0 %v6416
    %7327 = vmatprep.subr.bf16.mxu0 %v6421
    %7328 = vmatpush1.bf16.msra.mxu0 %v6420
    %7329 = vmatprep.subr.bf16.mxu0 %v6425
    %7330 = vmatpush1.bf16.msra.mxu0 %v6424
    %7331 = vmatprep.subr.bf16.mxu0 %v6429
    %7332 = vmatpush1.bf16.msra.mxu0 %v6428
    %7333 = vmatprep.subr.bf16.mxu0 %v6433
    %7334 = vmatpush1.bf16.msra.mxu0 %v6432
    %7335 = vmatprep.subr.bf16.mxu0 %v6437
    %7336 = vmatpush1.bf16.msra.mxu0 %v6436
    %7337 = vmatprep.subr.bf16.mxu0 %v6441
    %7338 = vmatpush1.bf16.msra.mxu0 %v6440
    %7339 = vmatprep.subr.bf16.mxu0 %v6445
    %7340 = vmatpush1.bf16.msra.mxu0 %v6444
    %7341 = vmatprep.subr.bf16.mxu0 %v6449
    %7342 = vmatpush1.bf16.msra.mxu0 %v6448
    %7343 = vmatprep.subr.bf16.mxu0 %v6453
    %7344 = vmatpush1.bf16.msra.mxu0 %v6452
    %7345 = vmatprep.subr.bf16.mxu0 %v6457
    %7346 = vmatpush1.bf16.msra.mxu0 %v6456
    %7347 = vmatprep.subr.bf16.mxu0 %v6461
    %7348 = vmatpush1.bf16.msra.mxu0 %v6460
    %7349 = vmatprep.subr.bf16.mxu0 %v6465
    %7350 = vmatpush1.bf16.msra.mxu0 %v6464
    %7351 = vmatprep.subr.bf16.mxu0 %v6469
    %7352 = vmatpush1.bf16.msra.mxu0 %v6468
    %7353 = vmatprep.subr.bf16.mxu0 %v6473
    %7354 = vmatpush1.bf16.msra.mxu0 %v6472
    %7355 = vmatprep.subr.bf16.mxu0 %v6477
    %7356 = vmatpush1.bf16.msra.mxu0 %v6476
    %7357 = vmatprep.mubr.bf16.mxu0 %v4542
    %7358 = vmatmul.mubr.bf16.gmra.mrb[0].mxu0 %v4540
    %v7359 = vpop.f32.mrb[0].mxu0
    %v7360 = vadd.f32 %v7319, %v7359
    %v7361 = vpop.f32.mrb[0].mxu0
    %v7362 = vadd.f32 %v7321, %v7361
    %v7363 = vpop.f32.mrb[0].mxu0
    %v7364 = vpop.f32.mrb[0].mxu0
    %7365 = vdwg.mxu0
    %7366 = vmatprep.subr.bf16.mxu0 %v6481
    %7367 = vmatpush1.bf16.msra.mxu0 %v6480
    %7368 = vmatprep.subr.bf16.mxu0 %v6485
    %7369 = vmatpush1.bf16.msra.mxu0 %v6484
    %7370 = vmatprep.subr.bf16.mxu0 %v6489
    %7371 = vmatpush1.bf16.msra.mxu0 %v6488
    %7372 = vmatprep.subr.bf16.mxu0 %v6493
    %7373 = vmatpush1.bf16.msra.mxu0 %v6492
    %7374 = vmatprep.subr.bf16.mxu0 %v6497
    %7375 = vmatpush1.bf16.msra.mxu0 %v6496
    %7376 = vmatprep.subr.bf16.mxu0 %v6501
    %7377 = vmatpush1.bf16.msra.mxu0 %v6500
    %7378 = vmatprep.subr.bf16.mxu0 %v6505
    %7379 = vmatpush1.bf16.msra.mxu0 %v6504
    %7380 = vmatprep.subr.bf16.mxu0 %v6509
    %7381 = vmatpush1.bf16.msra.mxu0 %v6508
    %7382 = vmatprep.subr.bf16.mxu0 %v6513
    %7383 = vmatpush1.bf16.msra.mxu0 %v6512
    %7384 = vmatprep.subr.bf16.mxu0 %v6517
    %7385 = vmatpush1.bf16.msra.mxu0 %v6516
    %7386 = vmatprep.subr.bf16.mxu0 %v6521
    %7387 = vmatpush1.bf16.msra.mxu0 %v6520
    %7388 = vmatprep.subr.bf16.mxu0 %v6525
    %7389 = vmatpush1.bf16.msra.mxu0 %v6524
    %7390 = vmatprep.subr.bf16.mxu0 %v6529
    %7391 = vmatpush1.bf16.msra.mxu0 %v6528
    %7392 = vmatprep.subr.bf16.mxu0 %v6533
    %7393 = vmatpush1.bf16.msra.mxu0 %v6532
    %7394 = vmatprep.subr.bf16.mxu0 %v6537
    %7395 = vmatpush1.bf16.msra.mxu0 %v6536
    %7396 = vmatprep.subr.bf16.mxu0 %v6541
    %7397 = vmatpush1.bf16.msra.mxu0 %v6540
    %7398 = vmatprep.mubr.bf16.mxu0 %v4539
    %7399 = vmatmul.mubr.bf16.gmra.mrb[0].mxu0 %v4525
    %v7400 = vpop.f32.mrb[0].mxu0
    %v7401 = vadd.f32 %v7360, %v7400
    %v7402 = vpop.f32.mrb[0].mxu0
    %v7403 = vadd.f32 %v7362, %v7402
    %v7404 = vpop.f32.mrb[0].mxu0
    %v7405 = vpop.f32.mrb[0].mxu0
    %7406 = vdwg.mxu0
    %7407 = vmatprep.subr.bf16.mxu0 %v6545
    %7408 = vmatpush1.bf16.msra.mxu0 %v6544
    %7409 = vmatprep.subr.bf16.mxu0 %v6549
    %7410 = vmatpush1.bf16.msra.mxu0 %v6548
    %7411 = vmatprep.subr.bf16.mxu0 %v6553
    %7412 = vmatpush1.bf16.msra.mxu0 %v6552
    %7413 = vmatprep.subr.bf16.mxu0 %v6557
    %7414 = vmatpush1.bf16.msra.mxu0 %v6556
    %7415 = vmatprep.subr.bf16.mxu0 %v6561
    %7416 = vmatpush1.bf16.msra.mxu0 %v6560
    %7417 = vmatprep.subr.bf16.mxu0 %v6565
    %7418 = vmatpush1.bf16.msra.mxu0 %v6564
    %7419 = vmatprep.subr.bf16.mxu0 %v6569
    %7420 = vmatpush1.bf16.msra.mxu0 %v6568
    %7421 = vmatprep.subr.bf16.mxu0 %v6573
    %7422 = vmatpush1.bf16.msra.mxu0 %v6572
    %7423 = vmatprep.subr.bf16.mxu0 %v6577
    %7424 = vmatpush1.bf16.msra.mxu0 %v6576
    %7425 = vmatprep.subr.bf16.mxu0 %v6581
    %7426 = vmatpush1.bf16.msra.mxu0 %v6580
    %7427 = vmatprep.subr.bf16.mxu0 %v6585
    %7428 = vmatpush1.bf16.msra.mxu0 %v6584
    %7429 = vmatprep.subr.bf16.mxu0 %v6589
    %7430 = vmatpush1.bf16.msra.mxu0 %v6588
    %7431 = vmatprep.subr.bf16.mxu0 %v6593
    %7432 = vmatpush1.bf16.msra.mxu0 %v6592
    %7433 = vmatprep.subr.bf16.mxu0 %v6597
    %7434 = vmatpush1.bf16.msra.mxu0 %v6596
    %7435 = vmatprep.subr.bf16.mxu0 %v6601
    %7436 = vmatpush1.bf16.msra.mxu0 %v6600
    %7437 = vmatprep.subr.bf16.mxu0 %v6605
    %7438 = vmatpush1.bf16.msra.mxu0 %v6604
    %7439 = vmatprep.mubr.bf16.mxu0 %v4543
    %7440 = vmatmul.mubr.bf16.gmra.mrb[0].mxu0 %v4541
    %v7441 = vpop.f32.mrb[0].mxu0
    %v7442 = vadd.f32 %v7401, %v7441
    %v7443 = vpop.f32.mrb[0].mxu0
    %v7444 = vadd.f32 %v7403, %v7443
    %v7445 = vpop.f32.mrb[0].mxu0
    %v7446 = vpop.f32.mrb[0].mxu0
    %7447 = vdwg.mxu0
    %7448 = vmatprep.subr.bf16.mxu0 %v6099
    %7449 = vmatpush1.bf16.msra.mxu0 %v6098
    %7450 = vmatprep.subr.bf16.mxu0 %v6103
    %7451 = vmatpush1.bf16.msra.mxu0 %v6102
    %7452 = vmatprep.subr.bf16.mxu0 %v6107
    %7453 = vmatpush1.bf16.msra.mxu0 %v6106
    %7454 = vmatprep.subr.bf16.mxu0 %v6111
    %7455 = vmatpush1.bf16.msra.mxu0 %v6110
    %7456 = vmatprep.subr.bf16.mxu0 %v6115
    %7457 = vmatpush1.bf16.msra.mxu0 %v6114
    %7458 = vmatprep.subr.bf16.mxu0 %v6119
    %7459 = vmatpush1.bf16.msra.mxu0 %v6118
    %7460 = vmatprep.subr.bf16.mxu0 %v6123
    %7461 = vmatpush1.bf16.msra.mxu0 %v6122
    %7462 = vmatprep.subr.bf16.mxu0 %v6127
    %7463 = vmatpush1.bf16.msra.mxu0 %v6126
    %7464 = vmatprep.subr.bf16.mxu0 %v6131
    %7465 = vmatpush1.bf16.msra.mxu0 %v6130
    %7466 = vmatprep.subr.bf16.mxu0 %v6135
    %7467 = vmatpush1.bf16.msra.mxu0 %v6134
    %7468 = vmatprep.subr.bf16.mxu0 %v6139
    %7469 = vmatpush1.bf16.msra.mxu0 %v6138
    %7470 = vmatprep.subr.bf16.mxu0 %v6143
    %7471 = vmatpush1.bf16.msra.mxu0 %v6142
    %7472 = vmatprep.subr.bf16.mxu0 %v6147
    %7473 = vmatpush1.bf16.msra.mxu0 %v6146
    %7474 = vmatprep.subr.bf16.mxu0 %v6151
    %7475 = vmatpush1.bf16.msra.mxu0 %v6150
    %7476 = vmatprep.subr.bf16.mxu0 %v6155
    %7477 = vmatpush1.bf16.msra.mxu0 %v6154
    %7478 = vmatprep.subr.bf16.mxu0 %v6159
    %7479 = vmatpush1.bf16.msra.mxu0 %v6158
    %7480 = vmatprep.mubr.bf16.mxu0 %v4483
    %7481 = vmatmul.mubr.bf16.gmra.mrb[0].mxu0 %v4469
    %v7482 = vpop.f32.mrb[0].mxu0
    %v7483 = vadd.f32 %v4438, %v7482
    %v7484 = vpop.f32.mrb[0].mxu0
    %v7485 = vadd.f32 %v4440, %v7484
    %v7486 = vpop.f32.mrb[0].mxu0
    %v7487 = vpop.f32.mrb[0].mxu0
    %7488 = vdwg.mxu0
    %7489 = vmatprep.subr.bf16.mxu0 %v6163
    %7490 = vmatpush1.bf16.msra.mxu0 %v6162
    %7491 = vmatprep.subr.bf16.mxu0 %v6167
    %7492 = vmatpush1.bf16.msra.mxu0 %v6166
    %7493 = vmatprep.subr.bf16.mxu0 %v6171
    %7494 = vmatpush1.bf16.msra.mxu0 %v6170
    %7495 = vmatprep.subr.bf16.mxu0 %v6175
    %7496 = vmatpush1.bf16.msra.mxu0 %v6174
    %7497 = vmatprep.subr.bf16.mxu0 %v6179
    %7498 = vmatpush1.bf16.msra.mxu0 %v6178
    %7499 = vmatprep.subr.bf16.mxu0 %v6183
    %7500 = vmatpush1.bf16.msra.mxu0 %v6182
    %7501 = vmatprep.subr.bf16.mxu0 %v6187
    %7502 = vmatpush1.bf16.msra.mxu0 %v6186
    %7503 = vmatprep.subr.bf16.mxu0 %v6191
    %7504 = vmatpush1.bf16.msra.mxu0 %v6190
    %7505 = vmatprep.subr.bf16.mxu0 %v6195
    %7506 = vmatpush1.bf16.msra.mxu0 %v6194
    %7507 = vmatprep.subr.bf16.mxu0 %v6199
    %7508 = vmatpush1.bf16.msra.mxu0 %v6198
    %7509 = vmatprep.subr.bf16.mxu0 %v6203
    %7510 = vmatpush1.bf16.msra.mxu0 %v6202
    %7511 = vmatprep.subr.bf16.mxu0 %v6207
    %7512 = vmatpush1.bf16.msra.mxu0 %v6206
    %7513 = vmatprep.subr.bf16.mxu0 %v6211
    %7514 = vmatpush1.bf16.msra.mxu0 %v6210
    %7515 = vmatprep.subr.bf16.mxu0 %v6215
    %7516 = vmatpush1.bf16.msra.mxu0 %v6214
    %7517 = vmatprep.subr.bf16.mxu0 %v6219
    %7518 = vmatpush1.bf16.msra.mxu0 %v6218
    %7519 = vmatprep.subr.bf16.mxu0 %v6223
    %7520 = vmatpush1.bf16.msra.mxu0 %v6222
    %7521 = vmatprep.mubr.bf16.mxu0 %v4493
    %7522 = vmatmul.mubr.bf16.gmra.mrb[0].mxu0 %v4491
    %v7523 = vpop.f32.mrb[0].mxu0
    %v7524 = vadd.f32 %v7483, %v7523
    %v7525 = vpop.f32.mrb[0].mxu0
    %v7526 = vadd.f32 %v7485, %v7525
    %v7527 = vpop.f32.mrb[0].mxu0
    %v7528 = vpop.f32.mrb[0].mxu0
    %7529 = vdwg.mxu0
    %7530 = vmatprep.subr.bf16.mxu0 %v6227
    %7531 = vmatpush1.bf16.msra.mxu0 %v6226
    %7532 = vmatprep.subr.bf16.mxu0 %v6231
    %7533 = vmatpush1.bf16.msra.mxu0 %v6230
    %7534 = vmatprep.subr.bf16.mxu0 %v6235
    %7535 = vmatpush1.bf16.msra.mxu0 %v6234
    %7536 = vmatprep.subr.bf16.mxu0 %v6239
    %7537 = vmatpush1.bf16.msra.mxu0 %v6238
    %7538 = vmatprep.subr.bf16.mxu0 %v6243
    %7539 = vmatpush1.bf16.msra.mxu0 %v6242
    %7540 = vmatprep.subr.bf16.mxu0 %v6247
    %7541 = vmatpush1.bf16.msra.mxu0 %v6246
    %7542 = vmatprep.subr.bf16.mxu0 %v6251
    %7543 = vmatpush1.bf16.msra.mxu0 %v6250
    %7544 = vmatprep.subr.bf16.mxu0 %v6255
    %7545 = vmatpush1.bf16.msra.mxu0 %v6254
    %7546 = vmatprep.subr.bf16.mxu0 %v6259
    %7547 = vmatpush1.bf16.msra.mxu0 %v6258
    %7548 = vmatprep.subr.bf16.mxu0 %v6263
    %7549 = vmatpush1.bf16.msra.mxu0 %v6262
    %7550 = vmatprep.subr.bf16.mxu0 %v6267
    %7551 = vmatpush1.bf16.msra.mxu0 %v6266
    %7552 = vmatprep.subr.bf16.mxu0 %v6271
    %7553 = vmatpush1.bf16.msra.mxu0 %v6270
    %7554 = vmatprep.subr.bf16.mxu0 %v6275
    %7555 = vmatpush1.bf16.msra.mxu0 %v6274
    %7556 = vmatprep.subr.bf16.mxu0 %v6279
    %7557 = vmatpush1.bf16.msra.mxu0 %v6278
    %7558 = vmatprep.subr.bf16.mxu0 %v6283
    %7559 = vmatpush1.bf16.msra.mxu0 %v6282
    %7560 = vmatprep.subr.bf16.mxu0 %v6287
    %7561 = vmatpush1.bf16.msra.mxu0 %v6286
    %7562 = vmatprep.mubr.bf16.mxu0 %v4490
    %7563 = vmatmul.mubr.bf16.gmra.mrb[0].mxu0 %v4476
    %v7564 = vpop.f32.mrb[0].mxu0
    %v7565 = vadd.f32 %v7524, %v7564
    %v7566 = vpop.f32.mrb[0].mxu0
    %v7567 = vadd.f32 %v7526, %v7566
    %v7568 = vpop.f32.mrb[0].mxu0
    %v7569 = vpop.f32.mrb[0].mxu0
    %7570 = vdwg.mxu0
    %7571 = vmatprep.subr.bf16.mxu0 %v6291
    %7572 = vmatpush1.bf16.msra.mxu0 %v6290
    %7573 = vmatprep.subr.bf16.mxu0 %v6295
    %7574 = vmatpush1.bf16.msra.mxu0 %v6294
    %7575 = vmatprep.subr.bf16.mxu0 %v6299
    %7576 = vmatpush1.bf16.msra.mxu0 %v6298
    %7577 = vmatprep.subr.bf16.mxu0 %v6303
    %7578 = vmatpush1.bf16.msra.mxu0 %v6302
    %7579 = vmatprep.subr.bf16.mxu0 %v6307
    %7580 = vmatpush1.bf16.msra.mxu0 %v6306
    %7581 = vmatprep.subr.bf16.mxu0 %v6311
    %7582 = vmatpush1.bf16.msra.mxu0 %v6310
    %7583 = vmatprep.subr.bf16.mxu0 %v6315
    %7584 = vmatpush1.bf16.msra.mxu0 %v6314
    %7585 = vmatprep.subr.bf16.mxu0 %v6319
    %7586 = vmatpush1.bf16.msra.mxu0 %v6318
    %7587 = vmatprep.subr.bf16.mxu0 %v6323
    %7588 = vmatpush1.bf16.msra.mxu0 %v6322
    %7589 = vmatprep.subr.bf16.mxu0 %v6327
    %7590 = vmatpush1.bf16.msra.mxu0 %v6326
    %7591 = vmatprep.subr.bf16.mxu0 %v6331
    %7592 = vmatpush1.bf16.msra.mxu0 %v6330
    %7593 = vmatprep.subr.bf16.mxu0 %v6335
    %7594 = vmatpush1.bf16.msra.mxu0 %v6334
    %7595 = vmatprep.subr.bf16.mxu0 %v6339
    %7596 = vmatpush1.bf16.msra.mxu0 %v6338
    %7597 = vmatprep.subr.bf16.mxu0 %v6343
    %7598 = vmatpush1.bf16.msra.mxu0 %v6342
    %7599 = vmatprep.subr.bf16.mxu0 %v6347
    %7600 = vmatpush1.bf16.msra.mxu0 %v6346
    %7601 = vmatprep.subr.bf16.mxu0 %v6351
    %7602 = vmatpush1.bf16.msra.mxu0 %v6350
    %7603 = vmatprep.mubr.bf16.mxu0 %v4494
    %7604 = vmatmul.mubr.bf16.gmra.mrb[0].mxu0 %v4492
    %v7605 = vpop.f32.mrb[0].mxu0
    %v7606 = vadd.f32 %v7565, %v7605
    %v7607 = vpop.f32.mrb[0].mxu0
    %v7608 = vadd.f32 %v7567, %v7607
    %v7609 = vpop.f32.mrb[0].mxu0
    %v7610 = vpop.f32.mrb[0].mxu0
    %7611 = vdwg.mxu0
    %7612 = vmatprep.subr.bf16.mxu0 %v6355
    %7613 = vmatpush1.bf16.msra.mxu0 %v6354
    %7614 = vmatprep.subr.bf16.mxu0 %v6359
    %7615 = vmatpush1.bf16.msra.mxu0 %v6358
    %7616 = vmatprep.subr.bf16.mxu0 %v6363
    %7617 = vmatpush1.bf16.msra.mxu0 %v6362
    %7618 = vmatprep.subr.bf16.mxu0 %v6367
    %7619 = vmatpush1.bf16.msra.mxu0 %v6366
    %7620 = vmatprep.subr.bf16.mxu0 %v6371
    %7621 = vmatpush1.bf16.msra.mxu0 %v6370
    %7622 = vmatprep.subr.bf16.mxu0 %v6375
    %7623 = vmatpush1.bf16.msra.mxu0 %v6374
    %7624 = vmatprep.subr.bf16.mxu0 %v6379
    %7625 = vmatpush1.bf16.msra.mxu0 %v6378
    %7626 = vmatprep.subr.bf16.mxu0 %v6383
    %7627 = vmatpush1.bf16.msra.mxu0 %v6382
    %7628 = vmatprep.subr.bf16.mxu0 %v6387
    %7629 = vmatpush1.bf16.msra.mxu0 %v6386
    %7630 = vmatprep.subr.bf16.mxu0 %v6391
    %7631 = vmatpush1.bf16.msra.mxu0 %v6390
    %7632 = vmatprep.subr.bf16.mxu0 %v6395
    %7633 = vmatpush1.bf16.msra.mxu0 %v6394
    %7634 = vmatprep.subr.bf16.mxu0 %v6399
    %7635 = vmatpush1.bf16.msra.mxu0 %v6398
    %7636 = vmatprep.subr.bf16.mxu0 %v6403
    %7637 = vmatpush1.bf16.msra.mxu0 %v6402
    %7638 = vmatprep.subr.bf16.mxu0 %v6407
    %7639 = vmatpush1.bf16.msra.mxu0 %v6406
    %7640 = vmatprep.subr.bf16.mxu0 %v6411
    %7641 = vmatpush1.bf16.msra.mxu0 %v6410
    %7642 = vmatprep.subr.bf16.mxu0 %v6415
    %7643 = vmatpush1.bf16.msra.mxu0 %v6414
    %7644 = vmatprep.mubr.bf16.mxu0 %v4532
    %7645 = vmatmul.mubr.bf16.gmra.mrb[0].mxu0 %v4518
    %v7646 = vpop.f32.mrb[0].mxu0
    %v7647 = vadd.f32 %v7606, %v7646
    %v7648 = vpop.f32.mrb[0].mxu0
    %v7649 = vadd.f32 %v7608, %v7648
    %v7650 = vpop.f32.mrb[0].mxu0
    %v7651 = vpop.f32.mrb[0].mxu0
    %7652 = vdwg.mxu0
    %7653 = vmatprep.subr.bf16.mxu0 %v6419
    %7654 = vmatpush1.bf16.msra.mxu0 %v6418
    %7655 = vmatprep.subr.bf16.mxu0 %v6423
    %7656 = vmatpush1.bf16.msra.mxu0 %v6422
    %7657 = vmatprep.subr.bf16.mxu0 %v6427
    %7658 = vmatpush1.bf16.msra.mxu0 %v6426
    %7659 = vmatprep.subr.bf16.mxu0 %v6431
    %7660 = vmatpush1.bf16.msra.mxu0 %v6430
    %7661 = vmatprep.subr.bf16.mxu0 %v6435
    %7662 = vmatpush1.bf16.msra.mxu0 %v6434
    %7663 = vmatprep.subr.bf16.mxu0 %v6439
    %7664 = vmatpush1.bf16.msra.mxu0 %v6438
    %7665 = vmatprep.subr.bf16.mxu0 %v6443
    %7666 = vmatpush1.bf16.msra.mxu0 %v6442
    %7667 = vmatprep.subr.bf16.mxu0 %v6447
    %7668 = vmatpush1.bf16.msra.mxu0 %v6446
    %7669 = vmatprep.subr.bf16.mxu0 %v6451
    %7670 = vmatpush1.bf16.msra.mxu0 %v6450
    %7671 = vmatprep.subr.bf16.mxu0 %v6455
    %7672 = vmatpush1.bf16.msra.mxu0 %v6454
    %7673 = vmatprep.subr.bf16.mxu0 %v6459
    %7674 = vmatpush1.bf16.msra.mxu0 %v6458
    %7675 = vmatprep.subr.bf16.mxu0 %v6463
    %7676 = vmatpush1.bf16.msra.mxu0 %v6462
    %7677 = vmatprep.subr.bf16.mxu0 %v6467
    %7678 = vmatpush1.bf16.msra.mxu0 %v6466
    %7679 = vmatprep.subr.bf16.mxu0 %v6471
    %7680 = vmatpush1.bf16.msra.mxu0 %v6470
    %7681 = vmatprep.subr.bf16.mxu0 %v6475
    %7682 = vmatpush1.bf16.msra.mxu0 %v6474
    %7683 = vmatprep.subr.bf16.mxu0 %v6479
    %7684 = vmatpush1.bf16.msra.mxu0 %v6478
    %7685 = vmatprep.mubr.bf16.mxu0 %v4542
    %7686 = vmatmul.mubr.bf16.gmra.mrb[0].mxu0 %v4540
    %v7687 = vpop.f32.mrb[0].mxu0
    %v7688 = vadd.f32 %v7647, %v7687
    %v7689 = vpop.f32.mrb[0].mxu0
    %v7690 = vadd.f32 %v7649, %v7689
    %v7691 = vpop.f32.mrb[0].mxu0
    %v7692 = vpop.f32.mrb[0].mxu0
    %7693 = vdwg.mxu0
    %7694 = vmatprep.subr.bf16.mxu0 %v6483
    %7695 = vmatpush1.bf16.msra.mxu0 %v6482
    %7696 = vmatprep.subr.bf16.mxu0 %v6487
    %7697 = vmatpush1.bf16.msra.mxu0 %v6486
    %7698 = vmatprep.subr.bf16.mxu0 %v6491
    %7699 = vmatpush1.bf16.msra.mxu0 %v6490
    %7700 = vmatprep.subr.bf16.mxu0 %v6495
    %7701 = vmatpush1.bf16.msra.mxu0 %v6494
    %7702 = vmatprep.subr.bf16.mxu0 %v6499
    %7703 = vmatpush1.bf16.msra.mxu0 %v6498
    %7704 = vmatprep.subr.bf16.mxu0 %v6503
    %7705 = vmatpush1.bf16.msra.mxu0 %v6502
    %7706 = vmatprep.subr.bf16.mxu0 %v6507
    %7707 = vmatpush1.bf16.msra.mxu0 %v6506
    %7708 = vmatprep.subr.bf16.mxu0 %v6511
    %7709 = vmatpush1.bf16.msra.mxu0 %v6510
    %7710 = vmatprep.subr.bf16.mxu0 %v6515
    %7711 = vmatpush1.bf16.msra.mxu0 %v6514
    %7712 = vmatprep.subr.bf16.mxu0 %v6519
    %7713 = vmatpush1.bf16.msra.mxu0 %v6518
    %7714 = vmatprep.subr.bf16.mxu0 %v6523
    %7715 = vmatpush1.bf16.msra.mxu0 %v6522
    %7716 = vmatprep.subr.bf16.mxu0 %v6527
    %7717 = vmatpush1.bf16.msra.mxu0 %v6526
    %7718 = vmatprep.subr.bf16.mxu0 %v6531
    %7719 = vmatpush1.bf16.msra.mxu0 %v6530
    %7720 = vmatprep.subr.bf16.mxu0 %v6535
    %7721 = vmatpush1.bf16.msra.mxu0 %v6534
    %7722 = vmatprep.subr.bf16.mxu0 %v6539
    %7723 = vmatpush1.bf16.msra.mxu0 %v6538
    %7724 = vmatprep.subr.bf16.mxu0 %v6543
    %7725 = vmatpush1.bf16.msra.mxu0 %v6542
    %7726 = vmatprep.mubr.bf16.mxu0 %v4539
    %7727 = vmatmul.mubr.bf16.gmra.mrb[0].mxu0 %v4525
    %v7728 = vpop.f32.mrb[0].mxu0
    %v7729 = vadd.f32 %v7688, %v7728
    %v7730 = vpop.f32.mrb[0].mxu0
    %v7731 = vadd.f32 %v7690, %v7730
    %v7732 = vpop.f32.mrb[0].mxu0
    %v7733 = vpop.f32.mrb[0].mxu0
    %7734 = vdwg.mxu0
    %7735 = vmatprep.subr.bf16.mxu0 %v6547
    %7736 = vmatpush1.bf16.msra.mxu0 %v6546
    %7737 = vmatprep.subr.bf16.mxu0 %v6551
    %7738 = vmatpush1.bf16.msra.mxu0 %v6550
    %7739 = vmatprep.subr.bf16.mxu0 %v6555
    %7740 = vmatpush1.bf16.msra.mxu0 %v6554
    %7741 = vmatprep.subr.bf16.mxu0 %v6559
    %7742 = vmatpush1.bf16.msra.mxu0 %v6558
    %7743 = vmatprep.subr.bf16.mxu0 %v6563
    %7744 = vmatpush1.bf16.msra.mxu0 %v6562
    %7745 = vmatprep.subr.bf16.mxu0 %v6567
    %7746 = vmatpush1.bf16.msra.mxu0 %v6566
    %7747 = vmatprep.subr.bf16.mxu0 %v6571
    %7748 = vmatpush1.bf16.msra.mxu0 %v6570
    %7749 = vmatprep.subr.bf16.mxu0 %v6575
    %7750 = vmatpush1.bf16.msra.mxu0 %v6574
    %7751 = vmatprep.subr.bf16.mxu0 %v6579
    %7752 = vmatpush1.bf16.msra.mxu0 %v6578
    %7753 = vmatprep.subr.bf16.mxu0 %v6583
    %7754 = vmatpush1.bf16.msra.mxu0 %v6582
    %7755 = vmatprep.subr.bf16.mxu0 %v6587
    %7756 = vmatpush1.bf16.msra.mxu0 %v6586
    %7757 = vmatprep.subr.bf16.mxu0 %v6591
    %7758 = vmatpush1.bf16.msra.mxu0 %v6590
    %7759 = vmatprep.subr.bf16.mxu0 %v6595
    %7760 = vmatpush1.bf16.msra.mxu0 %v6594
    %7761 = vmatprep.subr.bf16.mxu0 %v6599
    %7762 = vmatpush1.bf16.msra.mxu0 %v6598
    %7763 = vmatprep.subr.bf16.mxu0 %v6603
    %7764 = vmatpush1.bf16.msra.mxu0 %v6602
    %7765 = vmatprep.subr.bf16.mxu0 %v6607
    %7766 = vmatpush1.bf16.msra.mxu0 %v6606
    %7767 = vmatprep.mubr.bf16.mxu0 %v4543
    %7768 = vmatmul.mubr.bf16.gmra.mrb[0].mxu0 %v4541
    %v7769 = vpop.f32.mrb[0].mxu0
    %v7770 = vadd.f32 %v7729, %v7769
    %v7771 = vpop.f32.mrb[0].mxu0
    %v7772 = vadd.f32 %v7731, %v7771
    %v7773 = vpop.f32.mrb[0].mxu0
    %v7774 = vpop.f32.mrb[0].mxu0
    %7775 = vdwg.mxu0
    %v7776 = vld [vmem:[#allocation8] sm:$0xf]
    %v7778 = vlaneseq
    %v7779 = vshrl.u32 %v7778, 7
    %v7780 = vsub.s32 0, %v7779
    %v7781 = vrot.slane %v7776, %v7780
    %v7782 = vlaneseq
    %v7783 = vshrl.u32 %v7782, 7
    %v7784 = vsub.s32 1, %v7783
    %v7785 = vrot.slane %v7776, %v7784
    %v7786 = vlaneseq
    %v7787 = vshrl.u32 %v7786, 7
    %v7788 = vsub.s32 2, %v7787
    %v7789 = vrot.slane %v7776, %v7788
    %v7790 = vlaneseq
    %v7791 = vshrl.u32 %v7790, 7
    %v7792 = vsub.s32 3, %v7791
    %v7793 = vrot.slane %v7776, %v7792
    %v7798 = vadd.f32 %v7442, %v7781
    %v7799 = vadd.f32 %v7444, %v7785
    %v7800 = vadd.f32 %v7770, %v7789
    %v7801 = vadd.f32 %v7772, %v7793
    %v7802 = vmax.f32 %v7798, 0.0
    %v7803 = vmax.f32 %v7799, 0.0
    %v7804 = vmax.f32 %v7800, 0.0
    %v7805 = vmax.f32 %v7801, 0.0
    %v7806 = vld [vmem:[%s4] sm:$0xff]
    %v7807 = vld [vmem:[%s4 + $0x8] sm:$0xff]
    %v7808 = vld [vmem:[%s4 + $0x10] sm:$0xff]
    %v7809 = vld [vmem:[%s4 + $0x18] sm:$0xff]
    %v7810 = vld [vmem:[%s4 + $0x20] sm:$0xff]
    %v7811 = vld [vmem:[%s4 + $0x28] sm:$0xff]
    %v7812 = vld [vmem:[%s4 + $0x30] sm:$0xff]
    %v7813 = vld [vmem:[%s4 + $0x38] sm:$0xff]
    %v7814 = vld [vmem:[%s4 + $0x40] sm:$0xff]
    %v7815 = vld [vmem:[%s4 + $0x48] sm:$0xff]
    %v7816 = vld [vmem:[%s4 + $0x50] sm:$0xff]
    %v7817 = vld [vmem:[%s4 + $0x58] sm:$0xff]
    %v7818 = vld [vmem:[%s4 + $0x60] sm:$0xff]
    %v7819 = vld [vmem:[%s4 + $0x68] sm:$0xff]
    %v7820 = vld [vmem:[%s4 + $0x70] sm:$0xff]
    %v7821 = vld [vmem:[%s4 + $0x78] sm:$0xff]
    %v7822 = vld [vmem:[%s4 + $0x80] sm:$0xff]
    %v7823 = vld [vmem:[%s4 + $0x88] sm:$0xff]
    %v7824 = vld [vmem:[%s4 + $0x90] sm:$0xff]
    %v7825 = vld [vmem:[%s4 + $0x98] sm:$0xff]
    %v7826 = vld [vmem:[%s4 + $0xa0] sm:$0xff]
    %v7827 = vld [vmem:[%s4 + $0xa8] sm:$0xff]
    %v7828 = vld [vmem:[%s4 + $0xb0] sm:$0xff]
    %v7829 = vld [vmem:[%s4 + $0xb8] sm:$0xff]
    %v7830 = vld [vmem:[%s4 + $0xc0] sm:$0xff]
    %v7831 = vld [vmem:[%s4 + $0xc8] sm:$0xff]
    %v7832 = vld [vmem:[%s4 + $0xd0] sm:$0xff]
    %v7833 = vld [vmem:[%s4 + $0xd8] sm:$0xff]
    %v7834 = vld [vmem:[%s4 + $0xe0] sm:$0xff]
    %v7835 = vld [vmem:[%s4 + $0xe8] sm:$0xff]
    %v7836 = vld [vmem:[%s4 + $0xf0] sm:$0xff]
    %v7837 = vld [vmem:[%s4 + $0xf8] sm:$0xff]
    %v7838 = vld [vmem:[%s4 + $0x100] sm:$0xff]
    %v7839 = vld [vmem:[%s4 + $0x108] sm:$0xff]
    %v7840 = vld [vmem:[%s4 + $0x110] sm:$0xff]
    %v7841 = vld [vmem:[%s4 + $0x118] sm:$0xff]
    %v7842 = vld [vmem:[%s4 + $0x120] sm:$0xff]
    %v7843 = vld [vmem:[%s4 + $0x128] sm:$0xff]
    %v7844 = vld [vmem:[%s4 + $0x130] sm:$0xff]
    %v7845 = vld [vmem:[%s4 + $0x138] sm:$0xff]
    %v7846 = vld [vmem:[%s4 + $0x140] sm:$0xff]
    %v7847 = vld [vmem:[%s4 + $0x148] sm:$0xff]
    %v7848 = vld [vmem:[%s4 + $0x150] sm:$0xff]
    %v7849 = vld [vmem:[%s4 + $0x158] sm:$0xff]
    %v7850 = vld [vmem:[%s4 + $0x160] sm:$0xff]
    %v7851 = vld [vmem:[%s4 + $0x168] sm:$0xff]
    %v7852 = vld [vmem:[%s4 + $0x170] sm:$0xff]
    %v7853 = vld [vmem:[%s4 + $0x178] sm:$0xff]
    %v7854 = vld [vmem:[%s4 + $0x180] sm:$0xff]
    %v7855 = vld [vmem:[%s4 + $0x188] sm:$0xff]
    %v7856 = vld [vmem:[%s4 + $0x190] sm:$0xff]
    %v7857 = vld [vmem:[%s4 + $0x198] sm:$0xff]
    %v7858 = vld [vmem:[%s4 + $0x1a0] sm:$0xff]
    %v7859 = vld [vmem:[%s4 + $0x1a8] sm:$0xff]
    %v7860 = vld [vmem:[%s4 + $0x1b0] sm:$0xff]
    %v7861 = vld [vmem:[%s4 + $0x1b8] sm:$0xff]
    %v7862 = vld [vmem:[%s4 + $0x1c0] sm:$0xff]
    %v7863 = vld [vmem:[%s4 + $0x1c8] sm:$0xff]
    %v7864 = vld [vmem:[%s4 + $0x1d0] sm:$0xff]
    %v7865 = vld [vmem:[%s4 + $0x1d8] sm:$0xff]
    %v7866 = vld [vmem:[%s4 + $0x1e0] sm:$0xff]
    %v7867 = vld [vmem:[%s4 + $0x1e8] sm:$0xff]
    %v7868 = vld [vmem:[%s4 + $0x1f0] sm:$0xff]
    %v7869 = vld [vmem:[%s4 + $0x1f8] sm:$0xff]
    %v7870 = vld [vmem:[#allocation10] sm:$0x1]
    %v7872 = vlaneseq
    %v7873 = vshrl.u32 %v7872, 7
    %v7874 = vsub.s32 0, %v7873
    %v7875 = vrot.slane %v7870, %v7874
    %7877 = vmatprep.subr.mxu0 0.0
    %7878 = vmatpush1.msra.mxu0 %v7806
    %7879 = vmatprep.subr.mxu0 0.0
    %7880 = vmatpush1.msra.mxu0 %v7807
    %7881 = vmatprep.subr.mxu0 0.0
    %7882 = vmatpush1.msra.mxu0 %v7808
    %7883 = vmatprep.subr.mxu0 0.0
    %7884 = vmatpush1.msra.mxu0 %v7809
    %7885 = vmatprep.subr.mxu0 0.0
    %7886 = vmatpush1.msra.mxu0 %v7810
    %7887 = vmatprep.subr.mxu0 0.0
    %7888 = vmatpush1.msra.mxu0 %v7811
    %7889 = vmatprep.subr.mxu0 0.0
    %7890 = vmatpush1.msra.mxu0 %v7812
    %7891 = vmatprep.subr.mxu0 0.0
    %7892 = vmatpush1.msra.mxu0 %v7813
    %7893 = vmatprep.subr.mxu0 0.0
    %7894 = vmatpush1.msra.mxu0 %v7814
    %7895 = vmatprep.subr.mxu0 0.0
    %7896 = vmatpush1.msra.mxu0 %v7815
    %7897 = vmatprep.subr.mxu0 0.0
    %7898 = vmatpush1.msra.mxu0 %v7816
    %7899 = vmatprep.subr.mxu0 0.0
    %7900 = vmatpush1.msra.mxu0 %v7817
    %7901 = vmatprep.subr.mxu0 0.0
    %7902 = vmatpush1.msra.mxu0 %v7818
    %7903 = vmatprep.subr.mxu0 0.0
    %7904 = vmatpush1.msra.mxu0 %v7819
    %7905 = vmatprep.subr.mxu0 0.0
    %7906 = vmatpush1.msra.mxu0 %v7820
    %7907 = vmatprep.subr.mxu0 0.0
    %7908 = vmatpush1.msra.mxu0 %v7821
    %7909 = vmatprep.subr.mxu0 0.0
    %7910 = vmatpush1.msra.mxu0 %v7822
    %7911 = vmatprep.subr.mxu0 0.0
    %7912 = vmatpush1.msra.mxu0 %v7823
    %7913 = vmatprep.subr.mxu0 0.0
    %7914 = vmatpush1.msra.mxu0 %v7824
    %7915 = vmatprep.subr.mxu0 0.0
    %7916 = vmatpush1.msra.mxu0 %v7825
    %7917 = vmatprep.subr.mxu0 0.0
    %7918 = vmatpush1.msra.mxu0 %v7826
    %7919 = vmatprep.subr.mxu0 0.0
    %7920 = vmatpush1.msra.mxu0 %v7827
    %7921 = vmatprep.subr.mxu0 0.0
    %7922 = vmatpush1.msra.mxu0 %v7828
    %7923 = vmatprep.subr.mxu0 0.0
    %7924 = vmatpush1.msra.mxu0 %v7829
    %7925 = vmatprep.subr.mxu0 0.0
    %7926 = vmatpush1.msra.mxu0 %v7830
    %7927 = vmatprep.subr.mxu0 0.0
    %7928 = vmatpush1.msra.mxu0 %v7831
    %7929 = vmatprep.subr.mxu0 0.0
    %7930 = vmatpush1.msra.mxu0 %v7832
    %7931 = vmatprep.subr.mxu0 0.0
    %7932 = vmatpush1.msra.mxu0 %v7833
    %7933 = vmatprep.subr.mxu0 0.0
    %7934 = vmatpush1.msra.mxu0 %v7834
    %7935 = vmatprep.subr.mxu0 0.0
    %7936 = vmatpush1.msra.mxu0 %v7835
    %7937 = vmatprep.subr.mxu0 0.0
    %7938 = vmatpush1.msra.mxu0 %v7836
    %7939 = vmatprep.subr.mxu0 0.0
    %7940 = vmatpush1.msra.mxu0 %v7837
    %7941 = vmatprep.mubr.f32.mxu0 %v7803
    %7942 = vmatmul.mubr.f32.gmra.mrb[0].mxu0 %v7802
    %v7943 = vpop.f32.mrb[0].mxu0
    %v7944 = vadd.f32 %v7875, %v7943
    %v7945 = vpop.f32.mrb[0].mxu0
    %7946 = vdwg.mxu0
    %7947 = vmatprep.subr.mxu0 0.0
    %7948 = vmatpush1.msra.mxu0 %v7838
    %7949 = vmatprep.subr.mxu0 0.0
    %7950 = vmatpush1.msra.mxu0 %v7839
    %7951 = vmatprep.subr.mxu0 0.0
    %7952 = vmatpush1.msra.mxu0 %v7840
    %7953 = vmatprep.subr.mxu0 0.0
    %7954 = vmatpush1.msra.mxu0 %v7841
    %7955 = vmatprep.subr.mxu0 0.0
    %7956 = vmatpush1.msra.mxu0 %v7842
    %7957 = vmatprep.subr.mxu0 0.0
    %7958 = vmatpush1.msra.mxu0 %v7843
    %7959 = vmatprep.subr.mxu0 0.0
    %7960 = vmatpush1.msra.mxu0 %v7844
    %7961 = vmatprep.subr.mxu0 0.0
    %7962 = vmatpush1.msra.mxu0 %v7845
    %7963 = vmatprep.subr.mxu0 0.0
    %7964 = vmatpush1.msra.mxu0 %v7846
    %7965 = vmatprep.subr.mxu0 0.0
    %7966 = vmatpush1.msra.mxu0 %v7847
    %7967 = vmatprep.subr.mxu0 0.0
    %7968 = vmatpush1.msra.mxu0 %v7848
    %7969 = vmatprep.subr.mxu0 0.0
    %7970 = vmatpush1.msra.mxu0 %v7849
    %7971 = vmatprep.subr.mxu0 0.0
    %7972 = vmatpush1.msra.mxu0 %v7850
    %7973 = vmatprep.subr.mxu0 0.0
    %7974 = vmatpush1.msra.mxu0 %v7851
    %7975 = vmatprep.subr.mxu0 0.0
    %7976 = vmatpush1.msra.mxu0 %v7852
    %7977 = vmatprep.subr.mxu0 0.0
    %7978 = vmatpush1.msra.mxu0 %v7853
    %7979 = vmatprep.subr.mxu0 0.0
    %7980 = vmatpush1.msra.mxu0 %v7854
    %7981 = vmatprep.subr.mxu0 0.0
    %7982 = vmatpush1.msra.mxu0 %v7855
    %7983 = vmatprep.subr.mxu0 0.0
    %7984 = vmatpush1.msra.mxu0 %v7856
    %7985 = vmatprep.subr.mxu0 0.0
    %7986 = vmatpush1.msra.mxu0 %v7857
    %7987 = vmatprep.subr.mxu0 0.0
    %7988 = vmatpush1.msra.mxu0 %v7858
    %7989 = vmatprep.subr.mxu0 0.0
    %7990 = vmatpush1.msra.mxu0 %v7859
    %7991 = vmatprep.subr.mxu0 0.0
    %7992 = vmatpush1.msra.mxu0 %v7860
    %7993 = vmatprep.subr.mxu0 0.0
    %7994 = vmatpush1.msra.mxu0 %v7861
    %7995 = vmatprep.subr.mxu0 0.0
    %7996 = vmatpush1.msra.mxu0 %v7862
    %7997 = vmatprep.subr.mxu0 0.0
    %7998 = vmatpush1.msra.mxu0 %v7863
    %7999 = vmatprep.subr.mxu0 0.0
    %8000 = vmatpush1.msra.mxu0 %v7864
    %8001 = vmatprep.subr.mxu0 0.0
    %8002 = vmatpush1.msra.mxu0 %v7865
    %8003 = vmatprep.subr.mxu0 0.0
    %8004 = vmatpush1.msra.mxu0 %v7866
    %8005 = vmatprep.subr.mxu0 0.0
    %8006 = vmatpush1.msra.mxu0 %v7867
    %8007 = vmatprep.subr.mxu0 0.0
    %8008 = vmatpush1.msra.mxu0 %v7868
    %8009 = vmatprep.subr.mxu0 0.0
    %8010 = vmatpush1.msra.mxu0 %v7869
    %8011 = vmatprep.mubr.f32.mxu0 %v7805
    %8012 = vmatmul.mubr.f32.gmra.mrb[0].mxu0 %v7804
    %v8013 = vpop.f32.mrb[0].mxu0
    %v8014 = vadd.f32 %v7944, %v8013
    %v8015 = vpop.f32.mrb[0].mxu0
    %8016 = vdwg.mxu0
    %vm8017 = vcmask 25600
    %8018 = vst.msk [vmem:[#allocation11] sm:$0x3] %vm8017, %v8014
    // Predicated region
    $region46: #{tpu_custom_call.1} parent=1 // pred_check
      _
    $region47: #{tpu_custom_call.1} parent=1 // pred_check_branch
      %8020 = sbr.rel (0) target = $region49
    $region48: #{tpu_custom_call.1} parent=1 // pred_region
      %s8022 = ssub.s32 32, 32
      %8023 = vsyncadd [#allocation4], %s8022
      %s8025 = sshll.u32 [#allocation11], 4
      %s8026 = int_to_ptr.vmem [resolvable:$true] %s8025
      %8028 = dma.vmem_to_hbm [thread:$0]  %s8026, 32, %s6, [#allocation4]
    $region49: #{tpu_custom_call.1} parent=1 // pred_fallthru
      _
    // Predicated region
    $region50: #{tpu_custom_call.1} parent=1 // pred_check
      _
    $region51: #{tpu_custom_call.1} parent=1 // pred_check_branch
      %8030 = sbr.rel (0) target = $region53
    $region52: #{tpu_custom_call.1} parent=1 // pred_region
      %8031 = dma.done [#allocation4], 32
    $region53: #{tpu_custom_call.1} parent=1 // pred_fallthru
      _
    %8032 = vsyncpa [#allocation3], 1
    %8033 = vsyncpa [#allocation6], 1
    %8034 = vsyncpa [#allocation9], 1
    %8035 = vsyncpa [#allocation4], 1

</llo_original>
